<compile_context>
chip_gen: v7x
topology: tpu7x:2x2x1
jax: 0.10.0
libtpu: 0.0.40
codegen_flags: <defaults>
</compile_context>

<pallas_src>
import jax
import jax.numpy as jnp
from jax.experimental import pallas as pl
from jax.experimental.pallas import tpu as pltpu


def _round_up(x, m):
    return ((x + m - 1) // m) * m


def _silu(x):
    return x * jax.nn.sigmoid(x)


def _resblock_body(xpad_ref, xres_ref, temb_ref, w1_ref, b1_ref, w2_ref, b2_ref,
                   wt_ref, bt_ref, wr_ref, br_ref, o_ref, *, H, W, Wp):
    """Fused ResBlock body for one batch element.

    xpad_ref : (1, H+4, Wp, Cin_p)  input, spatially zero-padded by 2 (top/left)
               and enough on the right so Wp % 8 == 0 and Wp >= W+3.
    xres_ref : (1, H, W, Cin_p)     unpadded input for the residual branch.
    o_ref    : (1, H, W, Cp)        output block.
    """
    f32, bf16 = jnp.float32, jnp.bfloat16
    Cin_p = xpad_ref.shape[-1]
    Cp = w1_ref.shape[-1]
    R1 = (H + 4) * Wp   # flattened rows of the padded input
    R2 = (H + 2) * Wp   # flattened rows of the padded h buffer
    R3 = H * Wp         # flattened rows of the conv2 output domain

    # ---------------- conv1: 3x3, 9 MXU matmuls on shifted slabs ----------------
    # Flatten (rows, W) into the sublane axis (free: Wp % 8 == 0).  Column shifts
    # (dx) become rolls of the flattened axis; the roll wrap-around only pollutes
    # columns >= W+2, which are masked / dropped below.
    xflat = xpad_ref[0].reshape(R1, Cin_p)                       # f32
    xs = [xflat,
          pltpu.roll(xflat, R1 - 1, 0),                          # shift left by 1
          pltpu.roll(xflat, R1 - 2, 0)]                          # shift left by 2

    w1 = w1_ref[...]                                             # (9, Cin_p, Cp) bf16
    acc1 = jnp.zeros((R2, Cp), f32)
    for dy in range(3):
        for dx in range(3):
            # row (dy) shift = sublane-aligned static slice (dy*Wp is a multiple of 8)
            slab = xs[dx][dy * Wp: dy * Wp + R2, :].astype(bf16)
            acc1 = acc1 + jnp.dot(slab, w1[3 * dy + dx],
                                  preferred_element_type=f32)

    # time-embedding projection: computed once per batch element (tiny, f32).
    tproj = jnp.dot(temb_ref[0], wt_ref[...], preferred_element_type=f32) + bt_ref[...]

    h = _silu(acc1 + b1_ref[...]) + tproj                        # (R2, Cp) f32

    # Zero the halo ring so it acts as conv2's zero padding (h buffer frame:
    # rows 1..H, cols 1..W hold the real activation).
    r_ids = jax.lax.broadcasted_iota(jnp.int32, (H + 2, Wp, Cp), 0).reshape(R2, Cp)
    c_ids = jax.lax.broadcasted_iota(jnp.int32, (H + 2, Wp, Cp), 1).reshape(R2, Cp)
    interior = (r_ids >= 1) & (r_ids <= H) & (c_ids >= 1) & (c_ids <= W)
    hflat = jnp.where(interior, h, 0.0)                          # (R2, Cp) f32

    # ---------------- conv2: same scheme on the in-VMEM h buffer ----------------
    hs = [hflat,
          pltpu.roll(hflat, R2 - 1, 0),
          pltpu.roll(hflat, R2 - 2, 0)]
    w2 = w2_ref[...]                                             # (9, Cp, Cp) bf16
    acc2 = jnp.zeros((R3, Cp), f32)
    for dy in range(3):
        for dx in range(3):
            slab = hs[dx][dy * Wp: dy * Wp + R3, :].astype(bf16)
            acc2 = acc2 + jnp.dot(slab, w2[3 * dy + dx],
                                  preferred_element_type=f32)

    h2 = _silu(acc2 + b2_ref[...]).reshape(H, Wp, Cp)[:, :W, :]  # drop W halo cols

    # ---------------- residual branch ----------------
    if wr_ref is None:
        # identity residual: plain VPU add, no eye() matmul.
        res = xres_ref[0].astype(f32)
    else:
        xr = xres_ref[0].reshape(H * W, Cin_p).astype(bf16)
        res = (jnp.dot(xr, wr_ref[...], preferred_element_type=f32)
               + br_ref[...]).reshape(H, W, Cp)

    o_ref[0] = (h2 + res).astype(o_ref.dtype)


def resblock_forward(x_nhwc, t_emb, params):
    """ResBlock forward. x_nhwc: (N, H, W, Cin) f32, t_emb: (N, T) f32."""
    N, H, W, Cin = x_nhwc.shape
    T = t_emb.shape[-1]
    Cout = params["b1"].shape[-1]
    identity = "wr" not in params            # residual_conv = nn.Identity()

    LANE, SUB = 128, 8
    Cin_p = _round_up(Cin, LANE)             # lane-dense input channels
    Cp = _round_up(Cout, LANE)               # lane-dense output channels
    Wp = _round_up(W + 3, SUB)               # padded width, sublane aligned
    f32, bf16 = jnp.float32, jnp.bfloat16

    # ---- layout plumbing (glue): channel padding to 128-lane multiples and the
    #      one-time spatial pre-pad of the input (h is never padded in HBM).
    xpad = jnp.pad(x_nhwc, ((0, 0), (2, 2), (2, Wp - W - 2), (0, Cin_p - Cin)))
    x_res = jnp.pad(x_nhwc, ((0, 0), (0, 0), (0, 0), (0, Cin_p - Cin)))
    temb3 = t_emb.reshape(N, 1, T)

    w1p = jnp.pad(params["w1"], ((0, 0), (0, 0), (0, Cin_p - Cin), (0, Cp - Cout))
                  ).reshape(9, Cin_p, Cp).astype(bf16)
    w2p = jnp.pad(params["w2"], ((0, 0), (0, 0), (0, Cp - Cout), (0, Cp - Cout))
                  ).reshape(9, Cp, Cp).astype(bf16)
    b1p = jnp.pad(params["b1"], ((0, 0), (0, Cp - Cout))).astype(f32)
    b2p = jnp.pad(params["b2"], ((0, 0), (0, Cp - Cout))).astype(f32)
    wtp = jnp.pad(params["wt"], ((0, 0), (0, Cp - Cout))).astype(f32)
    btp = jnp.pad(params["bt"], ((0, 0), (0, Cp - Cout))).astype(f32)

    inputs = [xpad, x_res, temb3, w1p, b1p, w2p, b2p, wtp, btp]
    in_specs = [
        pl.BlockSpec((1, H + 4, Wp, Cin_p), lambda n: (n, 0, 0, 0)),
        pl.BlockSpec((1, H, W, Cin_p), lambda n: (n, 0, 0, 0)),
        pl.BlockSpec((1, 1, T), lambda n: (n, 0, 0)),
        pl.BlockSpec((9, Cin_p, Cp), lambda n: (0, 0, 0)),
        pl.BlockSpec((1, Cp), lambda n: (0, 0)),
        pl.BlockSpec((9, Cp, Cp), lambda n: (0, 0, 0)),
        pl.BlockSpec((1, Cp), lambda n: (0, 0)),
        pl.BlockSpec((T, Cp), lambda n: (0, 0)),
        pl.BlockSpec((1, Cp), lambda n: (0, 0)),
    ]
    if not identity:
        wrp = jnp.pad(params["wr"], ((0, Cin_p - Cin), (0, Cp - Cout))).astype(bf16)
        brp = jnp.pad(params["br"], ((0, 0), (0, Cp - Cout))).astype(f32)
        inputs += [wrp, brp]
        in_specs += [pl.BlockSpec((Cin_p, Cp), lambda n: (0, 0)),
                     pl.BlockSpec((1, Cp), lambda n: (0, 0))]

    def kernel(*refs):
        if identity:
            (xpad_ref, xres_ref, temb_ref, w1_ref, b1_ref, w2_ref, b2_ref,
             wt_ref, bt_ref, o_ref) = refs
            wr_ref = br_ref = None
        else:
            (xpad_ref, xres_ref, temb_ref, w1_ref, b1_ref, w2_ref, b2_ref,
             wt_ref, bt_ref, wr_ref, br_ref, o_ref) = refs
        _resblock_body(xpad_ref, xres_ref, temb_ref, w1_ref, b1_ref, w2_ref,
                       b2_ref, wt_ref, bt_ref, wr_ref, br_ref, o_ref,
                       H=H, W=W, Wp=Wp)

    out = pl.pallas_call(
        kernel,
        grid=(N,),
        in_specs=in_specs,
        out_specs=pl.BlockSpec((1, H, W, Cp), lambda n: (n, 0, 0, 0)),
        out_shape=jax.ShapeDtypeStruct((N, H, W, Cp), f32),
        compiler_params=pltpu.CompilerParams(
            dimension_semantics=("parallel",),
            vmem_limit_bytes=32 * 1024 * 1024),
    )(*inputs)
    return out[..., :Cout]          # drop channel padding (glue)


def init_params(key, in_channels, out_channels, time_emb_dim):
    ks = jax.random.split(key, 8)
    s = 0.1
    p = dict(
        w1=jax.random.normal(ks[0], (3, 3, in_channels, out_channels), jnp.float32) * s,
        b1=jax.random.normal(ks[1], (1, out_channels), jnp.float32) * s,
        w2=jax.random.normal(ks[2], (3, 3, out_channels, out_channels), jnp.float32) * s,
        b2=jax.random.normal(ks[3], (1, out_channels), jnp.float32) * s,
        wt=jax.random.normal(ks[4], (time_emb_dim, out_channels), jnp.float32) * s,
        bt=jax.random.normal(ks[5], (1, out_channels), jnp.float32) * s,
    )
    if in_channels != out_channels:
        p["wr"] = jax.random.normal(ks[6], (in_channels, out_channels), jnp.float32) * s
        p["br"] = jax.random.normal(ks[7], (1, out_channels), jnp.float32) * s
    # else: residual_conv = nn.Identity() -> no residual weights at all.
    return p


def resblock_ref(x_nhwc, t_emb, p):
    """Pure-JAX f32 reference with identical semantics (for verification)."""
    def conv3x3(x, w, b):
        y = jax.lax.conv_general_dilated(
            x, w, window_strides=(1, 1), padding="SAME",
            dimension_numbers=("NHWC", "HWIO", "NHWC"))
        return y + b.reshape(1, 1, 1, -1)

    h = jax.nn.silu(conv3x3(x_nhwc, p["w1"], p["b1"]))
    tproj = t_emb @ p["wt"] + p["bt"]
    h = h + tproj[:, None, None, :]
    h = jax.nn.silu(conv3x3(h, p["w2"], p["b2"]))
    if "wr" in p:
        res = jnp.einsum("nhwc,cd->nhwd", x_nhwc, p["wr"]) + p["br"].reshape(1, 1, 1, -1)
    else:
        res = x_nhwc
    return h + res


if __name__ == "__main__":
    key = jax.random.PRNGKey(0)
    kx, kt, kp, kx2, kp2 = jax.random.split(key, 5)

    N, Cin, Cout, H, W, T = 2, 4, 8, 16, 16, 32

    # PyTorch-convention NCHW input, transposed to NHWC for the kernel (glue).
    x_nchw = jax.random.normal(kx, (N, Cin, H, W), jnp.float32)
    x_nhwc = jnp.transpose(x_nchw, (0, 2, 3, 1))
    t_emb = jax.random.normal(kt, (N, T), jnp.float32)

    fwd = jax.jit(resblock_forward)

    # Case 1: in_channels != out_channels  (1x1 residual conv path).
    params = init_params(kp, Cin, Cout, T)
    out = jax.block_until_ready(fwd(x_nhwc, t_emb, params))
    ref = resblock_ref(x_nhwc, t_emb, params)
    assert out.shape == (N, H, W, Cout)
    # bf16 MXU operands with f32 accumulation -> loosened tolerance vs f32 reference.
    assert jnp.allclose(out, ref, rtol=5e-2, atol=5e-2), "mismatch (conv residual)"

    # Case 2: in_channels == out_channels  (identity residual, no eye() matmul).
    x2_nhwc = jnp.transpose(
        jax.random.normal(kx2, (N, Cout, H, W), jnp.float32), (0, 2, 3, 1))
    params2 = init_params(kp2, Cout, Cout, T)
    out2 = jax.block_until_ready(fwd(x2_nhwc, t_emb, params2))
    ref2 = resblock_ref(x2_nhwc, t_emb, params2)
    assert jnp.allclose(out2, ref2, rtol=5e-2, atol=5e-2), "mismatch (identity residual)"

    print("KERNEL_OK")
</pallas_src>

<mosaic_0001>
module attributes {stable_mosaic.version = 11 : i64} {
  func.func @kernel(%arg0: i32, %arg1: memref<1x20x24x128xf32, #tpu.memory_space<vmem>>, %arg2: memref<1x16x16x128xf32, #tpu.memory_space<vmem>>, %arg3: memref<1x1x32xf32, #tpu.memory_space<vmem>>, %arg4: memref<9x128x128xbf16, #tpu.memory_space<vmem>>, %arg5: memref<1x128xf32, #tpu.memory_space<vmem>>, %arg6: memref<9x128x128xbf16, #tpu.memory_space<vmem>>, %arg7: memref<1x128xf32, #tpu.memory_space<vmem>>, %arg8: memref<32x128xf32, #tpu.memory_space<vmem>>, %arg9: memref<1x128xf32, #tpu.memory_space<vmem>>, %arg10: memref<128x128xbf16, #tpu.memory_space<vmem>>, %arg11: memref<1x128xf32, #tpu.memory_space<vmem>>, %arg12: memref<1x16x16x128xf32, #tpu.memory_space<vmem>>) attributes {dimension_semantics = [#tpu.dimension_semantics<parallel>], iteration_bounds = array<i64: 2>, scalar_prefetch = 0 : i64, scratch_operands = 0 : i64, tpu.core_type = #tpu.core_type<tc>, window_params = [{transform_indices = @transform_0, window_bounds = array<i64: 1, 20, 24, 128>}, {transform_indices = @transform_1, window_bounds = array<i64: 1, 16, 16, 128>}, {transform_indices = @transform_2, window_bounds = array<i64: 1, 1, 32>}, {pipeline_mode = #tpu.pipeline_mode<synchronous>, transform_indices = @transform_3, window_bounds = array<i64: 9, 128, 128>}, {pipeline_mode = #tpu.pipeline_mode<synchronous>, transform_indices = @transform_4, window_bounds = array<i64: 1, 128>}, {pipeline_mode = #tpu.pipeline_mode<synchronous>, transform_indices = @transform_5, window_bounds = array<i64: 9, 128, 128>}, {pipeline_mode = #tpu.pipeline_mode<synchronous>, transform_indices = @transform_6, window_bounds = array<i64: 1, 128>}, {pipeline_mode = #tpu.pipeline_mode<synchronous>, transform_indices = @transform_7, window_bounds = array<i64: 32, 128>}, {pipeline_mode = #tpu.pipeline_mode<synchronous>, transform_indices = @transform_8, window_bounds = array<i64: 1, 128>}, {pipeline_mode = #tpu.pipeline_mode<synchronous>, transform_indices = @transform_9, window_bounds = array<i64: 128, 128>}, {pipeline_mode = #tpu.pipeline_mode<synchronous>, transform_indices = @transform_10, window_bounds = array<i64: 1, 128>}, {transform_indices = @transform_11, window_bounds = array<i64: 1, 16, 16, 128>}]} {
    %c0 = arith.constant 0 : index
    %c0_0 = arith.constant 0 : index
    %c0_1 = arith.constant 0 : index
    %c0_2 = arith.constant 0 : index
    %0 = vector.load %arg1[%c0, %c0_0, %c0_1, %c0_2] : memref<1x20x24x128xf32, #tpu.memory_space<vmem>>, vector<1x20x24x128xf32>
    %1 = vector.shape_cast %0 : vector<1x20x24x128xf32> to vector<20x24x128xf32>
    %2 = vector.shape_cast %1 : vector<20x24x128xf32> to vector<480x128xf32>
    %c479_i32 = arith.constant 479 : i32
    %3 = tpu.dynamic_rotate %2 by %c479_i32 dim 0 : vector<480x128xf32>, i32 -> vector<480x128xf32>
    %c478_i32 = arith.constant 478 : i32
    %4 = tpu.dynamic_rotate %2 by %c478_i32 dim 0 : vector<480x128xf32>, i32 -> vector<480x128xf32>
    %c0_3 = arith.constant 0 : index
    %c0_4 = arith.constant 0 : index
    %c0_5 = arith.constant 0 : index
    %5 = vector.load %arg4[%c0_3, %c0_4, %c0_5] : memref<9x128x128xbf16, #tpu.memory_space<vmem>>, vector<9x128x128xbf16>
    %cst = arith.constant 0.000000e+00 : f32
    %6 = vector.broadcast %cst : f32 to vector<432x128xf32>
    %7 = vector.extract_strided_slice %2 {offsets = [0, 0], sizes = [432, 128], strides = [1, 1]} : vector<480x128xf32> to vector<432x128xf32>
    %8 = arith.truncf %7 : vector<432x128xf32> to vector<432x128xbf16>
    %9 = vector.extract_strided_slice %5 {offsets = [0, 0, 0], sizes = [1, 128, 128], strides = [1, 1, 1]} : vector<9x128x128xbf16> to vector<1x128x128xbf16>
    %10 = vector.shape_cast %9 : vector<1x128x128xbf16> to vector<128x128xbf16>
    %cst_6 = arith.constant dense<0.000000e+00> : vector<432x128xf32>
    %11 = tpu.matmul %8, %10, %cst_6 {dimension_numbers = #tpu.dot_dimension_numbers<[1], [0], [0], [1], [0, 0, 1, 1], [], []>} : vector<432x128xbf16>, vector<128x128xbf16>, vector<432x128xf32> -> vector<432x128xf32>
    %12 = arith.addf %6, %11 : vector<432x128xf32>
    %13 = vector.extract_strided_slice %3 {offsets = [0, 0], sizes = [432, 128], strides = [1, 1]} : vector<480x128xf32> to vector<432x128xf32>
    %14 = arith.truncf %13 : vector<432x128xf32> to vector<432x128xbf16>
    %15 = vector.extract_strided_slice %5 {offsets = [1, 0, 0], sizes = [1, 128, 128], strides = [1, 1, 1]} : vector<9x128x128xbf16> to vector<1x128x128xbf16>
    %16 = vector.shape_cast %15 : vector<1x128x128xbf16> to vector<128x128xbf16>
    %cst_7 = arith.constant dense<0.000000e+00> : vector<432x128xf32>
    %17 = tpu.matmul %14, %16, %cst_7 {dimension_numbers = #tpu.dot_dimension_numbers<[1], [0], [0], [1], [0, 0, 1, 1], [], []>} : vector<432x128xbf16>, vector<128x128xbf16>, vector<432x128xf32> -> vector<432x128xf32>
    %18 = arith.addf %12, %17 : vector<432x128xf32>
    %19 = vector.extract_strided_slice %4 {offsets = [0, 0], sizes = [432, 128], strides = [1, 1]} : vector<480x128xf32> to vector<432x128xf32>
    %20 = arith.truncf %19 : vector<432x128xf32> to vector<432x128xbf16>
    %21 = vector.extract_strided_slice %5 {offsets = [2, 0, 0], sizes = [1, 128, 128], strides = [1, 1, 1]} : vector<9x128x128xbf16> to vector<1x128x128xbf16>
    %22 = vector.shape_cast %21 : vector<1x128x128xbf16> to vector<128x128xbf16>
    %cst_8 = arith.constant dense<0.000000e+00> : vector<432x128xf32>
    %23 = tpu.matmul %20, %22, %cst_8 {dimension_numbers = #tpu.dot_dimension_numbers<[1], [0], [0], [1], [0, 0, 1, 1], [], []>} : vector<432x128xbf16>, vector<128x128xbf16>, vector<432x128xf32> -> vector<432x128xf32>
    %24 = arith.addf %18, %23 : vector<432x128xf32>
    %25 = vector.extract_strided_slice %2 {offsets = [24, 0], sizes = [432, 128], strides = [1, 1]} : vector<480x128xf32> to vector<432x128xf32>
    %26 = arith.truncf %25 : vector<432x128xf32> to vector<432x128xbf16>
    %27 = vector.extract_strided_slice %5 {offsets = [3, 0, 0], sizes = [1, 128, 128], strides = [1, 1, 1]} : vector<9x128x128xbf16> to vector<1x128x128xbf16>
    %28 = vector.shape_cast %27 : vector<1x128x128xbf16> to vector<128x128xbf16>
    %cst_9 = arith.constant dense<0.000000e+00> : vector<432x128xf32>
    %29 = tpu.matmul %26, %28, %cst_9 {dimension_numbers = #tpu.dot_dimension_numbers<[1], [0], [0], [1], [0, 0, 1, 1], [], []>} : vector<432x128xbf16>, vector<128x128xbf16>, vector<432x128xf32> -> vector<432x128xf32>
    %30 = arith.addf %24, %29 : vector<432x128xf32>
    %31 = vector.extract_strided_slice %3 {offsets = [24, 0], sizes = [432, 128], strides = [1, 1]} : vector<480x128xf32> to vector<432x128xf32>
    %32 = arith.truncf %31 : vector<432x128xf32> to vector<432x128xbf16>
    %33 = vector.extract_strided_slice %5 {offsets = [4, 0, 0], sizes = [1, 128, 128], strides = [1, 1, 1]} : vector<9x128x128xbf16> to vector<1x128x128xbf16>
    %34 = vector.shape_cast %33 : vector<1x128x128xbf16> to vector<128x128xbf16>
    %cst_10 = arith.constant dense<0.000000e+00> : vector<432x128xf32>
    %35 = tpu.matmul %32, %34, %cst_10 {dimension_numbers = #tpu.dot_dimension_numbers<[1], [0], [0], [1], [0, 0, 1, 1], [], []>} : vector<432x128xbf16>, vector<128x128xbf16>, vector<432x128xf32> -> vector<432x128xf32>
    %36 = arith.addf %30, %35 : vector<432x128xf32>
    %37 = vector.extract_strided_slice %4 {offsets = [24, 0], sizes = [432, 128], strides = [1, 1]} : vector<480x128xf32> to vector<432x128xf32>
    %38 = arith.truncf %37 : vector<432x128xf32> to vector<432x128xbf16>
    %39 = vector.extract_strided_slice %5 {offsets = [5, 0, 0], sizes = [1, 128, 128], strides = [1, 1, 1]} : vector<9x128x128xbf16> to vector<1x128x128xbf16>
    %40 = vector.shape_cast %39 : vector<1x128x128xbf16> to vector<128x128xbf16>
    %cst_11 = arith.constant dense<0.000000e+00> : vector<432x128xf32>
    %41 = tpu.matmul %38, %40, %cst_11 {dimension_numbers = #tpu.dot_dimension_numbers<[1], [0], [0], [1], [0, 0, 1, 1], [], []>} : vector<432x128xbf16>, vector<128x128xbf16>, vector<432x128xf32> -> vector<432x128xf32>
    %42 = arith.addf %36, %41 : vector<432x128xf32>
    %43 = vector.extract_strided_slice %2 {offsets = [48, 0], sizes = [432, 128], strides = [1, 1]} : vector<480x128xf32> to vector<432x128xf32>
    %44 = arith.truncf %43 : vector<432x128xf32> to vector<432x128xbf16>
    %45 = vector.extract_strided_slice %5 {offsets = [6, 0, 0], sizes = [1, 128, 128], strides = [1, 1, 1]} : vector<9x128x128xbf16> to vector<1x128x128xbf16>
    %46 = vector.shape_cast %45 : vector<1x128x128xbf16> to vector<128x128xbf16>
    %cst_12 = arith.constant dense<0.000000e+00> : vector<432x128xf32>
    %47 = tpu.matmul %44, %46, %cst_12 {dimension_numbers = #tpu.dot_dimension_numbers<[1], [0], [0], [1], [0, 0, 1, 1], [], []>} : vector<432x128xbf16>, vector<128x128xbf16>, vector<432x128xf32> -> vector<432x128xf32>
    %48 = arith.addf %42, %47 : vector<432x128xf32>
    %49 = vector.extract_strided_slice %3 {offsets = [48, 0], sizes = [432, 128], strides = [1, 1]} : vector<480x128xf32> to vector<432x128xf32>
    %50 = arith.truncf %49 : vector<432x128xf32> to vector<432x128xbf16>
    %51 = vector.extract_strided_slice %5 {offsets = [7, 0, 0], sizes = [1, 128, 128], strides = [1, 1, 1]} : vector<9x128x128xbf16> to vector<1x128x128xbf16>
    %52 = vector.shape_cast %51 : vector<1x128x128xbf16> to vector<128x128xbf16>
    %cst_13 = arith.constant dense<0.000000e+00> : vector<432x128xf32>
    %53 = tpu.matmul %50, %52, %cst_13 {dimension_numbers = #tpu.dot_dimension_numbers<[1], [0], [0], [1], [0, 0, 1, 1], [], []>} : vector<432x128xbf16>, vector<128x128xbf16>, vector<432x128xf32> -> vector<432x128xf32>
    %54 = arith.addf %48, %53 : vector<432x128xf32>
    %55 = vector.extract_strided_slice %4 {offsets = [48, 0], sizes = [432, 128], strides = [1, 1]} : vector<480x128xf32> to vector<432x128xf32>
    %56 = arith.truncf %55 : vector<432x128xf32> to vector<432x128xbf16>
    %57 = vector.extract_strided_slice %5 {offsets = [8, 0, 0], sizes = [1, 128, 128], strides = [1, 1, 1]} : vector<9x128x128xbf16> to vector<1x128x128xbf16>
    %58 = vector.shape_cast %57 : vector<1x128x128xbf16> to vector<128x128xbf16>
    %cst_14 = arith.constant dense<0.000000e+00> : vector<432x128xf32>
    %59 = tpu.matmul %56, %58, %cst_14 {dimension_numbers = #tpu.dot_dimension_numbers<[1], [0], [0], [1], [0, 0, 1, 1], [], []>} : vector<432x128xbf16>, vector<128x128xbf16>, vector<432x128xf32> -> vector<432x128xf32>
    %60 = arith.addf %54, %59 : vector<432x128xf32>
    %c0_15 = arith.constant 0 : index
    %c0_16 = arith.constant 0 : index
    %c0_17 = arith.constant 0 : index
    %61 = vector.load %arg3[%c0_15, %c0_16, %c0_17] : memref<1x1x32xf32, #tpu.memory_space<vmem>>, vector<1x1x32xf32>
    %62 = vector.shape_cast %61 : vector<1x1x32xf32> to vector<1x32xf32>
    %c0_18 = arith.constant 0 : index
    %c0_19 = arith.constant 0 : index
    %63 = vector.load %arg8[%c0_18, %c0_19] : memref<32x128xf32, #tpu.memory_space<vmem>>, vector<32x128xf32>
    %cst_20 = arith.constant dense<0.000000e+00> : vector<1x128xf32>
    %64 = tpu.matmul %62, %63, %cst_20 {dimension_numbers = #tpu.dot_dimension_numbers<[1], [0], [0], [1], [0, 0, 1, 1], [], []>} : vector<1x32xf32>, vector<32x128xf32>, vector<1x128xf32> -> vector<1x128xf32>
    %c0_21 = arith.constant 0 : index
    %c0_22 = arith.constant 0 : index
    %65 = vector.load %arg9[%c0_21, %c0_22] : memref<1x128xf32, #tpu.memory_space<vmem>>, vector<1x128xf32>
    %66 = arith.addf %64, %65 : vector<1x128xf32>
    %c0_23 = arith.constant 0 : index
    %c0_24 = arith.constant 0 : index
    %67 = vector.load %arg5[%c0_23, %c0_24] : memref<1x128xf32, #tpu.memory_space<vmem>>, vector<1x128xf32>
    %68 = vector.broadcast %67 : vector<1x128xf32> to vector<432x128xf32>
    %69 = arith.addf %60, %68 : vector<432x128xf32>
    %70 = arith.negf %69 : vector<432x128xf32>
    %71 = math.exp %70 : vector<432x128xf32>
    %cst_25 = arith.constant 1.000000e+00 : f32
    %72 = vector.broadcast %cst_25 : f32 to vector<432x128xf32>
    %73 = arith.addf %72, %71 : vector<432x128xf32>
    %74 = arith.divf %72, %73 : vector<432x128xf32>
    %75 = arith.mulf %69, %74 : vector<432x128xf32>
    %76 = vector.broadcast %66 : vector<1x128xf32> to vector<432x128xf32>
    %77 = arith.addf %75, %76 : vector<432x128xf32>
    %78 = tpu.iota {dimensions = array<i32: 0>} : vector<18x24x128xi32>
    %79 = vector.shape_cast %78 : vector<18x24x128xi32> to vector<432x128xi32>
    %80 = tpu.iota {dimensions = array<i32: 1>} : vector<18x24x128xi32>
    %81 = vector.shape_cast %80 : vector<18x24x128xi32> to vector<432x128xi32>
    %c1_i32 = arith.constant 1 : i32
    %82 = vector.broadcast %c1_i32 : i32 to vector<432x128xi32>
    %83 = arith.cmpi sge, %79, %82 : vector<432x128xi32>
    %c16_i32 = arith.constant 16 : i32
    %84 = vector.broadcast %c16_i32 : i32 to vector<432x128xi32>
    %85 = arith.cmpi sle, %79, %84 : vector<432x128xi32>
    %86 = arith.andi %83, %85 : vector<432x128xi1>
    %c1_i32_26 = arith.constant 1 : i32
    %87 = vector.broadcast %c1_i32_26 : i32 to vector<432x128xi32>
    %88 = arith.cmpi sge, %81, %87 : vector<432x128xi32>
    %89 = arith.andi %86, %88 : vector<432x128xi1>
    %c16_i32_27 = arith.constant 16 : i32
    %90 = vector.broadcast %c16_i32_27 : i32 to vector<432x128xi32>
    %91 = arith.cmpi sle, %81, %90 : vector<432x128xi32>
    %92 = arith.andi %89, %91 : vector<432x128xi1>
    %cst_28 = arith.constant 0.000000e+00 : f32
    %93 = vector.broadcast %cst_28 : f32 to vector<432x128xf32>
    %94 = arith.select %92, %77, %93 : vector<432x128xi1>, vector<432x128xf32>
    %c431_i32 = arith.constant 431 : i32
    %95 = tpu.dynamic_rotate %94 by %c431_i32 dim 0 : vector<432x128xf32>, i32 -> vector<432x128xf32>
    %c430_i32 = arith.constant 430 : i32
    %96 = tpu.dynamic_rotate %94 by %c430_i32 dim 0 : vector<432x128xf32>, i32 -> vector<432x128xf32>
    %c0_29 = arith.constant 0 : index
    %c0_30 = arith.constant 0 : index
    %c0_31 = arith.constant 0 : index
    %97 = vector.load %arg6[%c0_29, %c0_30, %c0_31] : memref<9x128x128xbf16, #tpu.memory_space<vmem>>, vector<9x128x128xbf16>
    %cst_32 = arith.constant 0.000000e+00 : f32
    %98 = vector.broadcast %cst_32 : f32 to vector<384x128xf32>
    %99 = vector.extract_strided_slice %94 {offsets = [0, 0], sizes = [384, 128], strides = [1, 1]} : vector<432x128xf32> to vector<384x128xf32>
    %100 = arith.truncf %99 : vector<384x128xf32> to vector<384x128xbf16>
    %101 = vector.extract_strided_slice %97 {offsets = [0, 0, 0], sizes = [1, 128, 128], strides = [1, 1, 1]} : vector<9x128x128xbf16> to vector<1x128x128xbf16>
    %102 = vector.shape_cast %101 : vector<1x128x128xbf16> to vector<128x128xbf16>
    %cst_33 = arith.constant dense<0.000000e+00> : vector<384x128xf32>
    %103 = tpu.matmul %100, %102, %cst_33 {dimension_numbers = #tpu.dot_dimension_numbers<[1], [0], [0], [1], [0, 0, 1, 1], [], []>} : vector<384x128xbf16>, vector<128x128xbf16>, vector<384x128xf32> -> vector<384x128xf32>
    %104 = arith.addf %98, %103 : vector<384x128xf32>
    %105 = vector.extract_strided_slice %95 {offsets = [0, 0], sizes = [384, 128], strides = [1, 1]} : vector<432x128xf32> to vector<384x128xf32>
    %106 = arith.truncf %105 : vector<384x128xf32> to vector<384x128xbf16>
    %107 = vector.extract_strided_slice %97 {offsets = [1, 0, 0], sizes = [1, 128, 128], strides = [1, 1, 1]} : vector<9x128x128xbf16> to vector<1x128x128xbf16>
    %108 = vector.shape_cast %107 : vector<1x128x128xbf16> to vector<128x128xbf16>
    %cst_34 = arith.constant dense<0.000000e+00> : vector<384x128xf32>
    %109 = tpu.matmul %106, %108, %cst_34 {dimension_numbers = #tpu.dot_dimension_numbers<[1], [0], [0], [1], [0, 0, 1, 1], [], []>} : vector<384x128xbf16>, vector<128x128xbf16>, vector<384x128xf32> -> vector<384x128xf32>
    %110 = arith.addf %104, %109 : vector<384x128xf32>
    %111 = vector.extract_strided_slice %96 {offsets = [0, 0], sizes = [384, 128], strides = [1, 1]} : vector<432x128xf32> to vector<384x128xf32>
    %112 = arith.truncf %111 : vector<384x128xf32> to vector<384x128xbf16>
    %113 = vector.extract_strided_slice %97 {offsets = [2, 0, 0], sizes = [1, 128, 128], strides = [1, 1, 1]} : vector<9x128x128xbf16> to vector<1x128x128xbf16>
    %114 = vector.shape_cast %113 : vector<1x128x128xbf16> to vector<128x128xbf16>
    %cst_35 = arith.constant dense<0.000000e+00> : vector<384x128xf32>
    %115 = tpu.matmul %112, %114, %cst_35 {dimension_numbers = #tpu.dot_dimension_numbers<[1], [0], [0], [1], [0, 0, 1, 1], [], []>} : vector<384x128xbf16>, vector<128x128xbf16>, vector<384x128xf32> -> vector<384x128xf32>
    %116 = arith.addf %110, %115 : vector<384x128xf32>
    %117 = vector.extract_strided_slice %94 {offsets = [24, 0], sizes = [384, 128], strides = [1, 1]} : vector<432x128xf32> to vector<384x128xf32>
    %118 = arith.truncf %117 : vector<384x128xf32> to vector<384x128xbf16>
    %119 = vector.extract_strided_slice %97 {offsets = [3, 0, 0], sizes = [1, 128, 128], strides = [1, 1, 1]} : vector<9x128x128xbf16> to vector<1x128x128xbf16>
    %120 = vector.shape_cast %119 : vector<1x128x128xbf16> to vector<128x128xbf16>
    %cst_36 = arith.constant dense<0.000000e+00> : vector<384x128xf32>
    %121 = tpu.matmul %118, %120, %cst_36 {dimension_numbers = #tpu.dot_dimension_numbers<[1], [0], [0], [1], [0, 0, 1, 1], [], []>} : vector<384x128xbf16>, vector<128x128xbf16>, vector<384x128xf32> -> vector<384x128xf32>
    %122 = arith.addf %116, %121 : vector<384x128xf32>
    %123 = vector.extract_strided_slice %95 {offsets = [24, 0], sizes = [384, 128], strides = [1, 1]} : vector<432x128xf32> to vector<384x128xf32>
    %124 = arith.truncf %123 : vector<384x128xf32> to vector<384x128xbf16>
    %125 = vector.extract_strided_slice %97 {offsets = [4, 0, 0], sizes = [1, 128, 128], strides = [1, 1, 1]} : vector<9x128x128xbf16> to vector<1x128x128xbf16>
    %126 = vector.shape_cast %125 : vector<1x128x128xbf16> to vector<128x128xbf16>
    %cst_37 = arith.constant dense<0.000000e+00> : vector<384x128xf32>
    %127 = tpu.matmul %124, %126, %cst_37 {dimension_numbers = #tpu.dot_dimension_numbers<[1], [0], [0], [1], [0, 0, 1, 1], [], []>} : vector<384x128xbf16>, vector<128x128xbf16>, vector<384x128xf32> -> vector<384x128xf32>
    %128 = arith.addf %122, %127 : vector<384x128xf32>
    %129 = vector.extract_strided_slice %96 {offsets = [24, 0], sizes = [384, 128], strides = [1, 1]} : vector<432x128xf32> to vector<384x128xf32>
    %130 = arith.truncf %129 : vector<384x128xf32> to vector<384x128xbf16>
    %131 = vector.extract_strided_slice %97 {offsets = [5, 0, 0], sizes = [1, 128, 128], strides = [1, 1, 1]} : vector<9x128x128xbf16> to vector<1x128x128xbf16>
    %132 = vector.shape_cast %131 : vector<1x128x128xbf16> to vector<128x128xbf16>
    %cst_38 = arith.constant dense<0.000000e+00> : vector<384x128xf32>
    %133 = tpu.matmul %130, %132, %cst_38 {dimension_numbers = #tpu.dot_dimension_numbers<[1], [0], [0], [1], [0, 0, 1, 1], [], []>} : vector<384x128xbf16>, vector<128x128xbf16>, vector<384x128xf32> -> vector<384x128xf32>
    %134 = arith.addf %128, %133 : vector<384x128xf32>
    %135 = vector.extract_strided_slice %94 {offsets = [48, 0], sizes = [384, 128], strides = [1, 1]} : vector<432x128xf32> to vector<384x128xf32>
    %136 = arith.truncf %135 : vector<384x128xf32> to vector<384x128xbf16>
    %137 = vector.extract_strided_slice %97 {offsets = [6, 0, 0], sizes = [1, 128, 128], strides = [1, 1, 1]} : vector<9x128x128xbf16> to vector<1x128x128xbf16>
    %138 = vector.shape_cast %137 : vector<1x128x128xbf16> to vector<128x128xbf16>
    %cst_39 = arith.constant dense<0.000000e+00> : vector<384x128xf32>
    %139 = tpu.matmul %136, %138, %cst_39 {dimension_numbers = #tpu.dot_dimension_numbers<[1], [0], [0], [1], [0, 0, 1, 1], [], []>} : vector<384x128xbf16>, vector<128x128xbf16>, vector<384x128xf32> -> vector<384x128xf32>
    %140 = arith.addf %134, %139 : vector<384x128xf32>
    %141 = vector.extract_strided_slice %95 {offsets = [48, 0], sizes = [384, 128], strides = [1, 1]} : vector<432x128xf32> to vector<384x128xf32>
    %142 = arith.truncf %141 : vector<384x128xf32> to vector<384x128xbf16>
    %143 = vector.extract_strided_slice %97 {offsets = [7, 0, 0], sizes = [1, 128, 128], strides = [1, 1, 1]} : vector<9x128x128xbf16> to vector<1x128x128xbf16>
    %144 = vector.shape_cast %143 : vector<1x128x128xbf16> to vector<128x128xbf16>
    %cst_40 = arith.constant dense<0.000000e+00> : vector<384x128xf32>
    %145 = tpu.matmul %142, %144, %cst_40 {dimension_numbers = #tpu.dot_dimension_numbers<[1], [0], [0], [1], [0, 0, 1, 1], [], []>} : vector<384x128xbf16>, vector<128x128xbf16>, vector<384x128xf32> -> vector<384x128xf32>
    %146 = arith.addf %140, %145 : vector<384x128xf32>
    %147 = vector.extract_strided_slice %96 {offsets = [48, 0], sizes = [384, 128], strides = [1, 1]} : vector<432x128xf32> to vector<384x128xf32>
    %148 = arith.truncf %147 : vector<384x128xf32> to vector<384x128xbf16>
    %149 = vector.extract_strided_slice %97 {offsets = [8, 0, 0], sizes = [1, 128, 128], strides = [1, 1, 1]} : vector<9x128x128xbf16> to vector<1x128x128xbf16>
    %150 = vector.shape_cast %149 : vector<1x128x128xbf16> to vector<128x128xbf16>
    %cst_41 = arith.constant dense<0.000000e+00> : vector<384x128xf32>
    %151 = tpu.matmul %148, %150, %cst_41 {dimension_numbers = #tpu.dot_dimension_numbers<[1], [0], [0], [1], [0, 0, 1, 1], [], []>} : vector<384x128xbf16>, vector<128x128xbf16>, vector<384x128xf32> -> vector<384x128xf32>
    %152 = arith.addf %146, %151 : vector<384x128xf32>
    %c0_42 = arith.constant 0 : index
    %c0_43 = arith.constant 0 : index
    %153 = vector.load %arg7[%c0_42, %c0_43] : memref<1x128xf32, #tpu.memory_space<vmem>>, vector<1x128xf32>
    %154 = vector.broadcast %153 : vector<1x128xf32> to vector<384x128xf32>
    %155 = arith.addf %152, %154 : vector<384x128xf32>
    %156 = arith.negf %155 : vector<384x128xf32>
    %157 = math.exp %156 : vector<384x128xf32>
    %cst_44 = arith.constant 1.000000e+00 : f32
    %158 = vector.broadcast %cst_44 : f32 to vector<384x128xf32>
    %159 = arith.addf %158, %157 : vector<384x128xf32>
    %160 = arith.divf %158, %159 : vector<384x128xf32>
    %161 = arith.mulf %155, %160 : vector<384x128xf32>
    %162 = vector.shape_cast %161 : vector<384x128xf32> to vector<16x24x128xf32>
    %163 = vector.extract_strided_slice %162 {offsets = [0, 0, 0], sizes = [16, 16, 128], strides = [1, 1, 1]} : vector<16x24x128xf32> to vector<16x16x128xf32>
    %c0_45 = arith.constant 0 : index
    %c0_46 = arith.constant 0 : index
    %c0_47 = arith.constant 0 : index
    %c0_48 = arith.constant 0 : index
    %164 = vector.load %arg2[%c0_45, %c0_46, %c0_47, %c0_48] : memref<1x16x16x128xf32, #tpu.memory_space<vmem>>, vector<1x16x16x128xf32>
    %165 = vector.shape_cast %164 : vector<1x16x16x128xf32> to vector<16x16x128xf32>
    %166 = vector.shape_cast %165 : vector<16x16x128xf32> to vector<256x128xf32>
    %167 = arith.truncf %166 : vector<256x128xf32> to vector<256x128xbf16>
    %c0_49 = arith.constant 0 : index
    %c0_50 = arith.constant 0 : index
    %168 = vector.load %arg10[%c0_49, %c0_50] : memref<128x128xbf16, #tpu.memory_space<vmem>>, vector<128x128xbf16>
    %cst_51 = arith.constant dense<0.000000e+00> : vector<256x128xf32>
    %169 = tpu.matmul %167, %168, %cst_51 {dimension_numbers = #tpu.dot_dimension_numbers<[1], [0], [0], [1], [0, 0, 1, 1], [], []>} : vector<256x128xbf16>, vector<128x128xbf16>, vector<256x128xf32> -> vector<256x128xf32>
    %c0_52 = arith.constant 0 : index
    %c0_53 = arith.constant 0 : index
    %170 = vector.load %arg11[%c0_52, %c0_53] : memref<1x128xf32, #tpu.memory_space<vmem>>, vector<1x128xf32>
    %171 = vector.broadcast %170 : vector<1x128xf32> to vector<256x128xf32>
    %172 = arith.addf %169, %171 : vector<256x128xf32>
    %173 = vector.shape_cast %172 : vector<256x128xf32> to vector<16x16x128xf32>
    %174 = arith.addf %163, %173 : vector<16x16x128xf32>
    %c0_54 = arith.constant 0 : index
    %c0_55 = arith.constant 0 : index
    %c0_56 = arith.constant 0 : index
    %c0_57 = arith.constant 0 : index
    %175 = vector.load %arg12[%c0_54, %c0_55, %c0_56, %c0_57] : memref<1x16x16x128xf32, #tpu.memory_space<vmem>>, vector<1x16x16x128xf32>
    %176 = vector.shape_cast %175 : vector<1x16x16x128xf32> to vector<16x16x128xf32>
    %177 = vector.shape_cast %174 : vector<16x16x128xf32> to vector<1x16x16x128xf32>
    tpu.vector_store %arg12[%c0_54, %c0_55, %c0_56, %c0_57], %177 {strides = array<i32>} : memref<1x16x16x128xf32, #tpu.memory_space<vmem>>, vector<1x16x16x128xf32>,
    return
  }
  func.func @transform_0(%arg0: i32) -> (i32, i32, i32, i32) {
    %c0_i32 = arith.constant 0 : i32
    %c0_i32_0 = arith.constant 0 : i32
    %c0_i32_1 = arith.constant 0 : i32
    %c0_i32_2 = arith.constant 0 : i32
    return %arg0, %c0_i32, %c0_i32_0, %c0_i32_1 : i32, i32, i32, i32
  }
  func.func @transform_1(%arg0: i32) -> (i32, i32, i32, i32) {
    %c0_i32 = arith.constant 0 : i32
    %c0_i32_0 = arith.constant 0 : i32
    %c0_i32_1 = arith.constant 0 : i32
    %c0_i32_2 = arith.constant 0 : i32
    return %arg0, %c0_i32, %c0_i32_0, %c0_i32_1 : i32, i32, i32, i32
  }
  func.func @transform_2(%arg0: i32) -> (i32, i32, i32) {
    %c0_i32 = arith.constant 0 : i32
    %c0_i32_0 = arith.constant 0 : i32
    %c0_i32_1 = arith.constant 0 : i32
    return %arg0, %c0_i32, %c0_i32_0 : i32, i32, i32
  }
  func.func @transform_3(%arg0: i32) -> (i32, i32, i32) {
    %c0_i32 = arith.constant 0 : i32
    %c0_i32_0 = arith.constant 0 : i32
    %c0_i32_1 = arith.constant 0 : i32
    %c0_i32_2 = arith.constant 0 : i32
    return %c0_i32, %c0_i32_0, %c0_i32_1 : i32, i32, i32
  }
  func.func @transform_4(%arg0: i32) -> (i32, i32) {
    %c0_i32 = arith.constant 0 : i32
    %c0_i32_0 = arith.constant 0 : i32
    %c0_i32_1 = arith.constant 0 : i32
    return %c0_i32, %c0_i32_0 : i32, i32
  }
  func.func @transform_5(%arg0: i32) -> (i32, i32, i32) {
    %c0_i32 = arith.constant 0 : i32
    %c0_i32_0 = arith.constant 0 : i32
    %c0_i32_1 = arith.constant 0 : i32
    %c0_i32_2 = arith.constant 0 : i32
    return %c0_i32, %c0_i32_0, %c0_i32_1 : i32, i32, i32
  }
  func.func @transform_6(%arg0: i32) -> (i32, i32) {
    %c0_i32 = arith.constant 0 : i32
    %c0_i32_0 = arith.constant 0 : i32
    %c0_i32_1 = arith.constant 0 : i32
    return %c0_i32, %c0_i32_0 : i32, i32
  }
  func.func @transform_7(%arg0: i32) -> (i32, i32) {
    %c0_i32 = arith.constant 0 : i32
    %c0_i32_0 = arith.constant 0 : i32
    %c0_i32_1 = arith.constant 0 : i32
    return %c0_i32, %c0_i32_0 : i32, i32
  }
  func.func @transform_8(%arg0: i32) -> (i32, i32) {
    %c0_i32 = arith.constant 0 : i32
    %c0_i32_0 = arith.constant 0 : i32
    %c0_i32_1 = arith.constant 0 : i32
    return %c0_i32, %c0_i32_0 : i32, i32
  }
  func.func @transform_9(%arg0: i32) -> (i32, i32) {
    %c0_i32 = arith.constant 0 : i32
    %c0_i32_0 = arith.constant 0 : i32
    %c0_i32_1 = arith.constant 0 : i32
    return %c0_i32, %c0_i32_0 : i32, i32
  }
  func.func @transform_10(%arg0: i32) -> (i32, i32) {
    %c0_i32 = arith.constant 0 : i32
    %c0_i32_0 = arith.constant 0 : i32
    %c0_i32_1 = arith.constant 0 : i32
    return %c0_i32, %c0_i32_0 : i32, i32
  }
  func.func @transform_11(%arg0: i32) -> (i32, i32, i32, i32) {
    %c0_i32 = arith.constant 0 : i32
    %c0_i32_0 = arith.constant 0 : i32
    %c0_i32_1 = arith.constant 0 : i32
    %c0_i32_2 = arith.constant 0 : i32
    return %arg0, %c0_i32, %c0_i32_0, %c0_i32_1 : i32, i32, i32, i32
  }
}

</mosaic_0001>

<llo_original>
// kernel: resblock_forward.1
$region0: #{resblock_forward.1}
  #allocation0 [shape = 'u32[]', space=smem, size = 0x4, offset = 0x4, fixed_abs, tag = 'smem constant byte address 0x4 - core index']
  #allocation1 [shape = 'u32[144,128]{1,0:T(1,128)}', space=vmem, size = 0x12000, scoped, tag = 'internal scratch']
  %s0 = inlined_call_operand.vmem [shape: f32[2,20,24,128], index: 0, kind: input, shape index: {}]
  %s1 = inlined_call_operand.vmem [shape: f32[2,16,16,128], index: 1, kind: input, shape index: {}]
  %s2 = inlined_call_operand.vmem [shape: f32[2,1,32], index: 2, kind: input, shape index: {}]
  %s3 = inlined_call_operand.vmem [shape: bf16[9,128,128], index: 3, kind: input, shape index: {}]
  %s4 = inlined_call_operand.vmem [shape: f32[1,128], index: 4, kind: input, shape index: {}]
  %s5 = inlined_call_operand.vmem [shape: bf16[9,128,128], index: 5, kind: input, shape index: {}]
  %s6 = inlined_call_operand.vmem [shape: f32[1,128], index: 6, kind: input, shape index: {}]
  %s7 = inlined_call_operand.vmem [shape: f32[32,128], index: 7, kind: input, shape index: {}]
  %s8 = inlined_call_operand.vmem [shape: f32[1,128], index: 8, kind: input, shape index: {}]
  %s9 = inlined_call_operand.vmem [shape: bf16[128,128], index: 9, kind: input, shape index: {}]
  %s10 = inlined_call_operand.vmem [shape: f32[1,128], index: 10, kind: input, shape index: {}]
  %s11 = inlined_call_operand.vmem [shape: f32[2,16,16,128], index: 11, kind: output, shape index: {}]
  %s12 = sld [smem:[#allocation0]]
  $region77: #{resblock_forward.1} parent=0
    _
  %s14 = ssub.s32 1, %s12
  %s15 = scalar_select 0, %s14, %s12
  loop: start=0, step=1, limit=4
  $region2: #{resblock_forward.1} parent=0 // loop_pre_header
    _
  $region3: #{resblock_forward.1} parent=0 // loop_header
    %s17 = sphi 0, %s21
    %p18 = scmp.ge.s32.totalorder %s17, 4
    %s27 = sphi 0, %s29
    %s30 = sphi 0, %s27
    %s31 = sphi 0, %s30
    %s47 = sphi 0, %s31
    %s53 = sphi 0, %s55
    %s56 = sphi 0, %s53
    %s57 = sphi 0, %s56
    %s73 = sphi 0, %s57
    %s79 = sphi 0, %s81
    %s82 = sphi 0, %s79
    %s83 = sphi 0, %s82
    %s99 = sphi 0, %s83
    %s103 = sphi 0, %s103
    %s105 = sphi 0, %s103
    %s106 = sphi 0, %s105
    %s120 = sphi 0, %s106
    %s124 = sphi 0, %s124
    %s126 = sphi 0, %s124
    %s127 = sphi 0, %s126
    %s141 = sphi 0, %s127
    %s145 = sphi 0, %s145
    %s147 = sphi 0, %s145
    %s148 = sphi 0, %s147
    %s162 = sphi 0, %s148
    %s166 = sphi 0, %s166
    %s168 = sphi 0, %s166
    %s169 = sphi 0, %s168
    %s183 = sphi 0, %s169
    %s187 = sphi 0, %s187
    %s189 = sphi 0, %s187
    %s190 = sphi 0, %s189
    %s204 = sphi 0, %s190
    %s208 = sphi 0, %s208
    %s210 = sphi 0, %s208
    %s211 = sphi 0, %s210
    %s225 = sphi 0, %s211
    %s229 = sphi 0, %s229
    %s231 = sphi 0, %s229
    %s232 = sphi 0, %s231
    %s246 = sphi 0, %s232
    %s250 = sphi 0, %s250
    %s252 = sphi 0, %s250
    %s253 = sphi 0, %s252
    %s267 = sphi 0, %s253
    %s273 = sphi 0, %s275
    %s276 = sphi 0, %s273
    %s277 = sphi 0, %s276
    %s293 = sphi 0, %s277
  $region4: #{resblock_forward.1} parent=0 // loop_header_branch
    %20 = sbr.rel (%p18) target = $region8
  $region5: #{resblock_forward.1} parent=0 // loop_body
    %s22 = ssub.s32 %s17, 1
    %s23 = ssub.s32 %s17, 2
    %s24 = sadd.s32 %s17, 1
    %s25 = ssub.s32 %s17, %s24
    %p26 = scmp.eq.s32.totalorder %s25, 0
    %s28 = sadd.s32 %s27, 1
    %s29 = scalar_select %p26, %s27, %s28
    %p32 = pneg %p26
    %p33 = scmp.eq.s32.totalorder %s17, 1
    %p34 = por %p32, %p33
    %p35 = scmp.ne.s32.totalorder %s27, %s30
    %p36 = scmp.eq.s32.totalorder %s17, 0
    %p37 = por %p35, %p36
    %p38 = scmp.ne.s32.totalorder %s27, %s30
    %p39 = scmp.eq.s32.totalorder %s22, 1
    %p40 = por %p38, %p39
    %p41 = scmp.ne.s32.totalorder %s30, %s31
    %p42 = scmp.eq.s32.totalorder %s22, 0
    %p43 = por %p41, %p42
    %p44 = scmp.ne.s32.totalorder %s30, %s31
    %p45 = scmp.eq.s32.totalorder %s23, 1
    %p46 = por %p44, %p45
    %p48 = scmp.ne.s32.totalorder %s31, %s47
    %p49 = scmp.eq.s32.totalorder %s23, 0
    %p50 = por %p48, %p49
    %s51 = ssub.s32 %s17, %s24
    %p52 = scmp.eq.s32.totalorder %s51, 0
    %s54 = sadd.s32 %s53, 1
    %s55 = scalar_select %p52, %s53, %s54
    %p58 = pneg %p52
    %p59 = scmp.eq.s32.totalorder %s17, 1
    %p60 = por %p58, %p59
    %p61 = scmp.ne.s32.totalorder %s53, %s56
    %p62 = scmp.eq.s32.totalorder %s17, 0
    %p63 = por %p61, %p62
    %p64 = scmp.ne.s32.totalorder %s53, %s56
    %p65 = scmp.eq.s32.totalorder %s22, 1
    %p66 = por %p64, %p65
    %p67 = scmp.ne.s32.totalorder %s56, %s57
    %p68 = scmp.eq.s32.totalorder %s22, 0
    %p69 = por %p67, %p68
    %p70 = scmp.ne.s32.totalorder %s56, %s57
    %p71 = scmp.eq.s32.totalorder %s23, 1
    %p72 = por %p70, %p71
    %p74 = scmp.ne.s32.totalorder %s57, %s73
    %p75 = scmp.eq.s32.totalorder %s23, 0
    %p76 = por %p74, %p75
    %s77 = ssub.s32 %s17, %s24
    %p78 = scmp.eq.s32.totalorder %s77, 0
    %s80 = sadd.s32 %s79, 1
    %s81 = scalar_select %p78, %s79, %s80
    %p84 = pneg %p78
    %p85 = scmp.eq.s32.totalorder %s17, 1
    %p86 = por %p84, %p85
    %p87 = scmp.ne.s32.totalorder %s79, %s82
    %p88 = scmp.eq.s32.totalorder %s17, 0
    %p89 = por %p87, %p88
    %p90 = scmp.ne.s32.totalorder %s79, %s82
    %p91 = scmp.eq.s32.totalorder %s22, 1
    %p92 = por %p90, %p91
    %p93 = scmp.ne.s32.totalorder %s82, %s83
    %p94 = scmp.eq.s32.totalorder %s22, 0
    %p95 = por %p93, %p94
    %p96 = scmp.ne.s32.totalorder %s82, %s83
    %p97 = scmp.eq.s32.totalorder %s23, 1
    %p98 = por %p96, %p97
    %p100 = scmp.ne.s32.totalorder %s83, %s99
    %p101 = scmp.eq.s32.totalorder %s23, 0
    %p102 = por %p100, %p101
    %s104 = sadd.s32 %s103, 1
    %p107 = scmp.eq.s32.totalorder %s17, 1
    %p108 = scmp.ne.s32.totalorder %s103, %s105
    %p109 = scmp.eq.s32.totalorder %s17, 0
    %p110 = por %p108, %p109
    %p111 = scmp.ne.s32.totalorder %s103, %s105
    %p112 = scmp.eq.s32.totalorder %s22, 1
    %p113 = por %p111, %p112
    %p114 = scmp.ne.s32.totalorder %s105, %s106
    %p115 = scmp.eq.s32.totalorder %s22, 0
    %p116 = por %p114, %p115
    %p117 = scmp.ne.s32.totalorder %s105, %s106
    %p118 = scmp.eq.s32.totalorder %s23, 1
    %p119 = por %p117, %p118
    %p121 = scmp.ne.s32.totalorder %s106, %s120
    %p122 = scmp.eq.s32.totalorder %s23, 0
    %p123 = por %p121, %p122
    %s125 = sadd.s32 %s124, 1
    %p128 = scmp.eq.s32.totalorder %s17, 1
    %p129 = scmp.ne.s32.totalorder %s124, %s126
    %p130 = scmp.eq.s32.totalorder %s17, 0
    %p131 = por %p129, %p130
    %p132 = scmp.ne.s32.totalorder %s124, %s126
    %p133 = scmp.eq.s32.totalorder %s22, 1
    %p134 = por %p132, %p133
    %p135 = scmp.ne.s32.totalorder %s126, %s127
    %p136 = scmp.eq.s32.totalorder %s22, 0
    %p137 = por %p135, %p136
    %p138 = scmp.ne.s32.totalorder %s126, %s127
    %p139 = scmp.eq.s32.totalorder %s23, 1
    %p140 = por %p138, %p139
    %p142 = scmp.ne.s32.totalorder %s127, %s141
    %p143 = scmp.eq.s32.totalorder %s23, 0
    %p144 = por %p142, %p143
    %s146 = sadd.s32 %s145, 1
    %p149 = scmp.eq.s32.totalorder %s17, 1
    %p150 = scmp.ne.s32.totalorder %s145, %s147
    %p151 = scmp.eq.s32.totalorder %s17, 0
    %p152 = por %p150, %p151
    %p153 = scmp.ne.s32.totalorder %s145, %s147
    %p154 = scmp.eq.s32.totalorder %s22, 1
    %p155 = por %p153, %p154
    %p156 = scmp.ne.s32.totalorder %s147, %s148
    %p157 = scmp.eq.s32.totalorder %s22, 0
    %p158 = por %p156, %p157
    %p159 = scmp.ne.s32.totalorder %s147, %s148
    %p160 = scmp.eq.s32.totalorder %s23, 1
    %p161 = por %p159, %p160
    %p163 = scmp.ne.s32.totalorder %s148, %s162
    %p164 = scmp.eq.s32.totalorder %s23, 0
    %p165 = por %p163, %p164
    %s167 = sadd.s32 %s166, 1
    %p170 = scmp.eq.s32.totalorder %s17, 1
    %p171 = scmp.ne.s32.totalorder %s166, %s168
    %p172 = scmp.eq.s32.totalorder %s17, 0
    %p173 = por %p171, %p172
    %p174 = scmp.ne.s32.totalorder %s166, %s168
    %p175 = scmp.eq.s32.totalorder %s22, 1
    %p176 = por %p174, %p175
    %p177 = scmp.ne.s32.totalorder %s168, %s169
    %p178 = scmp.eq.s32.totalorder %s22, 0
    %p179 = por %p177, %p178
    %p180 = scmp.ne.s32.totalorder %s168, %s169
    %p181 = scmp.eq.s32.totalorder %s23, 1
    %p182 = por %p180, %p181
    %p184 = scmp.ne.s32.totalorder %s169, %s183
    %p185 = scmp.eq.s32.totalorder %s23, 0
    %p186 = por %p184, %p185
    %s188 = sadd.s32 %s187, 1
    %p191 = scmp.eq.s32.totalorder %s17, 1
    %p192 = scmp.ne.s32.totalorder %s187, %s189
    %p193 = scmp.eq.s32.totalorder %s17, 0
    %p194 = por %p192, %p193
    %p195 = scmp.ne.s32.totalorder %s187, %s189
    %p196 = scmp.eq.s32.totalorder %s22, 1
    %p197 = por %p195, %p196
    %p198 = scmp.ne.s32.totalorder %s189, %s190
    %p199 = scmp.eq.s32.totalorder %s22, 0
    %p200 = por %p198, %p199
    %p201 = scmp.ne.s32.totalorder %s189, %s190
    %p202 = scmp.eq.s32.totalorder %s23, 1
    %p203 = por %p201, %p202
    %p205 = scmp.ne.s32.totalorder %s190, %s204
    %p206 = scmp.eq.s32.totalorder %s23, 0
    %p207 = por %p205, %p206
    %s209 = sadd.s32 %s208, 1
    %p212 = scmp.eq.s32.totalorder %s17, 1
    %p213 = scmp.ne.s32.totalorder %s208, %s210
    %p214 = scmp.eq.s32.totalorder %s17, 0
    %p215 = por %p213, %p214
    %p216 = scmp.ne.s32.totalorder %s208, %s210
    %p217 = scmp.eq.s32.totalorder %s22, 1
    %p218 = por %p216, %p217
    %p219 = scmp.ne.s32.totalorder %s210, %s211
    %p220 = scmp.eq.s32.totalorder %s22, 0
    %p221 = por %p219, %p220
    %p222 = scmp.ne.s32.totalorder %s210, %s211
    %p223 = scmp.eq.s32.totalorder %s23, 1
    %p224 = por %p222, %p223
    %p226 = scmp.ne.s32.totalorder %s211, %s225
    %p227 = scmp.eq.s32.totalorder %s23, 0
    %p228 = por %p226, %p227
    %s230 = sadd.s32 %s229, 1
    %p233 = scmp.eq.s32.totalorder %s17, 1
    %p234 = scmp.ne.s32.totalorder %s229, %s231
    %p235 = scmp.eq.s32.totalorder %s17, 0
    %p236 = por %p234, %p235
    %p237 = scmp.ne.s32.totalorder %s229, %s231
    %p238 = scmp.eq.s32.totalorder %s22, 1
    %p239 = por %p237, %p238
    %p240 = scmp.ne.s32.totalorder %s231, %s232
    %p241 = scmp.eq.s32.totalorder %s22, 0
    %p242 = por %p240, %p241
    %p243 = scmp.ne.s32.totalorder %s231, %s232
    %p244 = scmp.eq.s32.totalorder %s23, 1
    %p245 = por %p243, %p244
    %p247 = scmp.ne.s32.totalorder %s232, %s246
    %p248 = scmp.eq.s32.totalorder %s23, 0
    %p249 = por %p247, %p248
    %s251 = sadd.s32 %s250, 1
    %p254 = scmp.eq.s32.totalorder %s17, 1
    %p255 = scmp.ne.s32.totalorder %s250, %s252
    %p256 = scmp.eq.s32.totalorder %s17, 0
    %p257 = por %p255, %p256
    %p258 = scmp.ne.s32.totalorder %s250, %s252
    %p259 = scmp.eq.s32.totalorder %s22, 1
    %p260 = por %p258, %p259
    %p261 = scmp.ne.s32.totalorder %s252, %s253
    %p262 = scmp.eq.s32.totalorder %s22, 0
    %p263 = por %p261, %p262
    %p264 = scmp.ne.s32.totalorder %s252, %s253
    %p265 = scmp.eq.s32.totalorder %s23, 1
    %p266 = por %p264, %p265
    %p268 = scmp.ne.s32.totalorder %s253, %s267
    %p269 = scmp.eq.s32.totalorder %s23, 0
    %p270 = por %p268, %p269
    %s271 = ssub.s32 %s17, %s24
    %p272 = scmp.eq.s32.totalorder %s271, 0
    %s274 = sadd.s32 %s273, 1
    %s275 = scalar_select %p272, %s273, %s274
    %p278 = pneg %p272
    %p279 = scmp.eq.s32.totalorder %s17, 1
    %p280 = por %p278, %p279
    %p281 = scmp.ne.s32.totalorder %s273, %s276
    %p282 = scmp.eq.s32.totalorder %s17, 0
    %p283 = por %p281, %p282
    %p284 = scmp.ne.s32.totalorder %s273, %s276
    %p285 = scmp.eq.s32.totalorder %s22, 1
    %p286 = por %p284, %p285
    %p287 = scmp.ne.s32.totalorder %s276, %s277
    %p288 = scmp.eq.s32.totalorder %s22, 0
    %p289 = por %p287, %p288
    %p290 = scmp.ne.s32.totalorder %s276, %s277
    %p291 = scmp.eq.s32.totalorder %s23, 1
    %p292 = por %p290, %p291
    %p294 = scmp.ne.s32.totalorder %s277, %s293
    %p295 = scmp.eq.s32.totalorder %s23, 0
    %p296 = por %p294, %p295
    %p297 = scmp.le.s32.totalorder 1, %s17
    %p298 = scmp.lt.s32.totalorder %s17, 3
    %p299 = pnand %p297, %p298
    %p300 = pneg %p299
    // Predicated region
    $region9: #{resblock_forward.1} parent=5 // pred_check
      _
    $region10: #{resblock_forward.1} parent=5 // pred_check_branch
      %302 = sbr.rel (%p299) target = $region12
    $region11: #{resblock_forward.1} parent=5 // pred_region
      %s303 = ssub.s32 %s17, 1
      // Predicated region
      $region13: #{resblock_forward.1} parent=11 // pred_check
        %p304 = pneg %p116
      $region14: #{resblock_forward.1} parent=11 // pred_check_branch
        %306 = sbr.rel (%p304) target = $region16
      $region15: #{resblock_forward.1} parent=11 // pred_region
        _
      $region16: #{resblock_forward.1} parent=11 // pred_fallthru
        _
      // Predicated region
      $region17: #{resblock_forward.1} parent=11 // pred_check
        %p307 = pneg %p137
      $region18: #{resblock_forward.1} parent=11 // pred_check_branch
        %309 = sbr.rel (%p307) target = $region20
      $region19: #{resblock_forward.1} parent=11 // pred_region
        _
      $region20: #{resblock_forward.1} parent=11 // pred_fallthru
        _
      // Predicated region
      $region21: #{resblock_forward.1} parent=11 // pred_check
        %p310 = pneg %p158
      $region22: #{resblock_forward.1} parent=11 // pred_check_branch
        %312 = sbr.rel (%p310) target = $region24
      $region23: #{resblock_forward.1} parent=11 // pred_region
        _
      $region24: #{resblock_forward.1} parent=11 // pred_fallthru
        _
      // Predicated region
      $region25: #{resblock_forward.1} parent=11 // pred_check
        %p313 = pneg %p179
      $region26: #{resblock_forward.1} parent=11 // pred_check_branch
        %315 = sbr.rel (%p313) target = $region28
      $region27: #{resblock_forward.1} parent=11 // pred_region
        _
      $region28: #{resblock_forward.1} parent=11 // pred_fallthru
        _
      // Predicated region
      $region29: #{resblock_forward.1} parent=11 // pred_check
        %p316 = pneg %p200
      $region30: #{resblock_forward.1} parent=11 // pred_check_branch
        %318 = sbr.rel (%p316) target = $region32
      $region31: #{resblock_forward.1} parent=11 // pred_region
        _
      $region32: #{resblock_forward.1} parent=11 // pred_fallthru
        _
      // Predicated region
      $region33: #{resblock_forward.1} parent=11 // pred_check
        %p319 = pneg %p221
      $region34: #{resblock_forward.1} parent=11 // pred_check_branch
        %321 = sbr.rel (%p319) target = $region36
      $region35: #{resblock_forward.1} parent=11 // pred_region
        _
      $region36: #{resblock_forward.1} parent=11 // pred_fallthru
        _
      // Predicated region
      $region37: #{resblock_forward.1} parent=11 // pred_check
        %p322 = pneg %p242
      $region38: #{resblock_forward.1} parent=11 // pred_check_branch
        %324 = sbr.rel (%p322) target = $region40
      $region39: #{resblock_forward.1} parent=11 // pred_region
        _
      $region40: #{resblock_forward.1} parent=11 // pred_fallthru
        _
      // Predicated region
      $region41: #{resblock_forward.1} parent=11 // pred_check
        %p325 = pneg %p263
      $region42: #{resblock_forward.1} parent=11 // pred_check_branch
        %327 = sbr.rel (%p325) target = $region44
      $region43: #{resblock_forward.1} parent=11 // pred_region
        _
      $region44: #{resblock_forward.1} parent=11 // pred_fallthru
        _
    $region12: #{resblock_forward.1} parent=5 // pred_fallthru
      _
    %p328 = scmp.lt.s32.totalorder %s17, 2
    // Predicated region
    $region45: #{resblock_forward.1} parent=5 // pred_check
      %p329 = pneg %p328
    $region46: #{resblock_forward.1} parent=5 // pred_check_branch
      %331 = sbr.rel (%p329) target = $region48
    $region47: #{resblock_forward.1} parent=5 // pred_region
      // Predicated region
      $region49: #{resblock_forward.1} parent=47 // pred_check
        %p332 = pneg %p37
      $region50: #{resblock_forward.1} parent=47 // pred_check_branch
        %334 = sbr.rel (%p332) target = $region52
      $region51: #{resblock_forward.1} parent=47 // pred_region
        %p335 = scmp.lt.s32.totalorder %s17, 1
        %s336 = scalar_select %p335, %s17, 1
        %s337 = smul.addr %s336, 60
        %s338 = smul.addr %s337, 8
        %s339 = scalar_lea.vmem %s0, %s338
      $region52: #{resblock_forward.1} parent=47 // pred_fallthru
        _
      // Predicated region
      $region53: #{resblock_forward.1} parent=47 // pred_check
        %p340 = pneg %p63
      $region54: #{resblock_forward.1} parent=47 // pred_check_branch
        %342 = sbr.rel (%p340) target = $region56
      $region55: #{resblock_forward.1} parent=47 // pred_region
        %p343 = scmp.lt.s32.totalorder %s17, 1
        %s344 = scalar_select %p343, %s17, 1
        %s345 = smul.addr %s344, 32
        %s346 = smul.addr %s345, 8
        %s347 = scalar_lea.vmem %s1, %s346
      $region56: #{resblock_forward.1} parent=47 // pred_fallthru
        _
      // Predicated region
      $region57: #{resblock_forward.1} parent=47 // pred_check
        %p348 = pneg %p89
      $region58: #{resblock_forward.1} parent=47 // pred_check_branch
        %350 = sbr.rel (%p348) target = $region60
      $region59: #{resblock_forward.1} parent=47 // pred_region
        %p351 = scmp.lt.s32.totalorder %s17, 1
        %s352 = scalar_select %p351, %s17, 1
        %s353 = scalar_lea.vmem %s2, %s352
      $region60: #{resblock_forward.1} parent=47 // pred_fallthru
        _
    $region48: #{resblock_forward.1} parent=5 // pred_fallthru
      _
    %p354 = scmp.le.s32.totalorder 1, %s17
    %p355 = scmp.lt.s32.totalorder %s17, 3
    %p356 = pnand %p354, %p355
    %p357 = pneg %p356
    // Predicated region
    $region61: #{resblock_forward.1} parent=5 // pred_check
      _
    $region62: #{resblock_forward.1} parent=5 // pred_check_branch
      %359 = sbr.rel (%p356) target = $region64
    $region63: #{resblock_forward.1} parent=5 // pred_region
      %s360 = ssub.s32 %s17, 1
      %p361 = scmp.lt.s32.totalorder %s22, 1
      %s362 = scalar_select %p361, %s22, 1
      %s363 = smul.addr %s362, 60
      %s364 = smul.addr %s363, 8
      %s365 = scalar_lea.vmem %s0, %s364
      %p366 = pneg %p43
      %p367 = pneg %p40
      %p368 = scmp.lt.s32.totalorder %s22, 1
      %s369 = scalar_select %p368, %s22, 1
      %s370 = smul.addr %s369, 32
      %s371 = smul.addr %s370, 8
      %s372 = scalar_lea.vmem %s1, %s371
      %p373 = pneg %p69
      %p374 = pneg %p66
      %p375 = scmp.lt.s32.totalorder %s22, 1
      %s376 = scalar_select %p375, %s22, 1
      %s377 = scalar_lea.vmem %s2, %s376
      %p378 = pneg %p95
      %p379 = pneg %p92
      %p380 = pneg %p116
      %p381 = pneg %p113
      %p382 = pneg %p137
      %p383 = pneg %p134
      %p384 = pneg %p158
      %p385 = pneg %p155
      %p386 = pneg %p179
      %p387 = pneg %p176
      %p388 = pneg %p200
      %p389 = pneg %p197
      %p390 = pneg %p221
      %p391 = pneg %p218
      %p392 = pneg %p242
      %p393 = pneg %p239
      %p394 = pneg %p263
      %p395 = pneg %p260
      %p396 = pneg %p289
      %p397 = pneg %p286
      %p398 = scmp.lt.s32.totalorder %s22, 1
      %s399 = scalar_select %p398, %s22, 1
      %s400 = smul.addr %s399, 32
      %s401 = smul.addr %s400, 8
      %s402 = scalar_lea.vmem %s11, %s401
      %p403 = scmp.lt.s32.totalorder %s22, 1
      %s404 = scalar_select %p403, %s22, 1
      %s405 = smul.addr %s404, 60
      %s406 = smul.addr %s405, 8
      %s407 = scalar_lea.vmem %s0, %s406
      %p408 = scmp.lt.s32.totalorder %s22, 1
      %s409 = scalar_select %p408, %s22, 1
      %s410 = smul.addr %s409, 32
      %s411 = smul.addr %s410, 8
      %s412 = scalar_lea.vmem %s1, %s411
      %p413 = scmp.lt.s32.totalorder %s22, 1
      %s414 = scalar_select %p413, %s22, 1
      %s415 = scalar_lea.vmem %s2, %s414
      %p416 = scmp.lt.s32.totalorder %s22, 1
      %s417 = scalar_select %p416, %s22, 1
      %s418 = smul.addr %s417, 32
      %s419 = smul.addr %s418, 8
      %s420 = scalar_lea.vmem %s11, %s419
      %v422 = vld [vmem:[%s407] sm:$0xff]
      %v423 = vld [vmem:[%s407 + $0x8] sm:$0xff]
      %v424 = vld [vmem:[%s407 + $0x10] sm:$0xff]
      %v425 = vld [vmem:[%s407 + $0x18] sm:$0xff]
      %v426 = vld [vmem:[%s407 + $0x20] sm:$0xff]
      %v427 = vld [vmem:[%s407 + $0x28] sm:$0xff]
      %v428 = vld [vmem:[%s407 + $0x30] sm:$0xff]
      %v429 = vld [vmem:[%s407 + $0x38] sm:$0xff]
      %v430 = vld [vmem:[%s407 + $0x40] sm:$0xff]
      %v431 = vld [vmem:[%s407 + $0x48] sm:$0xff]
      %v432 = vld [vmem:[%s407 + $0x50] sm:$0xff]
      %v433 = vld [vmem:[%s407 + $0x58] sm:$0xff]
      %v434 = vld [vmem:[%s407 + $0x60] sm:$0xff]
      %v435 = vld [vmem:[%s407 + $0x68] sm:$0xff]
      %v436 = vld [vmem:[%s407 + $0x70] sm:$0xff]
      %v437 = vld [vmem:[%s407 + $0x78] sm:$0xff]
      %v438 = vld [vmem:[%s407 + $0x80] sm:$0xff]
      %v439 = vld [vmem:[%s407 + $0x88] sm:$0xff]
      %v440 = vld [vmem:[%s407 + $0x90] sm:$0xff]
      %v441 = vld [vmem:[%s407 + $0x98] sm:$0xff]
      %v442 = vld [vmem:[%s407 + $0xa0] sm:$0xff]
      %v443 = vld [vmem:[%s407 + $0xa8] sm:$0xff]
      %v444 = vld [vmem:[%s407 + $0xb0] sm:$0xff]
      %v445 = vld [vmem:[%s407 + $0xb8] sm:$0xff]
      %v446 = vld [vmem:[%s407 + $0xc0] sm:$0xff]
      %v447 = vld [vmem:[%s407 + $0xc8] sm:$0xff]
      %v448 = vld [vmem:[%s407 + $0xd0] sm:$0xff]
      %v449 = vld [vmem:[%s407 + $0xd8] sm:$0xff]
      %v450 = vld [vmem:[%s407 + $0xe0] sm:$0xff]
      %v451 = vld [vmem:[%s407 + $0xe8] sm:$0xff]
      %v452 = vld [vmem:[%s407 + $0xf0] sm:$0xff]
      %v453 = vld [vmem:[%s407 + $0xf8] sm:$0xff]
      %v454 = vld [vmem:[%s407 + $0x100] sm:$0xff]
      %v455 = vld [vmem:[%s407 + $0x108] sm:$0xff]
      %v456 = vld [vmem:[%s407 + $0x110] sm:$0xff]
      %v457 = vld [vmem:[%s407 + $0x118] sm:$0xff]
      %v458 = vld [vmem:[%s407 + $0x120] sm:$0xff]
      %v459 = vld [vmem:[%s407 + $0x128] sm:$0xff]
      %v460 = vld [vmem:[%s407 + $0x130] sm:$0xff]
      %v461 = vld [vmem:[%s407 + $0x138] sm:$0xff]
      %v462 = vld [vmem:[%s407 + $0x140] sm:$0xff]
      %v463 = vld [vmem:[%s407 + $0x148] sm:$0xff]
      %v464 = vld [vmem:[%s407 + $0x150] sm:$0xff]
      %v465 = vld [vmem:[%s407 + $0x158] sm:$0xff]
      %v466 = vld [vmem:[%s407 + $0x160] sm:$0xff]
      %v467 = vld [vmem:[%s407 + $0x168] sm:$0xff]
      %v468 = vld [vmem:[%s407 + $0x170] sm:$0xff]
      %v469 = vld [vmem:[%s407 + $0x178] sm:$0xff]
      %v470 = vld [vmem:[%s407 + $0x180] sm:$0xff]
      %v471 = vld [vmem:[%s407 + $0x188] sm:$0xff]
      %v472 = vld [vmem:[%s407 + $0x190] sm:$0xff]
      %v473 = vld [vmem:[%s407 + $0x198] sm:$0xff]
      %v474 = vld [vmem:[%s407 + $0x1a0] sm:$0xff]
      %v475 = vld [vmem:[%s407 + $0x1a8] sm:$0xff]
      %v476 = vld [vmem:[%s407 + $0x1b0] sm:$0xff]
      %v477 = vld [vmem:[%s407 + $0x1b8] sm:$0xff]
      %v478 = vld [vmem:[%s407 + $0x1c0] sm:$0xff]
      %v479 = vld [vmem:[%s407 + $0x1c8] sm:$0xff]
      %v480 = vld [vmem:[%s407 + $0x1d0] sm:$0xff]
      %v481 = vld [vmem:[%s407 + $0x1d8] sm:$0xff]
      %v482 = vrot.slane %v422, 1
      %v483 = vrot.slane %v423, 1
      %v484 = vrot.slane %v424, 1
      %v485 = vrot.slane %v425, 1
      %v486 = vrot.slane %v426, 1
      %v487 = vrot.slane %v427, 1
      %v488 = vrot.slane %v428, 1
      %v489 = vrot.slane %v429, 1
      %v490 = vrot.slane %v430, 1
      %v491 = vrot.slane %v431, 1
      %v492 = vrot.slane %v432, 1
      %v493 = vrot.slane %v433, 1
      %v494 = vrot.slane %v434, 1
      %v495 = vrot.slane %v435, 1
      %v496 = vrot.slane %v436, 1
      %v497 = vrot.slane %v437, 1
      %v498 = vrot.slane %v438, 1
      %v499 = vrot.slane %v439, 1
      %v500 = vrot.slane %v440, 1
      %v501 = vrot.slane %v441, 1
      %v502 = vrot.slane %v442, 1
      %v503 = vrot.slane %v443, 1
      %v504 = vrot.slane %v444, 1
      %v505 = vrot.slane %v445, 1
      %v506 = vrot.slane %v446, 1
      %v507 = vrot.slane %v447, 1
      %v508 = vrot.slane %v448, 1
      %v509 = vrot.slane %v449, 1
      %v510 = vrot.slane %v450, 1
      %v511 = vrot.slane %v451, 1
      %v512 = vrot.slane %v452, 1
      %v513 = vrot.slane %v453, 1
      %v514 = vrot.slane %v454, 1
      %v515 = vrot.slane %v455, 1
      %v516 = vrot.slane %v456, 1
      %v517 = vrot.slane %v457, 1
      %v518 = vrot.slane %v458, 1
      %v519 = vrot.slane %v459, 1
      %v520 = vrot.slane %v460, 1
      %v521 = vrot.slane %v461, 1
      %v522 = vrot.slane %v462, 1
      %v523 = vrot.slane %v463, 1
      %v524 = vrot.slane %v464, 1
      %v525 = vrot.slane %v465, 1
      %v526 = vrot.slane %v466, 1
      %v527 = vrot.slane %v467, 1
      %v528 = vrot.slane %v468, 1
      %v529 = vrot.slane %v469, 1
      %v530 = vrot.slane %v470, 1
      %v531 = vrot.slane %v471, 1
      %v532 = vrot.slane %v472, 1
      %v533 = vrot.slane %v473, 1
      %v534 = vrot.slane %v474, 1
      %v535 = vrot.slane %v475, 1
      %v536 = vrot.slane %v476, 1
      %v537 = vrot.slane %v477, 1
      %v538 = vrot.slane %v478, 1
      %v539 = vrot.slane %v479, 1
      %v540 = vrot.slane %v480, 1
      %v541 = vrot.slane %v481, 1
      %v542 = vlaneseq
      %v543 = vshrl.u32 %v542, 7
      %vm544 = vcmp.lt.s32.totalorder %v543, 7
      %v545 = vsel %vm544, %v540, %v541
      %v546 = vsel %vm544, %v539, %v540
      %v547 = vsel %vm544, %v538, %v539
      %v548 = vsel %vm544, %v537, %v538
      %v549 = vsel %vm544, %v536, %v537
      %v550 = vsel %vm544, %v535, %v536
      %v551 = vsel %vm544, %v534, %v535
      %v552 = vsel %vm544, %v533, %v534
      %v553 = vsel %vm544, %v532, %v533
      %v554 = vsel %vm544, %v531, %v532
      %v555 = vsel %vm544, %v530, %v531
      %v556 = vsel %vm544, %v529, %v530
      %v557 = vsel %vm544, %v528, %v529
      %v558 = vsel %vm544, %v527, %v528
      %v559 = vsel %vm544, %v526, %v527
      %v560 = vsel %vm544, %v525, %v526
      %v561 = vsel %vm544, %v524, %v525
      %v562 = vsel %vm544, %v523, %v524
      %v563 = vsel %vm544, %v522, %v523
      %v564 = vsel %vm544, %v521, %v522
      %v565 = vsel %vm544, %v520, %v521
      %v566 = vsel %vm544, %v519, %v520
      %v567 = vsel %vm544, %v518, %v519
      %v568 = vsel %vm544, %v517, %v518
      %v569 = vsel %vm544, %v516, %v517
      %v570 = vsel %vm544, %v515, %v516
      %v571 = vsel %vm544, %v514, %v515
      %v572 = vsel %vm544, %v513, %v514
      %v573 = vsel %vm544, %v512, %v513
      %v574 = vsel %vm544, %v511, %v512
      %v575 = vsel %vm544, %v510, %v511
      %v576 = vsel %vm544, %v509, %v510
      %v577 = vsel %vm544, %v508, %v509
      %v578 = vsel %vm544, %v507, %v508
      %v579 = vsel %vm544, %v506, %v507
      %v580 = vsel %vm544, %v505, %v506
      %v581 = vsel %vm544, %v504, %v505
      %v582 = vsel %vm544, %v503, %v504
      %v583 = vsel %vm544, %v502, %v503
      %v584 = vsel %vm544, %v501, %v502
      %v585 = vsel %vm544, %v500, %v501
      %v586 = vsel %vm544, %v499, %v500
      %v587 = vsel %vm544, %v498, %v499
      %v588 = vsel %vm544, %v497, %v498
      %v589 = vsel %vm544, %v496, %v497
      %v590 = vsel %vm544, %v495, %v496
      %v591 = vsel %vm544, %v494, %v495
      %v592 = vsel %vm544, %v493, %v494
      %v593 = vsel %vm544, %v492, %v493
      %v594 = vsel %vm544, %v491, %v492
      %v595 = vsel %vm544, %v490, %v491
      %v596 = vsel %vm544, %v489, %v490
      %v597 = vsel %vm544, %v488, %v489
      %v598 = vsel %vm544, %v487, %v488
      %v599 = vsel %vm544, %v486, %v487
      %v600 = vsel %vm544, %v485, %v486
      %v601 = vsel %vm544, %v484, %v485
      %v602 = vsel %vm544, %v483, %v484
      %v603 = vsel %vm544, %v482, %v483
      %v604 = vsel %vm544, %v541, %v482
      %v605 = vrot.slane %v422, 2
      %v606 = vrot.slane %v423, 2
      %v607 = vrot.slane %v424, 2
      %v608 = vrot.slane %v425, 2
      %v609 = vrot.slane %v426, 2
      %v610 = vrot.slane %v427, 2
      %v611 = vrot.slane %v428, 2
      %v612 = vrot.slane %v429, 2
      %v613 = vrot.slane %v430, 2
      %v614 = vrot.slane %v431, 2
      %v615 = vrot.slane %v432, 2
      %v616 = vrot.slane %v433, 2
      %v617 = vrot.slane %v434, 2
      %v618 = vrot.slane %v435, 2
      %v619 = vrot.slane %v436, 2
      %v620 = vrot.slane %v437, 2
      %v621 = vrot.slane %v438, 2
      %v622 = vrot.slane %v439, 2
      %v623 = vrot.slane %v440, 2
      %v624 = vrot.slane %v441, 2
      %v625 = vrot.slane %v442, 2
      %v626 = vrot.slane %v443, 2
      %v627 = vrot.slane %v444, 2
      %v628 = vrot.slane %v445, 2
      %v629 = vrot.slane %v446, 2
      %v630 = vrot.slane %v447, 2
      %v631 = vrot.slane %v448, 2
      %v632 = vrot.slane %v449, 2
      %v633 = vrot.slane %v450, 2
      %v634 = vrot.slane %v451, 2
      %v635 = vrot.slane %v452, 2
      %v636 = vrot.slane %v453, 2
      %v637 = vrot.slane %v454, 2
      %v638 = vrot.slane %v455, 2
      %v639 = vrot.slane %v456, 2
      %v640 = vrot.slane %v457, 2
      %v641 = vrot.slane %v458, 2
      %v642 = vrot.slane %v459, 2
      %v643 = vrot.slane %v460, 2
      %v644 = vrot.slane %v461, 2
      %v645 = vrot.slane %v462, 2
      %v646 = vrot.slane %v463, 2
      %v647 = vrot.slane %v464, 2
      %v648 = vrot.slane %v465, 2
      %v649 = vrot.slane %v466, 2
      %v650 = vrot.slane %v467, 2
      %v651 = vrot.slane %v468, 2
      %v652 = vrot.slane %v469, 2
      %v653 = vrot.slane %v470, 2
      %v654 = vrot.slane %v471, 2
      %v655 = vrot.slane %v472, 2
      %v656 = vrot.slane %v473, 2
      %v657 = vrot.slane %v474, 2
      %v658 = vrot.slane %v475, 2
      %v659 = vrot.slane %v476, 2
      %v660 = vrot.slane %v477, 2
      %v661 = vrot.slane %v478, 2
      %v662 = vrot.slane %v479, 2
      %v663 = vrot.slane %v480, 2
      %v664 = vrot.slane %v481, 2
      %vm665 = vcmp.lt.s32.totalorder %v543, 6
      %v666 = vsel %vm665, %v663, %v664
      %v667 = vsel %vm665, %v662, %v663
      %v668 = vsel %vm665, %v661, %v662
      %v669 = vsel %vm665, %v660, %v661
      %v670 = vsel %vm665, %v659, %v660
      %v671 = vsel %vm665, %v658, %v659
      %v672 = vsel %vm665, %v657, %v658
      %v673 = vsel %vm665, %v656, %v657
      %v674 = vsel %vm665, %v655, %v656
      %v675 = vsel %vm665, %v654, %v655
      %v676 = vsel %vm665, %v653, %v654
      %v677 = vsel %vm665, %v652, %v653
      %v678 = vsel %vm665, %v651, %v652
      %v679 = vsel %vm665, %v650, %v651
      %v680 = vsel %vm665, %v649, %v650
      %v681 = vsel %vm665, %v648, %v649
      %v682 = vsel %vm665, %v647, %v648
      %v683 = vsel %vm665, %v646, %v647
      %v684 = vsel %vm665, %v645, %v646
      %v685 = vsel %vm665, %v644, %v645
      %v686 = vsel %vm665, %v643, %v644
      %v687 = vsel %vm665, %v642, %v643
      %v688 = vsel %vm665, %v641, %v642
      %v689 = vsel %vm665, %v640, %v641
      %v690 = vsel %vm665, %v639, %v640
      %v691 = vsel %vm665, %v638, %v639
      %v692 = vsel %vm665, %v637, %v638
      %v693 = vsel %vm665, %v636, %v637
      %v694 = vsel %vm665, %v635, %v636
      %v695 = vsel %vm665, %v634, %v635
      %v696 = vsel %vm665, %v633, %v634
      %v697 = vsel %vm665, %v632, %v633
      %v698 = vsel %vm665, %v631, %v632
      %v699 = vsel %vm665, %v630, %v631
      %v700 = vsel %vm665, %v629, %v630
      %v701 = vsel %vm665, %v628, %v629
      %v702 = vsel %vm665, %v627, %v628
      %v703 = vsel %vm665, %v626, %v627
      %v704 = vsel %vm665, %v625, %v626
      %v705 = vsel %vm665, %v624, %v625
      %v706 = vsel %vm665, %v623, %v624
      %v707 = vsel %vm665, %v622, %v623
      %v708 = vsel %vm665, %v621, %v622
      %v709 = vsel %vm665, %v620, %v621
      %v710 = vsel %vm665, %v619, %v620
      %v711 = vsel %vm665, %v618, %v619
      %v712 = vsel %vm665, %v617, %v618
      %v713 = vsel %vm665, %v616, %v617
      %v714 = vsel %vm665, %v615, %v616
      %v715 = vsel %vm665, %v614, %v615
      %v716 = vsel %vm665, %v613, %v614
      %v717 = vsel %vm665, %v612, %v613
      %v718 = vsel %vm665, %v611, %v612
      %v719 = vsel %vm665, %v610, %v611
      %v720 = vsel %vm665, %v609, %v610
      %v721 = vsel %vm665, %v608, %v609
      %v722 = vsel %vm665, %v607, %v608
      %v723 = vsel %vm665, %v606, %v607
      %v724 = vsel %vm665, %v605, %v606
      %v725 = vsel %vm665, %v664, %v605
      %v726 = vld [vmem:[%s3] sm:$0xf]
      %v727 = vld [vmem:[%s3 + $0x4] sm:$0xf]
      %v728 = vld [vmem:[%s3 + $0x8] sm:$0xf]
      %v729 = vld [vmem:[%s3 + $0xc] sm:$0xf]
      %v730 = vld [vmem:[%s3 + $0x10] sm:$0xf]
      %v731 = vld [vmem:[%s3 + $0x14] sm:$0xf]
      %v732 = vld [vmem:[%s3 + $0x18] sm:$0xf]
      %v733 = vld [vmem:[%s3 + $0x1c] sm:$0xf]
      %v734 = vld [vmem:[%s3 + $0x20] sm:$0xf]
      %v735 = vld [vmem:[%s3 + $0x24] sm:$0xf]
      %v736 = vld [vmem:[%s3 + $0x28] sm:$0xf]
      %v737 = vld [vmem:[%s3 + $0x2c] sm:$0xf]
      %v738 = vld [vmem:[%s3 + $0x30] sm:$0xf]
      %v739 = vld [vmem:[%s3 + $0x34] sm:$0xf]
      %v740 = vld [vmem:[%s3 + $0x38] sm:$0xf]
      %v741 = vld [vmem:[%s3 + $0x3c] sm:$0xf]
      %v742 = vld [vmem:[%s3 + $0x40] sm:$0xf]
      %v743 = vld [vmem:[%s3 + $0x44] sm:$0xf]
      %v744 = vld [vmem:[%s3 + $0x48] sm:$0xf]
      %v745 = vld [vmem:[%s3 + $0x4c] sm:$0xf]
      %v746 = vld [vmem:[%s3 + $0x50] sm:$0xf]
      %v747 = vld [vmem:[%s3 + $0x54] sm:$0xf]
      %v748 = vld [vmem:[%s3 + $0x58] sm:$0xf]
      %v749 = vld [vmem:[%s3 + $0x5c] sm:$0xf]
      %v750 = vld [vmem:[%s3 + $0x60] sm:$0xf]
      %v751 = vld [vmem:[%s3 + $0x64] sm:$0xf]
      %v752 = vld [vmem:[%s3 + $0x68] sm:$0xf]
      %v753 = vld [vmem:[%s3 + $0x6c] sm:$0xf]
      %v754 = vld [vmem:[%s3 + $0x70] sm:$0xf]
      %v755 = vld [vmem:[%s3 + $0x74] sm:$0xf]
      %v756 = vld [vmem:[%s3 + $0x78] sm:$0xf]
      %v757 = vld [vmem:[%s3 + $0x7c] sm:$0xf]
      %v758 = vld [vmem:[%s3 + $0x80] sm:$0xf]
      %v759 = vld [vmem:[%s3 + $0x84] sm:$0xf]
      %v760 = vld [vmem:[%s3 + $0x88] sm:$0xf]
      %v761 = vld [vmem:[%s3 + $0x8c] sm:$0xf]
      %v762 = vld [vmem:[%s3 + $0x90] sm:$0xf]
      %v763 = vld [vmem:[%s3 + $0x94] sm:$0xf]
      %v764 = vld [vmem:[%s3 + $0x98] sm:$0xf]
      %v765 = vld [vmem:[%s3 + $0x9c] sm:$0xf]
      %v766 = vld [vmem:[%s3 + $0xa0] sm:$0xf]
      %v767 = vld [vmem:[%s3 + $0xa4] sm:$0xf]
      %v768 = vld [vmem:[%s3 + $0xa8] sm:$0xf]
      %v769 = vld [vmem:[%s3 + $0xac] sm:$0xf]
      %v770 = vld [vmem:[%s3 + $0xb0] sm:$0xf]
      %v771 = vld [vmem:[%s3 + $0xb4] sm:$0xf]
      %v772 = vld [vmem:[%s3 + $0xb8] sm:$0xf]
      %v773 = vld [vmem:[%s3 + $0xbc] sm:$0xf]
      %v774 = vld [vmem:[%s3 + $0xc0] sm:$0xf]
      %v775 = vld [vmem:[%s3 + $0xc4] sm:$0xf]
      %v776 = vld [vmem:[%s3 + $0xc8] sm:$0xf]
      %v777 = vld [vmem:[%s3 + $0xcc] sm:$0xf]
      %v778 = vld [vmem:[%s3 + $0xd0] sm:$0xf]
      %v779 = vld [vmem:[%s3 + $0xd4] sm:$0xf]
      %v780 = vld [vmem:[%s3 + $0xd8] sm:$0xf]
      %v781 = vld [vmem:[%s3 + $0xdc] sm:$0xf]
      %v782 = vld [vmem:[%s3 + $0xe0] sm:$0xf]
      %v783 = vld [vmem:[%s3 + $0xe4] sm:$0xf]
      %v784 = vld [vmem:[%s3 + $0xe8] sm:$0xf]
      %v785 = vld [vmem:[%s3 + $0xec] sm:$0xf]
      %v786 = vld [vmem:[%s3 + $0xf0] sm:$0xf]
      %v787 = vld [vmem:[%s3 + $0xf4] sm:$0xf]
      %v788 = vld [vmem:[%s3 + $0xf8] sm:$0xf]
      %v789 = vld [vmem:[%s3 + $0xfc] sm:$0xf]
      %v790 = vld [vmem:[%s3 + $0x100] sm:$0xf]
      %v791 = vld [vmem:[%s3 + $0x104] sm:$0xf]
      %v792 = vld [vmem:[%s3 + $0x108] sm:$0xf]
      %v793 = vld [vmem:[%s3 + $0x10c] sm:$0xf]
      %v794 = vld [vmem:[%s3 + $0x110] sm:$0xf]
      %v795 = vld [vmem:[%s3 + $0x114] sm:$0xf]
      %v796 = vld [vmem:[%s3 + $0x118] sm:$0xf]
      %v797 = vld [vmem:[%s3 + $0x11c] sm:$0xf]
      %v798 = vld [vmem:[%s3 + $0x120] sm:$0xf]
      %v799 = vld [vmem:[%s3 + $0x124] sm:$0xf]
      %v800 = vld [vmem:[%s3 + $0x128] sm:$0xf]
      %v801 = vld [vmem:[%s3 + $0x12c] sm:$0xf]
      %v802 = vld [vmem:[%s3 + $0x130] sm:$0xf]
      %v803 = vld [vmem:[%s3 + $0x134] sm:$0xf]
      %v804 = vld [vmem:[%s3 + $0x138] sm:$0xf]
      %v805 = vld [vmem:[%s3 + $0x13c] sm:$0xf]
      %v806 = vld [vmem:[%s3 + $0x140] sm:$0xf]
      %v807 = vld [vmem:[%s3 + $0x144] sm:$0xf]
      %v808 = vld [vmem:[%s3 + $0x148] sm:$0xf]
      %v809 = vld [vmem:[%s3 + $0x14c] sm:$0xf]
      %v810 = vld [vmem:[%s3 + $0x150] sm:$0xf]
      %v811 = vld [vmem:[%s3 + $0x154] sm:$0xf]
      %v812 = vld [vmem:[%s3 + $0x158] sm:$0xf]
      %v813 = vld [vmem:[%s3 + $0x15c] sm:$0xf]
      %v814 = vld [vmem:[%s3 + $0x160] sm:$0xf]
      %v815 = vld [vmem:[%s3 + $0x164] sm:$0xf]
      %v816 = vld [vmem:[%s3 + $0x168] sm:$0xf]
      %v817 = vld [vmem:[%s3 + $0x16c] sm:$0xf]
      %v818 = vld [vmem:[%s3 + $0x170] sm:$0xf]
      %v819 = vld [vmem:[%s3 + $0x174] sm:$0xf]
      %v820 = vld [vmem:[%s3 + $0x178] sm:$0xf]
      %v821 = vld [vmem:[%s3 + $0x17c] sm:$0xf]
      %v822 = vld [vmem:[%s3 + $0x180] sm:$0xf]
      %v823 = vld [vmem:[%s3 + $0x184] sm:$0xf]
      %v824 = vld [vmem:[%s3 + $0x188] sm:$0xf]
      %v825 = vld [vmem:[%s3 + $0x18c] sm:$0xf]
      %v826 = vld [vmem:[%s3 + $0x190] sm:$0xf]
      %v827 = vld [vmem:[%s3 + $0x194] sm:$0xf]
      %v828 = vld [vmem:[%s3 + $0x198] sm:$0xf]
      %v829 = vld [vmem:[%s3 + $0x19c] sm:$0xf]
      %v830 = vld [vmem:[%s3 + $0x1a0] sm:$0xf]
      %v831 = vld [vmem:[%s3 + $0x1a4] sm:$0xf]
      %v832 = vld [vmem:[%s3 + $0x1a8] sm:$0xf]
      %v833 = vld [vmem:[%s3 + $0x1ac] sm:$0xf]
      %v834 = vld [vmem:[%s3 + $0x1b0] sm:$0xf]
      %v835 = vld [vmem:[%s3 + $0x1b4] sm:$0xf]
      %v836 = vld [vmem:[%s3 + $0x1b8] sm:$0xf]
      %v837 = vld [vmem:[%s3 + $0x1bc] sm:$0xf]
      %v838 = vld [vmem:[%s3 + $0x1c0] sm:$0xf]
      %v839 = vld [vmem:[%s3 + $0x1c4] sm:$0xf]
      %v840 = vld [vmem:[%s3 + $0x1c8] sm:$0xf]
      %v841 = vld [vmem:[%s3 + $0x1cc] sm:$0xf]
      %v842 = vld [vmem:[%s3 + $0x1d0] sm:$0xf]
      %v843 = vld [vmem:[%s3 + $0x1d4] sm:$0xf]
      %v844 = vld [vmem:[%s3 + $0x1d8] sm:$0xf]
      %v845 = vld [vmem:[%s3 + $0x1dc] sm:$0xf]
      %v846 = vld [vmem:[%s3 + $0x1e0] sm:$0xf]
      %v847 = vld [vmem:[%s3 + $0x1e4] sm:$0xf]
      %v848 = vld [vmem:[%s3 + $0x1e8] sm:$0xf]
      %v849 = vld [vmem:[%s3 + $0x1ec] sm:$0xf]
      %v850 = vld [vmem:[%s3 + $0x1f0] sm:$0xf]
      %v851 = vld [vmem:[%s3 + $0x1f4] sm:$0xf]
      %v852 = vld [vmem:[%s3 + $0x1f8] sm:$0xf]
      %v853 = vld [vmem:[%s3 + $0x1fc] sm:$0xf]
      %v854 = vld [vmem:[%s3 + $0x200] sm:$0xf]
      %v855 = vld [vmem:[%s3 + $0x204] sm:$0xf]
      %v856 = vld [vmem:[%s3 + $0x208] sm:$0xf]
      %v857 = vld [vmem:[%s3 + $0x20c] sm:$0xf]
      %v858 = vld [vmem:[%s3 + $0x210] sm:$0xf]
      %v859 = vld [vmem:[%s3 + $0x214] sm:$0xf]
      %v860 = vld [vmem:[%s3 + $0x218] sm:$0xf]
      %v861 = vld [vmem:[%s3 + $0x21c] sm:$0xf]
      %v862 = vld [vmem:[%s3 + $0x220] sm:$0xf]
      %v863 = vld [vmem:[%s3 + $0x224] sm:$0xf]
      %v864 = vld [vmem:[%s3 + $0x228] sm:$0xf]
      %v865 = vld [vmem:[%s3 + $0x22c] sm:$0xf]
      %v866 = vld [vmem:[%s3 + $0x230] sm:$0xf]
      %v867 = vld [vmem:[%s3 + $0x234] sm:$0xf]
      %v868 = vld [vmem:[%s3 + $0x238] sm:$0xf]
      %v869 = vld [vmem:[%s3 + $0x23c] sm:$0xf]
      %v870 = vpack.c.bf16 %v423, %v422
      %v871 = vpack.c.bf16 %v425, %v424
      %v872 = vpack.c.bf16 %v427, %v426
      %v873 = vpack.c.bf16 %v429, %v428
      %v874 = vpack.c.bf16 %v431, %v430
      %v875 = vpack.c.bf16 %v433, %v432
      %v876 = vpack.c.bf16 %v435, %v434
      %v877 = vpack.c.bf16 %v437, %v436
      %v878 = vpack.c.bf16 %v439, %v438
      %v879 = vpack.c.bf16 %v441, %v440
      %v880 = vpack.c.bf16 %v443, %v442
      %v881 = vpack.c.bf16 %v445, %v444
      %v882 = vpack.c.bf16 %v447, %v446
      %v883 = vpack.c.bf16 %v449, %v448
      %v884 = vpack.c.bf16 %v451, %v450
      %v885 = vpack.c.bf16 %v453, %v452
      %v886 = vpack.c.bf16 %v455, %v454
      %v887 = vpack.c.bf16 %v457, %v456
      %v888 = vpack.c.bf16 %v459, %v458
      %v889 = vpack.c.bf16 %v461, %v460
      %v890 = vpack.c.bf16 %v463, %v462
      %v891 = vpack.c.bf16 %v465, %v464
      %v892 = vpack.c.bf16 %v467, %v466
      %v893 = vpack.c.bf16 %v469, %v468
      %v894 = vpack.c.bf16 %v471, %v470
      %v895 = vpack.c.bf16 %v473, %v472
      %v896 = vpack.c.bf16 %v475, %v474
      %v897 = vpack.c.bf16 %v602, %v603
      %v898 = vpack.c.bf16 %v600, %v601
      %v899 = vpack.c.bf16 %v598, %v599
      %v900 = vpack.c.bf16 %v596, %v597
      %v901 = vpack.c.bf16 %v594, %v595
      %v902 = vpack.c.bf16 %v592, %v593
      %v903 = vpack.c.bf16 %v590, %v591
      %v904 = vpack.c.bf16 %v588, %v589
      %v905 = vpack.c.bf16 %v586, %v587
      %v906 = vpack.c.bf16 %v584, %v585
      %v907 = vpack.c.bf16 %v582, %v583
      %v908 = vpack.c.bf16 %v580, %v581
      %v909 = vpack.c.bf16 %v578, %v579
      %v910 = vpack.c.bf16 %v576, %v577
      %v911 = vpack.c.bf16 %v574, %v575
      %v912 = vpack.c.bf16 %v572, %v573
      %v913 = vpack.c.bf16 %v570, %v571
      %v914 = vpack.c.bf16 %v568, %v569
      %v915 = vpack.c.bf16 %v566, %v567
      %v916 = vpack.c.bf16 %v564, %v565
      %v917 = vpack.c.bf16 %v562, %v563
      %v918 = vpack.c.bf16 %v560, %v561
      %v919 = vpack.c.bf16 %v558, %v559
      %v920 = vpack.c.bf16 %v556, %v557
      %v921 = vpack.c.bf16 %v554, %v555
      %v922 = vpack.c.bf16 %v552, %v553
      %v923 = vpack.c.bf16 %v550, %v551
      %v940 = vunpack.c.l.b16 %v742
      %v941 = vunpack.c.l.b16 %v743
      %v942 = vunpack.c.l.b16 %v744
      %v943 = vunpack.c.l.b16 %v745
      %v944 = vunpack.c.l.b16 %v746
      %v945 = vunpack.c.l.b16 %v747
      %v946 = vunpack.c.l.b16 %v748
      %v947 = vunpack.c.l.b16 %v749
      %v948 = vunpack.c.l.b16 %v750
      %v949 = vunpack.c.l.b16 %v751
      %v950 = vunpack.c.l.b16 %v752
      %v951 = vunpack.c.l.b16 %v753
      %v952 = vunpack.c.l.b16 %v754
      %v953 = vunpack.c.l.b16 %v755
      %v954 = vunpack.c.l.b16 %v756
      %v955 = vunpack.c.l.b16 %v757
      %v956 = vpack.c.b16 %v941, %v940
      %v957 = vpack.c.b16 %v943, %v942
      %v958 = vpack.c.b16 %v945, %v944
      %v959 = vpack.c.b16 %v947, %v946
      %v960 = vpack.c.b16 %v949, %v948
      %v961 = vpack.c.b16 %v951, %v950
      %v962 = vpack.c.b16 %v953, %v952
      %v963 = vpack.c.b16 %v955, %v954
      %972 = vmatprep.subr.bf16.mxu0 0
      %973 = vmatpush1.bf16.msra.mxu0 %v956
      %974 = vmatprep.subr.bf16.mxu0 0
      %975 = vmatpush1.bf16.msra.mxu0 %v957
      %976 = vmatprep.subr.bf16.mxu0 0
      %977 = vmatpush1.bf16.msra.mxu0 %v958
      %978 = vmatprep.subr.bf16.mxu0 0
      %979 = vmatpush1.bf16.msra.mxu0 %v959
      %980 = vmatprep.subr.bf16.mxu0 0
      %981 = vmatpush1.bf16.msra.mxu0 %v960
      %982 = vmatprep.subr.bf16.mxu0 0
      %983 = vmatpush1.bf16.msra.mxu0 %v961
      %984 = vmatprep.subr.bf16.mxu0 0
      %985 = vmatpush1.bf16.msra.mxu0 %v962
      %986 = vmatprep.subr.bf16.mxu0 0
      %987 = vmatpush1.bf16.msra.mxu0 %v963
      %988 = vmatprep.subr.bf16.mxu0 0
      %989 = vmatpush1.bf16.msra.mxu0 0
      %990 = vmatprep.subr.bf16.mxu0 0
      %991 = vmatpush1.bf16.msra.mxu0 0
      %992 = vmatprep.subr.bf16.mxu0 0
      %993 = vmatpush1.bf16.msra.mxu0 0
      %994 = vmatprep.subr.bf16.mxu0 0
      %995 = vmatpush1.bf16.msra.mxu0 0
      %996 = vmatprep.subr.bf16.mxu0 0
      %997 = vmatpush1.bf16.msra.mxu0 0
      %998 = vmatprep.subr.bf16.mxu0 0
      %999 = vmatpush1.bf16.msra.mxu0 0
      %1000 = vmatprep.subr.bf16.mxu0 0
      %1001 = vmatpush1.bf16.msra.mxu0 0
      %1002 = vmatprep.subr.bf16.mxu0 0
      %1003 = vmatpush1.bf16.msra.mxu0 0
      %1004 = vmatprep.mubr.bf16.mxu0 0
      %1005 = vmatmul.mubr.bf16.gmra.mrb[0].mxu0 %v897
      %v1006 = vpop.f32.mrb[0].mxu0
      %v1007 = vpop.f32.mrb[0].mxu0
      %v1008 = vpop.f32.mrb[0].mxu0
      %v1009 = vpop.f32.mrb[0].mxu0
      %1010 = vmatprep.mubr.bf16.mxu0 0
      %1011 = vmatmul.mubr.bf16.gmra.mrb[0].mxu0 %v898
      %v1012 = vpop.f32.mrb[0].mxu0
      %v1013 = vpop.f32.mrb[0].mxu0
      %v1014 = vpop.f32.mrb[0].mxu0
      %v1015 = vadd.f32 0.0, %v1014
      %v1016 = vpop.f32.mrb[0].mxu0
      %1017 = vmatprep.mubr.bf16.mxu0 0
      %1018 = vmatmul.mubr.bf16.gmra.mrb[0].mxu0 %v899
      %v1019 = vpop.f32.mrb[0].mxu0
      %v1020 = vadd.f32 0.0, %v1019
      %v1021 = vpop.f32.mrb[0].mxu0
      %v1022 = vpop.f32.mrb[0].mxu0
      %v1023 = vadd.f32 0.0, %v1022
      %v1024 = vpop.f32.mrb[0].mxu0
      %1025 = vmatprep.mubr.bf16.mxu0 0
      %1026 = vmatmul.mubr.bf16.gmra.mrb[0].mxu0 %v900
      %v1027 = vpop.f32.mrb[0].mxu0
      %v1028 = vadd.f32 0.0, %v1027
      %v1029 = vpop.f32.mrb[0].mxu0
      %v1030 = vpop.f32.mrb[0].mxu0
      %v1031 = vadd.f32 0.0, %v1030
      %v1032 = vpop.f32.mrb[0].mxu0
      %1033 = vmatprep.mubr.bf16.mxu0 0
      %1034 = vmatmul.mubr.bf16.gmra.mrb[0].mxu0 %v901
      %v1035 = vpop.f32.mrb[0].mxu0
      %v1036 = vadd.f32 0.0, %v1035
      %v1037 = vpop.f32.mrb[0].mxu0
      %v1038 = vpop.f32.mrb[0].mxu0
      %v1039 = vadd.f32 0.0, %v1038
      %v1040 = vpop.f32.mrb[0].mxu0
      %1041 = vmatprep.mubr.bf16.mxu0 0
      %1042 = vmatmul.mubr.bf16.gmra.mrb[0].mxu0 %v902
      %v1043 = vpop.f32.mrb[0].mxu0
      %v1044 = vadd.f32 0.0, %v1043
      %v1045 = vpop.f32.mrb[0].mxu0
      %v1046 = vpop.f32.mrb[0].mxu0
      %v1047 = vadd.f32 0.0, %v1046
      %v1048 = vpop.f32.mrb[0].mxu0
      %1049 = vmatprep.mubr.bf16.mxu0 0
      %1050 = vmatmul.mubr.bf16.gmra.mrb[0].mxu0 %v903
      %v1051 = vpop.f32.mrb[0].mxu0
      %v1052 = vadd.f32 0.0, %v1051
      %v1053 = vpop.f32.mrb[0].mxu0
      %v1054 = vpop.f32.mrb[0].mxu0
      %v1055 = vadd.f32 0.0, %v1054
      %v1056 = vpop.f32.mrb[0].mxu0
      %1057 = vmatprep.mubr.bf16.mxu0 0
      %1058 = vmatmul.mubr.bf16.gmra.mrb[0].mxu0 %v904
      %v1059 = vpop.f32.mrb[0].mxu0
      %v1060 = vadd.f32 0.0, %v1059
      %v1061 = vpop.f32.mrb[0].mxu0
      %v1062 = vpop.f32.mrb[0].mxu0
      %v1063 = vadd.f32 0.0, %v1062
      %v1064 = vpop.f32.mrb[0].mxu0
      %1065 = vmatprep.mubr.bf16.mxu0 0
      %1066 = vmatmul.mubr.bf16.gmra.mrb[0].mxu0 %v905
      %v1067 = vpop.f32.mrb[0].mxu0
      %v1068 = vadd.f32 0.0, %v1067
      %v1069 = vpop.f32.mrb[0].mxu0
      %v1070 = vpop.f32.mrb[0].mxu0
      %v1071 = vadd.f32 0.0, %v1070
      %v1072 = vpop.f32.mrb[0].mxu0
      %1073 = vmatprep.mubr.bf16.mxu0 0
      %1074 = vmatmul.mubr.bf16.gmra.mrb[0].mxu0 %v906
      %v1075 = vpop.f32.mrb[0].mxu0
      %v1076 = vadd.f32 0.0, %v1075
      %v1077 = vpop.f32.mrb[0].mxu0
      %v1078 = vpop.f32.mrb[0].mxu0
      %v1079 = vadd.f32 0.0, %v1078
      %v1080 = vpop.f32.mrb[0].mxu0
      %1081 = vmatprep.mubr.bf16.mxu0 0
      %1082 = vmatmul.mubr.bf16.gmra.mrb[0].mxu0 %v907
      %v1083 = vpop.f32.mrb[0].mxu0
      %v1084 = vadd.f32 0.0, %v1083
      %v1085 = vpop.f32.mrb[0].mxu0
      %v1086 = vpop.f32.mrb[0].mxu0
      %v1087 = vadd.f32 0.0, %v1086
      %v1088 = vpop.f32.mrb[0].mxu0
      %1089 = vmatprep.mubr.bf16.mxu0 0
      %1090 = vmatmul.mubr.bf16.gmra.mrb[0].mxu0 %v908
      %v1091 = vpop.f32.mrb[0].mxu0
      %v1092 = vadd.f32 0.0, %v1091
      %v1093 = vpop.f32.mrb[0].mxu0
      %v1094 = vpop.f32.mrb[0].mxu0
      %v1095 = vadd.f32 0.0, %v1094
      %v1096 = vpop.f32.mrb[0].mxu0
      %1097 = vmatprep.mubr.bf16.mxu0 0
      %1098 = vmatmul.mubr.bf16.gmra.mrb[0].mxu0 %v909
      %v1099 = vpop.f32.mrb[0].mxu0
      %v1100 = vadd.f32 0.0, %v1099
      %v1101 = vpop.f32.mrb[0].mxu0
      %v1102 = vpop.f32.mrb[0].mxu0
      %v1103 = vadd.f32 0.0, %v1102
      %v1104 = vpop.f32.mrb[0].mxu0
      %1105 = vmatprep.mubr.bf16.mxu0 0
      %1106 = vmatmul.mubr.bf16.gmra.mrb[0].mxu0 %v910
      %v1107 = vpop.f32.mrb[0].mxu0
      %v1108 = vadd.f32 0.0, %v1107
      %v1109 = vpop.f32.mrb[0].mxu0
      %v1110 = vpop.f32.mrb[0].mxu0
      %v1111 = vadd.f32 0.0, %v1110
      %v1112 = vpop.f32.mrb[0].mxu0
      %1113 = vmatprep.mubr.bf16.mxu0 0
      %1114 = vmatmul.mubr.bf16.gmra.mrb[0].mxu0 %v911
      %v1115 = vpop.f32.mrb[0].mxu0
      %v1116 = vadd.f32 0.0, %v1115
      %v1117 = vpop.f32.mrb[0].mxu0
      %v1118 = vpop.f32.mrb[0].mxu0
      %v1119 = vadd.f32 0.0, %v1118
      %v1120 = vpop.f32.mrb[0].mxu0
      %1121 = vmatprep.mubr.bf16.mxu0 0
      %1122 = vmatmul.mubr.bf16.gmra.mrb[0].mxu0 %v912
      %v1123 = vpop.f32.mrb[0].mxu0
      %v1124 = vadd.f32 0.0, %v1123
      %v1125 = vpop.f32.mrb[0].mxu0
      %v1126 = vpop.f32.mrb[0].mxu0
      %v1127 = vadd.f32 0.0, %v1126
      %v1128 = vpop.f32.mrb[0].mxu0
      %1129 = vmatprep.mubr.bf16.mxu0 0
      %1130 = vmatmul.mubr.bf16.gmra.mrb[0].mxu0 %v913
      %v1131 = vpop.f32.mrb[0].mxu0
      %v1132 = vadd.f32 0.0, %v1131
      %v1133 = vpop.f32.mrb[0].mxu0
      %v1134 = vpop.f32.mrb[0].mxu0
      %v1135 = vadd.f32 0.0, %v1134
      %v1136 = vpop.f32.mrb[0].mxu0
      %1137 = vmatprep.mubr.bf16.mxu0 0
      %1138 = vmatmul.mubr.bf16.gmra.mrb[0].mxu0 %v914
      %v1139 = vpop.f32.mrb[0].mxu0
      %v1140 = vadd.f32 0.0, %v1139
      %v1141 = vpop.f32.mrb[0].mxu0
      %v1142 = vpop.f32.mrb[0].mxu0
      %v1143 = vadd.f32 0.0, %v1142
      %v1144 = vpop.f32.mrb[0].mxu0
      %1145 = vmatprep.mubr.bf16.mxu0 0
      %1146 = vmatmul.mubr.bf16.gmra.mrb[0].mxu0 %v915
      %v1147 = vpop.f32.mrb[0].mxu0
      %v1148 = vadd.f32 0.0, %v1147
      %v1149 = vpop.f32.mrb[0].mxu0
      %v1150 = vpop.f32.mrb[0].mxu0
      %v1151 = vadd.f32 0.0, %v1150
      %v1152 = vpop.f32.mrb[0].mxu0
      %1153 = vmatprep.mubr.bf16.mxu0 0
      %1154 = vmatmul.mubr.bf16.gmra.mrb[0].mxu0 %v916
      %v1155 = vpop.f32.mrb[0].mxu0
      %v1156 = vadd.f32 0.0, %v1155
      %v1157 = vpop.f32.mrb[0].mxu0
      %v1158 = vpop.f32.mrb[0].mxu0
      %v1159 = vadd.f32 0.0, %v1158
      %v1160 = vpop.f32.mrb[0].mxu0
      %1161 = vmatprep.mubr.bf16.mxu0 0
      %1162 = vmatmul.mubr.bf16.gmra.mrb[0].mxu0 %v917
      %v1163 = vpop.f32.mrb[0].mxu0
      %v1164 = vadd.f32 0.0, %v1163
      %v1165 = vpop.f32.mrb[0].mxu0
      %v1166 = vpop.f32.mrb[0].mxu0
      %v1167 = vadd.f32 0.0, %v1166
      %v1168 = vpop.f32.mrb[0].mxu0
      %1169 = vmatprep.mubr.bf16.mxu0 0
      %1170 = vmatmul.mubr.bf16.gmra.mrb[0].mxu0 %v918
      %v1171 = vpop.f32.mrb[0].mxu0
      %v1172 = vadd.f32 0.0, %v1171
      %v1173 = vpop.f32.mrb[0].mxu0
      %v1174 = vpop.f32.mrb[0].mxu0
      %v1175 = vadd.f32 0.0, %v1174
      %v1176 = vpop.f32.mrb[0].mxu0
      %1177 = vmatprep.mubr.bf16.mxu0 0
      %1178 = vmatmul.mubr.bf16.gmra.mrb[0].mxu0 %v919
      %v1179 = vpop.f32.mrb[0].mxu0
      %v1180 = vadd.f32 0.0, %v1179
      %v1181 = vpop.f32.mrb[0].mxu0
      %v1182 = vpop.f32.mrb[0].mxu0
      %v1183 = vadd.f32 0.0, %v1182
      %v1184 = vpop.f32.mrb[0].mxu0
      %1185 = vmatprep.mubr.bf16.mxu0 0
      %1186 = vmatmul.mubr.bf16.gmra.mrb[0].mxu0 %v920
      %v1187 = vpop.f32.mrb[0].mxu0
      %v1188 = vadd.f32 0.0, %v1187
      %v1189 = vpop.f32.mrb[0].mxu0
      %v1190 = vpop.f32.mrb[0].mxu0
      %v1191 = vadd.f32 0.0, %v1190
      %v1192 = vpop.f32.mrb[0].mxu0
      %1193 = vmatprep.mubr.bf16.mxu0 0
      %1194 = vmatmul.mubr.bf16.gmra.mrb[0].mxu0 %v921
      %v1195 = vpop.f32.mrb[0].mxu0
      %v1196 = vadd.f32 0.0, %v1195
      %v1197 = vpop.f32.mrb[0].mxu0
      %v1198 = vpop.f32.mrb[0].mxu0
      %v1199 = vadd.f32 0.0, %v1198
      %v1200 = vpop.f32.mrb[0].mxu0
      %1201 = vmatprep.mubr.bf16.mxu0 0
      %1202 = vmatmul.mubr.bf16.gmra.mrb[0].mxu0 %v922
      %v1203 = vpop.f32.mrb[0].mxu0
      %v1204 = vadd.f32 0.0, %v1203
      %v1205 = vpop.f32.mrb[0].mxu0
      %v1206 = vpop.f32.mrb[0].mxu0
      %v1207 = vpop.f32.mrb[0].mxu0
      %1208 = vmatprep.mubr.bf16.mxu0 0
      %1209 = vmatmul.mubr.bf16.gmra.mrb[0].mxu0 %v923
      %v1210 = vpop.f32.mrb[0].mxu0
      %v1211 = vpop.f32.mrb[0].mxu0
      %v1212 = vpop.f32.mrb[0].mxu0
      %v1213 = vpop.f32.mrb[0].mxu0
      %1214 = vdwg.mxu0
      %v1231 = vunpack.c.l.b16 %v726
      %v1232 = vunpack.c.l.b16 %v727
      %v1233 = vunpack.c.l.b16 %v728
      %v1234 = vunpack.c.l.b16 %v729
      %v1235 = vunpack.c.l.b16 %v730
      %v1236 = vunpack.c.l.b16 %v731
      %v1237 = vunpack.c.l.b16 %v732
      %v1238 = vunpack.c.l.b16 %v733
      %v1239 = vunpack.c.l.b16 %v734
      %v1240 = vunpack.c.l.b16 %v735
      %v1241 = vunpack.c.l.b16 %v736
      %v1242 = vunpack.c.l.b16 %v737
      %v1243 = vunpack.c.l.b16 %v738
      %v1244 = vunpack.c.l.b16 %v739
      %v1245 = vunpack.c.l.b16 %v740
      %v1246 = vunpack.c.l.b16 %v741
      %v1247 = vpack.c.b16 %v1232, %v1231
      %v1248 = vpack.c.b16 %v1234, %v1233
      %v1249 = vpack.c.b16 %v1236, %v1235
      %v1250 = vpack.c.b16 %v1238, %v1237
      %v1251 = vpack.c.b16 %v1240, %v1239
      %v1252 = vpack.c.b16 %v1242, %v1241
      %v1253 = vpack.c.b16 %v1244, %v1243
      %v1254 = vpack.c.b16 %v1246, %v1245
      %1263 = vmatprep.subr.bf16.mxu0 0
      %1264 = vmatpush1.bf16.msra.mxu0 %v1247
      %1265 = vmatprep.subr.bf16.mxu0 0
      %1266 = vmatpush1.bf16.msra.mxu0 %v1248
      %1267 = vmatprep.subr.bf16.mxu0 0
      %1268 = vmatpush1.bf16.msra.mxu0 %v1249
      %1269 = vmatprep.subr.bf16.mxu0 0
      %1270 = vmatpush1.bf16.msra.mxu0 %v1250
      %1271 = vmatprep.subr.bf16.mxu0 0
      %1272 = vmatpush1.bf16.msra.mxu0 %v1251
      %1273 = vmatprep.subr.bf16.mxu0 0
      %1274 = vmatpush1.bf16.msra.mxu0 %v1252
      %1275 = vmatprep.subr.bf16.mxu0 0
      %1276 = vmatpush1.bf16.msra.mxu0 %v1253
      %1277 = vmatprep.subr.bf16.mxu0 0
      %1278 = vmatpush1.bf16.msra.mxu0 %v1254
      %1279 = vmatprep.subr.bf16.mxu0 0
      %1280 = vmatpush1.bf16.msra.mxu0 0
      %1281 = vmatprep.subr.bf16.mxu0 0
      %1282 = vmatpush1.bf16.msra.mxu0 0
      %1283 = vmatprep.subr.bf16.mxu0 0
      %1284 = vmatpush1.bf16.msra.mxu0 0
      %1285 = vmatprep.subr.bf16.mxu0 0
      %1286 = vmatpush1.bf16.msra.mxu0 0
      %1287 = vmatprep.subr.bf16.mxu0 0
      %1288 = vmatpush1.bf16.msra.mxu0 0
      %1289 = vmatprep.subr.bf16.mxu0 0
      %1290 = vmatpush1.bf16.msra.mxu0 0
      %1291 = vmatprep.subr.bf16.mxu0 0
      %1292 = vmatpush1.bf16.msra.mxu0 0
      %1293 = vmatprep.subr.bf16.mxu0 0
      %1294 = vmatpush1.bf16.msra.mxu0 0
      %1295 = vmatprep.mubr.bf16.mxu0 0
      %1296 = vmatmul.mubr.bf16.gmra.mrb[0].mxu0 %v870
      %v1297 = vpop.f32.mrb[0].mxu0
      %v1298 = vpop.f32.mrb[0].mxu0
      %v1299 = vpop.f32.mrb[0].mxu0
      %v1300 = vpop.f32.mrb[0].mxu0
      %1301 = vmatprep.mubr.bf16.mxu0 0
      %1302 = vmatmul.mubr.bf16.gmra.mrb[0].mxu0 %v871
      %v1303 = vpop.f32.mrb[0].mxu0
      %v1304 = vpop.f32.mrb[0].mxu0
      %v1305 = vpop.f32.mrb[0].mxu0
      %v1306 = vadd.f32 %v1015, %v1305
      %v1307 = vpop.f32.mrb[0].mxu0
      %1308 = vmatprep.mubr.bf16.mxu0 0
      %1309 = vmatmul.mubr.bf16.gmra.mrb[0].mxu0 %v872
      %v1310 = vpop.f32.mrb[0].mxu0
      %v1311 = vadd.f32 %v1020, %v1310
      %v1312 = vpop.f32.mrb[0].mxu0
      %v1313 = vpop.f32.mrb[0].mxu0
      %v1314 = vadd.f32 %v1023, %v1313
      %v1315 = vpop.f32.mrb[0].mxu0
      %1316 = vmatprep.mubr.bf16.mxu0 0
      %1317 = vmatmul.mubr.bf16.gmra.mrb[0].mxu0 %v873
      %v1318 = vpop.f32.mrb[0].mxu0
      %v1319 = vadd.f32 %v1028, %v1318
      %v1320 = vpop.f32.mrb[0].mxu0
      %v1321 = vpop.f32.mrb[0].mxu0
      %v1322 = vadd.f32 %v1031, %v1321
      %v1323 = vpop.f32.mrb[0].mxu0
      %1324 = vmatprep.mubr.bf16.mxu0 0
      %1325 = vmatmul.mubr.bf16.gmra.mrb[0].mxu0 %v874
      %v1326 = vpop.f32.mrb[0].mxu0
      %v1327 = vadd.f32 %v1036, %v1326
      %v1328 = vpop.f32.mrb[0].mxu0
      %v1329 = vpop.f32.mrb[0].mxu0
      %v1330 = vadd.f32 %v1039, %v1329
      %v1331 = vpop.f32.mrb[0].mxu0
      %1332 = vmatprep.mubr.bf16.mxu0 0
      %1333 = vmatmul.mubr.bf16.gmra.mrb[0].mxu0 %v875
      %v1334 = vpop.f32.mrb[0].mxu0
      %v1335 = vadd.f32 %v1044, %v1334
      %v1336 = vpop.f32.mrb[0].mxu0
      %v1337 = vpop.f32.mrb[0].mxu0
      %v1338 = vadd.f32 %v1047, %v1337
      %v1339 = vpop.f32.mrb[0].mxu0
      %1340 = vmatprep.mubr.bf16.mxu0 0
      %1341 = vmatmul.mubr.bf16.gmra.mrb[0].mxu0 %v876
      %v1342 = vpop.f32.mrb[0].mxu0
      %v1343 = vadd.f32 %v1052, %v1342
      %v1344 = vpop.f32.mrb[0].mxu0
      %v1345 = vpop.f32.mrb[0].mxu0
      %v1346 = vadd.f32 %v1055, %v1345
      %v1347 = vpop.f32.mrb[0].mxu0
      %1348 = vmatprep.mubr.bf16.mxu0 0
      %1349 = vmatmul.mubr.bf16.gmra.mrb[0].mxu0 %v877
      %v1350 = vpop.f32.mrb[0].mxu0
      %v1351 = vadd.f32 %v1060, %v1350
      %v1352 = vpop.f32.mrb[0].mxu0
      %v1353 = vpop.f32.mrb[0].mxu0
      %v1354 = vadd.f32 %v1063, %v1353
      %v1355 = vpop.f32.mrb[0].mxu0
      %1356 = vmatprep.mubr.bf16.mxu0 0
      %1357 = vmatmul.mubr.bf16.gmra.mrb[0].mxu0 %v878
      %v1358 = vpop.f32.mrb[0].mxu0
      %v1359 = vadd.f32 %v1068, %v1358
      %v1360 = vpop.f32.mrb[0].mxu0
      %v1361 = vpop.f32.mrb[0].mxu0
      %v1362 = vadd.f32 %v1071, %v1361
      %v1363 = vpop.f32.mrb[0].mxu0
      %1364 = vmatprep.mubr.bf16.mxu0 0
      %1365 = vmatmul.mubr.bf16.gmra.mrb[0].mxu0 %v879
      %v1366 = vpop.f32.mrb[0].mxu0
      %v1367 = vadd.f32 %v1076, %v1366
      %v1368 = vpop.f32.mrb[0].mxu0
      %v1369 = vpop.f32.mrb[0].mxu0
      %v1370 = vadd.f32 %v1079, %v1369
      %v1371 = vpop.f32.mrb[0].mxu0
      %1372 = vmatprep.mubr.bf16.mxu0 0
      %1373 = vmatmul.mubr.bf16.gmra.mrb[0].mxu0 %v880
      %v1374 = vpop.f32.mrb[0].mxu0
      %v1375 = vadd.f32 %v1084, %v1374
      %v1376 = vpop.f32.mrb[0].mxu0
      %v1377 = vpop.f32.mrb[0].mxu0
      %v1378 = vadd.f32 %v1087, %v1377
      %v1379 = vpop.f32.mrb[0].mxu0
      %1380 = vmatprep.mubr.bf16.mxu0 0
      %1381 = vmatmul.mubr.bf16.gmra.mrb[0].mxu0 %v881
      %v1382 = vpop.f32.mrb[0].mxu0
      %v1383 = vadd.f32 %v1092, %v1382
      %v1384 = vpop.f32.mrb[0].mxu0
      %v1385 = vpop.f32.mrb[0].mxu0
      %v1386 = vadd.f32 %v1095, %v1385
      %v1387 = vpop.f32.mrb[0].mxu0
      %1388 = vmatprep.mubr.bf16.mxu0 0
      %1389 = vmatmul.mubr.bf16.gmra.mrb[0].mxu0 %v882
      %v1390 = vpop.f32.mrb[0].mxu0
      %v1391 = vadd.f32 %v1100, %v1390
      %v1392 = vpop.f32.mrb[0].mxu0
      %v1393 = vpop.f32.mrb[0].mxu0
      %v1394 = vadd.f32 %v1103, %v1393
      %v1395 = vpop.f32.mrb[0].mxu0
      %1396 = vmatprep.mubr.bf16.mxu0 0
      %1397 = vmatmul.mubr.bf16.gmra.mrb[0].mxu0 %v883
      %v1398 = vpop.f32.mrb[0].mxu0
      %v1399 = vadd.f32 %v1108, %v1398
      %v1400 = vpop.f32.mrb[0].mxu0
      %v1401 = vpop.f32.mrb[0].mxu0
      %v1402 = vadd.f32 %v1111, %v1401
      %v1403 = vpop.f32.mrb[0].mxu0
      %1404 = vmatprep.mubr.bf16.mxu0 0
      %1405 = vmatmul.mubr.bf16.gmra.mrb[0].mxu0 %v884
      %v1406 = vpop.f32.mrb[0].mxu0
      %v1407 = vadd.f32 %v1116, %v1406
      %v1408 = vpop.f32.mrb[0].mxu0
      %v1409 = vpop.f32.mrb[0].mxu0
      %v1410 = vadd.f32 %v1119, %v1409
      %v1411 = vpop.f32.mrb[0].mxu0
      %1412 = vmatprep.mubr.bf16.mxu0 0
      %1413 = vmatmul.mubr.bf16.gmra.mrb[0].mxu0 %v885
      %v1414 = vpop.f32.mrb[0].mxu0
      %v1415 = vadd.f32 %v1124, %v1414
      %v1416 = vpop.f32.mrb[0].mxu0
      %v1417 = vpop.f32.mrb[0].mxu0
      %v1418 = vadd.f32 %v1127, %v1417
      %v1419 = vpop.f32.mrb[0].mxu0
      %1420 = vmatprep.mubr.bf16.mxu0 0
      %1421 = vmatmul.mubr.bf16.gmra.mrb[0].mxu0 %v886
      %v1422 = vpop.f32.mrb[0].mxu0
      %v1423 = vadd.f32 %v1132, %v1422
      %v1424 = vpop.f32.mrb[0].mxu0
      %v1425 = vpop.f32.mrb[0].mxu0
      %v1426 = vadd.f32 %v1135, %v1425
      %v1427 = vpop.f32.mrb[0].mxu0
      %1428 = vmatprep.mubr.bf16.mxu0 0
      %1429 = vmatmul.mubr.bf16.gmra.mrb[0].mxu0 %v887
      %v1430 = vpop.f32.mrb[0].mxu0
      %v1431 = vadd.f32 %v1140, %v1430
      %v1432 = vpop.f32.mrb[0].mxu0
      %v1433 = vpop.f32.mrb[0].mxu0
      %v1434 = vadd.f32 %v1143, %v1433
      %v1435 = vpop.f32.mrb[0].mxu0
      %1436 = vmatprep.mubr.bf16.mxu0 0
      %1437 = vmatmul.mubr.bf16.gmra.mrb[0].mxu0 %v888
      %v1438 = vpop.f32.mrb[0].mxu0
      %v1439 = vadd.f32 %v1148, %v1438
      %v1440 = vpop.f32.mrb[0].mxu0
      %v1441 = vpop.f32.mrb[0].mxu0
      %v1442 = vadd.f32 %v1151, %v1441
      %v1443 = vpop.f32.mrb[0].mxu0
      %1444 = vmatprep.mubr.bf16.mxu0 0
      %1445 = vmatmul.mubr.bf16.gmra.mrb[0].mxu0 %v889
      %v1446 = vpop.f32.mrb[0].mxu0
      %v1447 = vadd.f32 %v1156, %v1446
      %v1448 = vpop.f32.mrb[0].mxu0
      %v1449 = vpop.f32.mrb[0].mxu0
      %v1450 = vadd.f32 %v1159, %v1449
      %v1451 = vpop.f32.mrb[0].mxu0
      %1452 = vmatprep.mubr.bf16.mxu0 0
      %1453 = vmatmul.mubr.bf16.gmra.mrb[0].mxu0 %v890
      %v1454 = vpop.f32.mrb[0].mxu0
      %v1455 = vadd.f32 %v1164, %v1454
      %v1456 = vpop.f32.mrb[0].mxu0
      %v1457 = vpop.f32.mrb[0].mxu0
      %v1458 = vadd.f32 %v1167, %v1457
      %v1459 = vpop.f32.mrb[0].mxu0
      %1460 = vmatprep.mubr.bf16.mxu0 0
      %1461 = vmatmul.mubr.bf16.gmra.mrb[0].mxu0 %v891
      %v1462 = vpop.f32.mrb[0].mxu0
      %v1463 = vadd.f32 %v1172, %v1462
      %v1464 = vpop.f32.mrb[0].mxu0
      %v1465 = vpop.f32.mrb[0].mxu0
      %v1466 = vadd.f32 %v1175, %v1465
      %v1467 = vpop.f32.mrb[0].mxu0
      %1468 = vmatprep.mubr.bf16.mxu0 0
      %1469 = vmatmul.mubr.bf16.gmra.mrb[0].mxu0 %v892
      %v1470 = vpop.f32.mrb[0].mxu0
      %v1471 = vadd.f32 %v1180, %v1470
      %v1472 = vpop.f32.mrb[0].mxu0
      %v1473 = vpop.f32.mrb[0].mxu0
      %v1474 = vadd.f32 %v1183, %v1473
      %v1475 = vpop.f32.mrb[0].mxu0
      %1476 = vmatprep.mubr.bf16.mxu0 0
      %1477 = vmatmul.mubr.bf16.gmra.mrb[0].mxu0 %v893
      %v1478 = vpop.f32.mrb[0].mxu0
      %v1479 = vadd.f32 %v1188, %v1478
      %v1480 = vpop.f32.mrb[0].mxu0
      %v1481 = vpop.f32.mrb[0].mxu0
      %v1482 = vadd.f32 %v1191, %v1481
      %v1483 = vpop.f32.mrb[0].mxu0
      %1484 = vmatprep.mubr.bf16.mxu0 0
      %1485 = vmatmul.mubr.bf16.gmra.mrb[0].mxu0 %v894
      %v1486 = vpop.f32.mrb[0].mxu0
      %v1487 = vadd.f32 %v1196, %v1486
      %v1488 = vpop.f32.mrb[0].mxu0
      %v1489 = vpop.f32.mrb[0].mxu0
      %v1490 = vadd.f32 %v1199, %v1489
      %v1491 = vpop.f32.mrb[0].mxu0
      %1492 = vmatprep.mubr.bf16.mxu0 0
      %1493 = vmatmul.mubr.bf16.gmra.mrb[0].mxu0 %v895
      %v1494 = vpop.f32.mrb[0].mxu0
      %v1495 = vadd.f32 %v1204, %v1494
      %v1496 = vpop.f32.mrb[0].mxu0
      %v1497 = vpop.f32.mrb[0].mxu0
      %v1498 = vpop.f32.mrb[0].mxu0
      %1499 = vmatprep.mubr.bf16.mxu0 0
      %1500 = vmatmul.mubr.bf16.gmra.mrb[0].mxu0 %v896
      %v1501 = vpop.f32.mrb[0].mxu0
      %v1502 = vpop.f32.mrb[0].mxu0
      %v1503 = vpop.f32.mrb[0].mxu0
      %v1504 = vpop.f32.mrb[0].mxu0
      %1505 = vdwg.mxu0
      %v1506 = vpack.c.bf16 %v723, %v724
      %v1507 = vpack.c.bf16 %v721, %v722
      %v1508 = vpack.c.bf16 %v719, %v720
      %v1509 = vpack.c.bf16 %v717, %v718
      %v1510 = vpack.c.bf16 %v715, %v716
      %v1511 = vpack.c.bf16 %v713, %v714
      %v1512 = vpack.c.bf16 %v711, %v712
      %v1513 = vpack.c.bf16 %v709, %v710
      %v1514 = vpack.c.bf16 %v707, %v708
      %v1515 = vpack.c.bf16 %v705, %v706
      %v1516 = vpack.c.bf16 %v703, %v704
      %v1517 = vpack.c.bf16 %v701, %v702
      %v1518 = vpack.c.bf16 %v699, %v700
      %v1519 = vpack.c.bf16 %v697, %v698
      %v1520 = vpack.c.bf16 %v695, %v696
      %v1521 = vpack.c.bf16 %v693, %v694
      %v1522 = vpack.c.bf16 %v691, %v692
      %v1523 = vpack.c.bf16 %v689, %v690
      %v1524 = vpack.c.bf16 %v687, %v688
      %v1525 = vpack.c.bf16 %v685, %v686
      %v1526 = vpack.c.bf16 %v683, %v684
      %v1527 = vpack.c.bf16 %v681, %v682
      %v1528 = vpack.c.bf16 %v679, %v680
      %v1529 = vpack.c.bf16 %v677, %v678
      %v1530 = vpack.c.bf16 %v675, %v676
      %v1531 = vpack.c.bf16 %v673, %v674
      %v1532 = vpack.c.bf16 %v671, %v672
      %v1549 = vunpack.c.l.b16 %v758
      %v1550 = vunpack.c.l.b16 %v759
      %v1551 = vunpack.c.l.b16 %v760
      %v1552 = vunpack.c.l.b16 %v761
      %v1553 = vunpack.c.l.b16 %v762
      %v1554 = vunpack.c.l.b16 %v763
      %v1555 = vunpack.c.l.b16 %v764
      %v1556 = vunpack.c.l.b16 %v765
      %v1557 = vunpack.c.l.b16 %v766
      %v1558 = vunpack.c.l.b16 %v767
      %v1559 = vunpack.c.l.b16 %v768
      %v1560 = vunpack.c.l.b16 %v769
      %v1561 = vunpack.c.l.b16 %v770
      %v1562 = vunpack.c.l.b16 %v771
      %v1563 = vunpack.c.l.b16 %v772
      %v1564 = vunpack.c.l.b16 %v773
      %v1565 = vpack.c.b16 %v1550, %v1549
      %v1566 = vpack.c.b16 %v1552, %v1551
      %v1567 = vpack.c.b16 %v1554, %v1553
      %v1568 = vpack.c.b16 %v1556, %v1555
      %v1569 = vpack.c.b16 %v1558, %v1557
      %v1570 = vpack.c.b16 %v1560, %v1559
      %v1571 = vpack.c.b16 %v1562, %v1561
      %v1572 = vpack.c.b16 %v1564, %v1563
      %1581 = vmatprep.subr.bf16.mxu0 0
      %1582 = vmatpush1.bf16.msra.mxu0 %v1565
      %1583 = vmatprep.subr.bf16.mxu0 0
      %1584 = vmatpush1.bf16.msra.mxu0 %v1566
      %1585 = vmatprep.subr.bf16.mxu0 0
      %1586 = vmatpush1.bf16.msra.mxu0 %v1567
      %1587 = vmatprep.subr.bf16.mxu0 0
      %1588 = vmatpush1.bf16.msra.mxu0 %v1568
      %1589 = vmatprep.subr.bf16.mxu0 0
      %1590 = vmatpush1.bf16.msra.mxu0 %v1569
      %1591 = vmatprep.subr.bf16.mxu0 0
      %1592 = vmatpush1.bf16.msra.mxu0 %v1570
      %1593 = vmatprep.subr.bf16.mxu0 0
      %1594 = vmatpush1.bf16.msra.mxu0 %v1571
      %1595 = vmatprep.subr.bf16.mxu0 0
      %1596 = vmatpush1.bf16.msra.mxu0 %v1572
      %1597 = vmatprep.subr.bf16.mxu0 0
      %1598 = vmatpush1.bf16.msra.mxu0 0
      %1599 = vmatprep.subr.bf16.mxu0 0
      %1600 = vmatpush1.bf16.msra.mxu0 0
      %1601 = vmatprep.subr.bf16.mxu0 0
      %1602 = vmatpush1.bf16.msra.mxu0 0
      %1603 = vmatprep.subr.bf16.mxu0 0
      %1604 = vmatpush1.bf16.msra.mxu0 0
      %1605 = vmatprep.subr.bf16.mxu0 0
      %1606 = vmatpush1.bf16.msra.mxu0 0
      %1607 = vmatprep.subr.bf16.mxu0 0
      %1608 = vmatpush1.bf16.msra.mxu0 0
      %1609 = vmatprep.subr.bf16.mxu0 0
      %1610 = vmatpush1.bf16.msra.mxu0 0
      %1611 = vmatprep.subr.bf16.mxu0 0
      %1612 = vmatpush1.bf16.msra.mxu0 0
      %1613 = vmatprep.mubr.bf16.mxu0 0
      %1614 = vmatmul.mubr.bf16.gmra.mrb[0].mxu0 %v1506
      %v1615 = vpop.f32.mrb[0].mxu0
      %v1616 = vpop.f32.mrb[0].mxu0
      %v1617 = vpop.f32.mrb[0].mxu0
      %v1618 = vpop.f32.mrb[0].mxu0
      %1619 = vmatprep.mubr.bf16.mxu0 0
      %1620 = vmatmul.mubr.bf16.gmra.mrb[0].mxu0 %v1507
      %v1621 = vpop.f32.mrb[0].mxu0
      %v1622 = vpop.f32.mrb[0].mxu0
      %v1623 = vpop.f32.mrb[0].mxu0
      %v1624 = vadd.f32 0.0, %v1623
      %v1625 = vpop.f32.mrb[0].mxu0
      %1626 = vmatprep.mubr.bf16.mxu0 0
      %1627 = vmatmul.mubr.bf16.gmra.mrb[0].mxu0 %v1508
      %v1628 = vpop.f32.mrb[0].mxu0
      %v1629 = vadd.f32 0.0, %v1628
      %v1630 = vpop.f32.mrb[0].mxu0
      %v1631 = vpop.f32.mrb[0].mxu0
      %v1632 = vadd.f32 0.0, %v1631
      %v1633 = vpop.f32.mrb[0].mxu0
      %1634 = vmatprep.mubr.bf16.mxu0 0
      %1635 = vmatmul.mubr.bf16.gmra.mrb[0].mxu0 %v1509
      %v1636 = vpop.f32.mrb[0].mxu0
      %v1637 = vadd.f32 0.0, %v1636
      %v1638 = vpop.f32.mrb[0].mxu0
      %v1639 = vpop.f32.mrb[0].mxu0
      %v1640 = vadd.f32 0.0, %v1639
      %v1641 = vpop.f32.mrb[0].mxu0
      %1642 = vmatprep.mubr.bf16.mxu0 0
      %1643 = vmatmul.mubr.bf16.gmra.mrb[0].mxu0 %v1510
      %v1644 = vpop.f32.mrb[0].mxu0
      %v1645 = vadd.f32 0.0, %v1644
      %v1646 = vpop.f32.mrb[0].mxu0
      %v1647 = vpop.f32.mrb[0].mxu0
      %v1648 = vadd.f32 0.0, %v1647
      %v1649 = vpop.f32.mrb[0].mxu0
      %1650 = vmatprep.mubr.bf16.mxu0 0
      %1651 = vmatmul.mubr.bf16.gmra.mrb[0].mxu0 %v1511
      %v1652 = vpop.f32.mrb[0].mxu0
      %v1653 = vadd.f32 0.0, %v1652
      %v1654 = vpop.f32.mrb[0].mxu0
      %v1655 = vpop.f32.mrb[0].mxu0
      %v1656 = vadd.f32 0.0, %v1655
      %v1657 = vpop.f32.mrb[0].mxu0
      %1658 = vmatprep.mubr.bf16.mxu0 0
      %1659 = vmatmul.mubr.bf16.gmra.mrb[0].mxu0 %v1512
      %v1660 = vpop.f32.mrb[0].mxu0
      %v1661 = vadd.f32 0.0, %v1660
      %v1662 = vpop.f32.mrb[0].mxu0
      %v1663 = vpop.f32.mrb[0].mxu0
      %v1664 = vadd.f32 0.0, %v1663
      %v1665 = vpop.f32.mrb[0].mxu0
      %1666 = vmatprep.mubr.bf16.mxu0 0
      %1667 = vmatmul.mubr.bf16.gmra.mrb[0].mxu0 %v1513
      %v1668 = vpop.f32.mrb[0].mxu0
      %v1669 = vadd.f32 0.0, %v1668
      %v1670 = vpop.f32.mrb[0].mxu0
      %v1671 = vpop.f32.mrb[0].mxu0
      %v1672 = vadd.f32 0.0, %v1671
      %v1673 = vpop.f32.mrb[0].mxu0
      %1674 = vmatprep.mubr.bf16.mxu0 0
      %1675 = vmatmul.mubr.bf16.gmra.mrb[0].mxu0 %v1514
      %v1676 = vpop.f32.mrb[0].mxu0
      %v1677 = vadd.f32 0.0, %v1676
      %v1678 = vpop.f32.mrb[0].mxu0
      %v1679 = vpop.f32.mrb[0].mxu0
      %v1680 = vadd.f32 0.0, %v1679
      %v1681 = vpop.f32.mrb[0].mxu0
      %1682 = vmatprep.mubr.bf16.mxu0 0
      %1683 = vmatmul.mubr.bf16.gmra.mrb[0].mxu0 %v1515
      %v1684 = vpop.f32.mrb[0].mxu0
      %v1685 = vadd.f32 0.0, %v1684
      %v1686 = vpop.f32.mrb[0].mxu0
      %v1687 = vpop.f32.mrb[0].mxu0
      %v1688 = vadd.f32 0.0, %v1687
      %v1689 = vpop.f32.mrb[0].mxu0
      %1690 = vmatprep.mubr.bf16.mxu0 0
      %1691 = vmatmul.mubr.bf16.gmra.mrb[0].mxu0 %v1516
      %v1692 = vpop.f32.mrb[0].mxu0
      %v1693 = vadd.f32 0.0, %v1692
      %v1694 = vpop.f32.mrb[0].mxu0
      %v1695 = vpop.f32.mrb[0].mxu0
      %v1696 = vadd.f32 0.0, %v1695
      %v1697 = vpop.f32.mrb[0].mxu0
      %1698 = vmatprep.mubr.bf16.mxu0 0
      %1699 = vmatmul.mubr.bf16.gmra.mrb[0].mxu0 %v1517
      %v1700 = vpop.f32.mrb[0].mxu0
      %v1701 = vadd.f32 0.0, %v1700
      %v1702 = vpop.f32.mrb[0].mxu0
      %v1703 = vpop.f32.mrb[0].mxu0
      %v1704 = vadd.f32 0.0, %v1703
      %v1705 = vpop.f32.mrb[0].mxu0
      %1706 = vmatprep.mubr.bf16.mxu0 0
      %1707 = vmatmul.mubr.bf16.gmra.mrb[0].mxu0 %v1518
      %v1708 = vpop.f32.mrb[0].mxu0
      %v1709 = vadd.f32 0.0, %v1708
      %v1710 = vpop.f32.mrb[0].mxu0
      %v1711 = vpop.f32.mrb[0].mxu0
      %v1712 = vadd.f32 0.0, %v1711
      %v1713 = vpop.f32.mrb[0].mxu0
      %1714 = vmatprep.mubr.bf16.mxu0 0
      %1715 = vmatmul.mubr.bf16.gmra.mrb[0].mxu0 %v1519
      %v1716 = vpop.f32.mrb[0].mxu0
      %v1717 = vadd.f32 0.0, %v1716
      %v1718 = vpop.f32.mrb[0].mxu0
      %v1719 = vpop.f32.mrb[0].mxu0
      %v1720 = vadd.f32 0.0, %v1719
      %v1721 = vpop.f32.mrb[0].mxu0
      %1722 = vmatprep.mubr.bf16.mxu0 0
      %1723 = vmatmul.mubr.bf16.gmra.mrb[0].mxu0 %v1520
      %v1724 = vpop.f32.mrb[0].mxu0
      %v1725 = vadd.f32 0.0, %v1724
      %v1726 = vpop.f32.mrb[0].mxu0
      %v1727 = vpop.f32.mrb[0].mxu0
      %v1728 = vadd.f32 0.0, %v1727
      %v1729 = vpop.f32.mrb[0].mxu0
      %1730 = vmatprep.mubr.bf16.mxu0 0
      %1731 = vmatmul.mubr.bf16.gmra.mrb[0].mxu0 %v1521
      %v1732 = vpop.f32.mrb[0].mxu0
      %v1733 = vadd.f32 0.0, %v1732
      %v1734 = vpop.f32.mrb[0].mxu0
      %v1735 = vpop.f32.mrb[0].mxu0
      %v1736 = vadd.f32 0.0, %v1735
      %v1737 = vpop.f32.mrb[0].mxu0
      %1738 = vmatprep.mubr.bf16.mxu0 0
      %1739 = vmatmul.mubr.bf16.gmra.mrb[0].mxu0 %v1522
      %v1740 = vpop.f32.mrb[0].mxu0
      %v1741 = vadd.f32 0.0, %v1740
      %v1742 = vpop.f32.mrb[0].mxu0
      %v1743 = vpop.f32.mrb[0].mxu0
      %v1744 = vadd.f32 0.0, %v1743
      %v1745 = vpop.f32.mrb[0].mxu0
      %1746 = vmatprep.mubr.bf16.mxu0 0
      %1747 = vmatmul.mubr.bf16.gmra.mrb[0].mxu0 %v1523
      %v1748 = vpop.f32.mrb[0].mxu0
      %v1749 = vadd.f32 0.0, %v1748
      %v1750 = vpop.f32.mrb[0].mxu0
      %v1751 = vpop.f32.mrb[0].mxu0
      %v1752 = vadd.f32 0.0, %v1751
      %v1753 = vpop.f32.mrb[0].mxu0
      %1754 = vmatprep.mubr.bf16.mxu0 0
      %1755 = vmatmul.mubr.bf16.gmra.mrb[0].mxu0 %v1524
      %v1756 = vpop.f32.mrb[0].mxu0
      %v1757 = vadd.f32 0.0, %v1756
      %v1758 = vpop.f32.mrb[0].mxu0
      %v1759 = vpop.f32.mrb[0].mxu0
      %v1760 = vadd.f32 0.0, %v1759
      %v1761 = vpop.f32.mrb[0].mxu0
      %1762 = vmatprep.mubr.bf16.mxu0 0
      %1763 = vmatmul.mubr.bf16.gmra.mrb[0].mxu0 %v1525
      %v1764 = vpop.f32.mrb[0].mxu0
      %v1765 = vadd.f32 0.0, %v1764
      %v1766 = vpop.f32.mrb[0].mxu0
      %v1767 = vpop.f32.mrb[0].mxu0
      %v1768 = vadd.f32 0.0, %v1767
      %v1769 = vpop.f32.mrb[0].mxu0
      %1770 = vmatprep.mubr.bf16.mxu0 0
      %1771 = vmatmul.mubr.bf16.gmra.mrb[0].mxu0 %v1526
      %v1772 = vpop.f32.mrb[0].mxu0
      %v1773 = vadd.f32 0.0, %v1772
      %v1774 = vpop.f32.mrb[0].mxu0
      %v1775 = vpop.f32.mrb[0].mxu0
      %v1776 = vadd.f32 0.0, %v1775
      %v1777 = vpop.f32.mrb[0].mxu0
      %1778 = vmatprep.mubr.bf16.mxu0 0
      %1779 = vmatmul.mubr.bf16.gmra.mrb[0].mxu0 %v1527
      %v1780 = vpop.f32.mrb[0].mxu0
      %v1781 = vadd.f32 0.0, %v1780
      %v1782 = vpop.f32.mrb[0].mxu0
      %v1783 = vpop.f32.mrb[0].mxu0
      %v1784 = vadd.f32 0.0, %v1783
      %v1785 = vpop.f32.mrb[0].mxu0
      %1786 = vmatprep.mubr.bf16.mxu0 0
      %1787 = vmatmul.mubr.bf16.gmra.mrb[0].mxu0 %v1528
      %v1788 = vpop.f32.mrb[0].mxu0
      %v1789 = vadd.f32 0.0, %v1788
      %v1790 = vpop.f32.mrb[0].mxu0
      %v1791 = vpop.f32.mrb[0].mxu0
      %v1792 = vadd.f32 0.0, %v1791
      %v1793 = vpop.f32.mrb[0].mxu0
      %1794 = vmatprep.mubr.bf16.mxu0 0
      %1795 = vmatmul.mubr.bf16.gmra.mrb[0].mxu0 %v1529
      %v1796 = vpop.f32.mrb[0].mxu0
      %v1797 = vadd.f32 0.0, %v1796
      %v1798 = vpop.f32.mrb[0].mxu0
      %v1799 = vpop.f32.mrb[0].mxu0
      %v1800 = vadd.f32 0.0, %v1799
      %v1801 = vpop.f32.mrb[0].mxu0
      %1802 = vmatprep.mubr.bf16.mxu0 0
      %1803 = vmatmul.mubr.bf16.gmra.mrb[0].mxu0 %v1530
      %v1804 = vpop.f32.mrb[0].mxu0
      %v1805 = vadd.f32 0.0, %v1804
      %v1806 = vpop.f32.mrb[0].mxu0
      %v1807 = vpop.f32.mrb[0].mxu0
      %v1808 = vadd.f32 0.0, %v1807
      %v1809 = vpop.f32.mrb[0].mxu0
      %1810 = vmatprep.mubr.bf16.mxu0 0
      %1811 = vmatmul.mubr.bf16.gmra.mrb[0].mxu0 %v1531
      %v1812 = vpop.f32.mrb[0].mxu0
      %v1813 = vadd.f32 0.0, %v1812
      %v1814 = vpop.f32.mrb[0].mxu0
      %v1815 = vpop.f32.mrb[0].mxu0
      %v1816 = vpop.f32.mrb[0].mxu0
      %1817 = vmatprep.mubr.bf16.mxu0 0
      %1818 = vmatmul.mubr.bf16.gmra.mrb[0].mxu0 %v1532
      %v1819 = vpop.f32.mrb[0].mxu0
      %v1820 = vpop.f32.mrb[0].mxu0
      %v1821 = vpop.f32.mrb[0].mxu0
      %v1822 = vpop.f32.mrb[0].mxu0
      %1823 = vdwg.mxu0
      %v1824 = vadd.f32 %v1306, %v1624
      %v1825 = vadd.f32 %v1311, %v1629
      %v1826 = vadd.f32 %v1314, %v1632
      %v1827 = vadd.f32 %v1319, %v1637
      %v1828 = vadd.f32 %v1322, %v1640
      %v1829 = vadd.f32 %v1327, %v1645
      %v1830 = vadd.f32 %v1330, %v1648
      %v1831 = vadd.f32 %v1335, %v1653
      %v1832 = vadd.f32 %v1338, %v1656
      %v1833 = vadd.f32 %v1343, %v1661
      %v1834 = vadd.f32 %v1346, %v1664
      %v1835 = vadd.f32 %v1351, %v1669
      %v1836 = vadd.f32 %v1354, %v1672
      %v1837 = vadd.f32 %v1359, %v1677
      %v1838 = vadd.f32 %v1362, %v1680
      %v1839 = vadd.f32 %v1367, %v1685
      %v1840 = vadd.f32 %v1370, %v1688
      %v1841 = vadd.f32 %v1375, %v1693
      %v1842 = vadd.f32 %v1378, %v1696
      %v1843 = vadd.f32 %v1383, %v1701
      %v1844 = vadd.f32 %v1386, %v1704
      %v1845 = vadd.f32 %v1391, %v1709
      %v1846 = vadd.f32 %v1394, %v1712
      %v1847 = vadd.f32 %v1399, %v1717
      %v1848 = vadd.f32 %v1402, %v1720
      %v1849 = vadd.f32 %v1407, %v1725
      %v1850 = vadd.f32 %v1410, %v1728
      %v1851 = vadd.f32 %v1415, %v1733
      %v1852 = vadd.f32 %v1418, %v1736
      %v1853 = vadd.f32 %v1423, %v1741
      %v1854 = vadd.f32 %v1426, %v1744
      %v1855 = vadd.f32 %v1431, %v1749
      %v1856 = vadd.f32 %v1434, %v1752
      %v1857 = vadd.f32 %v1439, %v1757
      %v1858 = vadd.f32 %v1442, %v1760
      %v1859 = vadd.f32 %v1447, %v1765
      %v1860 = vadd.f32 %v1450, %v1768
      %v1861 = vadd.f32 %v1455, %v1773
      %v1862 = vadd.f32 %v1458, %v1776
      %v1863 = vadd.f32 %v1463, %v1781
      %v1864 = vadd.f32 %v1466, %v1784
      %v1865 = vadd.f32 %v1471, %v1789
      %v1866 = vadd.f32 %v1474, %v1792
      %v1867 = vadd.f32 %v1479, %v1797
      %v1868 = vadd.f32 %v1482, %v1800
      %v1869 = vadd.f32 %v1487, %v1805
      %v1870 = vadd.f32 %v1490, %v1808
      %v1871 = vadd.f32 %v1495, %v1813
      %v1872 = vpack.c.bf16 %v426, %v425
      %v1873 = vpack.c.bf16 %v428, %v427
      %v1874 = vpack.c.bf16 %v430, %v429
      %v1875 = vpack.c.bf16 %v432, %v431
      %v1876 = vpack.c.bf16 %v434, %v433
      %v1877 = vpack.c.bf16 %v436, %v435
      %v1878 = vpack.c.bf16 %v438, %v437
      %v1879 = vpack.c.bf16 %v440, %v439
      %v1880 = vpack.c.bf16 %v442, %v441
      %v1881 = vpack.c.bf16 %v444, %v443
      %v1882 = vpack.c.bf16 %v446, %v445
      %v1883 = vpack.c.bf16 %v448, %v447
      %v1884 = vpack.c.bf16 %v450, %v449
      %v1885 = vpack.c.bf16 %v452, %v451
      %v1886 = vpack.c.bf16 %v454, %v453
      %v1887 = vpack.c.bf16 %v456, %v455
      %v1888 = vpack.c.bf16 %v458, %v457
      %v1889 = vpack.c.bf16 %v460, %v459
      %v1890 = vpack.c.bf16 %v462, %v461
      %v1891 = vpack.c.bf16 %v464, %v463
      %v1892 = vpack.c.bf16 %v466, %v465
      %v1893 = vpack.c.bf16 %v468, %v467
      %v1894 = vpack.c.bf16 %v470, %v469
      %v1895 = vpack.c.bf16 %v472, %v471
      %v1896 = vpack.c.bf16 %v474, %v473
      %v1897 = vpack.c.bf16 %v476, %v475
      %v1898 = vpack.c.bf16 %v478, %v477
      %v1915 = vunpack.c.l.b16 %v774
      %v1916 = vunpack.c.l.b16 %v775
      %v1917 = vunpack.c.l.b16 %v776
      %v1918 = vunpack.c.l.b16 %v777
      %v1919 = vunpack.c.l.b16 %v778
      %v1920 = vunpack.c.l.b16 %v779
      %v1921 = vunpack.c.l.b16 %v780
      %v1922 = vunpack.c.l.b16 %v781
      %v1923 = vunpack.c.l.b16 %v782
      %v1924 = vunpack.c.l.b16 %v783
      %v1925 = vunpack.c.l.b16 %v784
      %v1926 = vunpack.c.l.b16 %v785
      %v1927 = vunpack.c.l.b16 %v786
      %v1928 = vunpack.c.l.b16 %v787
      %v1929 = vunpack.c.l.b16 %v788
      %v1930 = vunpack.c.l.b16 %v789
      %v1931 = vpack.c.b16 %v1916, %v1915
      %v1932 = vpack.c.b16 %v1918, %v1917
      %v1933 = vpack.c.b16 %v1920, %v1919
      %v1934 = vpack.c.b16 %v1922, %v1921
      %v1935 = vpack.c.b16 %v1924, %v1923
      %v1936 = vpack.c.b16 %v1926, %v1925
      %v1937 = vpack.c.b16 %v1928, %v1927
      %v1938 = vpack.c.b16 %v1930, %v1929
      %1947 = vmatprep.subr.bf16.mxu0 0
      %1948 = vmatpush1.bf16.msra.mxu0 %v1931
      %1949 = vmatprep.subr.bf16.mxu0 0
      %1950 = vmatpush1.bf16.msra.mxu0 %v1932
      %1951 = vmatprep.subr.bf16.mxu0 0
      %1952 = vmatpush1.bf16.msra.mxu0 %v1933
      %1953 = vmatprep.subr.bf16.mxu0 0
      %1954 = vmatpush1.bf16.msra.mxu0 %v1934
      %1955 = vmatprep.subr.bf16.mxu0 0
      %1956 = vmatpush1.bf16.msra.mxu0 %v1935
      %1957 = vmatprep.subr.bf16.mxu0 0
      %1958 = vmatpush1.bf16.msra.mxu0 %v1936
      %1959 = vmatprep.subr.bf16.mxu0 0
      %1960 = vmatpush1.bf16.msra.mxu0 %v1937
      %1961 = vmatprep.subr.bf16.mxu0 0
      %1962 = vmatpush1.bf16.msra.mxu0 %v1938
      %1963 = vmatprep.subr.bf16.mxu0 0
      %1964 = vmatpush1.bf16.msra.mxu0 0
      %1965 = vmatprep.subr.bf16.mxu0 0
      %1966 = vmatpush1.bf16.msra.mxu0 0
      %1967 = vmatprep.subr.bf16.mxu0 0
      %1968 = vmatpush1.bf16.msra.mxu0 0
      %1969 = vmatprep.subr.bf16.mxu0 0
      %1970 = vmatpush1.bf16.msra.mxu0 0
      %1971 = vmatprep.subr.bf16.mxu0 0
      %1972 = vmatpush1.bf16.msra.mxu0 0
      %1973 = vmatprep.subr.bf16.mxu0 0
      %1974 = vmatpush1.bf16.msra.mxu0 0
      %1975 = vmatprep.subr.bf16.mxu0 0
      %1976 = vmatpush1.bf16.msra.mxu0 0
      %1977 = vmatprep.subr.bf16.mxu0 0
      %1978 = vmatpush1.bf16.msra.mxu0 0
      %1979 = vmatprep.mubr.bf16.mxu0 0
      %1980 = vmatmul.mubr.bf16.gmra.mrb[0].mxu0 %v1872
      %v1981 = vpop.f32.mrb[0].mxu0
      %v1982 = vpop.f32.mrb[0].mxu0
      %v1983 = vpop.f32.mrb[0].mxu0
      %v1984 = vpop.f32.mrb[0].mxu0
      %1985 = vmatprep.mubr.bf16.mxu0 0
      %1986 = vmatmul.mubr.bf16.gmra.mrb[0].mxu0 %v1873
      %v1987 = vpop.f32.mrb[0].mxu0
      %v1988 = vpop.f32.mrb[0].mxu0
      %v1989 = vpop.f32.mrb[0].mxu0
      %v1990 = vadd.f32 0.0, %v1989
      %v1991 = vpop.f32.mrb[0].mxu0
      %1992 = vmatprep.mubr.bf16.mxu0 0
      %1993 = vmatmul.mubr.bf16.gmra.mrb[0].mxu0 %v1874
      %v1994 = vpop.f32.mrb[0].mxu0
      %v1995 = vadd.f32 0.0, %v1994
      %v1996 = vpop.f32.mrb[0].mxu0
      %v1997 = vpop.f32.mrb[0].mxu0
      %v1998 = vadd.f32 0.0, %v1997
      %v1999 = vpop.f32.mrb[0].mxu0
      %2000 = vmatprep.mubr.bf16.mxu0 0
      %2001 = vmatmul.mubr.bf16.gmra.mrb[0].mxu0 %v1875
      %v2002 = vpop.f32.mrb[0].mxu0
      %v2003 = vadd.f32 0.0, %v2002
      %v2004 = vpop.f32.mrb[0].mxu0
      %v2005 = vpop.f32.mrb[0].mxu0
      %v2006 = vadd.f32 0.0, %v2005
      %v2007 = vpop.f32.mrb[0].mxu0
      %2008 = vmatprep.mubr.bf16.mxu0 0
      %2009 = vmatmul.mubr.bf16.gmra.mrb[0].mxu0 %v1876
      %v2010 = vpop.f32.mrb[0].mxu0
      %v2011 = vadd.f32 0.0, %v2010
      %v2012 = vpop.f32.mrb[0].mxu0
      %v2013 = vpop.f32.mrb[0].mxu0
      %v2014 = vadd.f32 0.0, %v2013
      %v2015 = vpop.f32.mrb[0].mxu0
      %2016 = vmatprep.mubr.bf16.mxu0 0
      %2017 = vmatmul.mubr.bf16.gmra.mrb[0].mxu0 %v1877
      %v2018 = vpop.f32.mrb[0].mxu0
      %v2019 = vadd.f32 0.0, %v2018
      %v2020 = vpop.f32.mrb[0].mxu0
      %v2021 = vpop.f32.mrb[0].mxu0
      %v2022 = vadd.f32 0.0, %v2021
      %v2023 = vpop.f32.mrb[0].mxu0
      %2024 = vmatprep.mubr.bf16.mxu0 0
      %2025 = vmatmul.mubr.bf16.gmra.mrb[0].mxu0 %v1878
      %v2026 = vpop.f32.mrb[0].mxu0
      %v2027 = vadd.f32 0.0, %v2026
      %v2028 = vpop.f32.mrb[0].mxu0
      %v2029 = vpop.f32.mrb[0].mxu0
      %v2030 = vadd.f32 0.0, %v2029
      %v2031 = vpop.f32.mrb[0].mxu0
      %2032 = vmatprep.mubr.bf16.mxu0 0
      %2033 = vmatmul.mubr.bf16.gmra.mrb[0].mxu0 %v1879
      %v2034 = vpop.f32.mrb[0].mxu0
      %v2035 = vadd.f32 0.0, %v2034
      %v2036 = vpop.f32.mrb[0].mxu0
      %v2037 = vpop.f32.mrb[0].mxu0
      %v2038 = vadd.f32 0.0, %v2037
      %v2039 = vpop.f32.mrb[0].mxu0
      %2040 = vmatprep.mubr.bf16.mxu0 0
      %2041 = vmatmul.mubr.bf16.gmra.mrb[0].mxu0 %v1880
      %v2042 = vpop.f32.mrb[0].mxu0
      %v2043 = vadd.f32 0.0, %v2042
      %v2044 = vpop.f32.mrb[0].mxu0
      %v2045 = vpop.f32.mrb[0].mxu0
      %v2046 = vadd.f32 0.0, %v2045
      %v2047 = vpop.f32.mrb[0].mxu0
      %2048 = vmatprep.mubr.bf16.mxu0 0
      %2049 = vmatmul.mubr.bf16.gmra.mrb[0].mxu0 %v1881
      %v2050 = vpop.f32.mrb[0].mxu0
      %v2051 = vadd.f32 0.0, %v2050
      %v2052 = vpop.f32.mrb[0].mxu0
      %v2053 = vpop.f32.mrb[0].mxu0
      %v2054 = vadd.f32 0.0, %v2053
      %v2055 = vpop.f32.mrb[0].mxu0
      %2056 = vmatprep.mubr.bf16.mxu0 0
      %2057 = vmatmul.mubr.bf16.gmra.mrb[0].mxu0 %v1882
      %v2058 = vpop.f32.mrb[0].mxu0
      %v2059 = vadd.f32 0.0, %v2058
      %v2060 = vpop.f32.mrb[0].mxu0
      %v2061 = vpop.f32.mrb[0].mxu0
      %v2062 = vadd.f32 0.0, %v2061
      %v2063 = vpop.f32.mrb[0].mxu0
      %2064 = vmatprep.mubr.bf16.mxu0 0
      %2065 = vmatmul.mubr.bf16.gmra.mrb[0].mxu0 %v1883
      %v2066 = vpop.f32.mrb[0].mxu0
      %v2067 = vadd.f32 0.0, %v2066
      %v2068 = vpop.f32.mrb[0].mxu0
      %v2069 = vpop.f32.mrb[0].mxu0
      %v2070 = vadd.f32 0.0, %v2069
      %v2071 = vpop.f32.mrb[0].mxu0
      %2072 = vmatprep.mubr.bf16.mxu0 0
      %2073 = vmatmul.mubr.bf16.gmra.mrb[0].mxu0 %v1884
      %v2074 = vpop.f32.mrb[0].mxu0
      %v2075 = vadd.f32 0.0, %v2074
      %v2076 = vpop.f32.mrb[0].mxu0
      %v2077 = vpop.f32.mrb[0].mxu0
      %v2078 = vadd.f32 0.0, %v2077
      %v2079 = vpop.f32.mrb[0].mxu0
      %2080 = vmatprep.mubr.bf16.mxu0 0
      %2081 = vmatmul.mubr.bf16.gmra.mrb[0].mxu0 %v1885
      %v2082 = vpop.f32.mrb[0].mxu0
      %v2083 = vadd.f32 0.0, %v2082
      %v2084 = vpop.f32.mrb[0].mxu0
      %v2085 = vpop.f32.mrb[0].mxu0
      %v2086 = vadd.f32 0.0, %v2085
      %v2087 = vpop.f32.mrb[0].mxu0
      %2088 = vmatprep.mubr.bf16.mxu0 0
      %2089 = vmatmul.mubr.bf16.gmra.mrb[0].mxu0 %v1886
      %v2090 = vpop.f32.mrb[0].mxu0
      %v2091 = vadd.f32 0.0, %v2090
      %v2092 = vpop.f32.mrb[0].mxu0
      %v2093 = vpop.f32.mrb[0].mxu0
      %v2094 = vadd.f32 0.0, %v2093
      %v2095 = vpop.f32.mrb[0].mxu0
      %2096 = vmatprep.mubr.bf16.mxu0 0
      %2097 = vmatmul.mubr.bf16.gmra.mrb[0].mxu0 %v1887
      %v2098 = vpop.f32.mrb[0].mxu0
      %v2099 = vadd.f32 0.0, %v2098
      %v2100 = vpop.f32.mrb[0].mxu0
      %v2101 = vpop.f32.mrb[0].mxu0
      %v2102 = vadd.f32 0.0, %v2101
      %v2103 = vpop.f32.mrb[0].mxu0
      %2104 = vmatprep.mubr.bf16.mxu0 0
      %2105 = vmatmul.mubr.bf16.gmra.mrb[0].mxu0 %v1888
      %v2106 = vpop.f32.mrb[0].mxu0
      %v2107 = vadd.f32 0.0, %v2106
      %v2108 = vpop.f32.mrb[0].mxu0
      %v2109 = vpop.f32.mrb[0].mxu0
      %v2110 = vadd.f32 0.0, %v2109
      %v2111 = vpop.f32.mrb[0].mxu0
      %2112 = vmatprep.mubr.bf16.mxu0 0
      %2113 = vmatmul.mubr.bf16.gmra.mrb[0].mxu0 %v1889
      %v2114 = vpop.f32.mrb[0].mxu0
      %v2115 = vadd.f32 0.0, %v2114
      %v2116 = vpop.f32.mrb[0].mxu0
      %v2117 = vpop.f32.mrb[0].mxu0
      %v2118 = vadd.f32 0.0, %v2117
      %v2119 = vpop.f32.mrb[0].mxu0
      %2120 = vmatprep.mubr.bf16.mxu0 0
      %2121 = vmatmul.mubr.bf16.gmra.mrb[0].mxu0 %v1890
      %v2122 = vpop.f32.mrb[0].mxu0
      %v2123 = vadd.f32 0.0, %v2122
      %v2124 = vpop.f32.mrb[0].mxu0
      %v2125 = vpop.f32.mrb[0].mxu0
      %v2126 = vadd.f32 0.0, %v2125
      %v2127 = vpop.f32.mrb[0].mxu0
      %2128 = vmatprep.mubr.bf16.mxu0 0
      %2129 = vmatmul.mubr.bf16.gmra.mrb[0].mxu0 %v1891
      %v2130 = vpop.f32.mrb[0].mxu0
      %v2131 = vadd.f32 0.0, %v2130
      %v2132 = vpop.f32.mrb[0].mxu0
      %v2133 = vpop.f32.mrb[0].mxu0
      %v2134 = vadd.f32 0.0, %v2133
      %v2135 = vpop.f32.mrb[0].mxu0
      %2136 = vmatprep.mubr.bf16.mxu0 0
      %2137 = vmatmul.mubr.bf16.gmra.mrb[0].mxu0 %v1892
      %v2138 = vpop.f32.mrb[0].mxu0
      %v2139 = vadd.f32 0.0, %v2138
      %v2140 = vpop.f32.mrb[0].mxu0
      %v2141 = vpop.f32.mrb[0].mxu0
      %v2142 = vadd.f32 0.0, %v2141
      %v2143 = vpop.f32.mrb[0].mxu0
      %2144 = vmatprep.mubr.bf16.mxu0 0
      %2145 = vmatmul.mubr.bf16.gmra.mrb[0].mxu0 %v1893
      %v2146 = vpop.f32.mrb[0].mxu0
      %v2147 = vadd.f32 0.0, %v2146
      %v2148 = vpop.f32.mrb[0].mxu0
      %v2149 = vpop.f32.mrb[0].mxu0
      %v2150 = vadd.f32 0.0, %v2149
      %v2151 = vpop.f32.mrb[0].mxu0
      %2152 = vmatprep.mubr.bf16.mxu0 0
      %2153 = vmatmul.mubr.bf16.gmra.mrb[0].mxu0 %v1894
      %v2154 = vpop.f32.mrb[0].mxu0
      %v2155 = vadd.f32 0.0, %v2154
      %v2156 = vpop.f32.mrb[0].mxu0
      %v2157 = vpop.f32.mrb[0].mxu0
      %v2158 = vadd.f32 0.0, %v2157
      %v2159 = vpop.f32.mrb[0].mxu0
      %2160 = vmatprep.mubr.bf16.mxu0 0
      %2161 = vmatmul.mubr.bf16.gmra.mrb[0].mxu0 %v1895
      %v2162 = vpop.f32.mrb[0].mxu0
      %v2163 = vadd.f32 0.0, %v2162
      %v2164 = vpop.f32.mrb[0].mxu0
      %v2165 = vpop.f32.mrb[0].mxu0
      %v2166 = vadd.f32 0.0, %v2165
      %v2167 = vpop.f32.mrb[0].mxu0
      %2168 = vmatprep.mubr.bf16.mxu0 0
      %2169 = vmatmul.mubr.bf16.gmra.mrb[0].mxu0 %v1896
      %v2170 = vpop.f32.mrb[0].mxu0
      %v2171 = vadd.f32 0.0, %v2170
      %v2172 = vpop.f32.mrb[0].mxu0
      %v2173 = vpop.f32.mrb[0].mxu0
      %v2174 = vadd.f32 0.0, %v2173
      %v2175 = vpop.f32.mrb[0].mxu0
      %2176 = vmatprep.mubr.bf16.mxu0 0
      %2177 = vmatmul.mubr.bf16.gmra.mrb[0].mxu0 %v1897
      %v2178 = vpop.f32.mrb[0].mxu0
      %v2179 = vadd.f32 0.0, %v2178
      %v2180 = vpop.f32.mrb[0].mxu0
      %v2181 = vpop.f32.mrb[0].mxu0
      %v2182 = vpop.f32.mrb[0].mxu0
      %2183 = vmatprep.mubr.bf16.mxu0 0
      %2184 = vmatmul.mubr.bf16.gmra.mrb[0].mxu0 %v1898
      %v2185 = vpop.f32.mrb[0].mxu0
      %v2186 = vpop.f32.mrb[0].mxu0
      %v2187 = vpop.f32.mrb[0].mxu0
      %v2188 = vpop.f32.mrb[0].mxu0
      %2189 = vdwg.mxu0
      %v2190 = vadd.f32 %v1824, %v1990
      %v2191 = vadd.f32 %v1825, %v1995
      %v2192 = vadd.f32 %v1826, %v1998
      %v2193 = vadd.f32 %v1827, %v2003
      %v2194 = vadd.f32 %v1828, %v2006
      %v2195 = vadd.f32 %v1829, %v2011
      %v2196 = vadd.f32 %v1830, %v2014
      %v2197 = vadd.f32 %v1831, %v2019
      %v2198 = vadd.f32 %v1832, %v2022
      %v2199 = vadd.f32 %v1833, %v2027
      %v2200 = vadd.f32 %v1834, %v2030
      %v2201 = vadd.f32 %v1835, %v2035
      %v2202 = vadd.f32 %v1836, %v2038
      %v2203 = vadd.f32 %v1837, %v2043
      %v2204 = vadd.f32 %v1838, %v2046
      %v2205 = vadd.f32 %v1839, %v2051
      %v2206 = vadd.f32 %v1840, %v2054
      %v2207 = vadd.f32 %v1841, %v2059
      %v2208 = vadd.f32 %v1842, %v2062
      %v2209 = vadd.f32 %v1843, %v2067
      %v2210 = vadd.f32 %v1844, %v2070
      %v2211 = vadd.f32 %v1845, %v2075
      %v2212 = vadd.f32 %v1846, %v2078
      %v2213 = vadd.f32 %v1847, %v2083
      %v2214 = vadd.f32 %v1848, %v2086
      %v2215 = vadd.f32 %v1849, %v2091
      %v2216 = vadd.f32 %v1850, %v2094
      %v2217 = vadd.f32 %v1851, %v2099
      %v2218 = vadd.f32 %v1852, %v2102
      %v2219 = vadd.f32 %v1853, %v2107
      %v2220 = vadd.f32 %v1854, %v2110
      %v2221 = vadd.f32 %v1855, %v2115
      %v2222 = vadd.f32 %v1856, %v2118
      %v2223 = vadd.f32 %v1857, %v2123
      %v2224 = vadd.f32 %v1858, %v2126
      %v2225 = vadd.f32 %v1859, %v2131
      %v2226 = vadd.f32 %v1860, %v2134
      %v2227 = vadd.f32 %v1861, %v2139
      %v2228 = vadd.f32 %v1862, %v2142
      %v2229 = vadd.f32 %v1863, %v2147
      %v2230 = vadd.f32 %v1864, %v2150
      %v2231 = vadd.f32 %v1865, %v2155
      %v2232 = vadd.f32 %v1866, %v2158
      %v2233 = vadd.f32 %v1867, %v2163
      %v2234 = vadd.f32 %v1868, %v2166
      %v2235 = vadd.f32 %v1869, %v2171
      %v2236 = vadd.f32 %v1870, %v2174
      %v2237 = vadd.f32 %v1871, %v2179
      %v2238 = vpack.c.bf16 %v599, %v600
      %v2239 = vpack.c.bf16 %v597, %v598
      %v2240 = vpack.c.bf16 %v595, %v596
      %v2241 = vpack.c.bf16 %v593, %v594
      %v2242 = vpack.c.bf16 %v591, %v592
      %v2243 = vpack.c.bf16 %v589, %v590
      %v2244 = vpack.c.bf16 %v587, %v588
      %v2245 = vpack.c.bf16 %v585, %v586
      %v2246 = vpack.c.bf16 %v583, %v584
      %v2247 = vpack.c.bf16 %v581, %v582
      %v2248 = vpack.c.bf16 %v579, %v580
      %v2249 = vpack.c.bf16 %v577, %v578
      %v2250 = vpack.c.bf16 %v575, %v576
      %v2251 = vpack.c.bf16 %v573, %v574
      %v2252 = vpack.c.bf16 %v571, %v572
      %v2253 = vpack.c.bf16 %v569, %v570
      %v2254 = vpack.c.bf16 %v567, %v568
      %v2255 = vpack.c.bf16 %v565, %v566
      %v2256 = vpack.c.bf16 %v563, %v564
      %v2257 = vpack.c.bf16 %v561, %v562
      %v2258 = vpack.c.bf16 %v559, %v560
      %v2259 = vpack.c.bf16 %v557, %v558
      %v2260 = vpack.c.bf16 %v555, %v556
      %v2261 = vpack.c.bf16 %v553, %v554
      %v2262 = vpack.c.bf16 %v551, %v552
      %v2263 = vpack.c.bf16 %v549, %v550
      %v2264 = vpack.c.bf16 %v547, %v548
      %v2281 = vunpack.c.l.b16 %v790
      %v2282 = vunpack.c.l.b16 %v791
      %v2283 = vunpack.c.l.b16 %v792
      %v2284 = vunpack.c.l.b16 %v793
      %v2285 = vunpack.c.l.b16 %v794
      %v2286 = vunpack.c.l.b16 %v795
      %v2287 = vunpack.c.l.b16 %v796
      %v2288 = vunpack.c.l.b16 %v797
      %v2289 = vunpack.c.l.b16 %v798
      %v2290 = vunpack.c.l.b16 %v799
      %v2291 = vunpack.c.l.b16 %v800
      %v2292 = vunpack.c.l.b16 %v801
      %v2293 = vunpack.c.l.b16 %v802
      %v2294 = vunpack.c.l.b16 %v803
      %v2295 = vunpack.c.l.b16 %v804
      %v2296 = vunpack.c.l.b16 %v805
      %v2297 = vpack.c.b16 %v2282, %v2281
      %v2298 = vpack.c.b16 %v2284, %v2283
      %v2299 = vpack.c.b16 %v2286, %v2285
      %v2300 = vpack.c.b16 %v2288, %v2287
      %v2301 = vpack.c.b16 %v2290, %v2289
      %v2302 = vpack.c.b16 %v2292, %v2291
      %v2303 = vpack.c.b16 %v2294, %v2293
      %v2304 = vpack.c.b16 %v2296, %v2295
      %2313 = vmatprep.subr.bf16.mxu0 0
      %2314 = vmatpush1.bf16.msra.mxu0 %v2297
      %2315 = vmatprep.subr.bf16.mxu0 0
      %2316 = vmatpush1.bf16.msra.mxu0 %v2298
      %2317 = vmatprep.subr.bf16.mxu0 0
      %2318 = vmatpush1.bf16.msra.mxu0 %v2299
      %2319 = vmatprep.subr.bf16.mxu0 0
      %2320 = vmatpush1.bf16.msra.mxu0 %v2300
      %2321 = vmatprep.subr.bf16.mxu0 0
      %2322 = vmatpush1.bf16.msra.mxu0 %v2301
      %2323 = vmatprep.subr.bf16.mxu0 0
      %2324 = vmatpush1.bf16.msra.mxu0 %v2302
      %2325 = vmatprep.subr.bf16.mxu0 0
      %2326 = vmatpush1.bf16.msra.mxu0 %v2303
      %2327 = vmatprep.subr.bf16.mxu0 0
      %2328 = vmatpush1.bf16.msra.mxu0 %v2304
      %2329 = vmatprep.subr.bf16.mxu0 0
      %2330 = vmatpush1.bf16.msra.mxu0 0
      %2331 = vmatprep.subr.bf16.mxu0 0
      %2332 = vmatpush1.bf16.msra.mxu0 0
      %2333 = vmatprep.subr.bf16.mxu0 0
      %2334 = vmatpush1.bf16.msra.mxu0 0
      %2335 = vmatprep.subr.bf16.mxu0 0
      %2336 = vmatpush1.bf16.msra.mxu0 0
      %2337 = vmatprep.subr.bf16.mxu0 0
      %2338 = vmatpush1.bf16.msra.mxu0 0
      %2339 = vmatprep.subr.bf16.mxu0 0
      %2340 = vmatpush1.bf16.msra.mxu0 0
      %2341 = vmatprep.subr.bf16.mxu0 0
      %2342 = vmatpush1.bf16.msra.mxu0 0
      %2343 = vmatprep.subr.bf16.mxu0 0
      %2344 = vmatpush1.bf16.msra.mxu0 0
      %2345 = vmatprep.mubr.bf16.mxu0 0
      %2346 = vmatmul.mubr.bf16.gmra.mrb[0].mxu0 %v2238
      %v2347 = vpop.f32.mrb[0].mxu0
      %v2348 = vpop.f32.mrb[0].mxu0
      %v2349 = vpop.f32.mrb[0].mxu0
      %v2350 = vpop.f32.mrb[0].mxu0
      %2351 = vmatprep.mubr.bf16.mxu0 0
      %2352 = vmatmul.mubr.bf16.gmra.mrb[0].mxu0 %v2239
      %v2353 = vpop.f32.mrb[0].mxu0
      %v2354 = vpop.f32.mrb[0].mxu0
      %v2355 = vpop.f32.mrb[0].mxu0
      %v2356 = vadd.f32 0.0, %v2355
      %v2357 = vpop.f32.mrb[0].mxu0
      %2358 = vmatprep.mubr.bf16.mxu0 0
      %2359 = vmatmul.mubr.bf16.gmra.mrb[0].mxu0 %v2240
      %v2360 = vpop.f32.mrb[0].mxu0
      %v2361 = vadd.f32 0.0, %v2360
      %v2362 = vpop.f32.mrb[0].mxu0
      %v2363 = vpop.f32.mrb[0].mxu0
      %v2364 = vadd.f32 0.0, %v2363
      %v2365 = vpop.f32.mrb[0].mxu0
      %2366 = vmatprep.mubr.bf16.mxu0 0
      %2367 = vmatmul.mubr.bf16.gmra.mrb[0].mxu0 %v2241
      %v2368 = vpop.f32.mrb[0].mxu0
      %v2369 = vadd.f32 0.0, %v2368
      %v2370 = vpop.f32.mrb[0].mxu0
      %v2371 = vpop.f32.mrb[0].mxu0
      %v2372 = vadd.f32 0.0, %v2371
      %v2373 = vpop.f32.mrb[0].mxu0
      %2374 = vmatprep.mubr.bf16.mxu0 0
      %2375 = vmatmul.mubr.bf16.gmra.mrb[0].mxu0 %v2242
      %v2376 = vpop.f32.mrb[0].mxu0
      %v2377 = vadd.f32 0.0, %v2376
      %v2378 = vpop.f32.mrb[0].mxu0
      %v2379 = vpop.f32.mrb[0].mxu0
      %v2380 = vadd.f32 0.0, %v2379
      %v2381 = vpop.f32.mrb[0].mxu0
      %2382 = vmatprep.mubr.bf16.mxu0 0
      %2383 = vmatmul.mubr.bf16.gmra.mrb[0].mxu0 %v2243
      %v2384 = vpop.f32.mrb[0].mxu0
      %v2385 = vadd.f32 0.0, %v2384
      %v2386 = vpop.f32.mrb[0].mxu0
      %v2387 = vpop.f32.mrb[0].mxu0
      %v2388 = vadd.f32 0.0, %v2387
      %v2389 = vpop.f32.mrb[0].mxu0
      %2390 = vmatprep.mubr.bf16.mxu0 0
      %2391 = vmatmul.mubr.bf16.gmra.mrb[0].mxu0 %v2244
      %v2392 = vpop.f32.mrb[0].mxu0
      %v2393 = vadd.f32 0.0, %v2392
      %v2394 = vpop.f32.mrb[0].mxu0
      %v2395 = vpop.f32.mrb[0].mxu0
      %v2396 = vadd.f32 0.0, %v2395
      %v2397 = vpop.f32.mrb[0].mxu0
      %2398 = vmatprep.mubr.bf16.mxu0 0
      %2399 = vmatmul.mubr.bf16.gmra.mrb[0].mxu0 %v2245
      %v2400 = vpop.f32.mrb[0].mxu0
      %v2401 = vadd.f32 0.0, %v2400
      %v2402 = vpop.f32.mrb[0].mxu0
      %v2403 = vpop.f32.mrb[0].mxu0
      %v2404 = vadd.f32 0.0, %v2403
      %v2405 = vpop.f32.mrb[0].mxu0
      %2406 = vmatprep.mubr.bf16.mxu0 0
      %2407 = vmatmul.mubr.bf16.gmra.mrb[0].mxu0 %v2246
      %v2408 = vpop.f32.mrb[0].mxu0
      %v2409 = vadd.f32 0.0, %v2408
      %v2410 = vpop.f32.mrb[0].mxu0
      %v2411 = vpop.f32.mrb[0].mxu0
      %v2412 = vadd.f32 0.0, %v2411
      %v2413 = vpop.f32.mrb[0].mxu0
      %2414 = vmatprep.mubr.bf16.mxu0 0
      %2415 = vmatmul.mubr.bf16.gmra.mrb[0].mxu0 %v2247
      %v2416 = vpop.f32.mrb[0].mxu0
      %v2417 = vadd.f32 0.0, %v2416
      %v2418 = vpop.f32.mrb[0].mxu0
      %v2419 = vpop.f32.mrb[0].mxu0
      %v2420 = vadd.f32 0.0, %v2419
      %v2421 = vpop.f32.mrb[0].mxu0
      %2422 = vmatprep.mubr.bf16.mxu0 0
      %2423 = vmatmul.mubr.bf16.gmra.mrb[0].mxu0 %v2248
      %v2424 = vpop.f32.mrb[0].mxu0
      %v2425 = vadd.f32 0.0, %v2424
      %v2426 = vpop.f32.mrb[0].mxu0
      %v2427 = vpop.f32.mrb[0].mxu0
      %v2428 = vadd.f32 0.0, %v2427
      %v2429 = vpop.f32.mrb[0].mxu0
      %2430 = vmatprep.mubr.bf16.mxu0 0
      %2431 = vmatmul.mubr.bf16.gmra.mrb[0].mxu0 %v2249
      %v2432 = vpop.f32.mrb[0].mxu0
      %v2433 = vadd.f32 0.0, %v2432
      %v2434 = vpop.f32.mrb[0].mxu0
      %v2435 = vpop.f32.mrb[0].mxu0
      %v2436 = vadd.f32 0.0, %v2435
      %v2437 = vpop.f32.mrb[0].mxu0
      %2438 = vmatprep.mubr.bf16.mxu0 0
      %2439 = vmatmul.mubr.bf16.gmra.mrb[0].mxu0 %v2250
      %v2440 = vpop.f32.mrb[0].mxu0
      %v2441 = vadd.f32 0.0, %v2440
      %v2442 = vpop.f32.mrb[0].mxu0
      %v2443 = vpop.f32.mrb[0].mxu0
      %v2444 = vadd.f32 0.0, %v2443
      %v2445 = vpop.f32.mrb[0].mxu0
      %2446 = vmatprep.mubr.bf16.mxu0 0
      %2447 = vmatmul.mubr.bf16.gmra.mrb[0].mxu0 %v2251
      %v2448 = vpop.f32.mrb[0].mxu0
      %v2449 = vadd.f32 0.0, %v2448
      %v2450 = vpop.f32.mrb[0].mxu0
      %v2451 = vpop.f32.mrb[0].mxu0
      %v2452 = vadd.f32 0.0, %v2451
      %v2453 = vpop.f32.mrb[0].mxu0
      %2454 = vmatprep.mubr.bf16.mxu0 0
      %2455 = vmatmul.mubr.bf16.gmra.mrb[0].mxu0 %v2252
      %v2456 = vpop.f32.mrb[0].mxu0
      %v2457 = vadd.f32 0.0, %v2456
      %v2458 = vpop.f32.mrb[0].mxu0
      %v2459 = vpop.f32.mrb[0].mxu0
      %v2460 = vadd.f32 0.0, %v2459
      %v2461 = vpop.f32.mrb[0].mxu0
      %2462 = vmatprep.mubr.bf16.mxu0 0
      %2463 = vmatmul.mubr.bf16.gmra.mrb[0].mxu0 %v2253
      %v2464 = vpop.f32.mrb[0].mxu0
      %v2465 = vadd.f32 0.0, %v2464
      %v2466 = vpop.f32.mrb[0].mxu0
      %v2467 = vpop.f32.mrb[0].mxu0
      %v2468 = vadd.f32 0.0, %v2467
      %v2469 = vpop.f32.mrb[0].mxu0
      %2470 = vmatprep.mubr.bf16.mxu0 0
      %2471 = vmatmul.mubr.bf16.gmra.mrb[0].mxu0 %v2254
      %v2472 = vpop.f32.mrb[0].mxu0
      %v2473 = vadd.f32 0.0, %v2472
      %v2474 = vpop.f32.mrb[0].mxu0
      %v2475 = vpop.f32.mrb[0].mxu0
      %v2476 = vadd.f32 0.0, %v2475
      %v2477 = vpop.f32.mrb[0].mxu0
      %2478 = vmatprep.mubr.bf16.mxu0 0
      %2479 = vmatmul.mubr.bf16.gmra.mrb[0].mxu0 %v2255
      %v2480 = vpop.f32.mrb[0].mxu0
      %v2481 = vadd.f32 0.0, %v2480
      %v2482 = vpop.f32.mrb[0].mxu0
      %v2483 = vpop.f32.mrb[0].mxu0
      %v2484 = vadd.f32 0.0, %v2483
      %v2485 = vpop.f32.mrb[0].mxu0
      %2486 = vmatprep.mubr.bf16.mxu0 0
      %2487 = vmatmul.mubr.bf16.gmra.mrb[0].mxu0 %v2256
      %v2488 = vpop.f32.mrb[0].mxu0
      %v2489 = vadd.f32 0.0, %v2488
      %v2490 = vpop.f32.mrb[0].mxu0
      %v2491 = vpop.f32.mrb[0].mxu0
      %v2492 = vadd.f32 0.0, %v2491
      %v2493 = vpop.f32.mrb[0].mxu0
      %2494 = vmatprep.mubr.bf16.mxu0 0
      %2495 = vmatmul.mubr.bf16.gmra.mrb[0].mxu0 %v2257
      %v2496 = vpop.f32.mrb[0].mxu0
      %v2497 = vadd.f32 0.0, %v2496
      %v2498 = vpop.f32.mrb[0].mxu0
      %v2499 = vpop.f32.mrb[0].mxu0
      %v2500 = vadd.f32 0.0, %v2499
      %v2501 = vpop.f32.mrb[0].mxu0
      %2502 = vmatprep.mubr.bf16.mxu0 0
      %2503 = vmatmul.mubr.bf16.gmra.mrb[0].mxu0 %v2258
      %v2504 = vpop.f32.mrb[0].mxu0
      %v2505 = vadd.f32 0.0, %v2504
      %v2506 = vpop.f32.mrb[0].mxu0
      %v2507 = vpop.f32.mrb[0].mxu0
      %v2508 = vadd.f32 0.0, %v2507
      %v2509 = vpop.f32.mrb[0].mxu0
      %2510 = vmatprep.mubr.bf16.mxu0 0
      %2511 = vmatmul.mubr.bf16.gmra.mrb[0].mxu0 %v2259
      %v2512 = vpop.f32.mrb[0].mxu0
      %v2513 = vadd.f32 0.0, %v2512
      %v2514 = vpop.f32.mrb[0].mxu0
      %v2515 = vpop.f32.mrb[0].mxu0
      %v2516 = vadd.f32 0.0, %v2515
      %v2517 = vpop.f32.mrb[0].mxu0
      %2518 = vmatprep.mubr.bf16.mxu0 0
      %2519 = vmatmul.mubr.bf16.gmra.mrb[0].mxu0 %v2260
      %v2520 = vpop.f32.mrb[0].mxu0
      %v2521 = vadd.f32 0.0, %v2520
      %v2522 = vpop.f32.mrb[0].mxu0
      %v2523 = vpop.f32.mrb[0].mxu0
      %v2524 = vadd.f32 0.0, %v2523
      %v2525 = vpop.f32.mrb[0].mxu0
      %2526 = vmatprep.mubr.bf16.mxu0 0
      %2527 = vmatmul.mubr.bf16.gmra.mrb[0].mxu0 %v2261
      %v2528 = vpop.f32.mrb[0].mxu0
      %v2529 = vadd.f32 0.0, %v2528
      %v2530 = vpop.f32.mrb[0].mxu0
      %v2531 = vpop.f32.mrb[0].mxu0
      %v2532 = vadd.f32 0.0, %v2531
      %v2533 = vpop.f32.mrb[0].mxu0
      %2534 = vmatprep.mubr.bf16.mxu0 0
      %2535 = vmatmul.mubr.bf16.gmra.mrb[0].mxu0 %v2262
      %v2536 = vpop.f32.mrb[0].mxu0
      %v2537 = vadd.f32 0.0, %v2536
      %v2538 = vpop.f32.mrb[0].mxu0
      %v2539 = vpop.f32.mrb[0].mxu0
      %v2540 = vadd.f32 0.0, %v2539
      %v2541 = vpop.f32.mrb[0].mxu0
      %2542 = vmatprep.mubr.bf16.mxu0 0
      %2543 = vmatmul.mubr.bf16.gmra.mrb[0].mxu0 %v2263
      %v2544 = vpop.f32.mrb[0].mxu0
      %v2545 = vadd.f32 0.0, %v2544
      %v2546 = vpop.f32.mrb[0].mxu0
      %v2547 = vpop.f32.mrb[0].mxu0
      %v2548 = vpop.f32.mrb[0].mxu0
      %2549 = vmatprep.mubr.bf16.mxu0 0
      %2550 = vmatmul.mubr.bf16.gmra.mrb[0].mxu0 %v2264
      %v2551 = vpop.f32.mrb[0].mxu0
      %v2552 = vpop.f32.mrb[0].mxu0
      %v2553 = vpop.f32.mrb[0].mxu0
      %v2554 = vpop.f32.mrb[0].mxu0
      %2555 = vdwg.mxu0
      %v2556 = vadd.f32 %v2190, %v2356
      %v2557 = vadd.f32 %v2191, %v2361
      %v2558 = vadd.f32 %v2192, %v2364
      %v2559 = vadd.f32 %v2193, %v2369
      %v2560 = vadd.f32 %v2194, %v2372
      %v2561 = vadd.f32 %v2195, %v2377
      %v2562 = vadd.f32 %v2196, %v2380
      %v2563 = vadd.f32 %v2197, %v2385
      %v2564 = vadd.f32 %v2198, %v2388
      %v2565 = vadd.f32 %v2199, %v2393
      %v2566 = vadd.f32 %v2200, %v2396
      %v2567 = vadd.f32 %v2201, %v2401
      %v2568 = vadd.f32 %v2202, %v2404
      %v2569 = vadd.f32 %v2203, %v2409
      %v2570 = vadd.f32 %v2204, %v2412
      %v2571 = vadd.f32 %v2205, %v2417
      %v2572 = vadd.f32 %v2206, %v2420
      %v2573 = vadd.f32 %v2207, %v2425
      %v2574 = vadd.f32 %v2208, %v2428
      %v2575 = vadd.f32 %v2209, %v2433
      %v2576 = vadd.f32 %v2210, %v2436
      %v2577 = vadd.f32 %v2211, %v2441
      %v2578 = vadd.f32 %v2212, %v2444
      %v2579 = vadd.f32 %v2213, %v2449
      %v2580 = vadd.f32 %v2214, %v2452
      %v2581 = vadd.f32 %v2215, %v2457
      %v2582 = vadd.f32 %v2216, %v2460
      %v2583 = vadd.f32 %v2217, %v2465
      %v2584 = vadd.f32 %v2218, %v2468
      %v2585 = vadd.f32 %v2219, %v2473
      %v2586 = vadd.f32 %v2220, %v2476
      %v2587 = vadd.f32 %v2221, %v2481
      %v2588 = vadd.f32 %v2222, %v2484
      %v2589 = vadd.f32 %v2223, %v2489
      %v2590 = vadd.f32 %v2224, %v2492
      %v2591 = vadd.f32 %v2225, %v2497
      %v2592 = vadd.f32 %v2226, %v2500
      %v2593 = vadd.f32 %v2227, %v2505
      %v2594 = vadd.f32 %v2228, %v2508
      %v2595 = vadd.f32 %v2229, %v2513
      %v2596 = vadd.f32 %v2230, %v2516
      %v2597 = vadd.f32 %v2231, %v2521
      %v2598 = vadd.f32 %v2232, %v2524
      %v2599 = vadd.f32 %v2233, %v2529
      %v2600 = vadd.f32 %v2234, %v2532
      %v2601 = vadd.f32 %v2235, %v2537
      %v2602 = vadd.f32 %v2236, %v2540
      %v2603 = vadd.f32 %v2237, %v2545
      %v2604 = vpack.c.bf16 %v720, %v721
      %v2605 = vpack.c.bf16 %v718, %v719
      %v2606 = vpack.c.bf16 %v716, %v717
      %v2607 = vpack.c.bf16 %v714, %v715
      %v2608 = vpack.c.bf16 %v712, %v713
      %v2609 = vpack.c.bf16 %v710, %v711
      %v2610 = vpack.c.bf16 %v708, %v709
      %v2611 = vpack.c.bf16 %v706, %v707
      %v2612 = vpack.c.bf16 %v704, %v705
      %v2613 = vpack.c.bf16 %v702, %v703
      %v2614 = vpack.c.bf16 %v700, %v701
      %v2615 = vpack.c.bf16 %v698, %v699
      %v2616 = vpack.c.bf16 %v696, %v697
      %v2617 = vpack.c.bf16 %v694, %v695
      %v2618 = vpack.c.bf16 %v692, %v693
      %v2619 = vpack.c.bf16 %v690, %v691
      %v2620 = vpack.c.bf16 %v688, %v689
      %v2621 = vpack.c.bf16 %v686, %v687
      %v2622 = vpack.c.bf16 %v684, %v685
      %v2623 = vpack.c.bf16 %v682, %v683
      %v2624 = vpack.c.bf16 %v680, %v681
      %v2625 = vpack.c.bf16 %v678, %v679
      %v2626 = vpack.c.bf16 %v676, %v677
      %v2627 = vpack.c.bf16 %v674, %v675
      %v2628 = vpack.c.bf16 %v672, %v673
      %v2629 = vpack.c.bf16 %v670, %v671
      %v2630 = vpack.c.bf16 %v668, %v669
      %v2647 = vunpack.c.l.b16 %v806
      %v2648 = vunpack.c.l.b16 %v807
      %v2649 = vunpack.c.l.b16 %v808
      %v2650 = vunpack.c.l.b16 %v809
      %v2651 = vunpack.c.l.b16 %v810
      %v2652 = vunpack.c.l.b16 %v811
      %v2653 = vunpack.c.l.b16 %v812
      %v2654 = vunpack.c.l.b16 %v813
      %v2655 = vunpack.c.l.b16 %v814
      %v2656 = vunpack.c.l.b16 %v815
      %v2657 = vunpack.c.l.b16 %v816
      %v2658 = vunpack.c.l.b16 %v817
      %v2659 = vunpack.c.l.b16 %v818
      %v2660 = vunpack.c.l.b16 %v819
      %v2661 = vunpack.c.l.b16 %v820
      %v2662 = vunpack.c.l.b16 %v821
      %v2663 = vpack.c.b16 %v2648, %v2647
      %v2664 = vpack.c.b16 %v2650, %v2649
      %v2665 = vpack.c.b16 %v2652, %v2651
      %v2666 = vpack.c.b16 %v2654, %v2653
      %v2667 = vpack.c.b16 %v2656, %v2655
      %v2668 = vpack.c.b16 %v2658, %v2657
      %v2669 = vpack.c.b16 %v2660, %v2659
      %v2670 = vpack.c.b16 %v2662, %v2661
      %2679 = vmatprep.subr.bf16.mxu0 0
      %2680 = vmatpush1.bf16.msra.mxu0 %v2663
      %2681 = vmatprep.subr.bf16.mxu0 0
      %2682 = vmatpush1.bf16.msra.mxu0 %v2664
      %2683 = vmatprep.subr.bf16.mxu0 0
      %2684 = vmatpush1.bf16.msra.mxu0 %v2665
      %2685 = vmatprep.subr.bf16.mxu0 0
      %2686 = vmatpush1.bf16.msra.mxu0 %v2666
      %2687 = vmatprep.subr.bf16.mxu0 0
      %2688 = vmatpush1.bf16.msra.mxu0 %v2667
      %2689 = vmatprep.subr.bf16.mxu0 0
      %2690 = vmatpush1.bf16.msra.mxu0 %v2668
      %2691 = vmatprep.subr.bf16.mxu0 0
      %2692 = vmatpush1.bf16.msra.mxu0 %v2669
      %2693 = vmatprep.subr.bf16.mxu0 0
      %2694 = vmatpush1.bf16.msra.mxu0 %v2670
      %2695 = vmatprep.subr.bf16.mxu0 0
      %2696 = vmatpush1.bf16.msra.mxu0 0
      %2697 = vmatprep.subr.bf16.mxu0 0
      %2698 = vmatpush1.bf16.msra.mxu0 0
      %2699 = vmatprep.subr.bf16.mxu0 0
      %2700 = vmatpush1.bf16.msra.mxu0 0
      %2701 = vmatprep.subr.bf16.mxu0 0
      %2702 = vmatpush1.bf16.msra.mxu0 0
      %2703 = vmatprep.subr.bf16.mxu0 0
      %2704 = vmatpush1.bf16.msra.mxu0 0
      %2705 = vmatprep.subr.bf16.mxu0 0
      %2706 = vmatpush1.bf16.msra.mxu0 0
      %2707 = vmatprep.subr.bf16.mxu0 0
      %2708 = vmatpush1.bf16.msra.mxu0 0
      %2709 = vmatprep.subr.bf16.mxu0 0
      %2710 = vmatpush1.bf16.msra.mxu0 0
      %2711 = vmatprep.mubr.bf16.mxu0 0
      %2712 = vmatmul.mubr.bf16.gmra.mrb[0].mxu0 %v2604
      %v2713 = vpop.f32.mrb[0].mxu0
      %v2714 = vpop.f32.mrb[0].mxu0
      %v2715 = vpop.f32.mrb[0].mxu0
      %v2716 = vpop.f32.mrb[0].mxu0
      %2717 = vmatprep.mubr.bf16.mxu0 0
      %2718 = vmatmul.mubr.bf16.gmra.mrb[0].mxu0 %v2605
      %v2719 = vpop.f32.mrb[0].mxu0
      %v2720 = vpop.f32.mrb[0].mxu0
      %v2721 = vpop.f32.mrb[0].mxu0
      %v2722 = vadd.f32 0.0, %v2721
      %v2723 = vpop.f32.mrb[0].mxu0
      %2724 = vmatprep.mubr.bf16.mxu0 0
      %2725 = vmatmul.mubr.bf16.gmra.mrb[0].mxu0 %v2606
      %v2726 = vpop.f32.mrb[0].mxu0
      %v2727 = vadd.f32 0.0, %v2726
      %v2728 = vpop.f32.mrb[0].mxu0
      %v2729 = vpop.f32.mrb[0].mxu0
      %v2730 = vadd.f32 0.0, %v2729
      %v2731 = vpop.f32.mrb[0].mxu0
      %2732 = vmatprep.mubr.bf16.mxu0 0
      %2733 = vmatmul.mubr.bf16.gmra.mrb[0].mxu0 %v2607
      %v2734 = vpop.f32.mrb[0].mxu0
      %v2735 = vadd.f32 0.0, %v2734
      %v2736 = vpop.f32.mrb[0].mxu0
      %v2737 = vpop.f32.mrb[0].mxu0
      %v2738 = vadd.f32 0.0, %v2737
      %v2739 = vpop.f32.mrb[0].mxu0
      %2740 = vmatprep.mubr.bf16.mxu0 0
      %2741 = vmatmul.mubr.bf16.gmra.mrb[0].mxu0 %v2608
      %v2742 = vpop.f32.mrb[0].mxu0
      %v2743 = vadd.f32 0.0, %v2742
      %v2744 = vpop.f32.mrb[0].mxu0
      %v2745 = vpop.f32.mrb[0].mxu0
      %v2746 = vadd.f32 0.0, %v2745
      %v2747 = vpop.f32.mrb[0].mxu0
      %2748 = vmatprep.mubr.bf16.mxu0 0
      %2749 = vmatmul.mubr.bf16.gmra.mrb[0].mxu0 %v2609
      %v2750 = vpop.f32.mrb[0].mxu0
      %v2751 = vadd.f32 0.0, %v2750
      %v2752 = vpop.f32.mrb[0].mxu0
      %v2753 = vpop.f32.mrb[0].mxu0
      %v2754 = vadd.f32 0.0, %v2753
      %v2755 = vpop.f32.mrb[0].mxu0
      %2756 = vmatprep.mubr.bf16.mxu0 0
      %2757 = vmatmul.mubr.bf16.gmra.mrb[0].mxu0 %v2610
      %v2758 = vpop.f32.mrb[0].mxu0
      %v2759 = vadd.f32 0.0, %v2758
      %v2760 = vpop.f32.mrb[0].mxu0
      %v2761 = vpop.f32.mrb[0].mxu0
      %v2762 = vadd.f32 0.0, %v2761
      %v2763 = vpop.f32.mrb[0].mxu0
      %2764 = vmatprep.mubr.bf16.mxu0 0
      %2765 = vmatmul.mubr.bf16.gmra.mrb[0].mxu0 %v2611
      %v2766 = vpop.f32.mrb[0].mxu0
      %v2767 = vadd.f32 0.0, %v2766
      %v2768 = vpop.f32.mrb[0].mxu0
      %v2769 = vpop.f32.mrb[0].mxu0
      %v2770 = vadd.f32 0.0, %v2769
      %v2771 = vpop.f32.mrb[0].mxu0
      %2772 = vmatprep.mubr.bf16.mxu0 0
      %2773 = vmatmul.mubr.bf16.gmra.mrb[0].mxu0 %v2612
      %v2774 = vpop.f32.mrb[0].mxu0
      %v2775 = vadd.f32 0.0, %v2774
      %v2776 = vpop.f32.mrb[0].mxu0
      %v2777 = vpop.f32.mrb[0].mxu0
      %v2778 = vadd.f32 0.0, %v2777
      %v2779 = vpop.f32.mrb[0].mxu0
      %2780 = vmatprep.mubr.bf16.mxu0 0
      %2781 = vmatmul.mubr.bf16.gmra.mrb[0].mxu0 %v2613
      %v2782 = vpop.f32.mrb[0].mxu0
      %v2783 = vadd.f32 0.0, %v2782
      %v2784 = vpop.f32.mrb[0].mxu0
      %v2785 = vpop.f32.mrb[0].mxu0
      %v2786 = vadd.f32 0.0, %v2785
      %v2787 = vpop.f32.mrb[0].mxu0
      %2788 = vmatprep.mubr.bf16.mxu0 0
      %2789 = vmatmul.mubr.bf16.gmra.mrb[0].mxu0 %v2614
      %v2790 = vpop.f32.mrb[0].mxu0
      %v2791 = vadd.f32 0.0, %v2790
      %v2792 = vpop.f32.mrb[0].mxu0
      %v2793 = vpop.f32.mrb[0].mxu0
      %v2794 = vadd.f32 0.0, %v2793
      %v2795 = vpop.f32.mrb[0].mxu0
      %2796 = vmatprep.mubr.bf16.mxu0 0
      %2797 = vmatmul.mubr.bf16.gmra.mrb[0].mxu0 %v2615
      %v2798 = vpop.f32.mrb[0].mxu0
      %v2799 = vadd.f32 0.0, %v2798
      %v2800 = vpop.f32.mrb[0].mxu0
      %v2801 = vpop.f32.mrb[0].mxu0
      %v2802 = vadd.f32 0.0, %v2801
      %v2803 = vpop.f32.mrb[0].mxu0
      %2804 = vmatprep.mubr.bf16.mxu0 0
      %2805 = vmatmul.mubr.bf16.gmra.mrb[0].mxu0 %v2616
      %v2806 = vpop.f32.mrb[0].mxu0
      %v2807 = vadd.f32 0.0, %v2806
      %v2808 = vpop.f32.mrb[0].mxu0
      %v2809 = vpop.f32.mrb[0].mxu0
      %v2810 = vadd.f32 0.0, %v2809
      %v2811 = vpop.f32.mrb[0].mxu0
      %2812 = vmatprep.mubr.bf16.mxu0 0
      %2813 = vmatmul.mubr.bf16.gmra.mrb[0].mxu0 %v2617
      %v2814 = vpop.f32.mrb[0].mxu0
      %v2815 = vadd.f32 0.0, %v2814
      %v2816 = vpop.f32.mrb[0].mxu0
      %v2817 = vpop.f32.mrb[0].mxu0
      %v2818 = vadd.f32 0.0, %v2817
      %v2819 = vpop.f32.mrb[0].mxu0
      %2820 = vmatprep.mubr.bf16.mxu0 0
      %2821 = vmatmul.mubr.bf16.gmra.mrb[0].mxu0 %v2618
      %v2822 = vpop.f32.mrb[0].mxu0
      %v2823 = vadd.f32 0.0, %v2822
      %v2824 = vpop.f32.mrb[0].mxu0
      %v2825 = vpop.f32.mrb[0].mxu0
      %v2826 = vadd.f32 0.0, %v2825
      %v2827 = vpop.f32.mrb[0].mxu0
      %2828 = vmatprep.mubr.bf16.mxu0 0
      %2829 = vmatmul.mubr.bf16.gmra.mrb[0].mxu0 %v2619
      %v2830 = vpop.f32.mrb[0].mxu0
      %v2831 = vadd.f32 0.0, %v2830
      %v2832 = vpop.f32.mrb[0].mxu0
      %v2833 = vpop.f32.mrb[0].mxu0
      %v2834 = vadd.f32 0.0, %v2833
      %v2835 = vpop.f32.mrb[0].mxu0
      %2836 = vmatprep.mubr.bf16.mxu0 0
      %2837 = vmatmul.mubr.bf16.gmra.mrb[0].mxu0 %v2620
      %v2838 = vpop.f32.mrb[0].mxu0
      %v2839 = vadd.f32 0.0, %v2838
      %v2840 = vpop.f32.mrb[0].mxu0
      %v2841 = vpop.f32.mrb[0].mxu0
      %v2842 = vadd.f32 0.0, %v2841
      %v2843 = vpop.f32.mrb[0].mxu0
      %2844 = vmatprep.mubr.bf16.mxu0 0
      %2845 = vmatmul.mubr.bf16.gmra.mrb[0].mxu0 %v2621
      %v2846 = vpop.f32.mrb[0].mxu0
      %v2847 = vadd.f32 0.0, %v2846
      %v2848 = vpop.f32.mrb[0].mxu0
      %v2849 = vpop.f32.mrb[0].mxu0
      %v2850 = vadd.f32 0.0, %v2849
      %v2851 = vpop.f32.mrb[0].mxu0
      %2852 = vmatprep.mubr.bf16.mxu0 0
      %2853 = vmatmul.mubr.bf16.gmra.mrb[0].mxu0 %v2622
      %v2854 = vpop.f32.mrb[0].mxu0
      %v2855 = vadd.f32 0.0, %v2854
      %v2856 = vpop.f32.mrb[0].mxu0
      %v2857 = vpop.f32.mrb[0].mxu0
      %v2858 = vadd.f32 0.0, %v2857
      %v2859 = vpop.f32.mrb[0].mxu0
      %2860 = vmatprep.mubr.bf16.mxu0 0
      %2861 = vmatmul.mubr.bf16.gmra.mrb[0].mxu0 %v2623
      %v2862 = vpop.f32.mrb[0].mxu0
      %v2863 = vadd.f32 0.0, %v2862
      %v2864 = vpop.f32.mrb[0].mxu0
      %v2865 = vpop.f32.mrb[0].mxu0
      %v2866 = vadd.f32 0.0, %v2865
      %v2867 = vpop.f32.mrb[0].mxu0
      %2868 = vmatprep.mubr.bf16.mxu0 0
      %2869 = vmatmul.mubr.bf16.gmra.mrb[0].mxu0 %v2624
      %v2870 = vpop.f32.mrb[0].mxu0
      %v2871 = vadd.f32 0.0, %v2870
      %v2872 = vpop.f32.mrb[0].mxu0
      %v2873 = vpop.f32.mrb[0].mxu0
      %v2874 = vadd.f32 0.0, %v2873
      %v2875 = vpop.f32.mrb[0].mxu0
      %2876 = vmatprep.mubr.bf16.mxu0 0
      %2877 = vmatmul.mubr.bf16.gmra.mrb[0].mxu0 %v2625
      %v2878 = vpop.f32.mrb[0].mxu0
      %v2879 = vadd.f32 0.0, %v2878
      %v2880 = vpop.f32.mrb[0].mxu0
      %v2881 = vpop.f32.mrb[0].mxu0
      %v2882 = vadd.f32 0.0, %v2881
      %v2883 = vpop.f32.mrb[0].mxu0
      %2884 = vmatprep.mubr.bf16.mxu0 0
      %2885 = vmatmul.mubr.bf16.gmra.mrb[0].mxu0 %v2626
      %v2886 = vpop.f32.mrb[0].mxu0
      %v2887 = vadd.f32 0.0, %v2886
      %v2888 = vpop.f32.mrb[0].mxu0
      %v2889 = vpop.f32.mrb[0].mxu0
      %v2890 = vadd.f32 0.0, %v2889
      %v2891 = vpop.f32.mrb[0].mxu0
      %2892 = vmatprep.mubr.bf16.mxu0 0
      %2893 = vmatmul.mubr.bf16.gmra.mrb[0].mxu0 %v2627
      %v2894 = vpop.f32.mrb[0].mxu0
      %v2895 = vadd.f32 0.0, %v2894
      %v2896 = vpop.f32.mrb[0].mxu0
      %v2897 = vpop.f32.mrb[0].mxu0
      %v2898 = vadd.f32 0.0, %v2897
      %v2899 = vpop.f32.mrb[0].mxu0
      %2900 = vmatprep.mubr.bf16.mxu0 0
      %2901 = vmatmul.mubr.bf16.gmra.mrb[0].mxu0 %v2628
      %v2902 = vpop.f32.mrb[0].mxu0
      %v2903 = vadd.f32 0.0, %v2902
      %v2904 = vpop.f32.mrb[0].mxu0
      %v2905 = vpop.f32.mrb[0].mxu0
      %v2906 = vadd.f32 0.0, %v2905
      %v2907 = vpop.f32.mrb[0].mxu0
      %2908 = vmatprep.mubr.bf16.mxu0 0
      %2909 = vmatmul.mubr.bf16.gmra.mrb[0].mxu0 %v2629
      %v2910 = vpop.f32.mrb[0].mxu0
      %v2911 = vadd.f32 0.0, %v2910
      %v2912 = vpop.f32.mrb[0].mxu0
      %v2913 = vpop.f32.mrb[0].mxu0
      %v2914 = vpop.f32.mrb[0].mxu0
      %2915 = vmatprep.mubr.bf16.mxu0 0
      %2916 = vmatmul.mubr.bf16.gmra.mrb[0].mxu0 %v2630
      %v2917 = vpop.f32.mrb[0].mxu0
      %v2918 = vpop.f32.mrb[0].mxu0
      %v2919 = vpop.f32.mrb[0].mxu0
      %v2920 = vpop.f32.mrb[0].mxu0
      %2921 = vdwg.mxu0
      %v2922 = vadd.f32 %v2556, %v2722
      %v2923 = vadd.f32 %v2557, %v2727
      %v2924 = vadd.f32 %v2558, %v2730
      %v2925 = vadd.f32 %v2559, %v2735
      %v2926 = vadd.f32 %v2560, %v2738
      %v2927 = vadd.f32 %v2561, %v2743
      %v2928 = vadd.f32 %v2562, %v2746
      %v2929 = vadd.f32 %v2563, %v2751
      %v2930 = vadd.f32 %v2564, %v2754
      %v2931 = vadd.f32 %v2565, %v2759
      %v2932 = vadd.f32 %v2566, %v2762
      %v2933 = vadd.f32 %v2567, %v2767
      %v2934 = vadd.f32 %v2568, %v2770
      %v2935 = vadd.f32 %v2569, %v2775
      %v2936 = vadd.f32 %v2570, %v2778
      %v2937 = vadd.f32 %v2571, %v2783
      %v2938 = vadd.f32 %v2572, %v2786
      %v2939 = vadd.f32 %v2573, %v2791
      %v2940 = vadd.f32 %v2574, %v2794
      %v2941 = vadd.f32 %v2575, %v2799
      %v2942 = vadd.f32 %v2576, %v2802
      %v2943 = vadd.f32 %v2577, %v2807
      %v2944 = vadd.f32 %v2578, %v2810
      %v2945 = vadd.f32 %v2579, %v2815
      %v2946 = vadd.f32 %v2580, %v2818
      %v2947 = vadd.f32 %v2581, %v2823
      %v2948 = vadd.f32 %v2582, %v2826
      %v2949 = vadd.f32 %v2583, %v2831
      %v2950 = vadd.f32 %v2584, %v2834
      %v2951 = vadd.f32 %v2585, %v2839
      %v2952 = vadd.f32 %v2586, %v2842
      %v2953 = vadd.f32 %v2587, %v2847
      %v2954 = vadd.f32 %v2588, %v2850
      %v2955 = vadd.f32 %v2589, %v2855
      %v2956 = vadd.f32 %v2590, %v2858
      %v2957 = vadd.f32 %v2591, %v2863
      %v2958 = vadd.f32 %v2592, %v2866
      %v2959 = vadd.f32 %v2593, %v2871
      %v2960 = vadd.f32 %v2594, %v2874
      %v2961 = vadd.f32 %v2595, %v2879
      %v2962 = vadd.f32 %v2596, %v2882
      %v2963 = vadd.f32 %v2597, %v2887
      %v2964 = vadd.f32 %v2598, %v2890
      %v2965 = vadd.f32 %v2599, %v2895
      %v2966 = vadd.f32 %v2600, %v2898
      %v2967 = vadd.f32 %v2601, %v2903
      %v2968 = vadd.f32 %v2602, %v2906
      %v2969 = vadd.f32 %v2603, %v2911
      %v2970 = vpack.c.bf16 %v477, %v476
      %v2971 = vpack.c.bf16 %v479, %v478
      %v2972 = vpack.c.bf16 %v481, %v480
      %v2989 = vunpack.c.l.b16 %v822
      %v2990 = vunpack.c.l.b16 %v823
      %v2991 = vunpack.c.l.b16 %v824
      %v2992 = vunpack.c.l.b16 %v825
      %v2993 = vunpack.c.l.b16 %v826
      %v2994 = vunpack.c.l.b16 %v827
      %v2995 = vunpack.c.l.b16 %v828
      %v2996 = vunpack.c.l.b16 %v829
      %v2997 = vunpack.c.l.b16 %v830
      %v2998 = vunpack.c.l.b16 %v831
      %v2999 = vunpack.c.l.b16 %v832
      %v3000 = vunpack.c.l.b16 %v833
      %v3001 = vunpack.c.l.b16 %v834
      %v3002 = vunpack.c.l.b16 %v835
      %v3003 = vunpack.c.l.b16 %v836
      %v3004 = vunpack.c.l.b16 %v837
      %v3005 = vpack.c.b16 %v2990, %v2989
      %v3006 = vpack.c.b16 %v2992, %v2991
      %v3007 = vpack.c.b16 %v2994, %v2993
      %v3008 = vpack.c.b16 %v2996, %v2995
      %v3009 = vpack.c.b16 %v2998, %v2997
      %v3010 = vpack.c.b16 %v3000, %v2999
      %v3011 = vpack.c.b16 %v3002, %v3001
      %v3012 = vpack.c.b16 %v3004, %v3003
      %3021 = vmatprep.subr.bf16.mxu0 0
      %3022 = vmatpush1.bf16.msra.mxu0 %v3005
      %3023 = vmatprep.subr.bf16.mxu0 0
      %3024 = vmatpush1.bf16.msra.mxu0 %v3006
      %3025 = vmatprep.subr.bf16.mxu0 0
      %3026 = vmatpush1.bf16.msra.mxu0 %v3007
      %3027 = vmatprep.subr.bf16.mxu0 0
      %3028 = vmatpush1.bf16.msra.mxu0 %v3008
      %3029 = vmatprep.subr.bf16.mxu0 0
      %3030 = vmatpush1.bf16.msra.mxu0 %v3009
      %3031 = vmatprep.subr.bf16.mxu0 0
      %3032 = vmatpush1.bf16.msra.mxu0 %v3010
      %3033 = vmatprep.subr.bf16.mxu0 0
      %3034 = vmatpush1.bf16.msra.mxu0 %v3011
      %3035 = vmatprep.subr.bf16.mxu0 0
      %3036 = vmatpush1.bf16.msra.mxu0 %v3012
      %3037 = vmatprep.subr.bf16.mxu0 0
      %3038 = vmatpush1.bf16.msra.mxu0 0
      %3039 = vmatprep.subr.bf16.mxu0 0
      %3040 = vmatpush1.bf16.msra.mxu0 0
      %3041 = vmatprep.subr.bf16.mxu0 0
      %3042 = vmatpush1.bf16.msra.mxu0 0
      %3043 = vmatprep.subr.bf16.mxu0 0
      %3044 = vmatpush1.bf16.msra.mxu0 0
      %3045 = vmatprep.subr.bf16.mxu0 0
      %3046 = vmatpush1.bf16.msra.mxu0 0
      %3047 = vmatprep.subr.bf16.mxu0 0
      %3048 = vmatpush1.bf16.msra.mxu0 0
      %3049 = vmatprep.subr.bf16.mxu0 0
      %3050 = vmatpush1.bf16.msra.mxu0 0
      %3051 = vmatprep.subr.bf16.mxu0 0
      %3052 = vmatpush1.bf16.msra.mxu0 0
      %3053 = vmatprep.mubr.bf16.mxu0 0
      %3054 = vmatmul.mubr.bf16.gmra.mrb[0].mxu0 %v873
      %v3055 = vpop.f32.mrb[0].mxu0
      %v3056 = vpop.f32.mrb[0].mxu0
      %v3057 = vpop.f32.mrb[0].mxu0
      %v3058 = vpop.f32.mrb[0].mxu0
      %3059 = vmatprep.mubr.bf16.mxu0 0
      %3060 = vmatmul.mubr.bf16.gmra.mrb[0].mxu0 %v874
      %v3061 = vpop.f32.mrb[0].mxu0
      %v3062 = vpop.f32.mrb[0].mxu0
      %v3063 = vpop.f32.mrb[0].mxu0
      %v3064 = vadd.f32 0.0, %v3063
      %v3065 = vpop.f32.mrb[0].mxu0
      %3066 = vmatprep.mubr.bf16.mxu0 0
      %3067 = vmatmul.mubr.bf16.gmra.mrb[0].mxu0 %v875
      %v3068 = vpop.f32.mrb[0].mxu0
      %v3069 = vadd.f32 0.0, %v3068
      %v3070 = vpop.f32.mrb[0].mxu0
      %v3071 = vpop.f32.mrb[0].mxu0
      %v3072 = vadd.f32 0.0, %v3071
      %v3073 = vpop.f32.mrb[0].mxu0
      %3074 = vmatprep.mubr.bf16.mxu0 0
      %3075 = vmatmul.mubr.bf16.gmra.mrb[0].mxu0 %v876
      %v3076 = vpop.f32.mrb[0].mxu0
      %v3077 = vadd.f32 0.0, %v3076
      %v3078 = vpop.f32.mrb[0].mxu0
      %v3079 = vpop.f32.mrb[0].mxu0
      %v3080 = vadd.f32 0.0, %v3079
      %v3081 = vpop.f32.mrb[0].mxu0
      %3082 = vmatprep.mubr.bf16.mxu0 0
      %3083 = vmatmul.mubr.bf16.gmra.mrb[0].mxu0 %v877
      %v3084 = vpop.f32.mrb[0].mxu0
      %v3085 = vadd.f32 0.0, %v3084
      %v3086 = vpop.f32.mrb[0].mxu0
      %v3087 = vpop.f32.mrb[0].mxu0
      %v3088 = vadd.f32 0.0, %v3087
      %v3089 = vpop.f32.mrb[0].mxu0
      %3090 = vmatprep.mubr.bf16.mxu0 0
      %3091 = vmatmul.mubr.bf16.gmra.mrb[0].mxu0 %v878
      %v3092 = vpop.f32.mrb[0].mxu0
      %v3093 = vadd.f32 0.0, %v3092
      %v3094 = vpop.f32.mrb[0].mxu0
      %v3095 = vpop.f32.mrb[0].mxu0
      %v3096 = vadd.f32 0.0, %v3095
      %v3097 = vpop.f32.mrb[0].mxu0
      %3098 = vmatprep.mubr.bf16.mxu0 0
      %3099 = vmatmul.mubr.bf16.gmra.mrb[0].mxu0 %v879
      %v3100 = vpop.f32.mrb[0].mxu0
      %v3101 = vadd.f32 0.0, %v3100
      %v3102 = vpop.f32.mrb[0].mxu0
      %v3103 = vpop.f32.mrb[0].mxu0
      %v3104 = vadd.f32 0.0, %v3103
      %v3105 = vpop.f32.mrb[0].mxu0
      %3106 = vmatprep.mubr.bf16.mxu0 0
      %3107 = vmatmul.mubr.bf16.gmra.mrb[0].mxu0 %v880
      %v3108 = vpop.f32.mrb[0].mxu0
      %v3109 = vadd.f32 0.0, %v3108
      %v3110 = vpop.f32.mrb[0].mxu0
      %v3111 = vpop.f32.mrb[0].mxu0
      %v3112 = vadd.f32 0.0, %v3111
      %v3113 = vpop.f32.mrb[0].mxu0
      %3114 = vmatprep.mubr.bf16.mxu0 0
      %3115 = vmatmul.mubr.bf16.gmra.mrb[0].mxu0 %v881
      %v3116 = vpop.f32.mrb[0].mxu0
      %v3117 = vadd.f32 0.0, %v3116
      %v3118 = vpop.f32.mrb[0].mxu0
      %v3119 = vpop.f32.mrb[0].mxu0
      %v3120 = vadd.f32 0.0, %v3119
      %v3121 = vpop.f32.mrb[0].mxu0
      %3122 = vmatprep.mubr.bf16.mxu0 0
      %3123 = vmatmul.mubr.bf16.gmra.mrb[0].mxu0 %v882
      %v3124 = vpop.f32.mrb[0].mxu0
      %v3125 = vadd.f32 0.0, %v3124
      %v3126 = vpop.f32.mrb[0].mxu0
      %v3127 = vpop.f32.mrb[0].mxu0
      %v3128 = vadd.f32 0.0, %v3127
      %v3129 = vpop.f32.mrb[0].mxu0
      %3130 = vmatprep.mubr.bf16.mxu0 0
      %3131 = vmatmul.mubr.bf16.gmra.mrb[0].mxu0 %v883
      %v3132 = vpop.f32.mrb[0].mxu0
      %v3133 = vadd.f32 0.0, %v3132
      %v3134 = vpop.f32.mrb[0].mxu0
      %v3135 = vpop.f32.mrb[0].mxu0
      %v3136 = vadd.f32 0.0, %v3135
      %v3137 = vpop.f32.mrb[0].mxu0
      %3138 = vmatprep.mubr.bf16.mxu0 0
      %3139 = vmatmul.mubr.bf16.gmra.mrb[0].mxu0 %v884
      %v3140 = vpop.f32.mrb[0].mxu0
      %v3141 = vadd.f32 0.0, %v3140
      %v3142 = vpop.f32.mrb[0].mxu0
      %v3143 = vpop.f32.mrb[0].mxu0
      %v3144 = vadd.f32 0.0, %v3143
      %v3145 = vpop.f32.mrb[0].mxu0
      %3146 = vmatprep.mubr.bf16.mxu0 0
      %3147 = vmatmul.mubr.bf16.gmra.mrb[0].mxu0 %v885
      %v3148 = vpop.f32.mrb[0].mxu0
      %v3149 = vadd.f32 0.0, %v3148
      %v3150 = vpop.f32.mrb[0].mxu0
      %v3151 = vpop.f32.mrb[0].mxu0
      %v3152 = vadd.f32 0.0, %v3151
      %v3153 = vpop.f32.mrb[0].mxu0
      %3154 = vmatprep.mubr.bf16.mxu0 0
      %3155 = vmatmul.mubr.bf16.gmra.mrb[0].mxu0 %v886
      %v3156 = vpop.f32.mrb[0].mxu0
      %v3157 = vadd.f32 0.0, %v3156
      %v3158 = vpop.f32.mrb[0].mxu0
      %v3159 = vpop.f32.mrb[0].mxu0
      %v3160 = vadd.f32 0.0, %v3159
      %v3161 = vpop.f32.mrb[0].mxu0
      %3162 = vmatprep.mubr.bf16.mxu0 0
      %3163 = vmatmul.mubr.bf16.gmra.mrb[0].mxu0 %v887
      %v3164 = vpop.f32.mrb[0].mxu0
      %v3165 = vadd.f32 0.0, %v3164
      %v3166 = vpop.f32.mrb[0].mxu0
      %v3167 = vpop.f32.mrb[0].mxu0
      %v3168 = vadd.f32 0.0, %v3167
      %v3169 = vpop.f32.mrb[0].mxu0
      %3170 = vmatprep.mubr.bf16.mxu0 0
      %3171 = vmatmul.mubr.bf16.gmra.mrb[0].mxu0 %v888
      %v3172 = vpop.f32.mrb[0].mxu0
      %v3173 = vadd.f32 0.0, %v3172
      %v3174 = vpop.f32.mrb[0].mxu0
      %v3175 = vpop.f32.mrb[0].mxu0
      %v3176 = vadd.f32 0.0, %v3175
      %v3177 = vpop.f32.mrb[0].mxu0
      %3178 = vmatprep.mubr.bf16.mxu0 0
      %3179 = vmatmul.mubr.bf16.gmra.mrb[0].mxu0 %v889
      %v3180 = vpop.f32.mrb[0].mxu0
      %v3181 = vadd.f32 0.0, %v3180
      %v3182 = vpop.f32.mrb[0].mxu0
      %v3183 = vpop.f32.mrb[0].mxu0
      %v3184 = vadd.f32 0.0, %v3183
      %v3185 = vpop.f32.mrb[0].mxu0
      %3186 = vmatprep.mubr.bf16.mxu0 0
      %3187 = vmatmul.mubr.bf16.gmra.mrb[0].mxu0 %v890
      %v3188 = vpop.f32.mrb[0].mxu0
      %v3189 = vadd.f32 0.0, %v3188
      %v3190 = vpop.f32.mrb[0].mxu0
      %v3191 = vpop.f32.mrb[0].mxu0
      %v3192 = vadd.f32 0.0, %v3191
      %v3193 = vpop.f32.mrb[0].mxu0
      %3194 = vmatprep.mubr.bf16.mxu0 0
      %3195 = vmatmul.mubr.bf16.gmra.mrb[0].mxu0 %v891
      %v3196 = vpop.f32.mrb[0].mxu0
      %v3197 = vadd.f32 0.0, %v3196
      %v3198 = vpop.f32.mrb[0].mxu0
      %v3199 = vpop.f32.mrb[0].mxu0
      %v3200 = vadd.f32 0.0, %v3199
      %v3201 = vpop.f32.mrb[0].mxu0
      %3202 = vmatprep.mubr.bf16.mxu0 0
      %3203 = vmatmul.mubr.bf16.gmra.mrb[0].mxu0 %v892
      %v3204 = vpop.f32.mrb[0].mxu0
      %v3205 = vadd.f32 0.0, %v3204
      %v3206 = vpop.f32.mrb[0].mxu0
      %v3207 = vpop.f32.mrb[0].mxu0
      %v3208 = vadd.f32 0.0, %v3207
      %v3209 = vpop.f32.mrb[0].mxu0
      %3210 = vmatprep.mubr.bf16.mxu0 0
      %3211 = vmatmul.mubr.bf16.gmra.mrb[0].mxu0 %v893
      %v3212 = vpop.f32.mrb[0].mxu0
      %v3213 = vadd.f32 0.0, %v3212
      %v3214 = vpop.f32.mrb[0].mxu0
      %v3215 = vpop.f32.mrb[0].mxu0
      %v3216 = vadd.f32 0.0, %v3215
      %v3217 = vpop.f32.mrb[0].mxu0
      %3218 = vmatprep.mubr.bf16.mxu0 0
      %3219 = vmatmul.mubr.bf16.gmra.mrb[0].mxu0 %v894
      %v3220 = vpop.f32.mrb[0].mxu0
      %v3221 = vadd.f32 0.0, %v3220
      %v3222 = vpop.f32.mrb[0].mxu0
      %v3223 = vpop.f32.mrb[0].mxu0
      %v3224 = vadd.f32 0.0, %v3223
      %v3225 = vpop.f32.mrb[0].mxu0
      %3226 = vmatprep.mubr.bf16.mxu0 0
      %3227 = vmatmul.mubr.bf16.gmra.mrb[0].mxu0 %v895
      %v3228 = vpop.f32.mrb[0].mxu0
      %v3229 = vadd.f32 0.0, %v3228
      %v3230 = vpop.f32.mrb[0].mxu0
      %v3231 = vpop.f32.mrb[0].mxu0
      %v3232 = vadd.f32 0.0, %v3231
      %v3233 = vpop.f32.mrb[0].mxu0
      %3234 = vmatprep.mubr.bf16.mxu0 0
      %3235 = vmatmul.mubr.bf16.gmra.mrb[0].mxu0 %v896
      %v3236 = vpop.f32.mrb[0].mxu0
      %v3237 = vadd.f32 0.0, %v3236
      %v3238 = vpop.f32.mrb[0].mxu0
      %v3239 = vpop.f32.mrb[0].mxu0
      %v3240 = vadd.f32 0.0, %v3239
      %v3241 = vpop.f32.mrb[0].mxu0
      %3242 = vmatprep.mubr.bf16.mxu0 0
      %3243 = vmatmul.mubr.bf16.gmra.mrb[0].mxu0 %v2970
      %v3244 = vpop.f32.mrb[0].mxu0
      %v3245 = vadd.f32 0.0, %v3244
      %v3246 = vpop.f32.mrb[0].mxu0
      %v3247 = vpop.f32.mrb[0].mxu0
      %v3248 = vadd.f32 0.0, %v3247
      %v3249 = vpop.f32.mrb[0].mxu0
      %3250 = vmatprep.mubr.bf16.mxu0 0
      %3251 = vmatmul.mubr.bf16.gmra.mrb[0].mxu0 %v2971
      %v3252 = vpop.f32.mrb[0].mxu0
      %v3253 = vadd.f32 0.0, %v3252
      %v3254 = vpop.f32.mrb[0].mxu0
      %v3255 = vpop.f32.mrb[0].mxu0
      %v3256 = vpop.f32.mrb[0].mxu0
      %3257 = vmatprep.mubr.bf16.mxu0 0
      %3258 = vmatmul.mubr.bf16.gmra.mrb[0].mxu0 %v2972
      %v3259 = vpop.f32.mrb[0].mxu0
      %v3260 = vpop.f32.mrb[0].mxu0
      %v3261 = vpop.f32.mrb[0].mxu0
      %v3262 = vpop.f32.mrb[0].mxu0
      %3263 = vdwg.mxu0
      %v3264 = vadd.f32 %v2922, %v3064
      %v3265 = vadd.f32 %v2923, %v3069
      %v3266 = vadd.f32 %v2924, %v3072
      %v3267 = vadd.f32 %v2925, %v3077
      %v3268 = vadd.f32 %v2926, %v3080
      %v3269 = vadd.f32 %v2927, %v3085
      %v3270 = vadd.f32 %v2928, %v3088
      %v3271 = vadd.f32 %v2929, %v3093
      %v3272 = vadd.f32 %v2930, %v3096
      %v3273 = vadd.f32 %v2931, %v3101
      %v3274 = vadd.f32 %v2932, %v3104
      %v3275 = vadd.f32 %v2933, %v3109
      %v3276 = vadd.f32 %v2934, %v3112
      %v3277 = vadd.f32 %v2935, %v3117
      %v3278 = vadd.f32 %v2936, %v3120
      %v3279 = vadd.f32 %v2937, %v3125
      %v3280 = vadd.f32 %v2938, %v3128
      %v3281 = vadd.f32 %v2939, %v3133
      %v3282 = vadd.f32 %v2940, %v3136
      %v3283 = vadd.f32 %v2941, %v3141
      %v3284 = vadd.f32 %v2942, %v3144
      %v3285 = vadd.f32 %v2943, %v3149
      %v3286 = vadd.f32 %v2944, %v3152
      %v3287 = vadd.f32 %v2945, %v3157
      %v3288 = vadd.f32 %v2946, %v3160
      %v3289 = vadd.f32 %v2947, %v3165
      %v3290 = vadd.f32 %v2948, %v3168
      %v3291 = vadd.f32 %v2949, %v3173
      %v3292 = vadd.f32 %v2950, %v3176
      %v3293 = vadd.f32 %v2951, %v3181
      %v3294 = vadd.f32 %v2952, %v3184
      %v3295 = vadd.f32 %v2953, %v3189
      %v3296 = vadd.f32 %v2954, %v3192
      %v3297 = vadd.f32 %v2955, %v3197
      %v3298 = vadd.f32 %v2956, %v3200
      %v3299 = vadd.f32 %v2957, %v3205
      %v3300 = vadd.f32 %v2958, %v3208
      %v3301 = vadd.f32 %v2959, %v3213
      %v3302 = vadd.f32 %v2960, %v3216
      %v3303 = vadd.f32 %v2961, %v3221
      %v3304 = vadd.f32 %v2962, %v3224
      %v3305 = vadd.f32 %v2963, %v3229
      %v3306 = vadd.f32 %v2964, %v3232
      %v3307 = vadd.f32 %v2965, %v3237
      %v3308 = vadd.f32 %v2966, %v3240
      %v3309 = vadd.f32 %v2967, %v3245
      %v3310 = vadd.f32 %v2968, %v3248
      %v3311 = vadd.f32 %v2969, %v3253
      %v3312 = vpack.c.bf16 %v548, %v549
      %v3313 = vpack.c.bf16 %v546, %v547
      %v3314 = vpack.c.bf16 %v604, %v545
      %v3331 = vunpack.c.l.b16 %v838
      %v3332 = vunpack.c.l.b16 %v839
      %v3333 = vunpack.c.l.b16 %v840
      %v3334 = vunpack.c.l.b16 %v841
      %v3335 = vunpack.c.l.b16 %v842
      %v3336 = vunpack.c.l.b16 %v843
      %v3337 = vunpack.c.l.b16 %v844
      %v3338 = vunpack.c.l.b16 %v845
      %v3339 = vunpack.c.l.b16 %v846
      %v3340 = vunpack.c.l.b16 %v847
      %v3341 = vunpack.c.l.b16 %v848
      %v3342 = vunpack.c.l.b16 %v849
      %v3343 = vunpack.c.l.b16 %v850
      %v3344 = vunpack.c.l.b16 %v851
      %v3345 = vunpack.c.l.b16 %v852
      %v3346 = vunpack.c.l.b16 %v853
      %v3347 = vpack.c.b16 %v3332, %v3331
      %v3348 = vpack.c.b16 %v3334, %v3333
      %v3349 = vpack.c.b16 %v3336, %v3335
      %v3350 = vpack.c.b16 %v3338, %v3337
      %v3351 = vpack.c.b16 %v3340, %v3339
      %v3352 = vpack.c.b16 %v3342, %v3341
      %v3353 = vpack.c.b16 %v3344, %v3343
      %v3354 = vpack.c.b16 %v3346, %v3345
      %3363 = vmatprep.subr.bf16.mxu0 0
      %3364 = vmatpush1.bf16.msra.mxu0 %v3347
      %3365 = vmatprep.subr.bf16.mxu0 0
      %3366 = vmatpush1.bf16.msra.mxu0 %v3348
      %3367 = vmatprep.subr.bf16.mxu0 0
      %3368 = vmatpush1.bf16.msra.mxu0 %v3349
      %3369 = vmatprep.subr.bf16.mxu0 0
      %3370 = vmatpush1.bf16.msra.mxu0 %v3350
      %3371 = vmatprep.subr.bf16.mxu0 0
      %3372 = vmatpush1.bf16.msra.mxu0 %v3351
      %3373 = vmatprep.subr.bf16.mxu0 0
      %3374 = vmatpush1.bf16.msra.mxu0 %v3352
      %3375 = vmatprep.subr.bf16.mxu0 0
      %3376 = vmatpush1.bf16.msra.mxu0 %v3353
      %3377 = vmatprep.subr.bf16.mxu0 0
      %3378 = vmatpush1.bf16.msra.mxu0 %v3354
      %3379 = vmatprep.subr.bf16.mxu0 0
      %3380 = vmatpush1.bf16.msra.mxu0 0
      %3381 = vmatprep.subr.bf16.mxu0 0
      %3382 = vmatpush1.bf16.msra.mxu0 0
      %3383 = vmatprep.subr.bf16.mxu0 0
      %3384 = vmatpush1.bf16.msra.mxu0 0
      %3385 = vmatprep.subr.bf16.mxu0 0
      %3386 = vmatpush1.bf16.msra.mxu0 0
      %3387 = vmatprep.subr.bf16.mxu0 0
      %3388 = vmatpush1.bf16.msra.mxu0 0
      %3389 = vmatprep.subr.bf16.mxu0 0
      %3390 = vmatpush1.bf16.msra.mxu0 0
      %3391 = vmatprep.subr.bf16.mxu0 0
      %3392 = vmatpush1.bf16.msra.mxu0 0
      %3393 = vmatprep.subr.bf16.mxu0 0
      %3394 = vmatpush1.bf16.msra.mxu0 0
      %3395 = vmatprep.mubr.bf16.mxu0 0
      %3396 = vmatmul.mubr.bf16.gmra.mrb[0].mxu0 %v900
      %v3397 = vpop.f32.mrb[0].mxu0
      %v3398 = vpop.f32.mrb[0].mxu0
      %v3399 = vpop.f32.mrb[0].mxu0
      %v3400 = vpop.f32.mrb[0].mxu0
      %3401 = vmatprep.mubr.bf16.mxu0 0
      %3402 = vmatmul.mubr.bf16.gmra.mrb[0].mxu0 %v901
      %v3403 = vpop.f32.mrb[0].mxu0
      %v3404 = vpop.f32.mrb[0].mxu0
      %v3405 = vpop.f32.mrb[0].mxu0
      %v3406 = vadd.f32 0.0, %v3405
      %v3407 = vpop.f32.mrb[0].mxu0
      %3408 = vmatprep.mubr.bf16.mxu0 0
      %3409 = vmatmul.mubr.bf16.gmra.mrb[0].mxu0 %v902
      %v3410 = vpop.f32.mrb[0].mxu0
      %v3411 = vadd.f32 0.0, %v3410
      %v3412 = vpop.f32.mrb[0].mxu0
      %v3413 = vpop.f32.mrb[0].mxu0
      %v3414 = vadd.f32 0.0, %v3413
      %v3415 = vpop.f32.mrb[0].mxu0
      %3416 = vmatprep.mubr.bf16.mxu0 0
      %3417 = vmatmul.mubr.bf16.gmra.mrb[0].mxu0 %v903
      %v3418 = vpop.f32.mrb[0].mxu0
      %v3419 = vadd.f32 0.0, %v3418
      %v3420 = vpop.f32.mrb[0].mxu0
      %v3421 = vpop.f32.mrb[0].mxu0
      %v3422 = vadd.f32 0.0, %v3421
      %v3423 = vpop.f32.mrb[0].mxu0
      %3424 = vmatprep.mubr.bf16.mxu0 0
      %3425 = vmatmul.mubr.bf16.gmra.mrb[0].mxu0 %v904
      %v3426 = vpop.f32.mrb[0].mxu0
      %v3427 = vadd.f32 0.0, %v3426
      %v3428 = vpop.f32.mrb[0].mxu0
      %v3429 = vpop.f32.mrb[0].mxu0
      %v3430 = vadd.f32 0.0, %v3429
      %v3431 = vpop.f32.mrb[0].mxu0
      %3432 = vmatprep.mubr.bf16.mxu0 0
      %3433 = vmatmul.mubr.bf16.gmra.mrb[0].mxu0 %v905
      %v3434 = vpop.f32.mrb[0].mxu0
      %v3435 = vadd.f32 0.0, %v3434
      %v3436 = vpop.f32.mrb[0].mxu0
      %v3437 = vpop.f32.mrb[0].mxu0
      %v3438 = vadd.f32 0.0, %v3437
      %v3439 = vpop.f32.mrb[0].mxu0
      %3440 = vmatprep.mubr.bf16.mxu0 0
      %3441 = vmatmul.mubr.bf16.gmra.mrb[0].mxu0 %v906
      %v3442 = vpop.f32.mrb[0].mxu0
      %v3443 = vadd.f32 0.0, %v3442
      %v3444 = vpop.f32.mrb[0].mxu0
      %v3445 = vpop.f32.mrb[0].mxu0
      %v3446 = vadd.f32 0.0, %v3445
      %v3447 = vpop.f32.mrb[0].mxu0
      %3448 = vmatprep.mubr.bf16.mxu0 0
      %3449 = vmatmul.mubr.bf16.gmra.mrb[0].mxu0 %v907
      %v3450 = vpop.f32.mrb[0].mxu0
      %v3451 = vadd.f32 0.0, %v3450
      %v3452 = vpop.f32.mrb[0].mxu0
      %v3453 = vpop.f32.mrb[0].mxu0
      %v3454 = vadd.f32 0.0, %v3453
      %v3455 = vpop.f32.mrb[0].mxu0
      %3456 = vmatprep.mubr.bf16.mxu0 0
      %3457 = vmatmul.mubr.bf16.gmra.mrb[0].mxu0 %v908
      %v3458 = vpop.f32.mrb[0].mxu0
      %v3459 = vadd.f32 0.0, %v3458
      %v3460 = vpop.f32.mrb[0].mxu0
      %v3461 = vpop.f32.mrb[0].mxu0
      %v3462 = vadd.f32 0.0, %v3461
      %v3463 = vpop.f32.mrb[0].mxu0
      %3464 = vmatprep.mubr.bf16.mxu0 0
      %3465 = vmatmul.mubr.bf16.gmra.mrb[0].mxu0 %v909
      %v3466 = vpop.f32.mrb[0].mxu0
      %v3467 = vadd.f32 0.0, %v3466
      %v3468 = vpop.f32.mrb[0].mxu0
      %v3469 = vpop.f32.mrb[0].mxu0
      %v3470 = vadd.f32 0.0, %v3469
      %v3471 = vpop.f32.mrb[0].mxu0
      %3472 = vmatprep.mubr.bf16.mxu0 0
      %3473 = vmatmul.mubr.bf16.gmra.mrb[0].mxu0 %v910
      %v3474 = vpop.f32.mrb[0].mxu0
      %v3475 = vadd.f32 0.0, %v3474
      %v3476 = vpop.f32.mrb[0].mxu0
      %v3477 = vpop.f32.mrb[0].mxu0
      %v3478 = vadd.f32 0.0, %v3477
      %v3479 = vpop.f32.mrb[0].mxu0
      %3480 = vmatprep.mubr.bf16.mxu0 0
      %3481 = vmatmul.mubr.bf16.gmra.mrb[0].mxu0 %v911
      %v3482 = vpop.f32.mrb[0].mxu0
      %v3483 = vadd.f32 0.0, %v3482
      %v3484 = vpop.f32.mrb[0].mxu0
      %v3485 = vpop.f32.mrb[0].mxu0
      %v3486 = vadd.f32 0.0, %v3485
      %v3487 = vpop.f32.mrb[0].mxu0
      %3488 = vmatprep.mubr.bf16.mxu0 0
      %3489 = vmatmul.mubr.bf16.gmra.mrb[0].mxu0 %v912
      %v3490 = vpop.f32.mrb[0].mxu0
      %v3491 = vadd.f32 0.0, %v3490
      %v3492 = vpop.f32.mrb[0].mxu0
      %v3493 = vpop.f32.mrb[0].mxu0
      %v3494 = vadd.f32 0.0, %v3493
      %v3495 = vpop.f32.mrb[0].mxu0
      %3496 = vmatprep.mubr.bf16.mxu0 0
      %3497 = vmatmul.mubr.bf16.gmra.mrb[0].mxu0 %v913
      %v3498 = vpop.f32.mrb[0].mxu0
      %v3499 = vadd.f32 0.0, %v3498
      %v3500 = vpop.f32.mrb[0].mxu0
      %v3501 = vpop.f32.mrb[0].mxu0
      %v3502 = vadd.f32 0.0, %v3501
      %v3503 = vpop.f32.mrb[0].mxu0
      %3504 = vmatprep.mubr.bf16.mxu0 0
      %3505 = vmatmul.mubr.bf16.gmra.mrb[0].mxu0 %v914
      %v3506 = vpop.f32.mrb[0].mxu0
      %v3507 = vadd.f32 0.0, %v3506
      %v3508 = vpop.f32.mrb[0].mxu0
      %v3509 = vpop.f32.mrb[0].mxu0
      %v3510 = vadd.f32 0.0, %v3509
      %v3511 = vpop.f32.mrb[0].mxu0
      %3512 = vmatprep.mubr.bf16.mxu0 0
      %3513 = vmatmul.mubr.bf16.gmra.mrb[0].mxu0 %v915
      %v3514 = vpop.f32.mrb[0].mxu0
      %v3515 = vadd.f32 0.0, %v3514
      %v3516 = vpop.f32.mrb[0].mxu0
      %v3517 = vpop.f32.mrb[0].mxu0
      %v3518 = vadd.f32 0.0, %v3517
      %v3519 = vpop.f32.mrb[0].mxu0
      %3520 = vmatprep.mubr.bf16.mxu0 0
      %3521 = vmatmul.mubr.bf16.gmra.mrb[0].mxu0 %v916
      %v3522 = vpop.f32.mrb[0].mxu0
      %v3523 = vadd.f32 0.0, %v3522
      %v3524 = vpop.f32.mrb[0].mxu0
      %v3525 = vpop.f32.mrb[0].mxu0
      %v3526 = vadd.f32 0.0, %v3525
      %v3527 = vpop.f32.mrb[0].mxu0
      %3528 = vmatprep.mubr.bf16.mxu0 0
      %3529 = vmatmul.mubr.bf16.gmra.mrb[0].mxu0 %v917
      %v3530 = vpop.f32.mrb[0].mxu0
      %v3531 = vadd.f32 0.0, %v3530
      %v3532 = vpop.f32.mrb[0].mxu0
      %v3533 = vpop.f32.mrb[0].mxu0
      %v3534 = vadd.f32 0.0, %v3533
      %v3535 = vpop.f32.mrb[0].mxu0
      %3536 = vmatprep.mubr.bf16.mxu0 0
      %3537 = vmatmul.mubr.bf16.gmra.mrb[0].mxu0 %v918
      %v3538 = vpop.f32.mrb[0].mxu0
      %v3539 = vadd.f32 0.0, %v3538
      %v3540 = vpop.f32.mrb[0].mxu0
      %v3541 = vpop.f32.mrb[0].mxu0
      %v3542 = vadd.f32 0.0, %v3541
      %v3543 = vpop.f32.mrb[0].mxu0
      %3544 = vmatprep.mubr.bf16.mxu0 0
      %3545 = vmatmul.mubr.bf16.gmra.mrb[0].mxu0 %v919
      %v3546 = vpop.f32.mrb[0].mxu0
      %v3547 = vadd.f32 0.0, %v3546
      %v3548 = vpop.f32.mrb[0].mxu0
      %v3549 = vpop.f32.mrb[0].mxu0
      %v3550 = vadd.f32 0.0, %v3549
      %v3551 = vpop.f32.mrb[0].mxu0
      %3552 = vmatprep.mubr.bf16.mxu0 0
      %3553 = vmatmul.mubr.bf16.gmra.mrb[0].mxu0 %v920
      %v3554 = vpop.f32.mrb[0].mxu0
      %v3555 = vadd.f32 0.0, %v3554
      %v3556 = vpop.f32.mrb[0].mxu0
      %v3557 = vpop.f32.mrb[0].mxu0
      %v3558 = vadd.f32 0.0, %v3557
      %v3559 = vpop.f32.mrb[0].mxu0
      %3560 = vmatprep.mubr.bf16.mxu0 0
      %3561 = vmatmul.mubr.bf16.gmra.mrb[0].mxu0 %v921
      %v3562 = vpop.f32.mrb[0].mxu0
      %v3563 = vadd.f32 0.0, %v3562
      %v3564 = vpop.f32.mrb[0].mxu0
      %v3565 = vpop.f32.mrb[0].mxu0
      %v3566 = vadd.f32 0.0, %v3565
      %v3567 = vpop.f32.mrb[0].mxu0
      %3568 = vmatprep.mubr.bf16.mxu0 0
      %3569 = vmatmul.mubr.bf16.gmra.mrb[0].mxu0 %v922
      %v3570 = vpop.f32.mrb[0].mxu0
      %v3571 = vadd.f32 0.0, %v3570
      %v3572 = vpop.f32.mrb[0].mxu0
      %v3573 = vpop.f32.mrb[0].mxu0
      %v3574 = vadd.f32 0.0, %v3573
      %v3575 = vpop.f32.mrb[0].mxu0
      %3576 = vmatprep.mubr.bf16.mxu0 0
      %3577 = vmatmul.mubr.bf16.gmra.mrb[0].mxu0 %v923
      %v3578 = vpop.f32.mrb[0].mxu0
      %v3579 = vadd.f32 0.0, %v3578
      %v3580 = vpop.f32.mrb[0].mxu0
      %v3581 = vpop.f32.mrb[0].mxu0
      %v3582 = vadd.f32 0.0, %v3581
      %v3583 = vpop.f32.mrb[0].mxu0
      %3584 = vmatprep.mubr.bf16.mxu0 0
      %3585 = vmatmul.mubr.bf16.gmra.mrb[0].mxu0 %v3312
      %v3586 = vpop.f32.mrb[0].mxu0
      %v3587 = vadd.f32 0.0, %v3586
      %v3588 = vpop.f32.mrb[0].mxu0
      %v3589 = vpop.f32.mrb[0].mxu0
      %v3590 = vadd.f32 0.0, %v3589
      %v3591 = vpop.f32.mrb[0].mxu0
      %3592 = vmatprep.mubr.bf16.mxu0 0
      %3593 = vmatmul.mubr.bf16.gmra.mrb[0].mxu0 %v3313
      %v3594 = vpop.f32.mrb[0].mxu0
      %v3595 = vadd.f32 0.0, %v3594
      %v3596 = vpop.f32.mrb[0].mxu0
      %v3597 = vpop.f32.mrb[0].mxu0
      %v3598 = vpop.f32.mrb[0].mxu0
      %3599 = vmatprep.mubr.bf16.mxu0 0
      %3600 = vmatmul.mubr.bf16.gmra.mrb[0].mxu0 %v3314
      %v3601 = vpop.f32.mrb[0].mxu0
      %v3602 = vpop.f32.mrb[0].mxu0
      %v3603 = vpop.f32.mrb[0].mxu0
      %v3604 = vpop.f32.mrb[0].mxu0
      %3605 = vdwg.mxu0
      %v3606 = vadd.f32 %v3264, %v3406
      %v3607 = vadd.f32 %v3265, %v3411
      %v3608 = vadd.f32 %v3266, %v3414
      %v3609 = vadd.f32 %v3267, %v3419
      %v3610 = vadd.f32 %v3268, %v3422
      %v3611 = vadd.f32 %v3269, %v3427
      %v3612 = vadd.f32 %v3270, %v3430
      %v3613 = vadd.f32 %v3271, %v3435
      %v3614 = vadd.f32 %v3272, %v3438
      %v3615 = vadd.f32 %v3273, %v3443
      %v3616 = vadd.f32 %v3274, %v3446
      %v3617 = vadd.f32 %v3275, %v3451
      %v3618 = vadd.f32 %v3276, %v3454
      %v3619 = vadd.f32 %v3277, %v3459
      %v3620 = vadd.f32 %v3278, %v3462
      %v3621 = vadd.f32 %v3279, %v3467
      %v3622 = vadd.f32 %v3280, %v3470
      %v3623 = vadd.f32 %v3281, %v3475
      %v3624 = vadd.f32 %v3282, %v3478
      %v3625 = vadd.f32 %v3283, %v3483
      %v3626 = vadd.f32 %v3284, %v3486
      %v3627 = vadd.f32 %v3285, %v3491
      %v3628 = vadd.f32 %v3286, %v3494
      %v3629 = vadd.f32 %v3287, %v3499
      %v3630 = vadd.f32 %v3288, %v3502
      %v3631 = vadd.f32 %v3289, %v3507
      %v3632 = vadd.f32 %v3290, %v3510
      %v3633 = vadd.f32 %v3291, %v3515
      %v3634 = vadd.f32 %v3292, %v3518
      %v3635 = vadd.f32 %v3293, %v3523
      %v3636 = vadd.f32 %v3294, %v3526
      %v3637 = vadd.f32 %v3295, %v3531
      %v3638 = vadd.f32 %v3296, %v3534
      %v3639 = vadd.f32 %v3297, %v3539
      %v3640 = vadd.f32 %v3298, %v3542
      %v3641 = vadd.f32 %v3299, %v3547
      %v3642 = vadd.f32 %v3300, %v3550
      %v3643 = vadd.f32 %v3301, %v3555
      %v3644 = vadd.f32 %v3302, %v3558
      %v3645 = vadd.f32 %v3303, %v3563
      %v3646 = vadd.f32 %v3304, %v3566
      %v3647 = vadd.f32 %v3305, %v3571
      %v3648 = vadd.f32 %v3306, %v3574
      %v3649 = vadd.f32 %v3307, %v3579
      %v3650 = vadd.f32 %v3308, %v3582
      %v3651 = vadd.f32 %v3309, %v3587
      %v3652 = vadd.f32 %v3310, %v3590
      %v3653 = vadd.f32 %v3311, %v3595
      %v3654 = vpack.c.bf16 %v669, %v670
      %v3655 = vpack.c.bf16 %v667, %v668
      %v3656 = vpack.c.bf16 %v725, %v666
      %v3673 = vunpack.c.l.b16 %v854
      %v3674 = vunpack.c.l.b16 %v855
      %v3675 = vunpack.c.l.b16 %v856
      %v3676 = vunpack.c.l.b16 %v857
      %v3677 = vunpack.c.l.b16 %v858
      %v3678 = vunpack.c.l.b16 %v859
      %v3679 = vunpack.c.l.b16 %v860
      %v3680 = vunpack.c.l.b16 %v861
      %v3681 = vunpack.c.l.b16 %v862
      %v3682 = vunpack.c.l.b16 %v863
      %v3683 = vunpack.c.l.b16 %v864
      %v3684 = vunpack.c.l.b16 %v865
      %v3685 = vunpack.c.l.b16 %v866
      %v3686 = vunpack.c.l.b16 %v867
      %v3687 = vunpack.c.l.b16 %v868
      %v3688 = vunpack.c.l.b16 %v869
      %v3689 = vpack.c.b16 %v3674, %v3673
      %v3690 = vpack.c.b16 %v3676, %v3675
      %v3691 = vpack.c.b16 %v3678, %v3677
      %v3692 = vpack.c.b16 %v3680, %v3679
      %v3693 = vpack.c.b16 %v3682, %v3681
      %v3694 = vpack.c.b16 %v3684, %v3683
      %v3695 = vpack.c.b16 %v3686, %v3685
      %v3696 = vpack.c.b16 %v3688, %v3687
      %3705 = vmatprep.subr.bf16.mxu0 0
      %3706 = vmatpush1.bf16.msra.mxu0 %v3689
      %3707 = vmatprep.subr.bf16.mxu0 0
      %3708 = vmatpush1.bf16.msra.mxu0 %v3690
      %3709 = vmatprep.subr.bf16.mxu0 0
      %3710 = vmatpush1.bf16.msra.mxu0 %v3691
      %3711 = vmatprep.subr.bf16.mxu0 0
      %3712 = vmatpush1.bf16.msra.mxu0 %v3692
      %3713 = vmatprep.subr.bf16.mxu0 0
      %3714 = vmatpush1.bf16.msra.mxu0 %v3693
      %3715 = vmatprep.subr.bf16.mxu0 0
      %3716 = vmatpush1.bf16.msra.mxu0 %v3694
      %3717 = vmatprep.subr.bf16.mxu0 0
      %3718 = vmatpush1.bf16.msra.mxu0 %v3695
      %3719 = vmatprep.subr.bf16.mxu0 0
      %3720 = vmatpush1.bf16.msra.mxu0 %v3696
      %3721 = vmatprep.subr.bf16.mxu0 0
      %3722 = vmatpush1.bf16.msra.mxu0 0
      %3723 = vmatprep.subr.bf16.mxu0 0
      %3724 = vmatpush1.bf16.msra.mxu0 0
      %3725 = vmatprep.subr.bf16.mxu0 0
      %3726 = vmatpush1.bf16.msra.mxu0 0
      %3727 = vmatprep.subr.bf16.mxu0 0
      %3728 = vmatpush1.bf16.msra.mxu0 0
      %3729 = vmatprep.subr.bf16.mxu0 0
      %3730 = vmatpush1.bf16.msra.mxu0 0
      %3731 = vmatprep.subr.bf16.mxu0 0
      %3732 = vmatpush1.bf16.msra.mxu0 0
      %3733 = vmatprep.subr.bf16.mxu0 0
      %3734 = vmatpush1.bf16.msra.mxu0 0
      %3735 = vmatprep.subr.bf16.mxu0 0
      %3736 = vmatpush1.bf16.msra.mxu0 0
      %3737 = vmatprep.mubr.bf16.mxu0 0
      %3738 = vmatmul.mubr.bf16.gmra.mrb[0].mxu0 %v1509
      %v3739 = vpop.f32.mrb[0].mxu0
      %v3740 = vpop.f32.mrb[0].mxu0
      %v3741 = vpop.f32.mrb[0].mxu0
      %v3742 = vpop.f32.mrb[0].mxu0
      %3743 = vmatprep.mubr.bf16.mxu0 0
      %3744 = vmatmul.mubr.bf16.gmra.mrb[0].mxu0 %v1510
      %v3745 = vpop.f32.mrb[0].mxu0
      %v3746 = vpop.f32.mrb[0].mxu0
      %v3747 = vpop.f32.mrb[0].mxu0
      %v3748 = vadd.f32 0.0, %v3747
      %v3749 = vpop.f32.mrb[0].mxu0
      %3750 = vmatprep.mubr.bf16.mxu0 0
      %3751 = vmatmul.mubr.bf16.gmra.mrb[0].mxu0 %v1511
      %v3752 = vpop.f32.mrb[0].mxu0
      %v3753 = vadd.f32 0.0, %v3752
      %v3754 = vpop.f32.mrb[0].mxu0
      %v3755 = vpop.f32.mrb[0].mxu0
      %v3756 = vadd.f32 0.0, %v3755
      %v3757 = vpop.f32.mrb[0].mxu0
      %3758 = vmatprep.mubr.bf16.mxu0 0
      %3759 = vmatmul.mubr.bf16.gmra.mrb[0].mxu0 %v1512
      %v3760 = vpop.f32.mrb[0].mxu0
      %v3761 = vadd.f32 0.0, %v3760
      %v3762 = vpop.f32.mrb[0].mxu0
      %v3763 = vpop.f32.mrb[0].mxu0
      %v3764 = vadd.f32 0.0, %v3763
      %v3765 = vpop.f32.mrb[0].mxu0
      %3766 = vmatprep.mubr.bf16.mxu0 0
      %3767 = vmatmul.mubr.bf16.gmra.mrb[0].mxu0 %v1513
      %v3768 = vpop.f32.mrb[0].mxu0
      %v3769 = vadd.f32 0.0, %v3768
      %v3770 = vpop.f32.mrb[0].mxu0
      %v3771 = vpop.f32.mrb[0].mxu0
      %v3772 = vadd.f32 0.0, %v3771
      %v3773 = vpop.f32.mrb[0].mxu0
      %3774 = vmatprep.mubr.bf16.mxu0 0
      %3775 = vmatmul.mubr.bf16.gmra.mrb[0].mxu0 %v1514
      %v3776 = vpop.f32.mrb[0].mxu0
      %v3777 = vadd.f32 0.0, %v3776
      %v3778 = vpop.f32.mrb[0].mxu0
      %v3779 = vpop.f32.mrb[0].mxu0
      %v3780 = vadd.f32 0.0, %v3779
      %v3781 = vpop.f32.mrb[0].mxu0
      %3782 = vmatprep.mubr.bf16.mxu0 0
      %3783 = vmatmul.mubr.bf16.gmra.mrb[0].mxu0 %v1515
      %v3784 = vpop.f32.mrb[0].mxu0
      %v3785 = vadd.f32 0.0, %v3784
      %v3786 = vpop.f32.mrb[0].mxu0
      %v3787 = vpop.f32.mrb[0].mxu0
      %v3788 = vadd.f32 0.0, %v3787
      %v3789 = vpop.f32.mrb[0].mxu0
      %3790 = vmatprep.mubr.bf16.mxu0 0
      %3791 = vmatmul.mubr.bf16.gmra.mrb[0].mxu0 %v1516
      %v3792 = vpop.f32.mrb[0].mxu0
      %v3793 = vadd.f32 0.0, %v3792
      %v3794 = vpop.f32.mrb[0].mxu0
      %v3795 = vpop.f32.mrb[0].mxu0
      %v3796 = vadd.f32 0.0, %v3795
      %v3797 = vpop.f32.mrb[0].mxu0
      %3798 = vmatprep.mubr.bf16.mxu0 0
      %3799 = vmatmul.mubr.bf16.gmra.mrb[0].mxu0 %v1517
      %v3800 = vpop.f32.mrb[0].mxu0
      %v3801 = vadd.f32 0.0, %v3800
      %v3802 = vpop.f32.mrb[0].mxu0
      %v3803 = vpop.f32.mrb[0].mxu0
      %v3804 = vadd.f32 0.0, %v3803
      %v3805 = vpop.f32.mrb[0].mxu0
      %3806 = vmatprep.mubr.bf16.mxu0 0
      %3807 = vmatmul.mubr.bf16.gmra.mrb[0].mxu0 %v1518
      %v3808 = vpop.f32.mrb[0].mxu0
      %v3809 = vadd.f32 0.0, %v3808
      %v3810 = vpop.f32.mrb[0].mxu0
      %v3811 = vpop.f32.mrb[0].mxu0
      %v3812 = vadd.f32 0.0, %v3811
      %v3813 = vpop.f32.mrb[0].mxu0
      %3814 = vmatprep.mubr.bf16.mxu0 0
      %3815 = vmatmul.mubr.bf16.gmra.mrb[0].mxu0 %v1519
      %v3816 = vpop.f32.mrb[0].mxu0
      %v3817 = vadd.f32 0.0, %v3816
      %v3818 = vpop.f32.mrb[0].mxu0
      %v3819 = vpop.f32.mrb[0].mxu0
      %v3820 = vadd.f32 0.0, %v3819
      %v3821 = vpop.f32.mrb[0].mxu0
      %3822 = vmatprep.mubr.bf16.mxu0 0
      %3823 = vmatmul.mubr.bf16.gmra.mrb[0].mxu0 %v1520
      %v3824 = vpop.f32.mrb[0].mxu0
      %v3825 = vadd.f32 0.0, %v3824
      %v3826 = vpop.f32.mrb[0].mxu0
      %v3827 = vpop.f32.mrb[0].mxu0
      %v3828 = vadd.f32 0.0, %v3827
      %v3829 = vpop.f32.mrb[0].mxu0
      %3830 = vmatprep.mubr.bf16.mxu0 0
      %3831 = vmatmul.mubr.bf16.gmra.mrb[0].mxu0 %v1521
      %v3832 = vpop.f32.mrb[0].mxu0
      %v3833 = vadd.f32 0.0, %v3832
      %v3834 = vpop.f32.mrb[0].mxu0
      %v3835 = vpop.f32.mrb[0].mxu0
      %v3836 = vadd.f32 0.0, %v3835
      %v3837 = vpop.f32.mrb[0].mxu0
      %3838 = vmatprep.mubr.bf16.mxu0 0
      %3839 = vmatmul.mubr.bf16.gmra.mrb[0].mxu0 %v1522
      %v3840 = vpop.f32.mrb[0].mxu0
      %v3841 = vadd.f32 0.0, %v3840
      %v3842 = vpop.f32.mrb[0].mxu0
      %v3843 = vpop.f32.mrb[0].mxu0
      %v3844 = vadd.f32 0.0, %v3843
      %v3845 = vpop.f32.mrb[0].mxu0
      %3846 = vmatprep.mubr.bf16.mxu0 0
      %3847 = vmatmul.mubr.bf16.gmra.mrb[0].mxu0 %v1523
      %v3848 = vpop.f32.mrb[0].mxu0
      %v3849 = vadd.f32 0.0, %v3848
      %v3850 = vpop.f32.mrb[0].mxu0
      %v3851 = vpop.f32.mrb[0].mxu0
      %v3852 = vadd.f32 0.0, %v3851
      %v3853 = vpop.f32.mrb[0].mxu0
      %3854 = vmatprep.mubr.bf16.mxu0 0
      %3855 = vmatmul.mubr.bf16.gmra.mrb[0].mxu0 %v1524
      %v3856 = vpop.f32.mrb[0].mxu0
      %v3857 = vadd.f32 0.0, %v3856
      %v3858 = vpop.f32.mrb[0].mxu0
      %v3859 = vpop.f32.mrb[0].mxu0
      %v3860 = vadd.f32 0.0, %v3859
      %v3861 = vpop.f32.mrb[0].mxu0
      %3862 = vmatprep.mubr.bf16.mxu0 0
      %3863 = vmatmul.mubr.bf16.gmra.mrb[0].mxu0 %v1525
      %v3864 = vpop.f32.mrb[0].mxu0
      %v3865 = vadd.f32 0.0, %v3864
      %v3866 = vpop.f32.mrb[0].mxu0
      %v3867 = vpop.f32.mrb[0].mxu0
      %v3868 = vadd.f32 0.0, %v3867
      %v3869 = vpop.f32.mrb[0].mxu0
      %3870 = vmatprep.mubr.bf16.mxu0 0
      %3871 = vmatmul.mubr.bf16.gmra.mrb[0].mxu0 %v1526
      %v3872 = vpop.f32.mrb[0].mxu0
      %v3873 = vadd.f32 0.0, %v3872
      %v3874 = vpop.f32.mrb[0].mxu0
      %v3875 = vpop.f32.mrb[0].mxu0
      %v3876 = vadd.f32 0.0, %v3875
      %v3877 = vpop.f32.mrb[0].mxu0
      %3878 = vmatprep.mubr.bf16.mxu0 0
      %3879 = vmatmul.mubr.bf16.gmra.mrb[0].mxu0 %v1527
      %v3880 = vpop.f32.mrb[0].mxu0
      %v3881 = vadd.f32 0.0, %v3880
      %v3882 = vpop.f32.mrb[0].mxu0
      %v3883 = vpop.f32.mrb[0].mxu0
      %v3884 = vadd.f32 0.0, %v3883
      %v3885 = vpop.f32.mrb[0].mxu0
      %3886 = vmatprep.mubr.bf16.mxu0 0
      %3887 = vmatmul.mubr.bf16.gmra.mrb[0].mxu0 %v1528
      %v3888 = vpop.f32.mrb[0].mxu0
      %v3889 = vadd.f32 0.0, %v3888
      %v3890 = vpop.f32.mrb[0].mxu0
      %v3891 = vpop.f32.mrb[0].mxu0
      %v3892 = vadd.f32 0.0, %v3891
      %v3893 = vpop.f32.mrb[0].mxu0
      %3894 = vmatprep.mubr.bf16.mxu0 0
      %3895 = vmatmul.mubr.bf16.gmra.mrb[0].mxu0 %v1529
      %v3896 = vpop.f32.mrb[0].mxu0
      %v3897 = vadd.f32 0.0, %v3896
      %v3898 = vpop.f32.mrb[0].mxu0
      %v3899 = vpop.f32.mrb[0].mxu0
      %v3900 = vadd.f32 0.0, %v3899
      %v3901 = vpop.f32.mrb[0].mxu0
      %3902 = vmatprep.mubr.bf16.mxu0 0
      %3903 = vmatmul.mubr.bf16.gmra.mrb[0].mxu0 %v1530
      %v3904 = vpop.f32.mrb[0].mxu0
      %v3905 = vadd.f32 0.0, %v3904
      %v3906 = vpop.f32.mrb[0].mxu0
      %v3907 = vpop.f32.mrb[0].mxu0
      %v3908 = vadd.f32 0.0, %v3907
      %v3909 = vpop.f32.mrb[0].mxu0
      %3910 = vmatprep.mubr.bf16.mxu0 0
      %3911 = vmatmul.mubr.bf16.gmra.mrb[0].mxu0 %v1531
      %v3912 = vpop.f32.mrb[0].mxu0
      %v3913 = vadd.f32 0.0, %v3912
      %v3914 = vpop.f32.mrb[0].mxu0
      %v3915 = vpop.f32.mrb[0].mxu0
      %v3916 = vadd.f32 0.0, %v3915
      %v3917 = vpop.f32.mrb[0].mxu0
      %3918 = vmatprep.mubr.bf16.mxu0 0
      %3919 = vmatmul.mubr.bf16.gmra.mrb[0].mxu0 %v1532
      %v3920 = vpop.f32.mrb[0].mxu0
      %v3921 = vadd.f32 0.0, %v3920
      %v3922 = vpop.f32.mrb[0].mxu0
      %v3923 = vpop.f32.mrb[0].mxu0
      %v3924 = vadd.f32 0.0, %v3923
      %v3925 = vpop.f32.mrb[0].mxu0
      %3926 = vmatprep.mubr.bf16.mxu0 0
      %3927 = vmatmul.mubr.bf16.gmra.mrb[0].mxu0 %v3654
      %v3928 = vpop.f32.mrb[0].mxu0
      %v3929 = vadd.f32 0.0, %v3928
      %v3930 = vpop.f32.mrb[0].mxu0
      %v3931 = vpop.f32.mrb[0].mxu0
      %v3932 = vadd.f32 0.0, %v3931
      %v3933 = vpop.f32.mrb[0].mxu0
      %3934 = vmatprep.mubr.bf16.mxu0 0
      %3935 = vmatmul.mubr.bf16.gmra.mrb[0].mxu0 %v3655
      %v3936 = vpop.f32.mrb[0].mxu0
      %v3937 = vadd.f32 0.0, %v3936
      %v3938 = vpop.f32.mrb[0].mxu0
      %v3939 = vpop.f32.mrb[0].mxu0
      %v3940 = vpop.f32.mrb[0].mxu0
      %3941 = vmatprep.mubr.bf16.mxu0 0
      %3942 = vmatmul.mubr.bf16.gmra.mrb[0].mxu0 %v3656
      %v3943 = vpop.f32.mrb[0].mxu0
      %v3944 = vpop.f32.mrb[0].mxu0
      %v3945 = vpop.f32.mrb[0].mxu0
      %v3946 = vpop.f32.mrb[0].mxu0
      %3947 = vdwg.mxu0
      %v3948 = vadd.f32 %v3606, %v3748
      %v3949 = vadd.f32 %v3607, %v3753
      %v3950 = vadd.f32 %v3608, %v3756
      %v3951 = vadd.f32 %v3609, %v3761
      %v3952 = vadd.f32 %v3610, %v3764
      %v3953 = vadd.f32 %v3611, %v3769
      %v3954 = vadd.f32 %v3612, %v3772
      %v3955 = vadd.f32 %v3613, %v3777
      %v3956 = vadd.f32 %v3614, %v3780
      %v3957 = vadd.f32 %v3615, %v3785
      %v3958 = vadd.f32 %v3616, %v3788
      %v3959 = vadd.f32 %v3617, %v3793
      %v3960 = vadd.f32 %v3618, %v3796
      %v3961 = vadd.f32 %v3619, %v3801
      %v3962 = vadd.f32 %v3620, %v3804
      %v3963 = vadd.f32 %v3621, %v3809
      %v3964 = vadd.f32 %v3622, %v3812
      %v3965 = vadd.f32 %v3623, %v3817
      %v3966 = vadd.f32 %v3624, %v3820
      %v3967 = vadd.f32 %v3625, %v3825
      %v3968 = vadd.f32 %v3626, %v3828
      %v3969 = vadd.f32 %v3627, %v3833
      %v3970 = vadd.f32 %v3628, %v3836
      %v3971 = vadd.f32 %v3629, %v3841
      %v3972 = vadd.f32 %v3630, %v3844
      %v3973 = vadd.f32 %v3631, %v3849
      %v3974 = vadd.f32 %v3632, %v3852
      %v3975 = vadd.f32 %v3633, %v3857
      %v3976 = vadd.f32 %v3634, %v3860
      %v3977 = vadd.f32 %v3635, %v3865
      %v3978 = vadd.f32 %v3636, %v3868
      %v3979 = vadd.f32 %v3637, %v3873
      %v3980 = vadd.f32 %v3638, %v3876
      %v3981 = vadd.f32 %v3639, %v3881
      %v3982 = vadd.f32 %v3640, %v3884
      %v3983 = vadd.f32 %v3641, %v3889
      %v3984 = vadd.f32 %v3642, %v3892
      %v3985 = vadd.f32 %v3643, %v3897
      %v3986 = vadd.f32 %v3644, %v3900
      %v3987 = vadd.f32 %v3645, %v3905
      %v3988 = vadd.f32 %v3646, %v3908
      %v3989 = vadd.f32 %v3647, %v3913
      %v3990 = vadd.f32 %v3648, %v3916
      %v3991 = vadd.f32 %v3649, %v3921
      %v3992 = vadd.f32 %v3650, %v3924
      %v3993 = vadd.f32 %v3651, %v3929
      %v3994 = vadd.f32 %v3652, %v3932
      %v3995 = vadd.f32 %v3653, %v3937
      %v3996 = vld [vmem:[%s415] sm:$0x1]
      %v3997 = vld [vmem:[%s7] sm:$0xff]
      %v3998 = vld [vmem:[%s7 + $0x8] sm:$0xff]
      %v3999 = vld [vmem:[%s7 + $0x10] sm:$0xff]
      %v4000 = vld [vmem:[%s7 + $0x18] sm:$0xff]
      %v4001 = vld [vmem:[%s8] sm:$0x1]
      %vm4002 = vcmask 261120
      %v4004 = vsel %vm4002, %v3996, 0
      %4006 = vmatprep.subr.mxu0 0.0
      %4007 = vmatpush1.msra.mxu0 %v3997
      %4008 = vmatprep.subr.mxu0 0.0
      %4009 = vmatpush1.msra.mxu0 %v3998
      %4010 = vmatprep.subr.mxu0 0.0
      %4011 = vmatpush1.msra.mxu0 %v3999
      %4012 = vmatprep.subr.mxu0 0.0
      %4013 = vmatpush1.msra.mxu0 %v4000
      %4014 = vmatprep.subr.mxu0 0.0
      %4015 = vmatpush1.msra.mxu0 0.0
      %4016 = vmatprep.subr.mxu0 0.0
      %4017 = vmatpush1.msra.mxu0 0.0
      %4018 = vmatprep.subr.mxu0 0.0
      %4019 = vmatpush1.msra.mxu0 0.0
      %4020 = vmatprep.subr.mxu0 0.0
      %4021 = vmatpush1.msra.mxu0 0.0
      %4022 = vmatprep.subr.mxu0 0.0
      %4023 = vmatpush1.msra.mxu0 0.0
      %4024 = vmatprep.subr.mxu0 0.0
      %4025 = vmatpush1.msra.mxu0 0.0
      %4026 = vmatprep.subr.mxu0 0.0
      %4027 = vmatpush1.msra.mxu0 0.0
      %4028 = vmatprep.subr.mxu0 0.0
      %4029 = vmatpush1.msra.mxu0 0.0
      %4030 = vmatprep.subr.mxu0 0.0
      %4031 = vmatpush1.msra.mxu0 0.0
      %4032 = vmatprep.subr.mxu0 0.0
      %4033 = vmatpush1.msra.mxu0 0.0
      %4034 = vmatprep.subr.mxu0 0.0
      %4035 = vmatpush1.msra.mxu0 0.0
      %4036 = vmatprep.subr.mxu0 0.0
      %4037 = vmatpush1.msra.mxu0 0.0
      %4038 = vmatprep.subr.mxu0 0.0
      %4039 = vmatpush1.msra.mxu0 0.0
      %4040 = vmatprep.subr.mxu0 0.0
      %4041 = vmatpush1.msra.mxu0 0.0
      %4042 = vmatprep.subr.mxu0 0.0
      %4043 = vmatpush1.msra.mxu0 0.0
      %4044 = vmatprep.subr.mxu0 0.0
      %4045 = vmatpush1.msra.mxu0 0.0
      %4046 = vmatprep.subr.mxu0 0.0
      %4047 = vmatpush1.msra.mxu0 0.0
      %4048 = vmatprep.subr.mxu0 0.0
      %4049 = vmatpush1.msra.mxu0 0.0
      %4050 = vmatprep.subr.mxu0 0.0
      %4051 = vmatpush1.msra.mxu0 0.0
      %4052 = vmatprep.subr.mxu0 0.0
      %4053 = vmatpush1.msra.mxu0 0.0
      %4054 = vmatprep.subr.mxu0 0.0
      %4055 = vmatpush1.msra.mxu0 0.0
      %4056 = vmatprep.subr.mxu0 0.0
      %4057 = vmatpush1.msra.mxu0 0.0
      %4058 = vmatprep.subr.mxu0 0.0
      %4059 = vmatpush1.msra.mxu0 0.0
      %4060 = vmatprep.subr.mxu0 0.0
      %4061 = vmatpush1.msra.mxu0 0.0
      %4062 = vmatprep.subr.mxu0 0.0
      %4063 = vmatpush1.msra.mxu0 0.0
      %4064 = vmatprep.subr.mxu0 0.0
      %4065 = vmatpush1.msra.mxu0 0.0
      %4066 = vmatprep.subr.mxu0 0.0
      %4067 = vmatpush1.msra.mxu0 0.0
      %4068 = vmatprep.subr.mxu0 0.0
      %4069 = vmatpush1.msra.mxu0 0.0
      %4070 = vmatprep.mubr.f32.mxu0 0.0
      %4071 = vmatmul.mubr.f32.gmra.mrb[0].mxu0 %v4004
      %v4072 = vpop.f32.mrb[0].mxu0
      %v4073 = vadd.f32 %v4001, %v4072
      %v4074 = vpop.f32.mrb[0].mxu0
      %4075 = vdwg.mxu0
      %v4076 = vld [vmem:[%s4] sm:$0x1]
      %v4078 = vlaneseq
      %v4079 = vshrl.u32 %v4078, 7
      %v4080 = vsub.s32 0, %v4079
      %v4081 = vrot.slane %v4076, %v4080
      %v4083 = vadd.f32 %v3948, %v4081
      %v4084 = vadd.f32 %v3949, %v4081
      %v4085 = vadd.f32 %v3950, %v4081
      %v4086 = vadd.f32 %v3951, %v4081
      %v4087 = vadd.f32 %v3952, %v4081
      %v4088 = vadd.f32 %v3953, %v4081
      %v4089 = vadd.f32 %v3954, %v4081
      %v4090 = vadd.f32 %v3955, %v4081
      %v4091 = vadd.f32 %v3956, %v4081
      %v4092 = vadd.f32 %v3957, %v4081
      %v4093 = vadd.f32 %v3958, %v4081
      %v4094 = vadd.f32 %v3959, %v4081
      %v4095 = vadd.f32 %v3960, %v4081
      %v4096 = vadd.f32 %v3961, %v4081
      %v4097 = vadd.f32 %v3962, %v4081
      %v4098 = vadd.f32 %v3963, %v4081
      %v4099 = vadd.f32 %v3964, %v4081
      %v4100 = vadd.f32 %v3965, %v4081
      %v4101 = vadd.f32 %v3966, %v4081
      %v4102 = vadd.f32 %v3967, %v4081
      %v4103 = vadd.f32 %v3968, %v4081
      %v4104 = vadd.f32 %v3969, %v4081
      %v4105 = vadd.f32 %v3970, %v4081
      %v4106 = vadd.f32 %v3971, %v4081
      %v4107 = vadd.f32 %v3972, %v4081
      %v4108 = vadd.f32 %v3973, %v4081
      %v4109 = vadd.f32 %v3974, %v4081
      %v4110 = vadd.f32 %v3975, %v4081
      %v4111 = vadd.f32 %v3976, %v4081
      %v4112 = vadd.f32 %v3977, %v4081
      %v4113 = vadd.f32 %v3978, %v4081
      %v4114 = vadd.f32 %v3979, %v4081
      %v4115 = vadd.f32 %v3980, %v4081
      %v4116 = vadd.f32 %v3981, %v4081
      %v4117 = vadd.f32 %v3982, %v4081
      %v4118 = vadd.f32 %v3983, %v4081
      %v4119 = vadd.f32 %v3984, %v4081
      %v4120 = vadd.f32 %v3985, %v4081
      %v4121 = vadd.f32 %v3986, %v4081
      %v4122 = vadd.f32 %v3987, %v4081
      %v4123 = vadd.f32 %v3988, %v4081
      %v4124 = vadd.f32 %v3989, %v4081
      %v4125 = vadd.f32 %v3990, %v4081
      %v4126 = vadd.f32 %v3991, %v4081
      %v4127 = vadd.f32 %v3992, %v4081
      %v4128 = vadd.f32 %v3993, %v4081
      %v4129 = vadd.f32 %v3994, %v4081
      %v4130 = vadd.f32 %v3995, %v4081
      %v4131 = vxor.u32 %v4083, 2147483648
      %v4132 = vxor.u32 %v4084, 2147483648
      %v4133 = vxor.u32 %v4085, 2147483648
      %v4134 = vxor.u32 %v4086, 2147483648
      %v4135 = vxor.u32 %v4087, 2147483648
      %v4136 = vxor.u32 %v4088, 2147483648
      %v4137 = vxor.u32 %v4089, 2147483648
      %v4138 = vxor.u32 %v4090, 2147483648
      %v4139 = vxor.u32 %v4091, 2147483648
      %v4140 = vxor.u32 %v4092, 2147483648
      %v4141 = vxor.u32 %v4093, 2147483648
      %v4142 = vxor.u32 %v4094, 2147483648
      %v4143 = vxor.u32 %v4095, 2147483648
      %v4144 = vxor.u32 %v4096, 2147483648
      %v4145 = vxor.u32 %v4097, 2147483648
      %v4146 = vxor.u32 %v4098, 2147483648
      %v4147 = vxor.u32 %v4099, 2147483648
      %v4148 = vxor.u32 %v4100, 2147483648
      %v4149 = vxor.u32 %v4101, 2147483648
      %v4150 = vxor.u32 %v4102, 2147483648
      %v4151 = vxor.u32 %v4103, 2147483648
      %v4152 = vxor.u32 %v4104, 2147483648
      %v4153 = vxor.u32 %v4105, 2147483648
      %v4154 = vxor.u32 %v4106, 2147483648
      %v4155 = vxor.u32 %v4107, 2147483648
      %v4156 = vxor.u32 %v4108, 2147483648
      %v4157 = vxor.u32 %v4109, 2147483648
      %v4158 = vxor.u32 %v4110, 2147483648
      %v4159 = vxor.u32 %v4111, 2147483648
      %v4160 = vxor.u32 %v4112, 2147483648
      %v4161 = vxor.u32 %v4113, 2147483648
      %v4162 = vxor.u32 %v4114, 2147483648
      %v4163 = vxor.u32 %v4115, 2147483648
      %v4164 = vxor.u32 %v4116, 2147483648
      %v4165 = vxor.u32 %v4117, 2147483648
      %v4166 = vxor.u32 %v4118, 2147483648
      %v4167 = vxor.u32 %v4119, 2147483648
      %v4168 = vxor.u32 %v4120, 2147483648
      %v4169 = vxor.u32 %v4121, 2147483648
      %v4170 = vxor.u32 %v4122, 2147483648
      %v4171 = vxor.u32 %v4123, 2147483648
      %v4172 = vxor.u32 %v4124, 2147483648
      %v4173 = vxor.u32 %v4125, 2147483648
      %v4174 = vxor.u32 %v4126, 2147483648
      %v4175 = vxor.u32 %v4127, 2147483648
      %v4176 = vxor.u32 %v4128, 2147483648
      %v4177 = vxor.u32 %v4129, 2147483648
      %v4178 = vxor.u32 %v4130, 2147483648
      %v4179 = vmul.f32 %v4131, 1.442695
      %v4180 = vpow.pop %v4179
      %v4181 = vmul.f32 %v4132, 1.442695
      %v4182 = vpow.pop %v4181
      %v4183 = vmul.f32 %v4133, 1.442695
      %v4184 = vpow.pop %v4183
      %v4185 = vmul.f32 %v4134, 1.442695
      %v4186 = vpow.pop %v4185
      %v4187 = vmul.f32 %v4135, 1.442695
      %v4188 = vpow.pop %v4187
      %v4189 = vmul.f32 %v4136, 1.442695
      %v4190 = vpow.pop %v4189
      %v4191 = vmul.f32 %v4137, 1.442695
      %v4192 = vpow.pop %v4191
      %v4193 = vmul.f32 %v4138, 1.442695
      %v4194 = vpow.pop %v4193
      %v4195 = vmul.f32 %v4139, 1.442695
      %v4196 = vpow.pop %v4195
      %v4197 = vmul.f32 %v4140, 1.442695
      %v4198 = vpow.pop %v4197
      %v4199 = vmul.f32 %v4141, 1.442695
      %v4200 = vpow.pop %v4199
      %v4201 = vmul.f32 %v4142, 1.442695
      %v4202 = vpow.pop %v4201
      %v4203 = vmul.f32 %v4143, 1.442695
      %v4204 = vpow.pop %v4203
      %v4205 = vmul.f32 %v4144, 1.442695
      %v4206 = vpow.pop %v4205
      %v4207 = vmul.f32 %v4145, 1.442695
      %v4208 = vpow.pop %v4207
      %v4209 = vmul.f32 %v4146, 1.442695
      %v4210 = vpow.pop %v4209
      %v4211 = vmul.f32 %v4147, 1.442695
      %v4212 = vpow.pop %v4211
      %v4213 = vmul.f32 %v4148, 1.442695
      %v4214 = vpow.pop %v4213
      %v4215 = vmul.f32 %v4149, 1.442695
      %v4216 = vpow.pop %v4215
      %v4217 = vmul.f32 %v4150, 1.442695
      %v4218 = vpow.pop %v4217
      %v4219 = vmul.f32 %v4151, 1.442695
      %v4220 = vpow.pop %v4219
      %v4221 = vmul.f32 %v4152, 1.442695
      %v4222 = vpow.pop %v4221
      %v4223 = vmul.f32 %v4153, 1.442695
      %v4224 = vpow.pop %v4223
      %v4225 = vmul.f32 %v4154, 1.442695
      %v4226 = vpow.pop %v4225
      %v4227 = vmul.f32 %v4155, 1.442695
      %v4228 = vpow.pop %v4227
      %v4229 = vmul.f32 %v4156, 1.442695
      %v4230 = vpow.pop %v4229
      %v4231 = vmul.f32 %v4157, 1.442695
      %v4232 = vpow.pop %v4231
      %v4233 = vmul.f32 %v4158, 1.442695
      %v4234 = vpow.pop %v4233
      %v4235 = vmul.f32 %v4159, 1.442695
      %v4236 = vpow.pop %v4235
      %v4237 = vmul.f32 %v4160, 1.442695
      %v4238 = vpow.pop %v4237
      %v4239 = vmul.f32 %v4161, 1.442695
      %v4240 = vpow.pop %v4239
      %v4241 = vmul.f32 %v4162, 1.442695
      %v4242 = vpow.pop %v4241
      %v4243 = vmul.f32 %v4163, 1.442695
      %v4244 = vpow.pop %v4243
      %v4245 = vmul.f32 %v4164, 1.442695
      %v4246 = vpow.pop %v4245
      %v4247 = vmul.f32 %v4165, 1.442695
      %v4248 = vpow.pop %v4247
      %v4249 = vmul.f32 %v4166, 1.442695
      %v4250 = vpow.pop %v4249
      %v4251 = vmul.f32 %v4167, 1.442695
      %v4252 = vpow.pop %v4251
      %v4253 = vmul.f32 %v4168, 1.442695
      %v4254 = vpow.pop %v4253
      %v4255 = vmul.f32 %v4169, 1.442695
      %v4256 = vpow.pop %v4255
      %v4257 = vmul.f32 %v4170, 1.442695
      %v4258 = vpow.pop %v4257
      %v4259 = vmul.f32 %v4171, 1.442695
      %v4260 = vpow.pop %v4259
      %v4261 = vmul.f32 %v4172, 1.442695
      %v4262 = vpow.pop %v4261
      %v4263 = vmul.f32 %v4173, 1.442695
      %v4264 = vpow.pop %v4263
      %v4265 = vmul.f32 %v4174, 1.442695
      %v4266 = vpow.pop %v4265
      %v4267 = vmul.f32 %v4175, 1.442695
      %v4268 = vpow.pop %v4267
      %v4269 = vmul.f32 %v4176, 1.442695
      %v4270 = vpow.pop %v4269
      %v4271 = vmul.f32 %v4177, 1.442695
      %v4272 = vpow.pop %v4271
      %v4273 = vmul.f32 %v4178, 1.442695
      %v4274 = vpow.pop %v4273
      %v4275 = vadd.f32 %v4180, 1.0
      %v4276 = vadd.f32 %v4182, 1.0
      %v4277 = vadd.f32 %v4184, 1.0
      %v4278 = vadd.f32 %v4186, 1.0
      %v4279 = vadd.f32 %v4188, 1.0
      %v4280 = vadd.f32 %v4190, 1.0
      %v4281 = vadd.f32 %v4192, 1.0
      %v4282 = vadd.f32 %v4194, 1.0
      %v4283 = vadd.f32 %v4196, 1.0
      %v4284 = vadd.f32 %v4198, 1.0
      %v4285 = vadd.f32 %v4200, 1.0
      %v4286 = vadd.f32 %v4202, 1.0
      %v4287 = vadd.f32 %v4204, 1.0
      %v4288 = vadd.f32 %v4206, 1.0
      %v4289 = vadd.f32 %v4208, 1.0
      %v4290 = vadd.f32 %v4210, 1.0
      %v4291 = vadd.f32 %v4212, 1.0
      %v4292 = vadd.f32 %v4214, 1.0
      %v4293 = vadd.f32 %v4216, 1.0
      %v4294 = vadd.f32 %v4218, 1.0
      %v4295 = vadd.f32 %v4220, 1.0
      %v4296 = vadd.f32 %v4222, 1.0
      %v4297 = vadd.f32 %v4224, 1.0
      %v4298 = vadd.f32 %v4226, 1.0
      %v4299 = vadd.f32 %v4228, 1.0
      %v4300 = vadd.f32 %v4230, 1.0
      %v4301 = vadd.f32 %v4232, 1.0
      %v4302 = vadd.f32 %v4234, 1.0
      %v4303 = vadd.f32 %v4236, 1.0
      %v4304 = vadd.f32 %v4238, 1.0
      %v4305 = vadd.f32 %v4240, 1.0
      %v4306 = vadd.f32 %v4242, 1.0
      %v4307 = vadd.f32 %v4244, 1.0
      %v4308 = vadd.f32 %v4246, 1.0
      %v4309 = vadd.f32 %v4248, 1.0
      %v4310 = vadd.f32 %v4250, 1.0
      %v4311 = vadd.f32 %v4252, 1.0
      %v4312 = vadd.f32 %v4254, 1.0
      %v4313 = vadd.f32 %v4256, 1.0
      %v4314 = vadd.f32 %v4258, 1.0
      %v4315 = vadd.f32 %v4260, 1.0
      %v4316 = vadd.f32 %v4262, 1.0
      %v4317 = vadd.f32 %v4264, 1.0
      %v4318 = vadd.f32 %v4266, 1.0
      %v4319 = vadd.f32 %v4268, 1.0
      %v4320 = vadd.f32 %v4270, 1.0
      %v4321 = vadd.f32 %v4272, 1.0
      %v4322 = vadd.f32 %v4274, 1.0
      %v4323 = vrcp.pop %v4275
      %v4324 = vmul.f32 1.0, %v4323
      %v4325 = vrcp.pop %v4276
      %v4326 = vmul.f32 1.0, %v4325
      %v4327 = vrcp.pop %v4277
      %v4328 = vmul.f32 1.0, %v4327
      %v4329 = vrcp.pop %v4278
      %v4330 = vmul.f32 1.0, %v4329
      %v4331 = vrcp.pop %v4279
      %v4332 = vmul.f32 1.0, %v4331
      %v4333 = vrcp.pop %v4280
      %v4334 = vmul.f32 1.0, %v4333
      %v4335 = vrcp.pop %v4281
      %v4336 = vmul.f32 1.0, %v4335
      %v4337 = vrcp.pop %v4282
      %v4338 = vmul.f32 1.0, %v4337
      %v4339 = vrcp.pop %v4283
      %v4340 = vmul.f32 1.0, %v4339
      %v4341 = vrcp.pop %v4284
      %v4342 = vmul.f32 1.0, %v4341
      %v4343 = vrcp.pop %v4285
      %v4344 = vmul.f32 1.0, %v4343
      %v4345 = vrcp.pop %v4286
      %v4346 = vmul.f32 1.0, %v4345
      %v4347 = vrcp.pop %v4287
      %v4348 = vmul.f32 1.0, %v4347
      %v4349 = vrcp.pop %v4288
      %v4350 = vmul.f32 1.0, %v4349
      %v4351 = vrcp.pop %v4289
      %v4352 = vmul.f32 1.0, %v4351
      %v4353 = vrcp.pop %v4290
      %v4354 = vmul.f32 1.0, %v4353
      %v4355 = vrcp.pop %v4291
      %v4356 = vmul.f32 1.0, %v4355
      %v4357 = vrcp.pop %v4292
      %v4358 = vmul.f32 1.0, %v4357
      %v4359 = vrcp.pop %v4293
      %v4360 = vmul.f32 1.0, %v4359
      %v4361 = vrcp.pop %v4294
      %v4362 = vmul.f32 1.0, %v4361
      %v4363 = vrcp.pop %v4295
      %v4364 = vmul.f32 1.0, %v4363
      %v4365 = vrcp.pop %v4296
      %v4366 = vmul.f32 1.0, %v4365
      %v4367 = vrcp.pop %v4297
      %v4368 = vmul.f32 1.0, %v4367
      %v4369 = vrcp.pop %v4298
      %v4370 = vmul.f32 1.0, %v4369
      %v4371 = vrcp.pop %v4299
      %v4372 = vmul.f32 1.0, %v4371
      %v4373 = vrcp.pop %v4300
      %v4374 = vmul.f32 1.0, %v4373
      %v4375 = vrcp.pop %v4301
      %v4376 = vmul.f32 1.0, %v4375
      %v4377 = vrcp.pop %v4302
      %v4378 = vmul.f32 1.0, %v4377
      %v4379 = vrcp.pop %v4303
      %v4380 = vmul.f32 1.0, %v4379
      %v4381 = vrcp.pop %v4304
      %v4382 = vmul.f32 1.0, %v4381
      %v4383 = vrcp.pop %v4305
      %v4384 = vmul.f32 1.0, %v4383
      %v4385 = vrcp.pop %v4306
      %v4386 = vmul.f32 1.0, %v4385
      %v4387 = vrcp.pop %v4307
      %v4388 = vmul.f32 1.0, %v4387
      %v4389 = vrcp.pop %v4308
      %v4390 = vmul.f32 1.0, %v4389
      %v4391 = vrcp.pop %v4309
      %v4392 = vmul.f32 1.0, %v4391
      %v4393 = vrcp.pop %v4310
      %v4394 = vmul.f32 1.0, %v4393
      %v4395 = vrcp.pop %v4311
      %v4396 = vmul.f32 1.0, %v4395
      %v4397 = vrcp.pop %v4312
      %v4398 = vmul.f32 1.0, %v4397
      %v4399 = vrcp.pop %v4313
      %v4400 = vmul.f32 1.0, %v4399
      %v4401 = vrcp.pop %v4314
      %v4402 = vmul.f32 1.0, %v4401
      %v4403 = vrcp.pop %v4315
      %v4404 = vmul.f32 1.0, %v4403
      %v4405 = vrcp.pop %v4316
      %v4406 = vmul.f32 1.0, %v4405
      %v4407 = vrcp.pop %v4317
      %v4408 = vmul.f32 1.0, %v4407
      %v4409 = vrcp.pop %v4318
      %v4410 = vmul.f32 1.0, %v4409
      %v4411 = vrcp.pop %v4319
      %v4412 = vmul.f32 1.0, %v4411
      %v4413 = vrcp.pop %v4320
      %v4414 = vmul.f32 1.0, %v4413
      %v4415 = vrcp.pop %v4321
      %v4416 = vmul.f32 1.0, %v4415
      %v4417 = vrcp.pop %v4322
      %v4418 = vmul.f32 1.0, %v4417
      %v4419 = vmul.f32 %v4083, %v4324
      %v4420 = vmul.f32 %v4084, %v4326
      %v4421 = vmul.f32 %v4085, %v4328
      %v4422 = vmul.f32 %v4086, %v4330
      %v4423 = vmul.f32 %v4087, %v4332
      %v4424 = vmul.f32 %v4088, %v4334
      %v4425 = vmul.f32 %v4089, %v4336
      %v4426 = vmul.f32 %v4090, %v4338
      %v4427 = vmul.f32 %v4091, %v4340
      %v4428 = vmul.f32 %v4092, %v4342
      %v4429 = vmul.f32 %v4093, %v4344
      %v4430 = vmul.f32 %v4094, %v4346
      %v4431 = vmul.f32 %v4095, %v4348
      %v4432 = vmul.f32 %v4096, %v4350
      %v4433 = vmul.f32 %v4097, %v4352
      %v4434 = vmul.f32 %v4098, %v4354
      %v4435 = vmul.f32 %v4099, %v4356
      %v4436 = vmul.f32 %v4100, %v4358
      %v4437 = vmul.f32 %v4101, %v4360
      %v4438 = vmul.f32 %v4102, %v4362
      %v4439 = vmul.f32 %v4103, %v4364
      %v4440 = vmul.f32 %v4104, %v4366
      %v4441 = vmul.f32 %v4105, %v4368
      %v4442 = vmul.f32 %v4106, %v4370
      %v4443 = vmul.f32 %v4107, %v4372
      %v4444 = vmul.f32 %v4108, %v4374
      %v4445 = vmul.f32 %v4109, %v4376
      %v4446 = vmul.f32 %v4110, %v4378
      %v4447 = vmul.f32 %v4111, %v4380
      %v4448 = vmul.f32 %v4112, %v4382
      %v4449 = vmul.f32 %v4113, %v4384
      %v4450 = vmul.f32 %v4114, %v4386
      %v4451 = vmul.f32 %v4115, %v4388
      %v4452 = vmul.f32 %v4116, %v4390
      %v4453 = vmul.f32 %v4117, %v4392
      %v4454 = vmul.f32 %v4118, %v4394
      %v4455 = vmul.f32 %v4119, %v4396
      %v4456 = vmul.f32 %v4120, %v4398
      %v4457 = vmul.f32 %v4121, %v4400
      %v4458 = vmul.f32 %v4122, %v4402
      %v4459 = vmul.f32 %v4123, %v4404
      %v4460 = vmul.f32 %v4124, %v4406
      %v4461 = vmul.f32 %v4125, %v4408
      %v4462 = vmul.f32 %v4126, %v4410
      %v4463 = vmul.f32 %v4127, %v4412
      %v4464 = vmul.f32 %v4128, %v4414
      %v4465 = vmul.f32 %v4129, %v4416
      %v4466 = vmul.f32 %v4130, %v4418
      %v4467 = vlaneseq
      %v4468 = vshrl.u32 %v4467, 7
      %v4469 = vsub.s32 0, %v4468
      %v4470 = vrot.slane %v4073, %v4469
      %v4471 = vadd.f32 %v4419, %v4470
      %v4472 = vadd.f32 %v4420, %v4470
      %v4473 = vadd.f32 %v4421, %v4470
      %v4474 = vadd.f32 %v4422, %v4470
      %v4475 = vadd.f32 %v4423, %v4470
      %v4476 = vadd.f32 %v4424, %v4470
      %v4477 = vadd.f32 %v4425, %v4470
      %v4478 = vadd.f32 %v4426, %v4470
      %v4479 = vadd.f32 %v4427, %v4470
      %v4480 = vadd.f32 %v4428, %v4470
      %v4481 = vadd.f32 %v4429, %v4470
      %v4482 = vadd.f32 %v4430, %v4470
      %v4483 = vadd.f32 %v4431, %v4470
      %v4484 = vadd.f32 %v4432, %v4470
      %v4485 = vadd.f32 %v4433, %v4470
      %v4486 = vadd.f32 %v4434, %v4470
      %v4487 = vadd.f32 %v4435, %v4470
      %v4488 = vadd.f32 %v4436, %v4470
      %v4489 = vadd.f32 %v4437, %v4470
      %v4490 = vadd.f32 %v4438, %v4470
      %v4491 = vadd.f32 %v4439, %v4470
      %v4492 = vadd.f32 %v4440, %v4470
      %v4493 = vadd.f32 %v4441, %v4470
      %v4494 = vadd.f32 %v4442, %v4470
      %v4495 = vadd.f32 %v4443, %v4470
      %v4496 = vadd.f32 %v4444, %v4470
      %v4497 = vadd.f32 %v4445, %v4470
      %v4498 = vadd.f32 %v4446, %v4470
      %v4499 = vadd.f32 %v4447, %v4470
      %v4500 = vadd.f32 %v4448, %v4470
      %v4501 = vadd.f32 %v4449, %v4470
      %v4502 = vadd.f32 %v4450, %v4470
      %v4503 = vadd.f32 %v4451, %v4470
      %v4504 = vadd.f32 %v4452, %v4470
      %v4505 = vadd.f32 %v4453, %v4470
      %v4506 = vadd.f32 %v4454, %v4470
      %v4507 = vadd.f32 %v4455, %v4470
      %v4508 = vadd.f32 %v4456, %v4470
      %v4509 = vadd.f32 %v4457, %v4470
      %v4510 = vadd.f32 %v4458, %v4470
      %v4511 = vadd.f32 %v4459, %v4470
      %v4512 = vadd.f32 %v4460, %v4470
      %v4513 = vadd.f32 %v4461, %v4470
      %v4514 = vadd.f32 %v4462, %v4470
      %v4515 = vadd.f32 %v4463, %v4470
      %v4516 = vadd.f32 %v4464, %v4470
      %v4517 = vadd.f32 %v4465, %v4470
      %v4518 = vadd.f32 %v4466, %v4470
      %v4519 = vadd.s32 %v543, 8
      %v4520 = vadd.s32 %v543, 16
      %vm4521 = vcmp.ge.s32.totalorder %v543, 1
      %vm4522 = vcmp.ge.s32.totalorder %v4519, 1
      %vm4523 = vcmp.ge.s32.totalorder %v4520, 1
      %vm4524 = vcmp.le.s32.totalorder %v543, 16
      %vm4525 = vcmp.le.s32.totalorder %v4519, 16
      %vm4526 = vcmp.le.s32.totalorder %v4520, 16
      %vm4527 = vmand %vm4521, %vm4524
      %vm4528 = vmand %vm4522, %vm4525
      %vm4529 = vmand %vm4523, %vm4526
      %v4530 = vsel %vm4527, %v4471, 0.0
      %v4531 = vsel %vm4528, %v4472, 0.0
      %v4532 = vsel %vm4529, %v4473, 0.0
      %v4533 = vsel %vm4527, %v4474, 0.0
      %v4534 = vsel %vm4528, %v4475, 0.0
      %v4535 = vsel %vm4529, %v4476, 0.0
      %v4536 = vsel %vm4527, %v4477, 0.0
      %v4537 = vsel %vm4528, %v4478, 0.0
      %v4538 = vsel %vm4529, %v4479, 0.0
      %v4539 = vsel %vm4527, %v4480, 0.0
      %v4540 = vsel %vm4528, %v4481, 0.0
      %v4541 = vsel %vm4529, %v4482, 0.0
      %v4542 = vsel %vm4527, %v4483, 0.0
      %v4543 = vsel %vm4528, %v4484, 0.0
      %v4544 = vsel %vm4529, %v4485, 0.0
      %v4545 = vsel %vm4527, %v4486, 0.0
      %v4546 = vsel %vm4528, %v4487, 0.0
      %v4547 = vsel %vm4529, %v4488, 0.0
      %v4548 = vsel %vm4527, %v4489, 0.0
      %v4549 = vsel %vm4528, %v4490, 0.0
      %v4550 = vsel %vm4529, %v4491, 0.0
      %v4551 = vsel %vm4527, %v4492, 0.0
      %v4552 = vsel %vm4528, %v4493, 0.0
      %v4553 = vsel %vm4529, %v4494, 0.0
      %v4554 = vsel %vm4527, %v4495, 0.0
      %v4555 = vsel %vm4528, %v4496, 0.0
      %v4556 = vsel %vm4529, %v4497, 0.0
      %v4557 = vsel %vm4527, %v4498, 0.0
      %v4558 = vsel %vm4528, %v4499, 0.0
      %v4559 = vsel %vm4529, %v4500, 0.0
      %v4560 = vsel %vm4527, %v4501, 0.0
      %v4561 = vsel %vm4528, %v4502, 0.0
      %v4562 = vsel %vm4529, %v4503, 0.0
      %v4563 = vsel %vm4527, %v4504, 0.0
      %v4564 = vsel %vm4528, %v4505, 0.0
      %v4565 = vsel %vm4529, %v4506, 0.0
      %v4566 = vsel %vm4527, %v4507, 0.0
      %v4567 = vsel %vm4528, %v4508, 0.0
      %v4568 = vsel %vm4529, %v4509, 0.0
      %v4569 = vsel %vm4527, %v4510, 0.0
      %v4570 = vsel %vm4528, %v4511, 0.0
      %v4571 = vsel %vm4529, %v4512, 0.0
      %v4572 = vsel %vm4527, %v4513, 0.0
      %v4573 = vsel %vm4528, %v4514, 0.0
      %v4574 = vsel %vm4529, %v4515, 0.0
      %v4575 = vsel %vm4527, %v4516, 0.0
      %v4576 = vsel %vm4528, %v4517, 0.0
      %v4577 = vsel %vm4529, %v4518, 0.0
      %v4578 = vrot.slane %v4530, 1
      %v4579 = vrot.slane %v4531, 1
      %v4580 = vrot.slane %v4532, 1
      %v4581 = vrot.slane %v4533, 1
      %v4582 = vrot.slane %v4534, 1
      %v4583 = vrot.slane %v4535, 1
      %v4584 = vrot.slane %v4536, 1
      %v4585 = vrot.slane %v4537, 1
      %v4586 = vrot.slane %v4538, 1
      %v4587 = vrot.slane %v4539, 1
      %v4588 = vrot.slane %v4540, 1
      %v4589 = vrot.slane %v4541, 1
      %v4590 = vrot.slane %v4542, 1
      %v4591 = vrot.slane %v4543, 1
      %v4592 = vrot.slane %v4544, 1
      %v4593 = vrot.slane %v4545, 1
      %v4594 = vrot.slane %v4546, 1
      %v4595 = vrot.slane %v4547, 1
      %v4596 = vrot.slane %v4548, 1
      %v4597 = vrot.slane %v4549, 1
      %v4598 = vrot.slane %v4550, 1
      %v4599 = vrot.slane %v4551, 1
      %v4600 = vrot.slane %v4552, 1
      %v4601 = vrot.slane %v4553, 1
      %v4602 = vrot.slane %v4554, 1
      %v4603 = vrot.slane %v4555, 1
      %v4604 = vrot.slane %v4556, 1
      %v4605 = vrot.slane %v4557, 1
      %v4606 = vrot.slane %v4558, 1
      %v4607 = vrot.slane %v4559, 1
      %v4608 = vrot.slane %v4560, 1
      %v4609 = vrot.slane %v4561, 1
      %v4610 = vrot.slane %v4562, 1
      %v4611 = vrot.slane %v4563, 1
      %v4612 = vrot.slane %v4564, 1
      %v4613 = vrot.slane %v4565, 1
      %v4614 = vrot.slane %v4566, 1
      %v4615 = vrot.slane %v4567, 1
      %v4616 = vrot.slane %v4568, 1
      %v4617 = vrot.slane %v4569, 1
      %v4618 = vrot.slane %v4570, 1
      %v4619 = vrot.slane %v4571, 1
      %v4620 = vrot.slane %v4572, 1
      %v4621 = vrot.slane %v4573, 1
      %v4622 = vrot.slane %v4574, 1
      %v4623 = vrot.slane %v4575, 1
      %v4624 = vrot.slane %v4576, 1
      %v4625 = vrot.slane %v4577, 1
      %v4626 = vsel %vm544, %v4625, 0.0
      %v4627 = vsel %vm544, %v4624, %v4625
      %v4628 = vsel %vm544, %v4623, %v4624
      %v4629 = vsel %vm544, %v4622, %v4623
      %v4630 = vsel %vm544, %v4621, %v4622
      %v4631 = vsel %vm544, %v4620, %v4621
      %v4632 = vsel %vm544, %v4619, %v4620
      %v4633 = vsel %vm544, %v4618, %v4619
      %v4634 = vsel %vm544, %v4617, %v4618
      %v4635 = vsel %vm544, %v4616, %v4617
      %v4636 = vsel %vm544, %v4615, %v4616
      %v4637 = vsel %vm544, %v4614, %v4615
      %v4638 = vsel %vm544, %v4613, %v4614
      %v4639 = vsel %vm544, %v4612, %v4613
      %v4640 = vsel %vm544, %v4611, %v4612
      %v4641 = vsel %vm544, %v4610, %v4611
      %v4642 = vsel %vm544, %v4609, %v4610
      %v4643 = vsel %vm544, %v4608, %v4609
      %v4644 = vsel %vm544, %v4607, %v4608
      %v4645 = vsel %vm544, %v4606, %v4607
      %v4646 = vsel %vm544, %v4605, %v4606
      %v4647 = vsel %vm544, %v4604, %v4605
      %v4648 = vsel %vm544, %v4603, %v4604
      %v4649 = vsel %vm544, %v4602, %v4603
      %v4650 = vsel %vm544, %v4601, %v4602
      %v4651 = vsel %vm544, %v4600, %v4601
      %v4652 = vsel %vm544, %v4599, %v4600
      %v4653 = vsel %vm544, %v4598, %v4599
      %v4654 = vsel %vm544, %v4597, %v4598
      %v4655 = vsel %vm544, %v4596, %v4597
      %v4656 = vsel %vm544, %v4595, %v4596
      %v4657 = vsel %vm544, %v4594, %v4595
      %v4658 = vsel %vm544, %v4593, %v4594
      %v4659 = vsel %vm544, %v4592, %v4593
      %v4660 = vsel %vm544, %v4591, %v4592
      %v4661 = vsel %vm544, %v4590, %v4591
      %v4662 = vsel %vm544, %v4589, %v4590
      %v4663 = vsel %vm544, %v4588, %v4589
      %v4664 = vsel %vm544, %v4587, %v4588
      %v4665 = vsel %vm544, %v4586, %v4587
      %v4666 = vsel %vm544, %v4585, %v4586
      %v4667 = vsel %vm544, %v4584, %v4585
      %v4668 = vsel %vm544, %v4583, %v4584
      %v4669 = vsel %vm544, %v4582, %v4583
      %v4670 = vsel %vm544, %v4581, %v4582
      %v4671 = vsel %vm544, %v4580, %v4581
      %v4672 = vsel %vm544, %v4579, %v4580
      %v4673 = vsel %vm544, %v4578, %v4579
      %v4674 = vsel %vm544, 0.0, %v4578
      %v4675 = vrot.slane %v4530, 2
      %v4676 = vrot.slane %v4531, 2
      %v4677 = vrot.slane %v4532, 2
      %v4678 = vrot.slane %v4533, 2
      %v4679 = vrot.slane %v4534, 2
      %v4680 = vrot.slane %v4535, 2
      %v4681 = vrot.slane %v4536, 2
      %v4682 = vrot.slane %v4537, 2
      %v4683 = vrot.slane %v4538, 2
      %v4684 = vrot.slane %v4539, 2
      %v4685 = vrot.slane %v4540, 2
      %v4686 = vrot.slane %v4541, 2
      %v4687 = vrot.slane %v4542, 2
      %v4688 = vrot.slane %v4543, 2
      %v4689 = vrot.slane %v4544, 2
      %v4690 = vrot.slane %v4545, 2
      %v4691 = vrot.slane %v4546, 2
      %v4692 = vrot.slane %v4547, 2
      %v4693 = vrot.slane %v4548, 2
      %v4694 = vrot.slane %v4549, 2
      %v4695 = vrot.slane %v4550, 2
      %v4696 = vrot.slane %v4551, 2
      %v4697 = vrot.slane %v4552, 2
      %v4698 = vrot.slane %v4553, 2
      %v4699 = vrot.slane %v4554, 2
      %v4700 = vrot.slane %v4555, 2
      %v4701 = vrot.slane %v4556, 2
      %v4702 = vrot.slane %v4557, 2
      %v4703 = vrot.slane %v4558, 2
      %v4704 = vrot.slane %v4559, 2
      %v4705 = vrot.slane %v4560, 2
      %v4706 = vrot.slane %v4561, 2
      %v4707 = vrot.slane %v4562, 2
      %v4708 = vrot.slane %v4563, 2
      %v4709 = vrot.slane %v4564, 2
      %v4710 = vrot.slane %v4565, 2
      %v4711 = vrot.slane %v4566, 2
      %v4712 = vrot.slane %v4567, 2
      %v4713 = vrot.slane %v4568, 2
      %v4714 = vrot.slane %v4569, 2
      %v4715 = vrot.slane %v4570, 2
      %v4716 = vrot.slane %v4571, 2
      %v4717 = vrot.slane %v4572, 2
      %v4718 = vrot.slane %v4573, 2
      %v4719 = vrot.slane %v4574, 2
      %v4720 = vrot.slane %v4575, 2
      %v4721 = vrot.slane %v4576, 2
      %v4722 = vrot.slane %v4577, 2
      %v4723 = vsel %vm665, %v4722, 0.0
      %v4724 = vsel %vm665, %v4721, %v4722
      %v4725 = vsel %vm665, %v4720, %v4721
      %v4726 = vsel %vm665, %v4719, %v4720
      %v4727 = vsel %vm665, %v4718, %v4719
      %v4728 = vsel %vm665, %v4717, %v4718
      %v4729 = vsel %vm665, %v4716, %v4717
      %v4730 = vsel %vm665, %v4715, %v4716
      %v4731 = vsel %vm665, %v4714, %v4715
      %v4732 = vsel %vm665, %v4713, %v4714
      %v4733 = vsel %vm665, %v4712, %v4713
      %v4734 = vsel %vm665, %v4711, %v4712
      %v4735 = vsel %vm665, %v4710, %v4711
      %v4736 = vsel %vm665, %v4709, %v4710
      %v4737 = vsel %vm665, %v4708, %v4709
      %v4738 = vsel %vm665, %v4707, %v4708
      %v4739 = vsel %vm665, %v4706, %v4707
      %v4740 = vsel %vm665, %v4705, %v4706
      %v4741 = vsel %vm665, %v4704, %v4705
      %v4742 = vsel %vm665, %v4703, %v4704
      %v4743 = vsel %vm665, %v4702, %v4703
      %v4744 = vsel %vm665, %v4701, %v4702
      %v4745 = vsel %vm665, %v4700, %v4701
      %v4746 = vsel %vm665, %v4699, %v4700
      %v4747 = vsel %vm665, %v4698, %v4699
      %v4748 = vsel %vm665, %v4697, %v4698
      %v4749 = vsel %vm665, %v4696, %v4697
      %v4750 = vsel %vm665, %v4695, %v4696
      %v4751 = vsel %vm665, %v4694, %v4695
      %v4752 = vsel %vm665, %v4693, %v4694
      %v4753 = vsel %vm665, %v4692, %v4693
      %v4754 = vsel %vm665, %v4691, %v4692
      %v4755 = vsel %vm665, %v4690, %v4691
      %v4756 = vsel %vm665, %v4689, %v4690
      %v4757 = vsel %vm665, %v4688, %v4689
      %v4758 = vsel %vm665, %v4687, %v4688
      %v4759 = vsel %vm665, %v4686, %v4687
      %v4760 = vsel %vm665, %v4685, %v4686
      %v4761 = vsel %vm665, %v4684, %v4685
      %v4762 = vsel %vm665, %v4683, %v4684
      %v4763 = vsel %vm665, %v4682, %v4683
      %v4764 = vsel %vm665, %v4681, %v4682
      %v4765 = vsel %vm665, %v4680, %v4681
      %v4766 = vsel %vm665, %v4679, %v4680
      %v4767 = vsel %vm665, %v4678, %v4679
      %v4768 = vsel %vm665, %v4677, %v4678
      %v4769 = vsel %vm665, %v4676, %v4677
      %v4770 = vsel %vm665, %v4675, %v4676
      %v4771 = vsel %vm665, 0.0, %v4675
      %v4772 = vld [vmem:[%s5] sm:$0xf]
      %v4773 = vld [vmem:[%s5 + $0x4] sm:$0xf]
      %v4774 = vld [vmem:[%s5 + $0x8] sm:$0xf]
      %v4775 = vld [vmem:[%s5 + $0xc] sm:$0xf]
      %v4776 = vld [vmem:[%s5 + $0x10] sm:$0xf]
      %v4777 = vld [vmem:[%s5 + $0x14] sm:$0xf]
      %v4778 = vld [vmem:[%s5 + $0x18] sm:$0xf]
      %v4779 = vld [vmem:[%s5 + $0x1c] sm:$0xf]
      %v4780 = vld [vmem:[%s5 + $0x20] sm:$0xf]
      %v4781 = vld [vmem:[%s5 + $0x24] sm:$0xf]
      %v4782 = vld [vmem:[%s5 + $0x28] sm:$0xf]
      %v4783 = vld [vmem:[%s5 + $0x2c] sm:$0xf]
      %v4784 = vld [vmem:[%s5 + $0x30] sm:$0xf]
      %v4785 = vld [vmem:[%s5 + $0x34] sm:$0xf]
      %v4786 = vld [vmem:[%s5 + $0x38] sm:$0xf]
      %v4787 = vld [vmem:[%s5 + $0x3c] sm:$0xf]
      %v4788 = vld [vmem:[%s5 + $0x40] sm:$0xf]
      %v4789 = vld [vmem:[%s5 + $0x44] sm:$0xf]
      %v4790 = vld [vmem:[%s5 + $0x48] sm:$0xf]
      %v4791 = vld [vmem:[%s5 + $0x4c] sm:$0xf]
      %v4792 = vld [vmem:[%s5 + $0x50] sm:$0xf]
      %v4793 = vld [vmem:[%s5 + $0x54] sm:$0xf]
      %v4794 = vld [vmem:[%s5 + $0x58] sm:$0xf]
      %v4795 = vld [vmem:[%s5 + $0x5c] sm:$0xf]
      %v4796 = vld [vmem:[%s5 + $0x60] sm:$0xf]
      %v4797 = vld [vmem:[%s5 + $0x64] sm:$0xf]
      %v4798 = vld [vmem:[%s5 + $0x68] sm:$0xf]
      %v4799 = vld [vmem:[%s5 + $0x6c] sm:$0xf]
      %v4800 = vld [vmem:[%s5 + $0x70] sm:$0xf]
      %v4801 = vld [vmem:[%s5 + $0x74] sm:$0xf]
      %v4802 = vld [vmem:[%s5 + $0x78] sm:$0xf]
      %v4803 = vld [vmem:[%s5 + $0x7c] sm:$0xf]
      %v4804 = vld [vmem:[%s5 + $0x80] sm:$0xf]
      %v4805 = vld [vmem:[%s5 + $0x84] sm:$0xf]
      %v4806 = vld [vmem:[%s5 + $0x88] sm:$0xf]
      %v4807 = vld [vmem:[%s5 + $0x8c] sm:$0xf]
      %v4808 = vld [vmem:[%s5 + $0x90] sm:$0xf]
      %v4809 = vld [vmem:[%s5 + $0x94] sm:$0xf]
      %v4810 = vld [vmem:[%s5 + $0x98] sm:$0xf]
      %v4811 = vld [vmem:[%s5 + $0x9c] sm:$0xf]
      %v4812 = vld [vmem:[%s5 + $0xa0] sm:$0xf]
      %v4813 = vld [vmem:[%s5 + $0xa4] sm:$0xf]
      %v4814 = vld [vmem:[%s5 + $0xa8] sm:$0xf]
      %v4815 = vld [vmem:[%s5 + $0xac] sm:$0xf]
      %v4816 = vld [vmem:[%s5 + $0xb0] sm:$0xf]
      %v4817 = vld [vmem:[%s5 + $0xb4] sm:$0xf]
      %v4818 = vld [vmem:[%s5 + $0xb8] sm:$0xf]
      %v4819 = vld [vmem:[%s5 + $0xbc] sm:$0xf]
      %v4820 = vld [vmem:[%s5 + $0xc0] sm:$0xf]
      %v4821 = vld [vmem:[%s5 + $0xc4] sm:$0xf]
      %v4822 = vld [vmem:[%s5 + $0xc8] sm:$0xf]
      %v4823 = vld [vmem:[%s5 + $0xcc] sm:$0xf]
      %v4824 = vld [vmem:[%s5 + $0xd0] sm:$0xf]
      %v4825 = vld [vmem:[%s5 + $0xd4] sm:$0xf]
      %v4826 = vld [vmem:[%s5 + $0xd8] sm:$0xf]
      %v4827 = vld [vmem:[%s5 + $0xdc] sm:$0xf]
      %v4828 = vld [vmem:[%s5 + $0xe0] sm:$0xf]
      %v4829 = vld [vmem:[%s5 + $0xe4] sm:$0xf]
      %v4830 = vld [vmem:[%s5 + $0xe8] sm:$0xf]
      %v4831 = vld [vmem:[%s5 + $0xec] sm:$0xf]
      %v4832 = vld [vmem:[%s5 + $0xf0] sm:$0xf]
      %v4833 = vld [vmem:[%s5 + $0xf4] sm:$0xf]
      %v4834 = vld [vmem:[%s5 + $0xf8] sm:$0xf]
      %v4835 = vld [vmem:[%s5 + $0xfc] sm:$0xf]
      %v4836 = vld [vmem:[%s5 + $0x100] sm:$0xf]
      %v4837 = vld [vmem:[%s5 + $0x104] sm:$0xf]
      %v4838 = vld [vmem:[%s5 + $0x108] sm:$0xf]
      %v4839 = vld [vmem:[%s5 + $0x10c] sm:$0xf]
      %v4840 = vld [vmem:[%s5 + $0x110] sm:$0xf]
      %v4841 = vld [vmem:[%s5 + $0x114] sm:$0xf]
      %v4842 = vld [vmem:[%s5 + $0x118] sm:$0xf]
      %v4843 = vld [vmem:[%s5 + $0x11c] sm:$0xf]
      %v4844 = vld [vmem:[%s5 + $0x120] sm:$0xf]
      %v4845 = vld [vmem:[%s5 + $0x124] sm:$0xf]
      %v4846 = vld [vmem:[%s5 + $0x128] sm:$0xf]
      %v4847 = vld [vmem:[%s5 + $0x12c] sm:$0xf]
      %v4848 = vld [vmem:[%s5 + $0x130] sm:$0xf]
      %v4849 = vld [vmem:[%s5 + $0x134] sm:$0xf]
      %v4850 = vld [vmem:[%s5 + $0x138] sm:$0xf]
      %v4851 = vld [vmem:[%s5 + $0x13c] sm:$0xf]
      %v4852 = vld [vmem:[%s5 + $0x140] sm:$0xf]
      %v4853 = vld [vmem:[%s5 + $0x144] sm:$0xf]
      %v4854 = vld [vmem:[%s5 + $0x148] sm:$0xf]
      %v4855 = vld [vmem:[%s5 + $0x14c] sm:$0xf]
      %v4856 = vld [vmem:[%s5 + $0x150] sm:$0xf]
      %v4857 = vld [vmem:[%s5 + $0x154] sm:$0xf]
      %v4858 = vld [vmem:[%s5 + $0x158] sm:$0xf]
      %v4859 = vld [vmem:[%s5 + $0x15c] sm:$0xf]
      %v4860 = vld [vmem:[%s5 + $0x160] sm:$0xf]
      %v4861 = vld [vmem:[%s5 + $0x164] sm:$0xf]
      %v4862 = vld [vmem:[%s5 + $0x168] sm:$0xf]
      %v4863 = vld [vmem:[%s5 + $0x16c] sm:$0xf]
      %v4864 = vld [vmem:[%s5 + $0x170] sm:$0xf]
      %v4865 = vld [vmem:[%s5 + $0x174] sm:$0xf]
      %v4866 = vld [vmem:[%s5 + $0x178] sm:$0xf]
      %v4867 = vld [vmem:[%s5 + $0x17c] sm:$0xf]
      %v4868 = vld [vmem:[%s5 + $0x180] sm:$0xf]
      %v4869 = vld [vmem:[%s5 + $0x184] sm:$0xf]
      %v4870 = vld [vmem:[%s5 + $0x188] sm:$0xf]
      %v4871 = vld [vmem:[%s5 + $0x18c] sm:$0xf]
      %v4872 = vld [vmem:[%s5 + $0x190] sm:$0xf]
      %v4873 = vld [vmem:[%s5 + $0x194] sm:$0xf]
      %v4874 = vld [vmem:[%s5 + $0x198] sm:$0xf]
      %v4875 = vld [vmem:[%s5 + $0x19c] sm:$0xf]
      %v4876 = vld [vmem:[%s5 + $0x1a0] sm:$0xf]
      %v4877 = vld [vmem:[%s5 + $0x1a4] sm:$0xf]
      %v4878 = vld [vmem:[%s5 + $0x1a8] sm:$0xf]
      %v4879 = vld [vmem:[%s5 + $0x1ac] sm:$0xf]
      %v4880 = vld [vmem:[%s5 + $0x1b0] sm:$0xf]
      %v4881 = vld [vmem:[%s5 + $0x1b4] sm:$0xf]
      %v4882 = vld [vmem:[%s5 + $0x1b8] sm:$0xf]
      %v4883 = vld [vmem:[%s5 + $0x1bc] sm:$0xf]
      %v4884 = vld [vmem:[%s5 + $0x1c0] sm:$0xf]
      %v4885 = vld [vmem:[%s5 + $0x1c4] sm:$0xf]
      %v4886 = vld [vmem:[%s5 + $0x1c8] sm:$0xf]
      %v4887 = vld [vmem:[%s5 + $0x1cc] sm:$0xf]
      %v4888 = vld [vmem:[%s5 + $0x1d0] sm:$0xf]
      %v4889 = vld [vmem:[%s5 + $0x1d4] sm:$0xf]
      %v4890 = vld [vmem:[%s5 + $0x1d8] sm:$0xf]
      %v4891 = vld [vmem:[%s5 + $0x1dc] sm:$0xf]
      %v4892 = vld [vmem:[%s5 + $0x1e0] sm:$0xf]
      %v4893 = vld [vmem:[%s5 + $0x1e4] sm:$0xf]
      %v4894 = vld [vmem:[%s5 + $0x1e8] sm:$0xf]
      %v4895 = vld [vmem:[%s5 + $0x1ec] sm:$0xf]
      %v4896 = vld [vmem:[%s5 + $0x1f0] sm:$0xf]
      %v4897 = vld [vmem:[%s5 + $0x1f4] sm:$0xf]
      %v4898 = vld [vmem:[%s5 + $0x1f8] sm:$0xf]
      %v4899 = vld [vmem:[%s5 + $0x1fc] sm:$0xf]
      %v4900 = vld [vmem:[%s5 + $0x200] sm:$0xf]
      %v4901 = vld [vmem:[%s5 + $0x204] sm:$0xf]
      %v4902 = vld [vmem:[%s5 + $0x208] sm:$0xf]
      %v4903 = vld [vmem:[%s5 + $0x20c] sm:$0xf]
      %v4904 = vld [vmem:[%s5 + $0x210] sm:$0xf]
      %v4905 = vld [vmem:[%s5 + $0x214] sm:$0xf]
      %v4906 = vld [vmem:[%s5 + $0x218] sm:$0xf]
      %v4907 = vld [vmem:[%s5 + $0x21c] sm:$0xf]
      %v4908 = vld [vmem:[%s5 + $0x220] sm:$0xf]
      %v4909 = vld [vmem:[%s5 + $0x224] sm:$0xf]
      %v4910 = vld [vmem:[%s5 + $0x228] sm:$0xf]
      %v4911 = vld [vmem:[%s5 + $0x22c] sm:$0xf]
      %v4912 = vld [vmem:[%s5 + $0x230] sm:$0xf]
      %v4913 = vld [vmem:[%s5 + $0x234] sm:$0xf]
      %v4914 = vld [vmem:[%s5 + $0x238] sm:$0xf]
      %v4915 = vld [vmem:[%s5 + $0x23c] sm:$0xf]
      %v4916 = vpack.c.bf16 0.0, 0.0
      %v4917 = vpack.c.bf16 %v4530, 0.0
      %v4918 = vpack.c.bf16 %v4532, %v4531
      %v4919 = vpack.c.bf16 %v4534, %v4533
      %v4920 = vpack.c.bf16 %v4536, %v4535
      %v4921 = vpack.c.bf16 %v4538, %v4537
      %v4922 = vpack.c.bf16 %v4540, %v4539
      %v4923 = vpack.c.bf16 %v4542, %v4541
      %v4924 = vpack.c.bf16 %v4544, %v4543
      %v4925 = vpack.c.bf16 %v4546, %v4545
      %v4926 = vpack.c.bf16 %v4548, %v4547
      %v4927 = vpack.c.bf16 %v4550, %v4549
      %v4928 = vpack.c.bf16 %v4552, %v4551
      %v4929 = vpack.c.bf16 %v4554, %v4553
      %v4930 = vpack.c.bf16 %v4556, %v4555
      %v4931 = vpack.c.bf16 %v4558, %v4557
      %v4932 = vpack.c.bf16 %v4560, %v4559
      %v4933 = vpack.c.bf16 %v4562, %v4561
      %v4934 = vpack.c.bf16 %v4564, %v4563
      %v4935 = vpack.c.bf16 %v4566, %v4565
      %v4936 = vpack.c.bf16 %v4568, %v4567
      %v4937 = vpack.c.bf16 %v4570, %v4569
      %v4938 = vpack.c.bf16 %v4572, %v4571
      %v4939 = vpack.c.bf16 %v4574, %v4573
      %v4940 = vpack.c.bf16 0.0, 0.0
      %v4941 = vpack.c.bf16 %v4673, %v4674
      %v4942 = vpack.c.bf16 %v4671, %v4672
      %v4943 = vpack.c.bf16 %v4669, %v4670
      %v4944 = vpack.c.bf16 %v4667, %v4668
      %v4945 = vpack.c.bf16 %v4665, %v4666
      %v4946 = vpack.c.bf16 %v4663, %v4664
      %v4947 = vpack.c.bf16 %v4661, %v4662
      %v4948 = vpack.c.bf16 %v4659, %v4660
      %v4949 = vpack.c.bf16 %v4657, %v4658
      %v4950 = vpack.c.bf16 %v4655, %v4656
      %v4951 = vpack.c.bf16 %v4653, %v4654
      %v4952 = vpack.c.bf16 %v4651, %v4652
      %v4953 = vpack.c.bf16 %v4649, %v4650
      %v4954 = vpack.c.bf16 %v4647, %v4648
      %v4955 = vpack.c.bf16 %v4645, %v4646
      %v4956 = vpack.c.bf16 %v4643, %v4644
      %v4957 = vpack.c.bf16 %v4641, %v4642
      %v4958 = vpack.c.bf16 %v4639, %v4640
      %v4959 = vpack.c.bf16 %v4637, %v4638
      %v4960 = vpack.c.bf16 %v4635, %v4636
      %v4961 = vpack.c.bf16 %v4633, %v4634
      %v4962 = vpack.c.bf16 %v4631, %v4632
      %v4963 = vpack.c.bf16 %v4629, %v4630
      %v4980 = vunpack.c.l.b16 %v4788
      %v4981 = vunpack.c.l.b16 %v4789
      %v4982 = vunpack.c.l.b16 %v4790
      %v4983 = vunpack.c.l.b16 %v4791
      %v4984 = vunpack.c.l.b16 %v4792
      %v4985 = vunpack.c.l.b16 %v4793
      %v4986 = vunpack.c.l.b16 %v4794
      %v4987 = vunpack.c.l.b16 %v4795
      %v4988 = vunpack.c.l.b16 %v4796
      %v4989 = vunpack.c.l.b16 %v4797
      %v4990 = vunpack.c.l.b16 %v4798
      %v4991 = vunpack.c.l.b16 %v4799
      %v4992 = vunpack.c.l.b16 %v4800
      %v4993 = vunpack.c.l.b16 %v4801
      %v4994 = vunpack.c.l.b16 %v4802
      %v4995 = vunpack.c.l.b16 %v4803
      %v4996 = vpack.c.b16 %v4981, %v4980
      %v4997 = vpack.c.b16 %v4983, %v4982
      %v4998 = vpack.c.b16 %v4985, %v4984
      %v4999 = vpack.c.b16 %v4987, %v4986
      %v5000 = vpack.c.b16 %v4989, %v4988
      %v5001 = vpack.c.b16 %v4991, %v4990
      %v5002 = vpack.c.b16 %v4993, %v4992
      %v5003 = vpack.c.b16 %v4995, %v4994
      %5012 = vmatprep.subr.bf16.mxu0 0
      %5013 = vmatpush1.bf16.msra.mxu0 %v4996
      %5014 = vmatprep.subr.bf16.mxu0 0
      %5015 = vmatpush1.bf16.msra.mxu0 %v4997
      %5016 = vmatprep.subr.bf16.mxu0 0
      %5017 = vmatpush1.bf16.msra.mxu0 %v4998
      %5018 = vmatprep.subr.bf16.mxu0 0
      %5019 = vmatpush1.bf16.msra.mxu0 %v4999
      %5020 = vmatprep.subr.bf16.mxu0 0
      %5021 = vmatpush1.bf16.msra.mxu0 %v5000
      %5022 = vmatprep.subr.bf16.mxu0 0
      %5023 = vmatpush1.bf16.msra.mxu0 %v5001
      %5024 = vmatprep.subr.bf16.mxu0 0
      %5025 = vmatpush1.bf16.msra.mxu0 %v5002
      %5026 = vmatprep.subr.bf16.mxu0 0
      %5027 = vmatpush1.bf16.msra.mxu0 %v5003
      %5028 = vmatprep.subr.bf16.mxu0 0
      %5029 = vmatpush1.bf16.msra.mxu0 0
      %5030 = vmatprep.subr.bf16.mxu0 0
      %5031 = vmatpush1.bf16.msra.mxu0 0
      %5032 = vmatprep.subr.bf16.mxu0 0
      %5033 = vmatpush1.bf16.msra.mxu0 0
      %5034 = vmatprep.subr.bf16.mxu0 0
      %5035 = vmatpush1.bf16.msra.mxu0 0
      %5036 = vmatprep.subr.bf16.mxu0 0
      %5037 = vmatpush1.bf16.msra.mxu0 0
      %5038 = vmatprep.subr.bf16.mxu0 0
      %5039 = vmatpush1.bf16.msra.mxu0 0
      %5040 = vmatprep.subr.bf16.mxu0 0
      %5041 = vmatpush1.bf16.msra.mxu0 0
      %5042 = vmatprep.subr.bf16.mxu0 0
      %5043 = vmatpush1.bf16.msra.mxu0 0
      %5044 = vmatprep.mubr.bf16.mxu0 0
      %5045 = vmatmul.mubr.bf16.gmra.mrb[0].mxu0 %v4940
      %v5046 = vpop.f32.mrb[0].mxu0
      %v5047 = vadd.f32 0.0, %v5046
      %v5048 = vpop.f32.mrb[0].mxu0
      %v5049 = vpop.f32.mrb[0].mxu0
      %v5050 = vadd.f32 0.0, %v5049
      %v5051 = vpop.f32.mrb[0].mxu0
      %5052 = vmatprep.mubr.bf16.mxu0 0
      %5053 = vmatmul.mubr.bf16.gmra.mrb[0].mxu0 %v4941
      %v5054 = vpop.f32.mrb[0].mxu0
      %v5055 = vpop.f32.mrb[0].mxu0
      %v5056 = vpop.f32.mrb[0].mxu0
      %v5057 = vadd.f32 0.0, %v5056
      %v5058 = vpop.f32.mrb[0].mxu0
      %5059 = vmatprep.mubr.bf16.mxu0 0
      %5060 = vmatmul.mubr.bf16.gmra.mrb[0].mxu0 %v4942
      %v5061 = vpop.f32.mrb[0].mxu0
      %v5062 = vadd.f32 0.0, %v5061
      %v5063 = vpop.f32.mrb[0].mxu0
      %v5064 = vpop.f32.mrb[0].mxu0
      %v5065 = vpop.f32.mrb[0].mxu0
      %5066 = vmatprep.mubr.bf16.mxu0 0
      %5067 = vmatmul.mubr.bf16.gmra.mrb[0].mxu0 %v4943
      %v5068 = vpop.f32.mrb[0].mxu0
      %v5069 = vadd.f32 0.0, %v5068
      %v5070 = vpop.f32.mrb[0].mxu0
      %v5071 = vpop.f32.mrb[0].mxu0
      %v5072 = vadd.f32 0.0, %v5071
      %v5073 = vpop.f32.mrb[0].mxu0
      %5074 = vmatprep.mubr.bf16.mxu0 0
      %5075 = vmatmul.mubr.bf16.gmra.mrb[0].mxu0 %v4944
      %v5076 = vpop.f32.mrb[0].mxu0
      %v5077 = vpop.f32.mrb[0].mxu0
      %v5078 = vpop.f32.mrb[0].mxu0
      %v5079 = vadd.f32 0.0, %v5078
      %v5080 = vpop.f32.mrb[0].mxu0
      %5081 = vmatprep.mubr.bf16.mxu0 0
      %5082 = vmatmul.mubr.bf16.gmra.mrb[0].mxu0 %v4945
      %v5083 = vpop.f32.mrb[0].mxu0
      %v5084 = vadd.f32 0.0, %v5083
      %v5085 = vpop.f32.mrb[0].mxu0
      %v5086 = vpop.f32.mrb[0].mxu0
      %v5087 = vpop.f32.mrb[0].mxu0
      %5088 = vmatprep.mubr.bf16.mxu0 0
      %5089 = vmatmul.mubr.bf16.gmra.mrb[0].mxu0 %v4946
      %v5090 = vpop.f32.mrb[0].mxu0
      %v5091 = vadd.f32 0.0, %v5090
      %v5092 = vpop.f32.mrb[0].mxu0
      %v5093 = vpop.f32.mrb[0].mxu0
      %v5094 = vadd.f32 0.0, %v5093
      %v5095 = vpop.f32.mrb[0].mxu0
      %5096 = vmatprep.mubr.bf16.mxu0 0
      %5097 = vmatmul.mubr.bf16.gmra.mrb[0].mxu0 %v4947
      %v5098 = vpop.f32.mrb[0].mxu0
      %v5099 = vpop.f32.mrb[0].mxu0
      %v5100 = vpop.f32.mrb[0].mxu0
      %v5101 = vadd.f32 0.0, %v5100
      %v5102 = vpop.f32.mrb[0].mxu0
      %5103 = vmatprep.mubr.bf16.mxu0 0
      %5104 = vmatmul.mubr.bf16.gmra.mrb[0].mxu0 %v4948
      %v5105 = vpop.f32.mrb[0].mxu0
      %v5106 = vadd.f32 0.0, %v5105
      %v5107 = vpop.f32.mrb[0].mxu0
      %v5108 = vpop.f32.mrb[0].mxu0
      %v5109 = vpop.f32.mrb[0].mxu0
      %5110 = vmatprep.mubr.bf16.mxu0 0
      %5111 = vmatmul.mubr.bf16.gmra.mrb[0].mxu0 %v4949
      %v5112 = vpop.f32.mrb[0].mxu0
      %v5113 = vadd.f32 0.0, %v5112
      %v5114 = vpop.f32.mrb[0].mxu0
      %v5115 = vpop.f32.mrb[0].mxu0
      %v5116 = vadd.f32 0.0, %v5115
      %v5117 = vpop.f32.mrb[0].mxu0
      %5118 = vmatprep.mubr.bf16.mxu0 0
      %5119 = vmatmul.mubr.bf16.gmra.mrb[0].mxu0 %v4950
      %v5120 = vpop.f32.mrb[0].mxu0
      %v5121 = vpop.f32.mrb[0].mxu0
      %v5122 = vpop.f32.mrb[0].mxu0
      %v5123 = vadd.f32 0.0, %v5122
      %v5124 = vpop.f32.mrb[0].mxu0
      %5125 = vmatprep.mubr.bf16.mxu0 0
      %5126 = vmatmul.mubr.bf16.gmra.mrb[0].mxu0 %v4951
      %v5127 = vpop.f32.mrb[0].mxu0
      %v5128 = vadd.f32 0.0, %v5127
      %v5129 = vpop.f32.mrb[0].mxu0
      %v5130 = vpop.f32.mrb[0].mxu0
      %v5131 = vpop.f32.mrb[0].mxu0
      %5132 = vmatprep.mubr.bf16.mxu0 0
      %5133 = vmatmul.mubr.bf16.gmra.mrb[0].mxu0 %v4952
      %v5134 = vpop.f32.mrb[0].mxu0
      %v5135 = vadd.f32 0.0, %v5134
      %v5136 = vpop.f32.mrb[0].mxu0
      %v5137 = vpop.f32.mrb[0].mxu0
      %v5138 = vadd.f32 0.0, %v5137
      %v5139 = vpop.f32.mrb[0].mxu0
      %5140 = vmatprep.mubr.bf16.mxu0 0
      %5141 = vmatmul.mubr.bf16.gmra.mrb[0].mxu0 %v4953
      %v5142 = vpop.f32.mrb[0].mxu0
      %v5143 = vpop.f32.mrb[0].mxu0
      %v5144 = vpop.f32.mrb[0].mxu0
      %v5145 = vadd.f32 0.0, %v5144
      %v5146 = vpop.f32.mrb[0].mxu0
      %5147 = vmatprep.mubr.bf16.mxu0 0
      %5148 = vmatmul.mubr.bf16.gmra.mrb[0].mxu0 %v4954
      %v5149 = vpop.f32.mrb[0].mxu0
      %v5150 = vadd.f32 0.0, %v5149
      %v5151 = vpop.f32.mrb[0].mxu0
      %v5152 = vpop.f32.mrb[0].mxu0
      %v5153 = vpop.f32.mrb[0].mxu0
      %5154 = vmatprep.mubr.bf16.mxu0 0
      %5155 = vmatmul.mubr.bf16.gmra.mrb[0].mxu0 %v4955
      %v5156 = vpop.f32.mrb[0].mxu0
      %v5157 = vadd.f32 0.0, %v5156
      %v5158 = vpop.f32.mrb[0].mxu0
      %v5159 = vpop.f32.mrb[0].mxu0
      %v5160 = vadd.f32 0.0, %v5159
      %v5161 = vpop.f32.mrb[0].mxu0
      %5162 = vmatprep.mubr.bf16.mxu0 0
      %5163 = vmatmul.mubr.bf16.gmra.mrb[0].mxu0 %v4956
      %v5164 = vpop.f32.mrb[0].mxu0
      %v5165 = vpop.f32.mrb[0].mxu0
      %v5166 = vpop.f32.mrb[0].mxu0
      %v5167 = vadd.f32 0.0, %v5166
      %v5168 = vpop.f32.mrb[0].mxu0
      %5169 = vmatprep.mubr.bf16.mxu0 0
      %5170 = vmatmul.mubr.bf16.gmra.mrb[0].mxu0 %v4957
      %v5171 = vpop.f32.mrb[0].mxu0
      %v5172 = vadd.f32 0.0, %v5171
      %v5173 = vpop.f32.mrb[0].mxu0
      %v5174 = vpop.f32.mrb[0].mxu0
      %v5175 = vpop.f32.mrb[0].mxu0
      %5176 = vmatprep.mubr.bf16.mxu0 0
      %5177 = vmatmul.mubr.bf16.gmra.mrb[0].mxu0 %v4958
      %v5178 = vpop.f32.mrb[0].mxu0
      %v5179 = vadd.f32 0.0, %v5178
      %v5180 = vpop.f32.mrb[0].mxu0
      %v5181 = vpop.f32.mrb[0].mxu0
      %v5182 = vadd.f32 0.0, %v5181
      %v5183 = vpop.f32.mrb[0].mxu0
      %5184 = vmatprep.mubr.bf16.mxu0 0
      %5185 = vmatmul.mubr.bf16.gmra.mrb[0].mxu0 %v4959
      %v5186 = vpop.f32.mrb[0].mxu0
      %v5187 = vpop.f32.mrb[0].mxu0
      %v5188 = vpop.f32.mrb[0].mxu0
      %v5189 = vadd.f32 0.0, %v5188
      %v5190 = vpop.f32.mrb[0].mxu0
      %5191 = vmatprep.mubr.bf16.mxu0 0
      %5192 = vmatmul.mubr.bf16.gmra.mrb[0].mxu0 %v4960
      %v5193 = vpop.f32.mrb[0].mxu0
      %v5194 = vadd.f32 0.0, %v5193
      %v5195 = vpop.f32.mrb[0].mxu0
      %v5196 = vpop.f32.mrb[0].mxu0
      %v5197 = vpop.f32.mrb[0].mxu0
      %5198 = vmatprep.mubr.bf16.mxu0 0
      %5199 = vmatmul.mubr.bf16.gmra.mrb[0].mxu0 %v4961
      %v5200 = vpop.f32.mrb[0].mxu0
      %v5201 = vadd.f32 0.0, %v5200
      %v5202 = vpop.f32.mrb[0].mxu0
      %v5203 = vpop.f32.mrb[0].mxu0
      %v5204 = vadd.f32 0.0, %v5203
      %v5205 = vpop.f32.mrb[0].mxu0
      %5206 = vmatprep.mubr.bf16.mxu0 0
      %5207 = vmatmul.mubr.bf16.gmra.mrb[0].mxu0 %v4962
      %v5208 = vpop.f32.mrb[0].mxu0
      %v5209 = vpop.f32.mrb[0].mxu0
      %v5210 = vpop.f32.mrb[0].mxu0
      %v5211 = vadd.f32 0.0, %v5210
      %v5212 = vpop.f32.mrb[0].mxu0
      %5213 = vmatprep.mubr.bf16.mxu0 0
      %5214 = vmatmul.mubr.bf16.gmra.mrb[0].mxu0 %v4963
      %v5215 = vpop.f32.mrb[0].mxu0
      %v5216 = vadd.f32 0.0, %v5215
      %v5217 = vpop.f32.mrb[0].mxu0
      %v5218 = vpop.f32.mrb[0].mxu0
      %v5219 = vpop.f32.mrb[0].mxu0
      %5220 = vdwg.mxu0
      %v5237 = vunpack.c.l.b16 %v4772
      %v5238 = vunpack.c.l.b16 %v4773
      %v5239 = vunpack.c.l.b16 %v4774
      %v5240 = vunpack.c.l.b16 %v4775
      %v5241 = vunpack.c.l.b16 %v4776
      %v5242 = vunpack.c.l.b16 %v4777
      %v5243 = vunpack.c.l.b16 %v4778
      %v5244 = vunpack.c.l.b16 %v4779
      %v5245 = vunpack.c.l.b16 %v4780
      %v5246 = vunpack.c.l.b16 %v4781
      %v5247 = vunpack.c.l.b16 %v4782
      %v5248 = vunpack.c.l.b16 %v4783
      %v5249 = vunpack.c.l.b16 %v4784
      %v5250 = vunpack.c.l.b16 %v4785
      %v5251 = vunpack.c.l.b16 %v4786
      %v5252 = vunpack.c.l.b16 %v4787
      %v5253 = vpack.c.b16 %v5238, %v5237
      %v5254 = vpack.c.b16 %v5240, %v5239
      %v5255 = vpack.c.b16 %v5242, %v5241
      %v5256 = vpack.c.b16 %v5244, %v5243
      %v5257 = vpack.c.b16 %v5246, %v5245
      %v5258 = vpack.c.b16 %v5248, %v5247
      %v5259 = vpack.c.b16 %v5250, %v5249
      %v5260 = vpack.c.b16 %v5252, %v5251
      %5269 = vmatprep.subr.bf16.mxu0 0
      %5270 = vmatpush1.bf16.msra.mxu0 %v5253
      %5271 = vmatprep.subr.bf16.mxu0 0
      %5272 = vmatpush1.bf16.msra.mxu0 %v5254
      %5273 = vmatprep.subr.bf16.mxu0 0
      %5274 = vmatpush1.bf16.msra.mxu0 %v5255
      %5275 = vmatprep.subr.bf16.mxu0 0
      %5276 = vmatpush1.bf16.msra.mxu0 %v5256
      %5277 = vmatprep.subr.bf16.mxu0 0
      %5278 = vmatpush1.bf16.msra.mxu0 %v5257
      %5279 = vmatprep.subr.bf16.mxu0 0
      %5280 = vmatpush1.bf16.msra.mxu0 %v5258
      %5281 = vmatprep.subr.bf16.mxu0 0
      %5282 = vmatpush1.bf16.msra.mxu0 %v5259
      %5283 = vmatprep.subr.bf16.mxu0 0
      %5284 = vmatpush1.bf16.msra.mxu0 %v5260
      %5285 = vmatprep.subr.bf16.mxu0 0
      %5286 = vmatpush1.bf16.msra.mxu0 0
      %5287 = vmatprep.subr.bf16.mxu0 0
      %5288 = vmatpush1.bf16.msra.mxu0 0
      %5289 = vmatprep.subr.bf16.mxu0 0
      %5290 = vmatpush1.bf16.msra.mxu0 0
      %5291 = vmatprep.subr.bf16.mxu0 0
      %5292 = vmatpush1.bf16.msra.mxu0 0
      %5293 = vmatprep.subr.bf16.mxu0 0
      %5294 = vmatpush1.bf16.msra.mxu0 0
      %5295 = vmatprep.subr.bf16.mxu0 0
      %5296 = vmatpush1.bf16.msra.mxu0 0
      %5297 = vmatprep.subr.bf16.mxu0 0
      %5298 = vmatpush1.bf16.msra.mxu0 0
      %5299 = vmatprep.subr.bf16.mxu0 0
      %5300 = vmatpush1.bf16.msra.mxu0 0
      %5301 = vmatprep.mubr.bf16.mxu0 0
      %5302 = vmatmul.mubr.bf16.gmra.mrb[0].mxu0 %v4916
      %v5303 = vpop.f32.mrb[0].mxu0
      %v5304 = vadd.f32 %v5047, %v5303
      %v5305 = vpop.f32.mrb[0].mxu0
      %v5306 = vpop.f32.mrb[0].mxu0
      %v5307 = vadd.f32 %v5050, %v5306
      %v5308 = vpop.f32.mrb[0].mxu0
      %5309 = vmatprep.mubr.bf16.mxu0 0
      %5310 = vmatmul.mubr.bf16.gmra.mrb[0].mxu0 %v4917
      %v5311 = vpop.f32.mrb[0].mxu0
      %v5312 = vpop.f32.mrb[0].mxu0
      %v5313 = vpop.f32.mrb[0].mxu0
      %v5314 = vadd.f32 %v5057, %v5313
      %v5315 = vpop.f32.mrb[0].mxu0
      %5316 = vmatprep.mubr.bf16.mxu0 0
      %5317 = vmatmul.mubr.bf16.gmra.mrb[0].mxu0 %v4918
      %v5318 = vpop.f32.mrb[0].mxu0
      %v5319 = vadd.f32 %v5062, %v5318
      %v5320 = vpop.f32.mrb[0].mxu0
      %v5321 = vpop.f32.mrb[0].mxu0
      %v5322 = vpop.f32.mrb[0].mxu0
      %5323 = vmatprep.mubr.bf16.mxu0 0
      %5324 = vmatmul.mubr.bf16.gmra.mrb[0].mxu0 %v4919
      %v5325 = vpop.f32.mrb[0].mxu0
      %v5326 = vadd.f32 %v5069, %v5325
      %v5327 = vpop.f32.mrb[0].mxu0
      %v5328 = vpop.f32.mrb[0].mxu0
      %v5329 = vadd.f32 %v5072, %v5328
      %v5330 = vpop.f32.mrb[0].mxu0
      %5331 = vmatprep.mubr.bf16.mxu0 0
      %5332 = vmatmul.mubr.bf16.gmra.mrb[0].mxu0 %v4920
      %v5333 = vpop.f32.mrb[0].mxu0
      %v5334 = vpop.f32.mrb[0].mxu0
      %v5335 = vpop.f32.mrb[0].mxu0
      %v5336 = vadd.f32 %v5079, %v5335
      %v5337 = vpop.f32.mrb[0].mxu0
      %5338 = vmatprep.mubr.bf16.mxu0 0
      %5339 = vmatmul.mubr.bf16.gmra.mrb[0].mxu0 %v4921
      %v5340 = vpop.f32.mrb[0].mxu0
      %v5341 = vadd.f32 %v5084, %v5340
      %v5342 = vpop.f32.mrb[0].mxu0
      %v5343 = vpop.f32.mrb[0].mxu0
      %v5344 = vpop.f32.mrb[0].mxu0
      %5345 = vmatprep.mubr.bf16.mxu0 0
      %5346 = vmatmul.mubr.bf16.gmra.mrb[0].mxu0 %v4922
      %v5347 = vpop.f32.mrb[0].mxu0
      %v5348 = vadd.f32 %v5091, %v5347
      %v5349 = vpop.f32.mrb[0].mxu0
      %v5350 = vpop.f32.mrb[0].mxu0
      %v5351 = vadd.f32 %v5094, %v5350
      %v5352 = vpop.f32.mrb[0].mxu0
      %5353 = vmatprep.mubr.bf16.mxu0 0
      %5354 = vmatmul.mubr.bf16.gmra.mrb[0].mxu0 %v4923
      %v5355 = vpop.f32.mrb[0].mxu0
      %v5356 = vpop.f32.mrb[0].mxu0
      %v5357 = vpop.f32.mrb[0].mxu0
      %v5358 = vadd.f32 %v5101, %v5357
      %v5359 = vpop.f32.mrb[0].mxu0
      %5360 = vmatprep.mubr.bf16.mxu0 0
      %5361 = vmatmul.mubr.bf16.gmra.mrb[0].mxu0 %v4924
      %v5362 = vpop.f32.mrb[0].mxu0
      %v5363 = vadd.f32 %v5106, %v5362
      %v5364 = vpop.f32.mrb[0].mxu0
      %v5365 = vpop.f32.mrb[0].mxu0
      %v5366 = vpop.f32.mrb[0].mxu0
      %5367 = vmatprep.mubr.bf16.mxu0 0
      %5368 = vmatmul.mubr.bf16.gmra.mrb[0].mxu0 %v4925
      %v5369 = vpop.f32.mrb[0].mxu0
      %v5370 = vadd.f32 %v5113, %v5369
      %v5371 = vpop.f32.mrb[0].mxu0
      %v5372 = vpop.f32.mrb[0].mxu0
      %v5373 = vadd.f32 %v5116, %v5372
      %v5374 = vpop.f32.mrb[0].mxu0
      %5375 = vmatprep.mubr.bf16.mxu0 0
      %5376 = vmatmul.mubr.bf16.gmra.mrb[0].mxu0 %v4926
      %v5377 = vpop.f32.mrb[0].mxu0
      %v5378 = vpop.f32.mrb[0].mxu0
      %v5379 = vpop.f32.mrb[0].mxu0
      %v5380 = vadd.f32 %v5123, %v5379
      %v5381 = vpop.f32.mrb[0].mxu0
      %5382 = vmatprep.mubr.bf16.mxu0 0
      %5383 = vmatmul.mubr.bf16.gmra.mrb[0].mxu0 %v4927
      %v5384 = vpop.f32.mrb[0].mxu0
      %v5385 = vadd.f32 %v5128, %v5384
      %v5386 = vpop.f32.mrb[0].mxu0
      %v5387 = vpop.f32.mrb[0].mxu0
      %v5388 = vpop.f32.mrb[0].mxu0
      %5389 = vmatprep.mubr.bf16.mxu0 0
      %5390 = vmatmul.mubr.bf16.gmra.mrb[0].mxu0 %v4928
      %v5391 = vpop.f32.mrb[0].mxu0
      %v5392 = vadd.f32 %v5135, %v5391
      %v5393 = vpop.f32.mrb[0].mxu0
      %v5394 = vpop.f32.mrb[0].mxu0
      %v5395 = vadd.f32 %v5138, %v5394
      %v5396 = vpop.f32.mrb[0].mxu0
      %5397 = vmatprep.mubr.bf16.mxu0 0
      %5398 = vmatmul.mubr.bf16.gmra.mrb[0].mxu0 %v4929
      %v5399 = vpop.f32.mrb[0].mxu0
      %v5400 = vpop.f32.mrb[0].mxu0
      %v5401 = vpop.f32.mrb[0].mxu0
      %v5402 = vadd.f32 %v5145, %v5401
      %v5403 = vpop.f32.mrb[0].mxu0
      %5404 = vmatprep.mubr.bf16.mxu0 0
      %5405 = vmatmul.mubr.bf16.gmra.mrb[0].mxu0 %v4930
      %v5406 = vpop.f32.mrb[0].mxu0
      %v5407 = vadd.f32 %v5150, %v5406
      %v5408 = vpop.f32.mrb[0].mxu0
      %v5409 = vpop.f32.mrb[0].mxu0
      %v5410 = vpop.f32.mrb[0].mxu0
      %5411 = vmatprep.mubr.bf16.mxu0 0
      %5412 = vmatmul.mubr.bf16.gmra.mrb[0].mxu0 %v4931
      %v5413 = vpop.f32.mrb[0].mxu0
      %v5414 = vadd.f32 %v5157, %v5413
      %v5415 = vpop.f32.mrb[0].mxu0
      %v5416 = vpop.f32.mrb[0].mxu0
      %v5417 = vadd.f32 %v5160, %v5416
      %v5418 = vpop.f32.mrb[0].mxu0
      %5419 = vmatprep.mubr.bf16.mxu0 0
      %5420 = vmatmul.mubr.bf16.gmra.mrb[0].mxu0 %v4932
      %v5421 = vpop.f32.mrb[0].mxu0
      %v5422 = vpop.f32.mrb[0].mxu0
      %v5423 = vpop.f32.mrb[0].mxu0
      %v5424 = vadd.f32 %v5167, %v5423
      %v5425 = vpop.f32.mrb[0].mxu0
      %5426 = vmatprep.mubr.bf16.mxu0 0
      %5427 = vmatmul.mubr.bf16.gmra.mrb[0].mxu0 %v4933
      %v5428 = vpop.f32.mrb[0].mxu0
      %v5429 = vadd.f32 %v5172, %v5428
      %v5430 = vpop.f32.mrb[0].mxu0
      %v5431 = vpop.f32.mrb[0].mxu0
      %v5432 = vpop.f32.mrb[0].mxu0
      %5433 = vmatprep.mubr.bf16.mxu0 0
      %5434 = vmatmul.mubr.bf16.gmra.mrb[0].mxu0 %v4934
      %v5435 = vpop.f32.mrb[0].mxu0
      %v5436 = vadd.f32 %v5179, %v5435
      %v5437 = vpop.f32.mrb[0].mxu0
      %v5438 = vpop.f32.mrb[0].mxu0
      %v5439 = vadd.f32 %v5182, %v5438
      %v5440 = vpop.f32.mrb[0].mxu0
      %5441 = vmatprep.mubr.bf16.mxu0 0
      %5442 = vmatmul.mubr.bf16.gmra.mrb[0].mxu0 %v4935
      %v5443 = vpop.f32.mrb[0].mxu0
      %v5444 = vpop.f32.mrb[0].mxu0
      %v5445 = vpop.f32.mrb[0].mxu0
      %v5446 = vadd.f32 %v5189, %v5445
      %v5447 = vpop.f32.mrb[0].mxu0
      %5448 = vmatprep.mubr.bf16.mxu0 0
      %5449 = vmatmul.mubr.bf16.gmra.mrb[0].mxu0 %v4936
      %v5450 = vpop.f32.mrb[0].mxu0
      %v5451 = vadd.f32 %v5194, %v5450
      %v5452 = vpop.f32.mrb[0].mxu0
      %v5453 = vpop.f32.mrb[0].mxu0
      %v5454 = vpop.f32.mrb[0].mxu0
      %5455 = vmatprep.mubr.bf16.mxu0 0
      %5456 = vmatmul.mubr.bf16.gmra.mrb[0].mxu0 %v4937
      %v5457 = vpop.f32.mrb[0].mxu0
      %v5458 = vadd.f32 %v5201, %v5457
      %v5459 = vpop.f32.mrb[0].mxu0
      %v5460 = vpop.f32.mrb[0].mxu0
      %v5461 = vadd.f32 %v5204, %v5460
      %v5462 = vpop.f32.mrb[0].mxu0
      %5463 = vmatprep.mubr.bf16.mxu0 0
      %5464 = vmatmul.mubr.bf16.gmra.mrb[0].mxu0 %v4938
      %v5465 = vpop.f32.mrb[0].mxu0
      %v5466 = vpop.f32.mrb[0].mxu0
      %v5467 = vpop.f32.mrb[0].mxu0
      %v5468 = vadd.f32 %v5211, %v5467
      %v5469 = vpop.f32.mrb[0].mxu0
      %5470 = vmatprep.mubr.bf16.mxu0 0
      %5471 = vmatmul.mubr.bf16.gmra.mrb[0].mxu0 %v4939
      %v5472 = vpop.f32.mrb[0].mxu0
      %v5473 = vadd.f32 %v5216, %v5472
      %v5474 = vpop.f32.mrb[0].mxu0
      %v5475 = vpop.f32.mrb[0].mxu0
      %v5476 = vpop.f32.mrb[0].mxu0
      %5477 = vdwg.mxu0
      %v5478 = vpack.c.bf16 0.0, 0.0
      %v5479 = vpack.c.bf16 %v4770, %v4771
      %v5480 = vpack.c.bf16 %v4768, %v4769
      %v5481 = vpack.c.bf16 %v4766, %v4767
      %v5482 = vpack.c.bf16 %v4764, %v4765
      %v5483 = vpack.c.bf16 %v4762, %v4763
      %v5484 = vpack.c.bf16 %v4760, %v4761
      %v5485 = vpack.c.bf16 %v4758, %v4759
      %v5486 = vpack.c.bf16 %v4756, %v4757
      %v5487 = vpack.c.bf16 %v4754, %v4755
      %v5488 = vpack.c.bf16 %v4752, %v4753
      %v5489 = vpack.c.bf16 %v4750, %v4751
      %v5490 = vpack.c.bf16 %v4748, %v4749
      %v5491 = vpack.c.bf16 %v4746, %v4747
      %v5492 = vpack.c.bf16 %v4744, %v4745
      %v5493 = vpack.c.bf16 %v4742, %v4743
      %v5494 = vpack.c.bf16 %v4740, %v4741
      %v5495 = vpack.c.bf16 %v4738, %v4739
      %v5496 = vpack.c.bf16 %v4736, %v4737
      %v5497 = vpack.c.bf16 %v4734, %v4735
      %v5498 = vpack.c.bf16 %v4732, %v4733
      %v5499 = vpack.c.bf16 %v4730, %v4731
      %v5500 = vpack.c.bf16 %v4728, %v4729
      %v5501 = vpack.c.bf16 %v4726, %v4727
      %v5518 = vunpack.c.l.b16 %v4804
      %v5519 = vunpack.c.l.b16 %v4805
      %v5520 = vunpack.c.l.b16 %v4806
      %v5521 = vunpack.c.l.b16 %v4807
      %v5522 = vunpack.c.l.b16 %v4808
      %v5523 = vunpack.c.l.b16 %v4809
      %v5524 = vunpack.c.l.b16 %v4810
      %v5525 = vunpack.c.l.b16 %v4811
      %v5526 = vunpack.c.l.b16 %v4812
      %v5527 = vunpack.c.l.b16 %v4813
      %v5528 = vunpack.c.l.b16 %v4814
      %v5529 = vunpack.c.l.b16 %v4815
      %v5530 = vunpack.c.l.b16 %v4816
      %v5531 = vunpack.c.l.b16 %v4817
      %v5532 = vunpack.c.l.b16 %v4818
      %v5533 = vunpack.c.l.b16 %v4819
      %v5534 = vpack.c.b16 %v5519, %v5518
      %v5535 = vpack.c.b16 %v5521, %v5520
      %v5536 = vpack.c.b16 %v5523, %v5522
      %v5537 = vpack.c.b16 %v5525, %v5524
      %v5538 = vpack.c.b16 %v5527, %v5526
      %v5539 = vpack.c.b16 %v5529, %v5528
      %v5540 = vpack.c.b16 %v5531, %v5530
      %v5541 = vpack.c.b16 %v5533, %v5532
      %5550 = vmatprep.subr.bf16.mxu0 0
      %5551 = vmatpush1.bf16.msra.mxu0 %v5534
      %5552 = vmatprep.subr.bf16.mxu0 0
      %5553 = vmatpush1.bf16.msra.mxu0 %v5535
      %5554 = vmatprep.subr.bf16.mxu0 0
      %5555 = vmatpush1.bf16.msra.mxu0 %v5536
      %5556 = vmatprep.subr.bf16.mxu0 0
      %5557 = vmatpush1.bf16.msra.mxu0 %v5537
      %5558 = vmatprep.subr.bf16.mxu0 0
      %5559 = vmatpush1.bf16.msra.mxu0 %v5538
      %5560 = vmatprep.subr.bf16.mxu0 0
      %5561 = vmatpush1.bf16.msra.mxu0 %v5539
      %5562 = vmatprep.subr.bf16.mxu0 0
      %5563 = vmatpush1.bf16.msra.mxu0 %v5540
      %5564 = vmatprep.subr.bf16.mxu0 0
      %5565 = vmatpush1.bf16.msra.mxu0 %v5541
      %5566 = vmatprep.subr.bf16.mxu0 0
      %5567 = vmatpush1.bf16.msra.mxu0 0
      %5568 = vmatprep.subr.bf16.mxu0 0
      %5569 = vmatpush1.bf16.msra.mxu0 0
      %5570 = vmatprep.subr.bf16.mxu0 0
      %5571 = vmatpush1.bf16.msra.mxu0 0
      %5572 = vmatprep.subr.bf16.mxu0 0
      %5573 = vmatpush1.bf16.msra.mxu0 0
      %5574 = vmatprep.subr.bf16.mxu0 0
      %5575 = vmatpush1.bf16.msra.mxu0 0
      %5576 = vmatprep.subr.bf16.mxu0 0
      %5577 = vmatpush1.bf16.msra.mxu0 0
      %5578 = vmatprep.subr.bf16.mxu0 0
      %5579 = vmatpush1.bf16.msra.mxu0 0
      %5580 = vmatprep.subr.bf16.mxu0 0
      %5581 = vmatpush1.bf16.msra.mxu0 0
      %5582 = vmatprep.mubr.bf16.mxu0 0
      %5583 = vmatmul.mubr.bf16.gmra.mrb[0].mxu0 %v5478
      %v5584 = vpop.f32.mrb[0].mxu0
      %v5585 = vadd.f32 0.0, %v5584
      %v5586 = vpop.f32.mrb[0].mxu0
      %v5587 = vpop.f32.mrb[0].mxu0
      %v5588 = vadd.f32 0.0, %v5587
      %v5589 = vpop.f32.mrb[0].mxu0
      %5590 = vmatprep.mubr.bf16.mxu0 0
      %5591 = vmatmul.mubr.bf16.gmra.mrb[0].mxu0 %v5479
      %v5592 = vpop.f32.mrb[0].mxu0
      %v5593 = vpop.f32.mrb[0].mxu0
      %v5594 = vpop.f32.mrb[0].mxu0
      %v5595 = vadd.f32 0.0, %v5594
      %v5596 = vpop.f32.mrb[0].mxu0
      %5597 = vmatprep.mubr.bf16.mxu0 0
      %5598 = vmatmul.mubr.bf16.gmra.mrb[0].mxu0 %v5480
      %v5599 = vpop.f32.mrb[0].mxu0
      %v5600 = vadd.f32 0.0, %v5599
      %v5601 = vpop.f32.mrb[0].mxu0
      %v5602 = vpop.f32.mrb[0].mxu0
      %v5603 = vpop.f32.mrb[0].mxu0
      %5604 = vmatprep.mubr.bf16.mxu0 0
      %5605 = vmatmul.mubr.bf16.gmra.mrb[0].mxu0 %v5481
      %v5606 = vpop.f32.mrb[0].mxu0
      %v5607 = vadd.f32 0.0, %v5606
      %v5608 = vpop.f32.mrb[0].mxu0
      %v5609 = vpop.f32.mrb[0].mxu0
      %v5610 = vadd.f32 0.0, %v5609
      %v5611 = vpop.f32.mrb[0].mxu0
      %5612 = vmatprep.mubr.bf16.mxu0 0
      %5613 = vmatmul.mubr.bf16.gmra.mrb[0].mxu0 %v5482
      %v5614 = vpop.f32.mrb[0].mxu0
      %v5615 = vpop.f32.mrb[0].mxu0
      %v5616 = vpop.f32.mrb[0].mxu0
      %v5617 = vadd.f32 0.0, %v5616
      %v5618 = vpop.f32.mrb[0].mxu0
      %5619 = vmatprep.mubr.bf16.mxu0 0
      %5620 = vmatmul.mubr.bf16.gmra.mrb[0].mxu0 %v5483
      %v5621 = vpop.f32.mrb[0].mxu0
      %v5622 = vadd.f32 0.0, %v5621
      %v5623 = vpop.f32.mrb[0].mxu0
      %v5624 = vpop.f32.mrb[0].mxu0
      %v5625 = vpop.f32.mrb[0].mxu0
      %5626 = vmatprep.mubr.bf16.mxu0 0
      %5627 = vmatmul.mubr.bf16.gmra.mrb[0].mxu0 %v5484
      %v5628 = vpop.f32.mrb[0].mxu0
      %v5629 = vadd.f32 0.0, %v5628
      %v5630 = vpop.f32.mrb[0].mxu0
      %v5631 = vpop.f32.mrb[0].mxu0
      %v5632 = vadd.f32 0.0, %v5631
      %v5633 = vpop.f32.mrb[0].mxu0
      %5634 = vmatprep.mubr.bf16.mxu0 0
      %5635 = vmatmul.mubr.bf16.gmra.mrb[0].mxu0 %v5485
      %v5636 = vpop.f32.mrb[0].mxu0
      %v5637 = vpop.f32.mrb[0].mxu0
      %v5638 = vpop.f32.mrb[0].mxu0
      %v5639 = vadd.f32 0.0, %v5638
      %v5640 = vpop.f32.mrb[0].mxu0
      %5641 = vmatprep.mubr.bf16.mxu0 0
      %5642 = vmatmul.mubr.bf16.gmra.mrb[0].mxu0 %v5486
      %v5643 = vpop.f32.mrb[0].mxu0
      %v5644 = vadd.f32 0.0, %v5643
      %v5645 = vpop.f32.mrb[0].mxu0
      %v5646 = vpop.f32.mrb[0].mxu0
      %v5647 = vpop.f32.mrb[0].mxu0
      %5648 = vmatprep.mubr.bf16.mxu0 0
      %5649 = vmatmul.mubr.bf16.gmra.mrb[0].mxu0 %v5487
      %v5650 = vpop.f32.mrb[0].mxu0
      %v5651 = vadd.f32 0.0, %v5650
      %v5652 = vpop.f32.mrb[0].mxu0
      %v5653 = vpop.f32.mrb[0].mxu0
      %v5654 = vadd.f32 0.0, %v5653
      %v5655 = vpop.f32.mrb[0].mxu0
      %5656 = vmatprep.mubr.bf16.mxu0 0
      %5657 = vmatmul.mubr.bf16.gmra.mrb[0].mxu0 %v5488
      %v5658 = vpop.f32.mrb[0].mxu0
      %v5659 = vpop.f32.mrb[0].mxu0
      %v5660 = vpop.f32.mrb[0].mxu0
      %v5661 = vadd.f32 0.0, %v5660
      %v5662 = vpop.f32.mrb[0].mxu0
      %5663 = vmatprep.mubr.bf16.mxu0 0
      %5664 = vmatmul.mubr.bf16.gmra.mrb[0].mxu0 %v5489
      %v5665 = vpop.f32.mrb[0].mxu0
      %v5666 = vadd.f32 0.0, %v5665
      %v5667 = vpop.f32.mrb[0].mxu0
      %v5668 = vpop.f32.mrb[0].mxu0
      %v5669 = vpop.f32.mrb[0].mxu0
      %5670 = vmatprep.mubr.bf16.mxu0 0
      %5671 = vmatmul.mubr.bf16.gmra.mrb[0].mxu0 %v5490
      %v5672 = vpop.f32.mrb[0].mxu0
      %v5673 = vadd.f32 0.0, %v5672
      %v5674 = vpop.f32.mrb[0].mxu0
      %v5675 = vpop.f32.mrb[0].mxu0
      %v5676 = vadd.f32 0.0, %v5675
      %v5677 = vpop.f32.mrb[0].mxu0
      %5678 = vmatprep.mubr.bf16.mxu0 0
      %5679 = vmatmul.mubr.bf16.gmra.mrb[0].mxu0 %v5491
      %v5680 = vpop.f32.mrb[0].mxu0
      %v5681 = vpop.f32.mrb[0].mxu0
      %v5682 = vpop.f32.mrb[0].mxu0
      %v5683 = vadd.f32 0.0, %v5682
      %v5684 = vpop.f32.mrb[0].mxu0
      %5685 = vmatprep.mubr.bf16.mxu0 0
      %5686 = vmatmul.mubr.bf16.gmra.mrb[0].mxu0 %v5492
      %v5687 = vpop.f32.mrb[0].mxu0
      %v5688 = vadd.f32 0.0, %v5687
      %v5689 = vpop.f32.mrb[0].mxu0
      %v5690 = vpop.f32.mrb[0].mxu0
      %v5691 = vpop.f32.mrb[0].mxu0
      %5692 = vmatprep.mubr.bf16.mxu0 0
      %5693 = vmatmul.mubr.bf16.gmra.mrb[0].mxu0 %v5493
      %v5694 = vpop.f32.mrb[0].mxu0
      %v5695 = vadd.f32 0.0, %v5694
      %v5696 = vpop.f32.mrb[0].mxu0
      %v5697 = vpop.f32.mrb[0].mxu0
      %v5698 = vadd.f32 0.0, %v5697
      %v5699 = vpop.f32.mrb[0].mxu0
      %5700 = vmatprep.mubr.bf16.mxu0 0
      %5701 = vmatmul.mubr.bf16.gmra.mrb[0].mxu0 %v5494
      %v5702 = vpop.f32.mrb[0].mxu0
      %v5703 = vpop.f32.mrb[0].mxu0
      %v5704 = vpop.f32.mrb[0].mxu0
      %v5705 = vadd.f32 0.0, %v5704
      %v5706 = vpop.f32.mrb[0].mxu0
      %5707 = vmatprep.mubr.bf16.mxu0 0
      %5708 = vmatmul.mubr.bf16.gmra.mrb[0].mxu0 %v5495
      %v5709 = vpop.f32.mrb[0].mxu0
      %v5710 = vadd.f32 0.0, %v5709
      %v5711 = vpop.f32.mrb[0].mxu0
      %v5712 = vpop.f32.mrb[0].mxu0
      %v5713 = vpop.f32.mrb[0].mxu0
      %5714 = vmatprep.mubr.bf16.mxu0 0
      %5715 = vmatmul.mubr.bf16.gmra.mrb[0].mxu0 %v5496
      %v5716 = vpop.f32.mrb[0].mxu0
      %v5717 = vadd.f32 0.0, %v5716
      %v5718 = vpop.f32.mrb[0].mxu0
      %v5719 = vpop.f32.mrb[0].mxu0
      %v5720 = vadd.f32 0.0, %v5719
      %v5721 = vpop.f32.mrb[0].mxu0
      %5722 = vmatprep.mubr.bf16.mxu0 0
      %5723 = vmatmul.mubr.bf16.gmra.mrb[0].mxu0 %v5497
      %v5724 = vpop.f32.mrb[0].mxu0
      %v5725 = vpop.f32.mrb[0].mxu0
      %v5726 = vpop.f32.mrb[0].mxu0
      %v5727 = vadd.f32 0.0, %v5726
      %v5728 = vpop.f32.mrb[0].mxu0
      %5729 = vmatprep.mubr.bf16.mxu0 0
      %5730 = vmatmul.mubr.bf16.gmra.mrb[0].mxu0 %v5498
      %v5731 = vpop.f32.mrb[0].mxu0
      %v5732 = vadd.f32 0.0, %v5731
      %v5733 = vpop.f32.mrb[0].mxu0
      %v5734 = vpop.f32.mrb[0].mxu0
      %v5735 = vpop.f32.mrb[0].mxu0
      %5736 = vmatprep.mubr.bf16.mxu0 0
      %5737 = vmatmul.mubr.bf16.gmra.mrb[0].mxu0 %v5499
      %v5738 = vpop.f32.mrb[0].mxu0
      %v5739 = vadd.f32 0.0, %v5738
      %v5740 = vpop.f32.mrb[0].mxu0
      %v5741 = vpop.f32.mrb[0].mxu0
      %v5742 = vadd.f32 0.0, %v5741
      %v5743 = vpop.f32.mrb[0].mxu0
      %5744 = vmatprep.mubr.bf16.mxu0 0
      %5745 = vmatmul.mubr.bf16.gmra.mrb[0].mxu0 %v5500
      %v5746 = vpop.f32.mrb[0].mxu0
      %v5747 = vpop.f32.mrb[0].mxu0
      %v5748 = vpop.f32.mrb[0].mxu0
      %v5749 = vadd.f32 0.0, %v5748
      %v5750 = vpop.f32.mrb[0].mxu0
      %5751 = vmatprep.mubr.bf16.mxu0 0
      %5752 = vmatmul.mubr.bf16.gmra.mrb[0].mxu0 %v5501
      %v5753 = vpop.f32.mrb[0].mxu0
      %v5754 = vadd.f32 0.0, %v5753
      %v5755 = vpop.f32.mrb[0].mxu0
      %v5756 = vpop.f32.mrb[0].mxu0
      %v5757 = vpop.f32.mrb[0].mxu0
      %5758 = vdwg.mxu0
      %v5759 = vadd.f32 %v5304, %v5585
      %v5760 = vadd.f32 %v5307, %v5588
      %v5761 = vadd.f32 %v5314, %v5595
      %v5762 = vadd.f32 %v5319, %v5600
      %v5763 = vadd.f32 %v5326, %v5607
      %v5764 = vadd.f32 %v5329, %v5610
      %v5765 = vadd.f32 %v5336, %v5617
      %v5766 = vadd.f32 %v5341, %v5622
      %v5767 = vadd.f32 %v5348, %v5629
      %v5768 = vadd.f32 %v5351, %v5632
      %v5769 = vadd.f32 %v5358, %v5639
      %v5770 = vadd.f32 %v5363, %v5644
      %v5771 = vadd.f32 %v5370, %v5651
      %v5772 = vadd.f32 %v5373, %v5654
      %v5773 = vadd.f32 %v5380, %v5661
      %v5774 = vadd.f32 %v5385, %v5666
      %v5775 = vadd.f32 %v5392, %v5673
      %v5776 = vadd.f32 %v5395, %v5676
      %v5777 = vadd.f32 %v5402, %v5683
      %v5778 = vadd.f32 %v5407, %v5688
      %v5779 = vadd.f32 %v5414, %v5695
      %v5780 = vadd.f32 %v5417, %v5698
      %v5781 = vadd.f32 %v5424, %v5705
      %v5782 = vadd.f32 %v5429, %v5710
      %v5783 = vadd.f32 %v5436, %v5717
      %v5784 = vadd.f32 %v5439, %v5720
      %v5785 = vadd.f32 %v5446, %v5727
      %v5786 = vadd.f32 %v5451, %v5732
      %v5787 = vadd.f32 %v5458, %v5739
      %v5788 = vadd.f32 %v5461, %v5742
      %v5789 = vadd.f32 %v5468, %v5749
      %v5790 = vadd.f32 %v5473, %v5754
      %v5791 = vpack.c.bf16 %v4531, %v4530
      %v5792 = vpack.c.bf16 %v4533, %v4532
      %v5793 = vpack.c.bf16 %v4535, %v4534
      %v5794 = vpack.c.bf16 %v4537, %v4536
      %v5795 = vpack.c.bf16 %v4539, %v4538
      %v5796 = vpack.c.bf16 %v4541, %v4540
      %v5797 = vpack.c.bf16 %v4543, %v4542
      %v5798 = vpack.c.bf16 %v4545, %v4544
      %v5799 = vpack.c.bf16 %v4547, %v4546
      %v5800 = vpack.c.bf16 %v4549, %v4548
      %v5801 = vpack.c.bf16 %v4551, %v4550
      %v5802 = vpack.c.bf16 %v4553, %v4552
      %v5803 = vpack.c.bf16 %v4555, %v4554
      %v5804 = vpack.c.bf16 %v4557, %v4556
      %v5805 = vpack.c.bf16 %v4559, %v4558
      %v5806 = vpack.c.bf16 %v4561, %v4560
      %v5807 = vpack.c.bf16 %v4563, %v4562
      %v5808 = vpack.c.bf16 %v4565, %v4564
      %v5809 = vpack.c.bf16 %v4567, %v4566
      %v5810 = vpack.c.bf16 %v4569, %v4568
      %v5811 = vpack.c.bf16 %v4571, %v4570
      %v5812 = vpack.c.bf16 %v4573, %v4572
      %v5813 = vpack.c.bf16 %v4575, %v4574
      %v5814 = vpack.c.bf16 %v4577, %v4576
      %v5831 = vunpack.c.l.b16 %v4820
      %v5832 = vunpack.c.l.b16 %v4821
      %v5833 = vunpack.c.l.b16 %v4822
      %v5834 = vunpack.c.l.b16 %v4823
      %v5835 = vunpack.c.l.b16 %v4824
      %v5836 = vunpack.c.l.b16 %v4825
      %v5837 = vunpack.c.l.b16 %v4826
      %v5838 = vunpack.c.l.b16 %v4827
      %v5839 = vunpack.c.l.b16 %v4828
      %v5840 = vunpack.c.l.b16 %v4829
      %v5841 = vunpack.c.l.b16 %v4830
      %v5842 = vunpack.c.l.b16 %v4831
      %v5843 = vunpack.c.l.b16 %v4832
      %v5844 = vunpack.c.l.b16 %v4833
      %v5845 = vunpack.c.l.b16 %v4834
      %v5846 = vunpack.c.l.b16 %v4835
      %v5847 = vpack.c.b16 %v5832, %v5831
      %v5848 = vpack.c.b16 %v5834, %v5833
      %v5849 = vpack.c.b16 %v5836, %v5835
      %v5850 = vpack.c.b16 %v5838, %v5837
      %v5851 = vpack.c.b16 %v5840, %v5839
      %v5852 = vpack.c.b16 %v5842, %v5841
      %v5853 = vpack.c.b16 %v5844, %v5843
      %v5854 = vpack.c.b16 %v5846, %v5845
      %5863 = vmatprep.subr.bf16.mxu0 0
      %5864 = vmatpush1.bf16.msra.mxu0 %v5847
      %5865 = vmatprep.subr.bf16.mxu0 0
      %5866 = vmatpush1.bf16.msra.mxu0 %v5848
      %5867 = vmatprep.subr.bf16.mxu0 0
      %5868 = vmatpush1.bf16.msra.mxu0 %v5849
      %5869 = vmatprep.subr.bf16.mxu0 0
      %5870 = vmatpush1.bf16.msra.mxu0 %v5850
      %5871 = vmatprep.subr.bf16.mxu0 0
      %5872 = vmatpush1.bf16.msra.mxu0 %v5851
      %5873 = vmatprep.subr.bf16.mxu0 0
      %5874 = vmatpush1.bf16.msra.mxu0 %v5852
      %5875 = vmatprep.subr.bf16.mxu0 0
      %5876 = vmatpush1.bf16.msra.mxu0 %v5853
      %5877 = vmatprep.subr.bf16.mxu0 0
      %5878 = vmatpush1.bf16.msra.mxu0 %v5854
      %5879 = vmatprep.subr.bf16.mxu0 0
      %5880 = vmatpush1.bf16.msra.mxu0 0
      %5881 = vmatprep.subr.bf16.mxu0 0
      %5882 = vmatpush1.bf16.msra.mxu0 0
      %5883 = vmatprep.subr.bf16.mxu0 0
      %5884 = vmatpush1.bf16.msra.mxu0 0
      %5885 = vmatprep.subr.bf16.mxu0 0
      %5886 = vmatpush1.bf16.msra.mxu0 0
      %5887 = vmatprep.subr.bf16.mxu0 0
      %5888 = vmatpush1.bf16.msra.mxu0 0
      %5889 = vmatprep.subr.bf16.mxu0 0
      %5890 = vmatpush1.bf16.msra.mxu0 0
      %5891 = vmatprep.subr.bf16.mxu0 0
      %5892 = vmatpush1.bf16.msra.mxu0 0
      %5893 = vmatprep.subr.bf16.mxu0 0
      %5894 = vmatpush1.bf16.msra.mxu0 0
      %5895 = vmatprep.mubr.bf16.mxu0 0
      %5896 = vmatmul.mubr.bf16.gmra.mrb[0].mxu0 %v5791
      %v5897 = vpop.f32.mrb[0].mxu0
      %v5898 = vadd.f32 0.0, %v5897
      %v5899 = vpop.f32.mrb[0].mxu0
      %v5900 = vpop.f32.mrb[0].mxu0
      %v5901 = vadd.f32 0.0, %v5900
      %v5902 = vpop.f32.mrb[0].mxu0
      %5903 = vmatprep.mubr.bf16.mxu0 0
      %5904 = vmatmul.mubr.bf16.gmra.mrb[0].mxu0 %v5792
      %v5905 = vpop.f32.mrb[0].mxu0
      %v5906 = vpop.f32.mrb[0].mxu0
      %v5907 = vpop.f32.mrb[0].mxu0
      %v5908 = vadd.f32 0.0, %v5907
      %v5909 = vpop.f32.mrb[0].mxu0
      %5910 = vmatprep.mubr.bf16.mxu0 0
      %5911 = vmatmul.mubr.bf16.gmra.mrb[0].mxu0 %v5793
      %v5912 = vpop.f32.mrb[0].mxu0
      %v5913 = vadd.f32 0.0, %v5912
      %v5914 = vpop.f32.mrb[0].mxu0
      %v5915 = vpop.f32.mrb[0].mxu0
      %v5916 = vpop.f32.mrb[0].mxu0
      %5917 = vmatprep.mubr.bf16.mxu0 0
      %5918 = vmatmul.mubr.bf16.gmra.mrb[0].mxu0 %v5794
      %v5919 = vpop.f32.mrb[0].mxu0
      %v5920 = vadd.f32 0.0, %v5919
      %v5921 = vpop.f32.mrb[0].mxu0
      %v5922 = vpop.f32.mrb[0].mxu0
      %v5923 = vadd.f32 0.0, %v5922
      %v5924 = vpop.f32.mrb[0].mxu0
      %5925 = vmatprep.mubr.bf16.mxu0 0
      %5926 = vmatmul.mubr.bf16.gmra.mrb[0].mxu0 %v5795
      %v5927 = vpop.f32.mrb[0].mxu0
      %v5928 = vpop.f32.mrb[0].mxu0
      %v5929 = vpop.f32.mrb[0].mxu0
      %v5930 = vadd.f32 0.0, %v5929
      %v5931 = vpop.f32.mrb[0].mxu0
      %5932 = vmatprep.mubr.bf16.mxu0 0
      %5933 = vmatmul.mubr.bf16.gmra.mrb[0].mxu0 %v5796
      %v5934 = vpop.f32.mrb[0].mxu0
      %v5935 = vadd.f32 0.0, %v5934
      %v5936 = vpop.f32.mrb[0].mxu0
      %v5937 = vpop.f32.mrb[0].mxu0
      %v5938 = vpop.f32.mrb[0].mxu0
      %5939 = vmatprep.mubr.bf16.mxu0 0
      %5940 = vmatmul.mubr.bf16.gmra.mrb[0].mxu0 %v5797
      %v5941 = vpop.f32.mrb[0].mxu0
      %v5942 = vadd.f32 0.0, %v5941
      %v5943 = vpop.f32.mrb[0].mxu0
      %v5944 = vpop.f32.mrb[0].mxu0
      %v5945 = vadd.f32 0.0, %v5944
      %v5946 = vpop.f32.mrb[0].mxu0
      %5947 = vmatprep.mubr.bf16.mxu0 0
      %5948 = vmatmul.mubr.bf16.gmra.mrb[0].mxu0 %v5798
      %v5949 = vpop.f32.mrb[0].mxu0
      %v5950 = vpop.f32.mrb[0].mxu0
      %v5951 = vpop.f32.mrb[0].mxu0
      %v5952 = vadd.f32 0.0, %v5951
      %v5953 = vpop.f32.mrb[0].mxu0
      %5954 = vmatprep.mubr.bf16.mxu0 0
      %5955 = vmatmul.mubr.bf16.gmra.mrb[0].mxu0 %v5799
      %v5956 = vpop.f32.mrb[0].mxu0
      %v5957 = vadd.f32 0.0, %v5956
      %v5958 = vpop.f32.mrb[0].mxu0
      %v5959 = vpop.f32.mrb[0].mxu0
      %v5960 = vpop.f32.mrb[0].mxu0
      %5961 = vmatprep.mubr.bf16.mxu0 0
      %5962 = vmatmul.mubr.bf16.gmra.mrb[0].mxu0 %v5800
      %v5963 = vpop.f32.mrb[0].mxu0
      %v5964 = vadd.f32 0.0, %v5963
      %v5965 = vpop.f32.mrb[0].mxu0
      %v5966 = vpop.f32.mrb[0].mxu0
      %v5967 = vadd.f32 0.0, %v5966
      %v5968 = vpop.f32.mrb[0].mxu0
      %5969 = vmatprep.mubr.bf16.mxu0 0
      %5970 = vmatmul.mubr.bf16.gmra.mrb[0].mxu0 %v5801
      %v5971 = vpop.f32.mrb[0].mxu0
      %v5972 = vpop.f32.mrb[0].mxu0
      %v5973 = vpop.f32.mrb[0].mxu0
      %v5974 = vadd.f32 0.0, %v5973
      %v5975 = vpop.f32.mrb[0].mxu0
      %5976 = vmatprep.mubr.bf16.mxu0 0
      %5977 = vmatmul.mubr.bf16.gmra.mrb[0].mxu0 %v5802
      %v5978 = vpop.f32.mrb[0].mxu0
      %v5979 = vadd.f32 0.0, %v5978
      %v5980 = vpop.f32.mrb[0].mxu0
      %v5981 = vpop.f32.mrb[0].mxu0
      %v5982 = vpop.f32.mrb[0].mxu0
      %5983 = vmatprep.mubr.bf16.mxu0 0
      %5984 = vmatmul.mubr.bf16.gmra.mrb[0].mxu0 %v5803
      %v5985 = vpop.f32.mrb[0].mxu0
      %v5986 = vadd.f32 0.0, %v5985
      %v5987 = vpop.f32.mrb[0].mxu0
      %v5988 = vpop.f32.mrb[0].mxu0
      %v5989 = vadd.f32 0.0, %v5988
      %v5990 = vpop.f32.mrb[0].mxu0
      %5991 = vmatprep.mubr.bf16.mxu0 0
      %5992 = vmatmul.mubr.bf16.gmra.mrb[0].mxu0 %v5804
      %v5993 = vpop.f32.mrb[0].mxu0
      %v5994 = vpop.f32.mrb[0].mxu0
      %v5995 = vpop.f32.mrb[0].mxu0
      %v5996 = vadd.f32 0.0, %v5995
      %v5997 = vpop.f32.mrb[0].mxu0
      %5998 = vmatprep.mubr.bf16.mxu0 0
      %5999 = vmatmul.mubr.bf16.gmra.mrb[0].mxu0 %v5805
      %v6000 = vpop.f32.mrb[0].mxu0
      %v6001 = vadd.f32 0.0, %v6000
      %v6002 = vpop.f32.mrb[0].mxu0
      %v6003 = vpop.f32.mrb[0].mxu0
      %v6004 = vpop.f32.mrb[0].mxu0
      %6005 = vmatprep.mubr.bf16.mxu0 0
      %6006 = vmatmul.mubr.bf16.gmra.mrb[0].mxu0 %v5806
      %v6007 = vpop.f32.mrb[0].mxu0
      %v6008 = vadd.f32 0.0, %v6007
      %v6009 = vpop.f32.mrb[0].mxu0
      %v6010 = vpop.f32.mrb[0].mxu0
      %v6011 = vadd.f32 0.0, %v6010
      %v6012 = vpop.f32.mrb[0].mxu0
      %6013 = vmatprep.mubr.bf16.mxu0 0
      %6014 = vmatmul.mubr.bf16.gmra.mrb[0].mxu0 %v5807
      %v6015 = vpop.f32.mrb[0].mxu0
      %v6016 = vpop.f32.mrb[0].mxu0
      %v6017 = vpop.f32.mrb[0].mxu0
      %v6018 = vadd.f32 0.0, %v6017
      %v6019 = vpop.f32.mrb[0].mxu0
      %6020 = vmatprep.mubr.bf16.mxu0 0
      %6021 = vmatmul.mubr.bf16.gmra.mrb[0].mxu0 %v5808
      %v6022 = vpop.f32.mrb[0].mxu0
      %v6023 = vadd.f32 0.0, %v6022
      %v6024 = vpop.f32.mrb[0].mxu0
      %v6025 = vpop.f32.mrb[0].mxu0
      %v6026 = vpop.f32.mrb[0].mxu0
      %6027 = vmatprep.mubr.bf16.mxu0 0
      %6028 = vmatmul.mubr.bf16.gmra.mrb[0].mxu0 %v5809
      %v6029 = vpop.f32.mrb[0].mxu0
      %v6030 = vadd.f32 0.0, %v6029
      %v6031 = vpop.f32.mrb[0].mxu0
      %v6032 = vpop.f32.mrb[0].mxu0
      %v6033 = vadd.f32 0.0, %v6032
      %v6034 = vpop.f32.mrb[0].mxu0
      %6035 = vmatprep.mubr.bf16.mxu0 0
      %6036 = vmatmul.mubr.bf16.gmra.mrb[0].mxu0 %v5810
      %v6037 = vpop.f32.mrb[0].mxu0
      %v6038 = vpop.f32.mrb[0].mxu0
      %v6039 = vpop.f32.mrb[0].mxu0
      %v6040 = vadd.f32 0.0, %v6039
      %v6041 = vpop.f32.mrb[0].mxu0
      %6042 = vmatprep.mubr.bf16.mxu0 0
      %6043 = vmatmul.mubr.bf16.gmra.mrb[0].mxu0 %v5811
      %v6044 = vpop.f32.mrb[0].mxu0
      %v6045 = vadd.f32 0.0, %v6044
      %v6046 = vpop.f32.mrb[0].mxu0
      %v6047 = vpop.f32.mrb[0].mxu0
      %v6048 = vpop.f32.mrb[0].mxu0
      %6049 = vmatprep.mubr.bf16.mxu0 0
      %6050 = vmatmul.mubr.bf16.gmra.mrb[0].mxu0 %v5812
      %v6051 = vpop.f32.mrb[0].mxu0
      %v6052 = vadd.f32 0.0, %v6051
      %v6053 = vpop.f32.mrb[0].mxu0
      %v6054 = vpop.f32.mrb[0].mxu0
      %v6055 = vadd.f32 0.0, %v6054
      %v6056 = vpop.f32.mrb[0].mxu0
      %6057 = vmatprep.mubr.bf16.mxu0 0
      %6058 = vmatmul.mubr.bf16.gmra.mrb[0].mxu0 %v5813
      %v6059 = vpop.f32.mrb[0].mxu0
      %v6060 = vpop.f32.mrb[0].mxu0
      %v6061 = vpop.f32.mrb[0].mxu0
      %v6062 = vadd.f32 0.0, %v6061
      %v6063 = vpop.f32.mrb[0].mxu0
      %6064 = vmatprep.mubr.bf16.mxu0 0
      %6065 = vmatmul.mubr.bf16.gmra.mrb[0].mxu0 %v5814
      %v6066 = vpop.f32.mrb[0].mxu0
      %v6067 = vadd.f32 0.0, %v6066
      %v6068 = vpop.f32.mrb[0].mxu0
      %v6069 = vpop.f32.mrb[0].mxu0
      %v6070 = vpop.f32.mrb[0].mxu0
      %6071 = vdwg.mxu0
      %v6072 = vadd.f32 %v5759, %v5898
      %v6073 = vadd.f32 %v5760, %v5901
      %v6074 = vadd.f32 %v5761, %v5908
      %v6075 = vadd.f32 %v5762, %v5913
      %v6076 = vadd.f32 %v5763, %v5920
      %v6077 = vadd.f32 %v5764, %v5923
      %v6078 = vadd.f32 %v5765, %v5930
      %v6079 = vadd.f32 %v5766, %v5935
      %v6080 = vadd.f32 %v5767, %v5942
      %v6081 = vadd.f32 %v5768, %v5945
      %v6082 = vadd.f32 %v5769, %v5952
      %v6083 = vadd.f32 %v5770, %v5957
      %v6084 = vadd.f32 %v5771, %v5964
      %v6085 = vadd.f32 %v5772, %v5967
      %v6086 = vadd.f32 %v5773, %v5974
      %v6087 = vadd.f32 %v5774, %v5979
      %v6088 = vadd.f32 %v5775, %v5986
      %v6089 = vadd.f32 %v5776, %v5989
      %v6090 = vadd.f32 %v5777, %v5996
      %v6091 = vadd.f32 %v5778, %v6001
      %v6092 = vadd.f32 %v5779, %v6008
      %v6093 = vadd.f32 %v5780, %v6011
      %v6094 = vadd.f32 %v5781, %v6018
      %v6095 = vadd.f32 %v5782, %v6023
      %v6096 = vadd.f32 %v5783, %v6030
      %v6097 = vadd.f32 %v5784, %v6033
      %v6098 = vadd.f32 %v5785, %v6040
      %v6099 = vadd.f32 %v5786, %v6045
      %v6100 = vadd.f32 %v5787, %v6052
      %v6101 = vadd.f32 %v5788, %v6055
      %v6102 = vadd.f32 %v5789, %v6062
      %v6103 = vadd.f32 %v5790, %v6067
      %v6104 = vpack.c.bf16 %v4672, %v4673
      %v6105 = vpack.c.bf16 %v4670, %v4671
      %v6106 = vpack.c.bf16 %v4668, %v4669
      %v6107 = vpack.c.bf16 %v4666, %v4667
      %v6108 = vpack.c.bf16 %v4664, %v4665
      %v6109 = vpack.c.bf16 %v4662, %v4663
      %v6110 = vpack.c.bf16 %v4660, %v4661
      %v6111 = vpack.c.bf16 %v4658, %v4659
      %v6112 = vpack.c.bf16 %v4656, %v4657
      %v6113 = vpack.c.bf16 %v4654, %v4655
      %v6114 = vpack.c.bf16 %v4652, %v4653
      %v6115 = vpack.c.bf16 %v4650, %v4651
      %v6116 = vpack.c.bf16 %v4648, %v4649
      %v6117 = vpack.c.bf16 %v4646, %v4647
      %v6118 = vpack.c.bf16 %v4644, %v4645
      %v6119 = vpack.c.bf16 %v4642, %v4643
      %v6120 = vpack.c.bf16 %v4640, %v4641
      %v6121 = vpack.c.bf16 %v4638, %v4639
      %v6122 = vpack.c.bf16 %v4636, %v4637
      %v6123 = vpack.c.bf16 %v4634, %v4635
      %v6124 = vpack.c.bf16 %v4632, %v4633
      %v6125 = vpack.c.bf16 %v4630, %v4631
      %v6126 = vpack.c.bf16 %v4628, %v4629
      %v6127 = vpack.c.bf16 %v4626, %v4627
      %v6144 = vunpack.c.l.b16 %v4836
      %v6145 = vunpack.c.l.b16 %v4837
      %v6146 = vunpack.c.l.b16 %v4838
      %v6147 = vunpack.c.l.b16 %v4839
      %v6148 = vunpack.c.l.b16 %v4840
      %v6149 = vunpack.c.l.b16 %v4841
      %v6150 = vunpack.c.l.b16 %v4842
      %v6151 = vunpack.c.l.b16 %v4843
      %v6152 = vunpack.c.l.b16 %v4844
      %v6153 = vunpack.c.l.b16 %v4845
      %v6154 = vunpack.c.l.b16 %v4846
      %v6155 = vunpack.c.l.b16 %v4847
      %v6156 = vunpack.c.l.b16 %v4848
      %v6157 = vunpack.c.l.b16 %v4849
      %v6158 = vunpack.c.l.b16 %v4850
      %v6159 = vunpack.c.l.b16 %v4851
      %v6160 = vpack.c.b16 %v6145, %v6144
      %v6161 = vpack.c.b16 %v6147, %v6146
      %v6162 = vpack.c.b16 %v6149, %v6148
      %v6163 = vpack.c.b16 %v6151, %v6150
      %v6164 = vpack.c.b16 %v6153, %v6152
      %v6165 = vpack.c.b16 %v6155, %v6154
      %v6166 = vpack.c.b16 %v6157, %v6156
      %v6167 = vpack.c.b16 %v6159, %v6158
      %6176 = vmatprep.subr.bf16.mxu0 0
      %6177 = vmatpush1.bf16.msra.mxu0 %v6160
      %6178 = vmatprep.subr.bf16.mxu0 0
      %6179 = vmatpush1.bf16.msra.mxu0 %v6161
      %6180 = vmatprep.subr.bf16.mxu0 0
      %6181 = vmatpush1.bf16.msra.mxu0 %v6162
      %6182 = vmatprep.subr.bf16.mxu0 0
      %6183 = vmatpush1.bf16.msra.mxu0 %v6163
      %6184 = vmatprep.subr.bf16.mxu0 0
      %6185 = vmatpush1.bf16.msra.mxu0 %v6164
      %6186 = vmatprep.subr.bf16.mxu0 0
      %6187 = vmatpush1.bf16.msra.mxu0 %v6165
      %6188 = vmatprep.subr.bf16.mxu0 0
      %6189 = vmatpush1.bf16.msra.mxu0 %v6166
      %6190 = vmatprep.subr.bf16.mxu0 0
      %6191 = vmatpush1.bf16.msra.mxu0 %v6167
      %6192 = vmatprep.subr.bf16.mxu0 0
      %6193 = vmatpush1.bf16.msra.mxu0 0
      %6194 = vmatprep.subr.bf16.mxu0 0
      %6195 = vmatpush1.bf16.msra.mxu0 0
      %6196 = vmatprep.subr.bf16.mxu0 0
      %6197 = vmatpush1.bf16.msra.mxu0 0
      %6198 = vmatprep.subr.bf16.mxu0 0
      %6199 = vmatpush1.bf16.msra.mxu0 0
      %6200 = vmatprep.subr.bf16.mxu0 0
      %6201 = vmatpush1.bf16.msra.mxu0 0
      %6202 = vmatprep.subr.bf16.mxu0 0
      %6203 = vmatpush1.bf16.msra.mxu0 0
      %6204 = vmatprep.subr.bf16.mxu0 0
      %6205 = vmatpush1.bf16.msra.mxu0 0
      %6206 = vmatprep.subr.bf16.mxu0 0
      %6207 = vmatpush1.bf16.msra.mxu0 0
      %6208 = vmatprep.mubr.bf16.mxu0 0
      %6209 = vmatmul.mubr.bf16.gmra.mrb[0].mxu0 %v6104
      %v6210 = vpop.f32.mrb[0].mxu0
      %v6211 = vadd.f32 0.0, %v6210
      %v6212 = vpop.f32.mrb[0].mxu0
      %v6213 = vpop.f32.mrb[0].mxu0
      %v6214 = vadd.f32 0.0, %v6213
      %v6215 = vpop.f32.mrb[0].mxu0
      %6216 = vmatprep.mubr.bf16.mxu0 0
      %6217 = vmatmul.mubr.bf16.gmra.mrb[0].mxu0 %v6105
      %v6218 = vpop.f32.mrb[0].mxu0
      %v6219 = vpop.f32.mrb[0].mxu0
      %v6220 = vpop.f32.mrb[0].mxu0
      %v6221 = vadd.f32 0.0, %v6220
      %v6222 = vpop.f32.mrb[0].mxu0
      %6223 = vmatprep.mubr.bf16.mxu0 0
      %6224 = vmatmul.mubr.bf16.gmra.mrb[0].mxu0 %v6106
      %v6225 = vpop.f32.mrb[0].mxu0
      %v6226 = vadd.f32 0.0, %v6225
      %v6227 = vpop.f32.mrb[0].mxu0
      %v6228 = vpop.f32.mrb[0].mxu0
      %v6229 = vpop.f32.mrb[0].mxu0
      %6230 = vmatprep.mubr.bf16.mxu0 0
      %6231 = vmatmul.mubr.bf16.gmra.mrb[0].mxu0 %v6107
      %v6232 = vpop.f32.mrb[0].mxu0
      %v6233 = vadd.f32 0.0, %v6232
      %v6234 = vpop.f32.mrb[0].mxu0
      %v6235 = vpop.f32.mrb[0].mxu0
      %v6236 = vadd.f32 0.0, %v6235
      %v6237 = vpop.f32.mrb[0].mxu0
      %6238 = vmatprep.mubr.bf16.mxu0 0
      %6239 = vmatmul.mubr.bf16.gmra.mrb[0].mxu0 %v6108
      %v6240 = vpop.f32.mrb[0].mxu0
      %v6241 = vpop.f32.mrb[0].mxu0
      %v6242 = vpop.f32.mrb[0].mxu0
      %v6243 = vadd.f32 0.0, %v6242
      %v6244 = vpop.f32.mrb[0].mxu0
      %6245 = vmatprep.mubr.bf16.mxu0 0
      %6246 = vmatmul.mubr.bf16.gmra.mrb[0].mxu0 %v6109
      %v6247 = vpop.f32.mrb[0].mxu0
      %v6248 = vadd.f32 0.0, %v6247
      %v6249 = vpop.f32.mrb[0].mxu0
      %v6250 = vpop.f32.mrb[0].mxu0
      %v6251 = vpop.f32.mrb[0].mxu0
      %6252 = vmatprep.mubr.bf16.mxu0 0
      %6253 = vmatmul.mubr.bf16.gmra.mrb[0].mxu0 %v6110
      %v6254 = vpop.f32.mrb[0].mxu0
      %v6255 = vadd.f32 0.0, %v6254
      %v6256 = vpop.f32.mrb[0].mxu0
      %v6257 = vpop.f32.mrb[0].mxu0
      %v6258 = vadd.f32 0.0, %v6257
      %v6259 = vpop.f32.mrb[0].mxu0
      %6260 = vmatprep.mubr.bf16.mxu0 0
      %6261 = vmatmul.mubr.bf16.gmra.mrb[0].mxu0 %v6111
      %v6262 = vpop.f32.mrb[0].mxu0
      %v6263 = vpop.f32.mrb[0].mxu0
      %v6264 = vpop.f32.mrb[0].mxu0
      %v6265 = vadd.f32 0.0, %v6264
      %v6266 = vpop.f32.mrb[0].mxu0
      %6267 = vmatprep.mubr.bf16.mxu0 0
      %6268 = vmatmul.mubr.bf16.gmra.mrb[0].mxu0 %v6112
      %v6269 = vpop.f32.mrb[0].mxu0
      %v6270 = vadd.f32 0.0, %v6269
      %v6271 = vpop.f32.mrb[0].mxu0
      %v6272 = vpop.f32.mrb[0].mxu0
      %v6273 = vpop.f32.mrb[0].mxu0
      %6274 = vmatprep.mubr.bf16.mxu0 0
      %6275 = vmatmul.mubr.bf16.gmra.mrb[0].mxu0 %v6113
      %v6276 = vpop.f32.mrb[0].mxu0
      %v6277 = vadd.f32 0.0, %v6276
      %v6278 = vpop.f32.mrb[0].mxu0
      %v6279 = vpop.f32.mrb[0].mxu0
      %v6280 = vadd.f32 0.0, %v6279
      %v6281 = vpop.f32.mrb[0].mxu0
      %6282 = vmatprep.mubr.bf16.mxu0 0
      %6283 = vmatmul.mubr.bf16.gmra.mrb[0].mxu0 %v6114
      %v6284 = vpop.f32.mrb[0].mxu0
      %v6285 = vpop.f32.mrb[0].mxu0
      %v6286 = vpop.f32.mrb[0].mxu0
      %v6287 = vadd.f32 0.0, %v6286
      %v6288 = vpop.f32.mrb[0].mxu0
      %6289 = vmatprep.mubr.bf16.mxu0 0
      %6290 = vmatmul.mubr.bf16.gmra.mrb[0].mxu0 %v6115
      %v6291 = vpop.f32.mrb[0].mxu0
      %v6292 = vadd.f32 0.0, %v6291
      %v6293 = vpop.f32.mrb[0].mxu0
      %v6294 = vpop.f32.mrb[0].mxu0
      %v6295 = vpop.f32.mrb[0].mxu0
      %6296 = vmatprep.mubr.bf16.mxu0 0
      %6297 = vmatmul.mubr.bf16.gmra.mrb[0].mxu0 %v6116
      %v6298 = vpop.f32.mrb[0].mxu0
      %v6299 = vadd.f32 0.0, %v6298
      %v6300 = vpop.f32.mrb[0].mxu0
      %v6301 = vpop.f32.mrb[0].mxu0
      %v6302 = vadd.f32 0.0, %v6301
      %v6303 = vpop.f32.mrb[0].mxu0
      %6304 = vmatprep.mubr.bf16.mxu0 0
      %6305 = vmatmul.mubr.bf16.gmra.mrb[0].mxu0 %v6117
      %v6306 = vpop.f32.mrb[0].mxu0
      %v6307 = vpop.f32.mrb[0].mxu0
      %v6308 = vpop.f32.mrb[0].mxu0
      %v6309 = vadd.f32 0.0, %v6308
      %v6310 = vpop.f32.mrb[0].mxu0
      %6311 = vmatprep.mubr.bf16.mxu0 0
      %6312 = vmatmul.mubr.bf16.gmra.mrb[0].mxu0 %v6118
      %v6313 = vpop.f32.mrb[0].mxu0
      %v6314 = vadd.f32 0.0, %v6313
      %v6315 = vpop.f32.mrb[0].mxu0
      %v6316 = vpop.f32.mrb[0].mxu0
      %v6317 = vpop.f32.mrb[0].mxu0
      %6318 = vmatprep.mubr.bf16.mxu0 0
      %6319 = vmatmul.mubr.bf16.gmra.mrb[0].mxu0 %v6119
      %v6320 = vpop.f32.mrb[0].mxu0
      %v6321 = vadd.f32 0.0, %v6320
      %v6322 = vpop.f32.mrb[0].mxu0
      %v6323 = vpop.f32.mrb[0].mxu0
      %v6324 = vadd.f32 0.0, %v6323
      %v6325 = vpop.f32.mrb[0].mxu0
      %6326 = vmatprep.mubr.bf16.mxu0 0
      %6327 = vmatmul.mubr.bf16.gmra.mrb[0].mxu0 %v6120
      %v6328 = vpop.f32.mrb[0].mxu0
      %v6329 = vpop.f32.mrb[0].mxu0
      %v6330 = vpop.f32.mrb[0].mxu0
      %v6331 = vadd.f32 0.0, %v6330
      %v6332 = vpop.f32.mrb[0].mxu0
      %6333 = vmatprep.mubr.bf16.mxu0 0
      %6334 = vmatmul.mubr.bf16.gmra.mrb[0].mxu0 %v6121
      %v6335 = vpop.f32.mrb[0].mxu0
      %v6336 = vadd.f32 0.0, %v6335
      %v6337 = vpop.f32.mrb[0].mxu0
      %v6338 = vpop.f32.mrb[0].mxu0
      %v6339 = vpop.f32.mrb[0].mxu0
      %6340 = vmatprep.mubr.bf16.mxu0 0
      %6341 = vmatmul.mubr.bf16.gmra.mrb[0].mxu0 %v6122
      %v6342 = vpop.f32.mrb[0].mxu0
      %v6343 = vadd.f32 0.0, %v6342
      %v6344 = vpop.f32.mrb[0].mxu0
      %v6345 = vpop.f32.mrb[0].mxu0
      %v6346 = vadd.f32 0.0, %v6345
      %v6347 = vpop.f32.mrb[0].mxu0
      %6348 = vmatprep.mubr.bf16.mxu0 0
      %6349 = vmatmul.mubr.bf16.gmra.mrb[0].mxu0 %v6123
      %v6350 = vpop.f32.mrb[0].mxu0
      %v6351 = vpop.f32.mrb[0].mxu0
      %v6352 = vpop.f32.mrb[0].mxu0
      %v6353 = vadd.f32 0.0, %v6352
      %v6354 = vpop.f32.mrb[0].mxu0
      %6355 = vmatprep.mubr.bf16.mxu0 0
      %6356 = vmatmul.mubr.bf16.gmra.mrb[0].mxu0 %v6124
      %v6357 = vpop.f32.mrb[0].mxu0
      %v6358 = vadd.f32 0.0, %v6357
      %v6359 = vpop.f32.mrb[0].mxu0
      %v6360 = vpop.f32.mrb[0].mxu0
      %v6361 = vpop.f32.mrb[0].mxu0
      %6362 = vmatprep.mubr.bf16.mxu0 0
      %6363 = vmatmul.mubr.bf16.gmra.mrb[0].mxu0 %v6125
      %v6364 = vpop.f32.mrb[0].mxu0
      %v6365 = vadd.f32 0.0, %v6364
      %v6366 = vpop.f32.mrb[0].mxu0
      %v6367 = vpop.f32.mrb[0].mxu0
      %v6368 = vadd.f32 0.0, %v6367
      %v6369 = vpop.f32.mrb[0].mxu0
      %6370 = vmatprep.mubr.bf16.mxu0 0
      %6371 = vmatmul.mubr.bf16.gmra.mrb[0].mxu0 %v6126
      %v6372 = vpop.f32.mrb[0].mxu0
      %v6373 = vpop.f32.mrb[0].mxu0
      %v6374 = vpop.f32.mrb[0].mxu0
      %v6375 = vadd.f32 0.0, %v6374
      %v6376 = vpop.f32.mrb[0].mxu0
      %6377 = vmatprep.mubr.bf16.mxu0 0
      %6378 = vmatmul.mubr.bf16.gmra.mrb[0].mxu0 %v6127
      %v6379 = vpop.f32.mrb[0].mxu0
      %v6380 = vadd.f32 0.0, %v6379
      %v6381 = vpop.f32.mrb[0].mxu0
      %v6382 = vpop.f32.mrb[0].mxu0
      %v6383 = vpop.f32.mrb[0].mxu0
      %6384 = vdwg.mxu0
      %v6385 = vadd.f32 %v6072, %v6211
      %v6386 = vadd.f32 %v6073, %v6214
      %v6387 = vadd.f32 %v6074, %v6221
      %v6388 = vadd.f32 %v6075, %v6226
      %v6389 = vadd.f32 %v6076, %v6233
      %v6390 = vadd.f32 %v6077, %v6236
      %v6391 = vadd.f32 %v6078, %v6243
      %v6392 = vadd.f32 %v6079, %v6248
      %v6393 = vadd.f32 %v6080, %v6255
      %v6394 = vadd.f32 %v6081, %v6258
      %v6395 = vadd.f32 %v6082, %v6265
      %v6396 = vadd.f32 %v6083, %v6270
      %v6397 = vadd.f32 %v6084, %v6277
      %v6398 = vadd.f32 %v6085, %v6280
      %v6399 = vadd.f32 %v6086, %v6287
      %v6400 = vadd.f32 %v6087, %v6292
      %v6401 = vadd.f32 %v6088, %v6299
      %v6402 = vadd.f32 %v6089, %v6302
      %v6403 = vadd.f32 %v6090, %v6309
      %v6404 = vadd.f32 %v6091, %v6314
      %v6405 = vadd.f32 %v6092, %v6321
      %v6406 = vadd.f32 %v6093, %v6324
      %v6407 = vadd.f32 %v6094, %v6331
      %v6408 = vadd.f32 %v6095, %v6336
      %v6409 = vadd.f32 %v6096, %v6343
      %v6410 = vadd.f32 %v6097, %v6346
      %v6411 = vadd.f32 %v6098, %v6353
      %v6412 = vadd.f32 %v6099, %v6358
      %v6413 = vadd.f32 %v6100, %v6365
      %v6414 = vadd.f32 %v6101, %v6368
      %v6415 = vadd.f32 %v6102, %v6375
      %v6416 = vadd.f32 %v6103, %v6380
      %v6417 = vpack.c.bf16 %v4769, %v4770
      %v6418 = vpack.c.bf16 %v4767, %v4768
      %v6419 = vpack.c.bf16 %v4765, %v4766
      %v6420 = vpack.c.bf16 %v4763, %v4764
      %v6421 = vpack.c.bf16 %v4761, %v4762
      %v6422 = vpack.c.bf16 %v4759, %v4760
      %v6423 = vpack.c.bf16 %v4757, %v4758
      %v6424 = vpack.c.bf16 %v4755, %v4756
      %v6425 = vpack.c.bf16 %v4753, %v4754
      %v6426 = vpack.c.bf16 %v4751, %v4752
      %v6427 = vpack.c.bf16 %v4749, %v4750
      %v6428 = vpack.c.bf16 %v4747, %v4748
      %v6429 = vpack.c.bf16 %v4745, %v4746
      %v6430 = vpack.c.bf16 %v4743, %v4744
      %v6431 = vpack.c.bf16 %v4741, %v4742
      %v6432 = vpack.c.bf16 %v4739, %v4740
      %v6433 = vpack.c.bf16 %v4737, %v4738
      %v6434 = vpack.c.bf16 %v4735, %v4736
      %v6435 = vpack.c.bf16 %v4733, %v4734
      %v6436 = vpack.c.bf16 %v4731, %v4732
      %v6437 = vpack.c.bf16 %v4729, %v4730
      %v6438 = vpack.c.bf16 %v4727, %v4728
      %v6439 = vpack.c.bf16 %v4725, %v4726
      %v6440 = vpack.c.bf16 %v4723, %v4724
      %v6457 = vunpack.c.l.b16 %v4852
      %v6458 = vunpack.c.l.b16 %v4853
      %v6459 = vunpack.c.l.b16 %v4854
      %v6460 = vunpack.c.l.b16 %v4855
      %v6461 = vunpack.c.l.b16 %v4856
      %v6462 = vunpack.c.l.b16 %v4857
      %v6463 = vunpack.c.l.b16 %v4858
      %v6464 = vunpack.c.l.b16 %v4859
      %v6465 = vunpack.c.l.b16 %v4860
      %v6466 = vunpack.c.l.b16 %v4861
      %v6467 = vunpack.c.l.b16 %v4862
      %v6468 = vunpack.c.l.b16 %v4863
      %v6469 = vunpack.c.l.b16 %v4864
      %v6470 = vunpack.c.l.b16 %v4865
      %v6471 = vunpack.c.l.b16 %v4866
      %v6472 = vunpack.c.l.b16 %v4867
      %v6473 = vpack.c.b16 %v6458, %v6457
      %v6474 = vpack.c.b16 %v6460, %v6459
      %v6475 = vpack.c.b16 %v6462, %v6461
      %v6476 = vpack.c.b16 %v6464, %v6463
      %v6477 = vpack.c.b16 %v6466, %v6465
      %v6478 = vpack.c.b16 %v6468, %v6467
      %v6479 = vpack.c.b16 %v6470, %v6469
      %v6480 = vpack.c.b16 %v6472, %v6471
      %6489 = vmatprep.subr.bf16.mxu0 0
      %6490 = vmatpush1.bf16.msra.mxu0 %v6473
      %6491 = vmatprep.subr.bf16.mxu0 0
      %6492 = vmatpush1.bf16.msra.mxu0 %v6474
      %6493 = vmatprep.subr.bf16.mxu0 0
      %6494 = vmatpush1.bf16.msra.mxu0 %v6475
      %6495 = vmatprep.subr.bf16.mxu0 0
      %6496 = vmatpush1.bf16.msra.mxu0 %v6476
      %6497 = vmatprep.subr.bf16.mxu0 0
      %6498 = vmatpush1.bf16.msra.mxu0 %v6477
      %6499 = vmatprep.subr.bf16.mxu0 0
      %6500 = vmatpush1.bf16.msra.mxu0 %v6478
      %6501 = vmatprep.subr.bf16.mxu0 0
      %6502 = vmatpush1.bf16.msra.mxu0 %v6479
      %6503 = vmatprep.subr.bf16.mxu0 0
      %6504 = vmatpush1.bf16.msra.mxu0 %v6480
      %6505 = vmatprep.subr.bf16.mxu0 0
      %6506 = vmatpush1.bf16.msra.mxu0 0
      %6507 = vmatprep.subr.bf16.mxu0 0
      %6508 = vmatpush1.bf16.msra.mxu0 0
      %6509 = vmatprep.subr.bf16.mxu0 0
      %6510 = vmatpush1.bf16.msra.mxu0 0
      %6511 = vmatprep.subr.bf16.mxu0 0
      %6512 = vmatpush1.bf16.msra.mxu0 0
      %6513 = vmatprep.subr.bf16.mxu0 0
      %6514 = vmatpush1.bf16.msra.mxu0 0
      %6515 = vmatprep.subr.bf16.mxu0 0
      %6516 = vmatpush1.bf16.msra.mxu0 0
      %6517 = vmatprep.subr.bf16.mxu0 0
      %6518 = vmatpush1.bf16.msra.mxu0 0
      %6519 = vmatprep.subr.bf16.mxu0 0
      %6520 = vmatpush1.bf16.msra.mxu0 0
      %6521 = vmatprep.mubr.bf16.mxu0 0
      %6522 = vmatmul.mubr.bf16.gmra.mrb[0].mxu0 %v6417
      %v6523 = vpop.f32.mrb[0].mxu0
      %v6524 = vadd.f32 0.0, %v6523
      %v6525 = vpop.f32.mrb[0].mxu0
      %v6526 = vpop.f32.mrb[0].mxu0
      %v6527 = vadd.f32 0.0, %v6526
      %v6528 = vpop.f32.mrb[0].mxu0
      %6529 = vmatprep.mubr.bf16.mxu0 0
      %6530 = vmatmul.mubr.bf16.gmra.mrb[0].mxu0 %v6418
      %v6531 = vpop.f32.mrb[0].mxu0
      %v6532 = vpop.f32.mrb[0].mxu0
      %v6533 = vpop.f32.mrb[0].mxu0
      %v6534 = vadd.f32 0.0, %v6533
      %v6535 = vpop.f32.mrb[0].mxu0
      %6536 = vmatprep.mubr.bf16.mxu0 0
      %6537 = vmatmul.mubr.bf16.gmra.mrb[0].mxu0 %v6419
      %v6538 = vpop.f32.mrb[0].mxu0
      %v6539 = vadd.f32 0.0, %v6538
      %v6540 = vpop.f32.mrb[0].mxu0
      %v6541 = vpop.f32.mrb[0].mxu0
      %v6542 = vpop.f32.mrb[0].mxu0
      %6543 = vmatprep.mubr.bf16.mxu0 0
      %6544 = vmatmul.mubr.bf16.gmra.mrb[0].mxu0 %v6420
      %v6545 = vpop.f32.mrb[0].mxu0
      %v6546 = vadd.f32 0.0, %v6545
      %v6547 = vpop.f32.mrb[0].mxu0
      %v6548 = vpop.f32.mrb[0].mxu0
      %v6549 = vadd.f32 0.0, %v6548
      %v6550 = vpop.f32.mrb[0].mxu0
      %6551 = vmatprep.mubr.bf16.mxu0 0
      %6552 = vmatmul.mubr.bf16.gmra.mrb[0].mxu0 %v6421
      %v6553 = vpop.f32.mrb[0].mxu0
      %v6554 = vpop.f32.mrb[0].mxu0
      %v6555 = vpop.f32.mrb[0].mxu0
      %v6556 = vadd.f32 0.0, %v6555
      %v6557 = vpop.f32.mrb[0].mxu0
      %6558 = vmatprep.mubr.bf16.mxu0 0
      %6559 = vmatmul.mubr.bf16.gmra.mrb[0].mxu0 %v6422
      %v6560 = vpop.f32.mrb[0].mxu0
      %v6561 = vadd.f32 0.0, %v6560
      %v6562 = vpop.f32.mrb[0].mxu0
      %v6563 = vpop.f32.mrb[0].mxu0
      %v6564 = vpop.f32.mrb[0].mxu0
      %6565 = vmatprep.mubr.bf16.mxu0 0
      %6566 = vmatmul.mubr.bf16.gmra.mrb[0].mxu0 %v6423
      %v6567 = vpop.f32.mrb[0].mxu0
      %v6568 = vadd.f32 0.0, %v6567
      %v6569 = vpop.f32.mrb[0].mxu0
      %v6570 = vpop.f32.mrb[0].mxu0
      %v6571 = vadd.f32 0.0, %v6570
      %v6572 = vpop.f32.mrb[0].mxu0
      %6573 = vmatprep.mubr.bf16.mxu0 0
      %6574 = vmatmul.mubr.bf16.gmra.mrb[0].mxu0 %v6424
      %v6575 = vpop.f32.mrb[0].mxu0
      %v6576 = vpop.f32.mrb[0].mxu0
      %v6577 = vpop.f32.mrb[0].mxu0
      %v6578 = vadd.f32 0.0, %v6577
      %v6579 = vpop.f32.mrb[0].mxu0
      %6580 = vmatprep.mubr.bf16.mxu0 0
      %6581 = vmatmul.mubr.bf16.gmra.mrb[0].mxu0 %v6425
      %v6582 = vpop.f32.mrb[0].mxu0
      %v6583 = vadd.f32 0.0, %v6582
      %v6584 = vpop.f32.mrb[0].mxu0
      %v6585 = vpop.f32.mrb[0].mxu0
      %v6586 = vpop.f32.mrb[0].mxu0
      %6587 = vmatprep.mubr.bf16.mxu0 0
      %6588 = vmatmul.mubr.bf16.gmra.mrb[0].mxu0 %v6426
      %v6589 = vpop.f32.mrb[0].mxu0
      %v6590 = vadd.f32 0.0, %v6589
      %v6591 = vpop.f32.mrb[0].mxu0
      %v6592 = vpop.f32.mrb[0].mxu0
      %v6593 = vadd.f32 0.0, %v6592
      %v6594 = vpop.f32.mrb[0].mxu0
      %6595 = vmatprep.mubr.bf16.mxu0 0
      %6596 = vmatmul.mubr.bf16.gmra.mrb[0].mxu0 %v6427
      %v6597 = vpop.f32.mrb[0].mxu0
      %v6598 = vpop.f32.mrb[0].mxu0
      %v6599 = vpop.f32.mrb[0].mxu0
      %v6600 = vadd.f32 0.0, %v6599
      %v6601 = vpop.f32.mrb[0].mxu0
      %6602 = vmatprep.mubr.bf16.mxu0 0
      %6603 = vmatmul.mubr.bf16.gmra.mrb[0].mxu0 %v6428
      %v6604 = vpop.f32.mrb[0].mxu0
      %v6605 = vadd.f32 0.0, %v6604
      %v6606 = vpop.f32.mrb[0].mxu0
      %v6607 = vpop.f32.mrb[0].mxu0
      %v6608 = vpop.f32.mrb[0].mxu0
      %6609 = vmatprep.mubr.bf16.mxu0 0
      %6610 = vmatmul.mubr.bf16.gmra.mrb[0].mxu0 %v6429
      %v6611 = vpop.f32.mrb[0].mxu0
      %v6612 = vadd.f32 0.0, %v6611
      %v6613 = vpop.f32.mrb[0].mxu0
      %v6614 = vpop.f32.mrb[0].mxu0
      %v6615 = vadd.f32 0.0, %v6614
      %v6616 = vpop.f32.mrb[0].mxu0
      %6617 = vmatprep.mubr.bf16.mxu0 0
      %6618 = vmatmul.mubr.bf16.gmra.mrb[0].mxu0 %v6430
      %v6619 = vpop.f32.mrb[0].mxu0
      %v6620 = vpop.f32.mrb[0].mxu0
      %v6621 = vpop.f32.mrb[0].mxu0
      %v6622 = vadd.f32 0.0, %v6621
      %v6623 = vpop.f32.mrb[0].mxu0
      %6624 = vmatprep.mubr.bf16.mxu0 0
      %6625 = vmatmul.mubr.bf16.gmra.mrb[0].mxu0 %v6431
      %v6626 = vpop.f32.mrb[0].mxu0
      %v6627 = vadd.f32 0.0, %v6626
      %v6628 = vpop.f32.mrb[0].mxu0
      %v6629 = vpop.f32.mrb[0].mxu0
      %v6630 = vpop.f32.mrb[0].mxu0
      %6631 = vmatprep.mubr.bf16.mxu0 0
      %6632 = vmatmul.mubr.bf16.gmra.mrb[0].mxu0 %v6432
      %v6633 = vpop.f32.mrb[0].mxu0
      %v6634 = vadd.f32 0.0, %v6633
      %v6635 = vpop.f32.mrb[0].mxu0
      %v6636 = vpop.f32.mrb[0].mxu0
      %v6637 = vadd.f32 0.0, %v6636
      %v6638 = vpop.f32.mrb[0].mxu0
      %6639 = vmatprep.mubr.bf16.mxu0 0
      %6640 = vmatmul.mubr.bf16.gmra.mrb[0].mxu0 %v6433
      %v6641 = vpop.f32.mrb[0].mxu0
      %v6642 = vpop.f32.mrb[0].mxu0
      %v6643 = vpop.f32.mrb[0].mxu0
      %v6644 = vadd.f32 0.0, %v6643
      %v6645 = vpop.f32.mrb[0].mxu0
      %6646 = vmatprep.mubr.bf16.mxu0 0
      %6647 = vmatmul.mubr.bf16.gmra.mrb[0].mxu0 %v6434
      %v6648 = vpop.f32.mrb[0].mxu0
      %v6649 = vadd.f32 0.0, %v6648
      %v6650 = vpop.f32.mrb[0].mxu0
      %v6651 = vpop.f32.mrb[0].mxu0
      %v6652 = vpop.f32.mrb[0].mxu0
      %6653 = vmatprep.mubr.bf16.mxu0 0
      %6654 = vmatmul.mubr.bf16.gmra.mrb[0].mxu0 %v6435
      %v6655 = vpop.f32.mrb[0].mxu0
      %v6656 = vadd.f32 0.0, %v6655
      %v6657 = vpop.f32.mrb[0].mxu0
      %v6658 = vpop.f32.mrb[0].mxu0
      %v6659 = vadd.f32 0.0, %v6658
      %v6660 = vpop.f32.mrb[0].mxu0
      %6661 = vmatprep.mubr.bf16.mxu0 0
      %6662 = vmatmul.mubr.bf16.gmra.mrb[0].mxu0 %v6436
      %v6663 = vpop.f32.mrb[0].mxu0
      %v6664 = vpop.f32.mrb[0].mxu0
      %v6665 = vpop.f32.mrb[0].mxu0
      %v6666 = vadd.f32 0.0, %v6665
      %v6667 = vpop.f32.mrb[0].mxu0
      %6668 = vmatprep.mubr.bf16.mxu0 0
      %6669 = vmatmul.mubr.bf16.gmra.mrb[0].mxu0 %v6437
      %v6670 = vpop.f32.mrb[0].mxu0
      %v6671 = vadd.f32 0.0, %v6670
      %v6672 = vpop.f32.mrb[0].mxu0
      %v6673 = vpop.f32.mrb[0].mxu0
      %v6674 = vpop.f32.mrb[0].mxu0
      %6675 = vmatprep.mubr.bf16.mxu0 0
      %6676 = vmatmul.mubr.bf16.gmra.mrb[0].mxu0 %v6438
      %v6677 = vpop.f32.mrb[0].mxu0
      %v6678 = vadd.f32 0.0, %v6677
      %v6679 = vpop.f32.mrb[0].mxu0
      %v6680 = vpop.f32.mrb[0].mxu0
      %v6681 = vadd.f32 0.0, %v6680
      %v6682 = vpop.f32.mrb[0].mxu0
      %6683 = vmatprep.mubr.bf16.mxu0 0
      %6684 = vmatmul.mubr.bf16.gmra.mrb[0].mxu0 %v6439
      %v6685 = vpop.f32.mrb[0].mxu0
      %v6686 = vpop.f32.mrb[0].mxu0
      %v6687 = vpop.f32.mrb[0].mxu0
      %v6688 = vadd.f32 0.0, %v6687
      %v6689 = vpop.f32.mrb[0].mxu0
      %6690 = vmatprep.mubr.bf16.mxu0 0
      %6691 = vmatmul.mubr.bf16.gmra.mrb[0].mxu0 %v6440
      %v6692 = vpop.f32.mrb[0].mxu0
      %v6693 = vadd.f32 0.0, %v6692
      %v6694 = vpop.f32.mrb[0].mxu0
      %v6695 = vpop.f32.mrb[0].mxu0
      %v6696 = vpop.f32.mrb[0].mxu0
      %6697 = vdwg.mxu0
      %v6698 = vadd.f32 %v6385, %v6524
      %v6699 = vadd.f32 %v6386, %v6527
      %v6700 = vadd.f32 %v6387, %v6534
      %v6701 = vadd.f32 %v6388, %v6539
      %v6702 = vadd.f32 %v6389, %v6546
      %v6703 = vadd.f32 %v6390, %v6549
      %v6704 = vadd.f32 %v6391, %v6556
      %v6705 = vadd.f32 %v6392, %v6561
      %v6706 = vadd.f32 %v6393, %v6568
      %v6707 = vadd.f32 %v6394, %v6571
      %v6708 = vadd.f32 %v6395, %v6578
      %v6709 = vadd.f32 %v6396, %v6583
      %v6710 = vadd.f32 %v6397, %v6590
      %v6711 = vadd.f32 %v6398, %v6593
      %v6712 = vadd.f32 %v6399, %v6600
      %v6713 = vadd.f32 %v6400, %v6605
      %v6714 = vadd.f32 %v6401, %v6612
      %v6715 = vadd.f32 %v6402, %v6615
      %v6716 = vadd.f32 %v6403, %v6622
      %v6717 = vadd.f32 %v6404, %v6627
      %v6718 = vadd.f32 %v6405, %v6634
      %v6719 = vadd.f32 %v6406, %v6637
      %v6720 = vadd.f32 %v6407, %v6644
      %v6721 = vadd.f32 %v6408, %v6649
      %v6722 = vadd.f32 %v6409, %v6656
      %v6723 = vadd.f32 %v6410, %v6659
      %v6724 = vadd.f32 %v6411, %v6666
      %v6725 = vadd.f32 %v6412, %v6671
      %v6726 = vadd.f32 %v6413, %v6678
      %v6727 = vadd.f32 %v6414, %v6681
      %v6728 = vadd.f32 %v6415, %v6688
      %v6729 = vadd.f32 %v6416, %v6693
      %v6730 = vpack.c.bf16 %v4576, %v4575
      %v6731 = vpack.c.bf16 0.0, %v4577
      %v6748 = vunpack.c.l.b16 %v4868
      %v6749 = vunpack.c.l.b16 %v4869
      %v6750 = vunpack.c.l.b16 %v4870
      %v6751 = vunpack.c.l.b16 %v4871
      %v6752 = vunpack.c.l.b16 %v4872
      %v6753 = vunpack.c.l.b16 %v4873
      %v6754 = vunpack.c.l.b16 %v4874
      %v6755 = vunpack.c.l.b16 %v4875
      %v6756 = vunpack.c.l.b16 %v4876
      %v6757 = vunpack.c.l.b16 %v4877
      %v6758 = vunpack.c.l.b16 %v4878
      %v6759 = vunpack.c.l.b16 %v4879
      %v6760 = vunpack.c.l.b16 %v4880
      %v6761 = vunpack.c.l.b16 %v4881
      %v6762 = vunpack.c.l.b16 %v4882
      %v6763 = vunpack.c.l.b16 %v4883
      %v6764 = vpack.c.b16 %v6749, %v6748
      %v6765 = vpack.c.b16 %v6751, %v6750
      %v6766 = vpack.c.b16 %v6753, %v6752
      %v6767 = vpack.c.b16 %v6755, %v6754
      %v6768 = vpack.c.b16 %v6757, %v6756
      %v6769 = vpack.c.b16 %v6759, %v6758
      %v6770 = vpack.c.b16 %v6761, %v6760
      %v6771 = vpack.c.b16 %v6763, %v6762
      %6780 = vmatprep.subr.bf16.mxu0 0
      %6781 = vmatpush1.bf16.msra.mxu0 %v6764
      %6782 = vmatprep.subr.bf16.mxu0 0
      %6783 = vmatpush1.bf16.msra.mxu0 %v6765
      %6784 = vmatprep.subr.bf16.mxu0 0
      %6785 = vmatpush1.bf16.msra.mxu0 %v6766
      %6786 = vmatprep.subr.bf16.mxu0 0
      %6787 = vmatpush1.bf16.msra.mxu0 %v6767
      %6788 = vmatprep.subr.bf16.mxu0 0
      %6789 = vmatpush1.bf16.msra.mxu0 %v6768
      %6790 = vmatprep.subr.bf16.mxu0 0
      %6791 = vmatpush1.bf16.msra.mxu0 %v6769
      %6792 = vmatprep.subr.bf16.mxu0 0
      %6793 = vmatpush1.bf16.msra.mxu0 %v6770
      %6794 = vmatprep.subr.bf16.mxu0 0
      %6795 = vmatpush1.bf16.msra.mxu0 %v6771
      %6796 = vmatprep.subr.bf16.mxu0 0
      %6797 = vmatpush1.bf16.msra.mxu0 0
      %6798 = vmatprep.subr.bf16.mxu0 0
      %6799 = vmatpush1.bf16.msra.mxu0 0
      %6800 = vmatprep.subr.bf16.mxu0 0
      %6801 = vmatpush1.bf16.msra.mxu0 0
      %6802 = vmatprep.subr.bf16.mxu0 0
      %6803 = vmatpush1.bf16.msra.mxu0 0
      %6804 = vmatprep.subr.bf16.mxu0 0
      %6805 = vmatpush1.bf16.msra.mxu0 0
      %6806 = vmatprep.subr.bf16.mxu0 0
      %6807 = vmatpush1.bf16.msra.mxu0 0
      %6808 = vmatprep.subr.bf16.mxu0 0
      %6809 = vmatpush1.bf16.msra.mxu0 0
      %6810 = vmatprep.subr.bf16.mxu0 0
      %6811 = vmatpush1.bf16.msra.mxu0 0
      %6812 = vmatprep.mubr.bf16.mxu0 0
      %6813 = vmatmul.mubr.bf16.gmra.mrb[0].mxu0 %v4919
      %v6814 = vpop.f32.mrb[0].mxu0
      %v6815 = vadd.f32 0.0, %v6814
      %v6816 = vpop.f32.mrb[0].mxu0
      %v6817 = vpop.f32.mrb[0].mxu0
      %v6818 = vadd.f32 0.0, %v6817
      %v6819 = vpop.f32.mrb[0].mxu0
      %6820 = vmatprep.mubr.bf16.mxu0 0
      %6821 = vmatmul.mubr.bf16.gmra.mrb[0].mxu0 %v4920
      %v6822 = vpop.f32.mrb[0].mxu0
      %v6823 = vpop.f32.mrb[0].mxu0
      %v6824 = vpop.f32.mrb[0].mxu0
      %v6825 = vadd.f32 0.0, %v6824
      %v6826 = vpop.f32.mrb[0].mxu0
      %6827 = vmatprep.mubr.bf16.mxu0 0
      %6828 = vmatmul.mubr.bf16.gmra.mrb[0].mxu0 %v4921
      %v6829 = vpop.f32.mrb[0].mxu0
      %v6830 = vadd.f32 0.0, %v6829
      %v6831 = vpop.f32.mrb[0].mxu0
      %v6832 = vpop.f32.mrb[0].mxu0
      %v6833 = vpop.f32.mrb[0].mxu0
      %6834 = vmatprep.mubr.bf16.mxu0 0
      %6835 = vmatmul.mubr.bf16.gmra.mrb[0].mxu0 %v4922
      %v6836 = vpop.f32.mrb[0].mxu0
      %v6837 = vadd.f32 0.0, %v6836
      %v6838 = vpop.f32.mrb[0].mxu0
      %v6839 = vpop.f32.mrb[0].mxu0
      %v6840 = vadd.f32 0.0, %v6839
      %v6841 = vpop.f32.mrb[0].mxu0
      %6842 = vmatprep.mubr.bf16.mxu0 0
      %6843 = vmatmul.mubr.bf16.gmra.mrb[0].mxu0 %v4923
      %v6844 = vpop.f32.mrb[0].mxu0
      %v6845 = vpop.f32.mrb[0].mxu0
      %v6846 = vpop.f32.mrb[0].mxu0
      %v6847 = vadd.f32 0.0, %v6846
      %v6848 = vpop.f32.mrb[0].mxu0
      %6849 = vmatprep.mubr.bf16.mxu0 0
      %6850 = vmatmul.mubr.bf16.gmra.mrb[0].mxu0 %v4924
      %v6851 = vpop.f32.mrb[0].mxu0
      %v6852 = vadd.f32 0.0, %v6851
      %v6853 = vpop.f32.mrb[0].mxu0
      %v6854 = vpop.f32.mrb[0].mxu0
      %v6855 = vpop.f32.mrb[0].mxu0
      %6856 = vmatprep.mubr.bf16.mxu0 0
      %6857 = vmatmul.mubr.bf16.gmra.mrb[0].mxu0 %v4925
      %v6858 = vpop.f32.mrb[0].mxu0
      %v6859 = vadd.f32 0.0, %v6858
      %v6860 = vpop.f32.mrb[0].mxu0
      %v6861 = vpop.f32.mrb[0].mxu0
      %v6862 = vadd.f32 0.0, %v6861
      %v6863 = vpop.f32.mrb[0].mxu0
      %6864 = vmatprep.mubr.bf16.mxu0 0
      %6865 = vmatmul.mubr.bf16.gmra.mrb[0].mxu0 %v4926
      %v6866 = vpop.f32.mrb[0].mxu0
      %v6867 = vpop.f32.mrb[0].mxu0
      %v6868 = vpop.f32.mrb[0].mxu0
      %v6869 = vadd.f32 0.0, %v6868
      %v6870 = vpop.f32.mrb[0].mxu0
      %6871 = vmatprep.mubr.bf16.mxu0 0
      %6872 = vmatmul.mubr.bf16.gmra.mrb[0].mxu0 %v4927
      %v6873 = vpop.f32.mrb[0].mxu0
      %v6874 = vadd.f32 0.0, %v6873
      %v6875 = vpop.f32.mrb[0].mxu0
      %v6876 = vpop.f32.mrb[0].mxu0
      %v6877 = vpop.f32.mrb[0].mxu0
      %6878 = vmatprep.mubr.bf16.mxu0 0
      %6879 = vmatmul.mubr.bf16.gmra.mrb[0].mxu0 %v4928
      %v6880 = vpop.f32.mrb[0].mxu0
      %v6881 = vadd.f32 0.0, %v6880
      %v6882 = vpop.f32.mrb[0].mxu0
      %v6883 = vpop.f32.mrb[0].mxu0
      %v6884 = vadd.f32 0.0, %v6883
      %v6885 = vpop.f32.mrb[0].mxu0
      %6886 = vmatprep.mubr.bf16.mxu0 0
      %6887 = vmatmul.mubr.bf16.gmra.mrb[0].mxu0 %v4929
      %v6888 = vpop.f32.mrb[0].mxu0
      %v6889 = vpop.f32.mrb[0].mxu0
      %v6890 = vpop.f32.mrb[0].mxu0
      %v6891 = vadd.f32 0.0, %v6890
      %v6892 = vpop.f32.mrb[0].mxu0
      %6893 = vmatprep.mubr.bf16.mxu0 0
      %6894 = vmatmul.mubr.bf16.gmra.mrb[0].mxu0 %v4930
      %v6895 = vpop.f32.mrb[0].mxu0
      %v6896 = vadd.f32 0.0, %v6895
      %v6897 = vpop.f32.mrb[0].mxu0
      %v6898 = vpop.f32.mrb[0].mxu0
      %v6899 = vpop.f32.mrb[0].mxu0
      %6900 = vmatprep.mubr.bf16.mxu0 0
      %6901 = vmatmul.mubr.bf16.gmra.mrb[0].mxu0 %v4931
      %v6902 = vpop.f32.mrb[0].mxu0
      %v6903 = vadd.f32 0.0, %v6902
      %v6904 = vpop.f32.mrb[0].mxu0
      %v6905 = vpop.f32.mrb[0].mxu0
      %v6906 = vadd.f32 0.0, %v6905
      %v6907 = vpop.f32.mrb[0].mxu0
      %6908 = vmatprep.mubr.bf16.mxu0 0
      %6909 = vmatmul.mubr.bf16.gmra.mrb[0].mxu0 %v4932
      %v6910 = vpop.f32.mrb[0].mxu0
      %v6911 = vpop.f32.mrb[0].mxu0
      %v6912 = vpop.f32.mrb[0].mxu0
      %v6913 = vadd.f32 0.0, %v6912
      %v6914 = vpop.f32.mrb[0].mxu0
      %6915 = vmatprep.mubr.bf16.mxu0 0
      %6916 = vmatmul.mubr.bf16.gmra.mrb[0].mxu0 %v4933
      %v6917 = vpop.f32.mrb[0].mxu0
      %v6918 = vadd.f32 0.0, %v6917
      %v6919 = vpop.f32.mrb[0].mxu0
      %v6920 = vpop.f32.mrb[0].mxu0
      %v6921 = vpop.f32.mrb[0].mxu0
      %6922 = vmatprep.mubr.bf16.mxu0 0
      %6923 = vmatmul.mubr.bf16.gmra.mrb[0].mxu0 %v4934
      %v6924 = vpop.f32.mrb[0].mxu0
      %v6925 = vadd.f32 0.0, %v6924
      %v6926 = vpop.f32.mrb[0].mxu0
      %v6927 = vpop.f32.mrb[0].mxu0
      %v6928 = vadd.f32 0.0, %v6927
      %v6929 = vpop.f32.mrb[0].mxu0
      %6930 = vmatprep.mubr.bf16.mxu0 0
      %6931 = vmatmul.mubr.bf16.gmra.mrb[0].mxu0 %v4935
      %v6932 = vpop.f32.mrb[0].mxu0
      %v6933 = vpop.f32.mrb[0].mxu0
      %v6934 = vpop.f32.mrb[0].mxu0
      %v6935 = vadd.f32 0.0, %v6934
      %v6936 = vpop.f32.mrb[0].mxu0
      %6937 = vmatprep.mubr.bf16.mxu0 0
      %6938 = vmatmul.mubr.bf16.gmra.mrb[0].mxu0 %v4936
      %v6939 = vpop.f32.mrb[0].mxu0
      %v6940 = vadd.f32 0.0, %v6939
      %v6941 = vpop.f32.mrb[0].mxu0
      %v6942 = vpop.f32.mrb[0].mxu0
      %v6943 = vpop.f32.mrb[0].mxu0
      %6944 = vmatprep.mubr.bf16.mxu0 0
      %6945 = vmatmul.mubr.bf16.gmra.mrb[0].mxu0 %v4937
      %v6946 = vpop.f32.mrb[0].mxu0
      %v6947 = vadd.f32 0.0, %v6946
      %v6948 = vpop.f32.mrb[0].mxu0
      %v6949 = vpop.f32.mrb[0].mxu0
      %v6950 = vadd.f32 0.0, %v6949
      %v6951 = vpop.f32.mrb[0].mxu0
      %6952 = vmatprep.mubr.bf16.mxu0 0
      %6953 = vmatmul.mubr.bf16.gmra.mrb[0].mxu0 %v4938
      %v6954 = vpop.f32.mrb[0].mxu0
      %v6955 = vpop.f32.mrb[0].mxu0
      %v6956 = vpop.f32.mrb[0].mxu0
      %v6957 = vadd.f32 0.0, %v6956
      %v6958 = vpop.f32.mrb[0].mxu0
      %6959 = vmatprep.mubr.bf16.mxu0 0
      %6960 = vmatmul.mubr.bf16.gmra.mrb[0].mxu0 %v4939
      %v6961 = vpop.f32.mrb[0].mxu0
      %v6962 = vadd.f32 0.0, %v6961
      %v6963 = vpop.f32.mrb[0].mxu0
      %v6964 = vpop.f32.mrb[0].mxu0
      %v6965 = vpop.f32.mrb[0].mxu0
      %6966 = vmatprep.mubr.bf16.mxu0 0
      %6967 = vmatmul.mubr.bf16.gmra.mrb[0].mxu0 %v6730
      %v6968 = vpop.f32.mrb[0].mxu0
      %v6969 = vadd.f32 0.0, %v6968
      %v6970 = vpop.f32.mrb[0].mxu0
      %v6971 = vpop.f32.mrb[0].mxu0
      %v6972 = vadd.f32 0.0, %v6971
      %v6973 = vpop.f32.mrb[0].mxu0
      %6974 = vmatprep.mubr.bf16.mxu0 0
      %6975 = vmatmul.mubr.bf16.gmra.mrb[0].mxu0 %v6731
      %v6976 = vpop.f32.mrb[0].mxu0
      %v6977 = vpop.f32.mrb[0].mxu0
      %v6978 = vpop.f32.mrb[0].mxu0
      %v6979 = vadd.f32 0.0, %v6978
      %v6980 = vpop.f32.mrb[0].mxu0
      %6981 = vmatprep.mubr.bf16.mxu0 0
      %6982 = vmatmul.mubr.bf16.gmra.mrb[0].mxu0 %v4916
      %v6983 = vpop.f32.mrb[0].mxu0
      %v6984 = vadd.f32 0.0, %v6983
      %v6985 = vpop.f32.mrb[0].mxu0
      %v6986 = vpop.f32.mrb[0].mxu0
      %v6987 = vpop.f32.mrb[0].mxu0
      %6988 = vdwg.mxu0
      %v6989 = vadd.f32 %v6698, %v6815
      %v6990 = vadd.f32 %v6699, %v6818
      %v6991 = vadd.f32 %v6700, %v6825
      %v6992 = vadd.f32 %v6701, %v6830
      %v6993 = vadd.f32 %v6702, %v6837
      %v6994 = vadd.f32 %v6703, %v6840
      %v6995 = vadd.f32 %v6704, %v6847
      %v6996 = vadd.f32 %v6705, %v6852
      %v6997 = vadd.f32 %v6706, %v6859
      %v6998 = vadd.f32 %v6707, %v6862
      %v6999 = vadd.f32 %v6708, %v6869
      %v7000 = vadd.f32 %v6709, %v6874
      %v7001 = vadd.f32 %v6710, %v6881
      %v7002 = vadd.f32 %v6711, %v6884
      %v7003 = vadd.f32 %v6712, %v6891
      %v7004 = vadd.f32 %v6713, %v6896
      %v7005 = vadd.f32 %v6714, %v6903
      %v7006 = vadd.f32 %v6715, %v6906
      %v7007 = vadd.f32 %v6716, %v6913
      %v7008 = vadd.f32 %v6717, %v6918
      %v7009 = vadd.f32 %v6718, %v6925
      %v7010 = vadd.f32 %v6719, %v6928
      %v7011 = vadd.f32 %v6720, %v6935
      %v7012 = vadd.f32 %v6721, %v6940
      %v7013 = vadd.f32 %v6722, %v6947
      %v7014 = vadd.f32 %v6723, %v6950
      %v7015 = vadd.f32 %v6724, %v6957
      %v7016 = vadd.f32 %v6725, %v6962
      %v7017 = vadd.f32 %v6726, %v6969
      %v7018 = vadd.f32 %v6727, %v6972
      %v7019 = vadd.f32 %v6728, %v6979
      %v7020 = vadd.f32 %v6729, %v6984
      %v7021 = vpack.c.bf16 %v4627, %v4628
      %v7022 = vpack.c.bf16 0.0, %v4626
      %v7039 = vunpack.c.l.b16 %v4884
      %v7040 = vunpack.c.l.b16 %v4885
      %v7041 = vunpack.c.l.b16 %v4886
      %v7042 = vunpack.c.l.b16 %v4887
      %v7043 = vunpack.c.l.b16 %v4888
      %v7044 = vunpack.c.l.b16 %v4889
      %v7045 = vunpack.c.l.b16 %v4890
      %v7046 = vunpack.c.l.b16 %v4891
      %v7047 = vunpack.c.l.b16 %v4892
      %v7048 = vunpack.c.l.b16 %v4893
      %v7049 = vunpack.c.l.b16 %v4894
      %v7050 = vunpack.c.l.b16 %v4895
      %v7051 = vunpack.c.l.b16 %v4896
      %v7052 = vunpack.c.l.b16 %v4897
      %v7053 = vunpack.c.l.b16 %v4898
      %v7054 = vunpack.c.l.b16 %v4899
      %v7055 = vpack.c.b16 %v7040, %v7039
      %v7056 = vpack.c.b16 %v7042, %v7041
      %v7057 = vpack.c.b16 %v7044, %v7043
      %v7058 = vpack.c.b16 %v7046, %v7045
      %v7059 = vpack.c.b16 %v7048, %v7047
      %v7060 = vpack.c.b16 %v7050, %v7049
      %v7061 = vpack.c.b16 %v7052, %v7051
      %v7062 = vpack.c.b16 %v7054, %v7053
      %7071 = vmatprep.subr.bf16.mxu0 0
      %7072 = vmatpush1.bf16.msra.mxu0 %v7055
      %7073 = vmatprep.subr.bf16.mxu0 0
      %7074 = vmatpush1.bf16.msra.mxu0 %v7056
      %7075 = vmatprep.subr.bf16.mxu0 0
      %7076 = vmatpush1.bf16.msra.mxu0 %v7057
      %7077 = vmatprep.subr.bf16.mxu0 0
      %7078 = vmatpush1.bf16.msra.mxu0 %v7058
      %7079 = vmatprep.subr.bf16.mxu0 0
      %7080 = vmatpush1.bf16.msra.mxu0 %v7059
      %7081 = vmatprep.subr.bf16.mxu0 0
      %7082 = vmatpush1.bf16.msra.mxu0 %v7060
      %7083 = vmatprep.subr.bf16.mxu0 0
      %7084 = vmatpush1.bf16.msra.mxu0 %v7061
      %7085 = vmatprep.subr.bf16.mxu0 0
      %7086 = vmatpush1.bf16.msra.mxu0 %v7062
      %7087 = vmatprep.subr.bf16.mxu0 0
      %7088 = vmatpush1.bf16.msra.mxu0 0
      %7089 = vmatprep.subr.bf16.mxu0 0
      %7090 = vmatpush1.bf16.msra.mxu0 0
      %7091 = vmatprep.subr.bf16.mxu0 0
      %7092 = vmatpush1.bf16.msra.mxu0 0
      %7093 = vmatprep.subr.bf16.mxu0 0
      %7094 = vmatpush1.bf16.msra.mxu0 0
      %7095 = vmatprep.subr.bf16.mxu0 0
      %7096 = vmatpush1.bf16.msra.mxu0 0
      %7097 = vmatprep.subr.bf16.mxu0 0
      %7098 = vmatpush1.bf16.msra.mxu0 0
      %7099 = vmatprep.subr.bf16.mxu0 0
      %7100 = vmatpush1.bf16.msra.mxu0 0
      %7101 = vmatprep.subr.bf16.mxu0 0
      %7102 = vmatpush1.bf16.msra.mxu0 0
      %7103 = vmatprep.mubr.bf16.mxu0 0
      %7104 = vmatmul.mubr.bf16.gmra.mrb[0].mxu0 %v4943
      %v7105 = vpop.f32.mrb[0].mxu0
      %v7106 = vadd.f32 0.0, %v7105
      %v7107 = vpop.f32.mrb[0].mxu0
      %v7108 = vpop.f32.mrb[0].mxu0
      %v7109 = vadd.f32 0.0, %v7108
      %v7110 = vpop.f32.mrb[0].mxu0
      %7111 = vmatprep.mubr.bf16.mxu0 0
      %7112 = vmatmul.mubr.bf16.gmra.mrb[0].mxu0 %v4944
      %v7113 = vpop.f32.mrb[0].mxu0
      %v7114 = vpop.f32.mrb[0].mxu0
      %v7115 = vpop.f32.mrb[0].mxu0
      %v7116 = vadd.f32 0.0, %v7115
      %v7117 = vpop.f32.mrb[0].mxu0
      %7118 = vmatprep.mubr.bf16.mxu0 0
      %7119 = vmatmul.mubr.bf16.gmra.mrb[0].mxu0 %v4945
      %v7120 = vpop.f32.mrb[0].mxu0
      %v7121 = vadd.f32 0.0, %v7120
      %v7122 = vpop.f32.mrb[0].mxu0
      %v7123 = vpop.f32.mrb[0].mxu0
      %v7124 = vpop.f32.mrb[0].mxu0
      %7125 = vmatprep.mubr.bf16.mxu0 0
      %7126 = vmatmul.mubr.bf16.gmra.mrb[0].mxu0 %v4946
      %v7127 = vpop.f32.mrb[0].mxu0
      %v7128 = vadd.f32 0.0, %v7127
      %v7129 = vpop.f32.mrb[0].mxu0
      %v7130 = vpop.f32.mrb[0].mxu0
      %v7131 = vadd.f32 0.0, %v7130
      %v7132 = vpop.f32.mrb[0].mxu0
      %7133 = vmatprep.mubr.bf16.mxu0 0
      %7134 = vmatmul.mubr.bf16.gmra.mrb[0].mxu0 %v4947
      %v7135 = vpop.f32.mrb[0].mxu0
      %v7136 = vpop.f32.mrb[0].mxu0
      %v7137 = vpop.f32.mrb[0].mxu0
      %v7138 = vadd.f32 0.0, %v7137
      %v7139 = vpop.f32.mrb[0].mxu0
      %7140 = vmatprep.mubr.bf16.mxu0 0
      %7141 = vmatmul.mubr.bf16.gmra.mrb[0].mxu0 %v4948
      %v7142 = vpop.f32.mrb[0].mxu0
      %v7143 = vadd.f32 0.0, %v7142
      %v7144 = vpop.f32.mrb[0].mxu0
      %v7145 = vpop.f32.mrb[0].mxu0
      %v7146 = vpop.f32.mrb[0].mxu0
      %7147 = vmatprep.mubr.bf16.mxu0 0
      %7148 = vmatmul.mubr.bf16.gmra.mrb[0].mxu0 %v4949
      %v7149 = vpop.f32.mrb[0].mxu0
      %v7150 = vadd.f32 0.0, %v7149
      %v7151 = vpop.f32.mrb[0].mxu0
      %v7152 = vpop.f32.mrb[0].mxu0
      %v7153 = vadd.f32 0.0, %v7152
      %v7154 = vpop.f32.mrb[0].mxu0
      %7155 = vmatprep.mubr.bf16.mxu0 0
      %7156 = vmatmul.mubr.bf16.gmra.mrb[0].mxu0 %v4950
      %v7157 = vpop.f32.mrb[0].mxu0
      %v7158 = vpop.f32.mrb[0].mxu0
      %v7159 = vpop.f32.mrb[0].mxu0
      %v7160 = vadd.f32 0.0, %v7159
      %v7161 = vpop.f32.mrb[0].mxu0
      %7162 = vmatprep.mubr.bf16.mxu0 0
      %7163 = vmatmul.mubr.bf16.gmra.mrb[0].mxu0 %v4951
      %v7164 = vpop.f32.mrb[0].mxu0
      %v7165 = vadd.f32 0.0, %v7164
      %v7166 = vpop.f32.mrb[0].mxu0
      %v7167 = vpop.f32.mrb[0].mxu0
      %v7168 = vpop.f32.mrb[0].mxu0
      %7169 = vmatprep.mubr.bf16.mxu0 0
      %7170 = vmatmul.mubr.bf16.gmra.mrb[0].mxu0 %v4952
      %v7171 = vpop.f32.mrb[0].mxu0
      %v7172 = vadd.f32 0.0, %v7171
      %v7173 = vpop.f32.mrb[0].mxu0
      %v7174 = vpop.f32.mrb[0].mxu0
      %v7175 = vadd.f32 0.0, %v7174
      %v7176 = vpop.f32.mrb[0].mxu0
      %7177 = vmatprep.mubr.bf16.mxu0 0
      %7178 = vmatmul.mubr.bf16.gmra.mrb[0].mxu0 %v4953
      %v7179 = vpop.f32.mrb[0].mxu0
      %v7180 = vpop.f32.mrb[0].mxu0
      %v7181 = vpop.f32.mrb[0].mxu0
      %v7182 = vadd.f32 0.0, %v7181
      %v7183 = vpop.f32.mrb[0].mxu0
      %7184 = vmatprep.mubr.bf16.mxu0 0
      %7185 = vmatmul.mubr.bf16.gmra.mrb[0].mxu0 %v4954
      %v7186 = vpop.f32.mrb[0].mxu0
      %v7187 = vadd.f32 0.0, %v7186
      %v7188 = vpop.f32.mrb[0].mxu0
      %v7189 = vpop.f32.mrb[0].mxu0
      %v7190 = vpop.f32.mrb[0].mxu0
      %7191 = vmatprep.mubr.bf16.mxu0 0
      %7192 = vmatmul.mubr.bf16.gmra.mrb[0].mxu0 %v4955
      %v7193 = vpop.f32.mrb[0].mxu0
      %v7194 = vadd.f32 0.0, %v7193
      %v7195 = vpop.f32.mrb[0].mxu0
      %v7196 = vpop.f32.mrb[0].mxu0
      %v7197 = vadd.f32 0.0, %v7196
      %v7198 = vpop.f32.mrb[0].mxu0
      %7199 = vmatprep.mubr.bf16.mxu0 0
      %7200 = vmatmul.mubr.bf16.gmra.mrb[0].mxu0 %v4956
      %v7201 = vpop.f32.mrb[0].mxu0
      %v7202 = vpop.f32.mrb[0].mxu0
      %v7203 = vpop.f32.mrb[0].mxu0
      %v7204 = vadd.f32 0.0, %v7203
      %v7205 = vpop.f32.mrb[0].mxu0
      %7206 = vmatprep.mubr.bf16.mxu0 0
      %7207 = vmatmul.mubr.bf16.gmra.mrb[0].mxu0 %v4957
      %v7208 = vpop.f32.mrb[0].mxu0
      %v7209 = vadd.f32 0.0, %v7208
      %v7210 = vpop.f32.mrb[0].mxu0
      %v7211 = vpop.f32.mrb[0].mxu0
      %v7212 = vpop.f32.mrb[0].mxu0
      %7213 = vmatprep.mubr.bf16.mxu0 0
      %7214 = vmatmul.mubr.bf16.gmra.mrb[0].mxu0 %v4958
      %v7215 = vpop.f32.mrb[0].mxu0
      %v7216 = vadd.f32 0.0, %v7215
      %v7217 = vpop.f32.mrb[0].mxu0
      %v7218 = vpop.f32.mrb[0].mxu0
      %v7219 = vadd.f32 0.0, %v7218
      %v7220 = vpop.f32.mrb[0].mxu0
      %7221 = vmatprep.mubr.bf16.mxu0 0
      %7222 = vmatmul.mubr.bf16.gmra.mrb[0].mxu0 %v4959
      %v7223 = vpop.f32.mrb[0].mxu0
      %v7224 = vpop.f32.mrb[0].mxu0
      %v7225 = vpop.f32.mrb[0].mxu0
      %v7226 = vadd.f32 0.0, %v7225
      %v7227 = vpop.f32.mrb[0].mxu0
      %7228 = vmatprep.mubr.bf16.mxu0 0
      %7229 = vmatmul.mubr.bf16.gmra.mrb[0].mxu0 %v4960
      %v7230 = vpop.f32.mrb[0].mxu0
      %v7231 = vadd.f32 0.0, %v7230
      %v7232 = vpop.f32.mrb[0].mxu0
      %v7233 = vpop.f32.mrb[0].mxu0
      %v7234 = vpop.f32.mrb[0].mxu0
      %7235 = vmatprep.mubr.bf16.mxu0 0
      %7236 = vmatmul.mubr.bf16.gmra.mrb[0].mxu0 %v4961
      %v7237 = vpop.f32.mrb[0].mxu0
      %v7238 = vadd.f32 0.0, %v7237
      %v7239 = vpop.f32.mrb[0].mxu0
      %v7240 = vpop.f32.mrb[0].mxu0
      %v7241 = vadd.f32 0.0, %v7240
      %v7242 = vpop.f32.mrb[0].mxu0
      %7243 = vmatprep.mubr.bf16.mxu0 0
      %7244 = vmatmul.mubr.bf16.gmra.mrb[0].mxu0 %v4962
      %v7245 = vpop.f32.mrb[0].mxu0
      %v7246 = vpop.f32.mrb[0].mxu0
      %v7247 = vpop.f32.mrb[0].mxu0
      %v7248 = vadd.f32 0.0, %v7247
      %v7249 = vpop.f32.mrb[0].mxu0
      %7250 = vmatprep.mubr.bf16.mxu0 0
      %7251 = vmatmul.mubr.bf16.gmra.mrb[0].mxu0 %v4963
      %v7252 = vpop.f32.mrb[0].mxu0
      %v7253 = vadd.f32 0.0, %v7252
      %v7254 = vpop.f32.mrb[0].mxu0
      %v7255 = vpop.f32.mrb[0].mxu0
      %v7256 = vpop.f32.mrb[0].mxu0
      %7257 = vmatprep.mubr.bf16.mxu0 0
      %7258 = vmatmul.mubr.bf16.gmra.mrb[0].mxu0 %v7021
      %v7259 = vpop.f32.mrb[0].mxu0
      %v7260 = vadd.f32 0.0, %v7259
      %v7261 = vpop.f32.mrb[0].mxu0
      %v7262 = vpop.f32.mrb[0].mxu0
      %v7263 = vadd.f32 0.0, %v7262
      %v7264 = vpop.f32.mrb[0].mxu0
      %7265 = vmatprep.mubr.bf16.mxu0 0
      %7266 = vmatmul.mubr.bf16.gmra.mrb[0].mxu0 %v7022
      %v7267 = vpop.f32.mrb[0].mxu0
      %v7268 = vpop.f32.mrb[0].mxu0
      %v7269 = vpop.f32.mrb[0].mxu0
      %v7270 = vadd.f32 0.0, %v7269
      %v7271 = vpop.f32.mrb[0].mxu0
      %7272 = vmatprep.mubr.bf16.mxu0 0
      %7273 = vmatmul.mubr.bf16.gmra.mrb[0].mxu0 %v4940
      %v7274 = vpop.f32.mrb[0].mxu0
      %v7275 = vadd.f32 0.0, %v7274
      %v7276 = vpop.f32.mrb[0].mxu0
      %v7277 = vpop.f32.mrb[0].mxu0
      %v7278 = vpop.f32.mrb[0].mxu0
      %7279 = vdwg.mxu0
      %v7280 = vadd.f32 %v6989, %v7106
      %v7281 = vadd.f32 %v6990, %v7109
      %v7282 = vadd.f32 %v6991, %v7116
      %v7283 = vadd.f32 %v6992, %v7121
      %v7284 = vadd.f32 %v6993, %v7128
      %v7285 = vadd.f32 %v6994, %v7131
      %v7286 = vadd.f32 %v6995, %v7138
      %v7287 = vadd.f32 %v6996, %v7143
      %v7288 = vadd.f32 %v6997, %v7150
      %v7289 = vadd.f32 %v6998, %v7153
      %v7290 = vadd.f32 %v6999, %v7160
      %v7291 = vadd.f32 %v7000, %v7165
      %v7292 = vadd.f32 %v7001, %v7172
      %v7293 = vadd.f32 %v7002, %v7175
      %v7294 = vadd.f32 %v7003, %v7182
      %v7295 = vadd.f32 %v7004, %v7187
      %v7296 = vadd.f32 %v7005, %v7194
      %v7297 = vadd.f32 %v7006, %v7197
      %v7298 = vadd.f32 %v7007, %v7204
      %v7299 = vadd.f32 %v7008, %v7209
      %v7300 = vadd.f32 %v7009, %v7216
      %v7301 = vadd.f32 %v7010, %v7219
      %v7302 = vadd.f32 %v7011, %v7226
      %v7303 = vadd.f32 %v7012, %v7231
      %v7304 = vadd.f32 %v7013, %v7238
      %v7305 = vadd.f32 %v7014, %v7241
      %v7306 = vadd.f32 %v7015, %v7248
      %v7307 = vadd.f32 %v7016, %v7253
      %v7308 = vadd.f32 %v7017, %v7260
      %v7309 = vadd.f32 %v7018, %v7263
      %v7310 = vadd.f32 %v7019, %v7270
      %v7311 = vadd.f32 %v7020, %v7275
      %v7312 = vpack.c.bf16 %v4724, %v4725
      %v7313 = vpack.c.bf16 0.0, %v4723
      %v7330 = vunpack.c.l.b16 %v4900
      %v7331 = vunpack.c.l.b16 %v4901
      %v7332 = vunpack.c.l.b16 %v4902
      %v7333 = vunpack.c.l.b16 %v4903
      %v7334 = vunpack.c.l.b16 %v4904
      %v7335 = vunpack.c.l.b16 %v4905
      %v7336 = vunpack.c.l.b16 %v4906
      %v7337 = vunpack.c.l.b16 %v4907
      %v7338 = vunpack.c.l.b16 %v4908
      %v7339 = vunpack.c.l.b16 %v4909
      %v7340 = vunpack.c.l.b16 %v4910
      %v7341 = vunpack.c.l.b16 %v4911
      %v7342 = vunpack.c.l.b16 %v4912
      %v7343 = vunpack.c.l.b16 %v4913
      %v7344 = vunpack.c.l.b16 %v4914
      %v7345 = vunpack.c.l.b16 %v4915
      %v7346 = vpack.c.b16 %v7331, %v7330
      %v7347 = vpack.c.b16 %v7333, %v7332
      %v7348 = vpack.c.b16 %v7335, %v7334
      %v7349 = vpack.c.b16 %v7337, %v7336
      %v7350 = vpack.c.b16 %v7339, %v7338
      %v7351 = vpack.c.b16 %v7341, %v7340
      %v7352 = vpack.c.b16 %v7343, %v7342
      %v7353 = vpack.c.b16 %v7345, %v7344
      %7362 = vmatprep.subr.bf16.mxu0 0
      %7363 = vmatpush1.bf16.msra.mxu0 %v7346
      %7364 = vmatprep.subr.bf16.mxu0 0
      %7365 = vmatpush1.bf16.msra.mxu0 %v7347
      %7366 = vmatprep.subr.bf16.mxu0 0
      %7367 = vmatpush1.bf16.msra.mxu0 %v7348
      %7368 = vmatprep.subr.bf16.mxu0 0
      %7369 = vmatpush1.bf16.msra.mxu0 %v7349
      %7370 = vmatprep.subr.bf16.mxu0 0
      %7371 = vmatpush1.bf16.msra.mxu0 %v7350
      %7372 = vmatprep.subr.bf16.mxu0 0
      %7373 = vmatpush1.bf16.msra.mxu0 %v7351
      %7374 = vmatprep.subr.bf16.mxu0 0
      %7375 = vmatpush1.bf16.msra.mxu0 %v7352
      %7376 = vmatprep.subr.bf16.mxu0 0
      %7377 = vmatpush1.bf16.msra.mxu0 %v7353
      %7378 = vmatprep.subr.bf16.mxu0 0
      %7379 = vmatpush1.bf16.msra.mxu0 0
      %7380 = vmatprep.subr.bf16.mxu0 0
      %7381 = vmatpush1.bf16.msra.mxu0 0
      %7382 = vmatprep.subr.bf16.mxu0 0
      %7383 = vmatpush1.bf16.msra.mxu0 0
      %7384 = vmatprep.subr.bf16.mxu0 0
      %7385 = vmatpush1.bf16.msra.mxu0 0
      %7386 = vmatprep.subr.bf16.mxu0 0
      %7387 = vmatpush1.bf16.msra.mxu0 0
      %7388 = vmatprep.subr.bf16.mxu0 0
      %7389 = vmatpush1.bf16.msra.mxu0 0
      %7390 = vmatprep.subr.bf16.mxu0 0
      %7391 = vmatpush1.bf16.msra.mxu0 0
      %7392 = vmatprep.subr.bf16.mxu0 0
      %7393 = vmatpush1.bf16.msra.mxu0 0
      %7394 = vmatprep.mubr.bf16.mxu0 0
      %7395 = vmatmul.mubr.bf16.gmra.mrb[0].mxu0 %v5481
      %v7396 = vpop.f32.mrb[0].mxu0
      %v7397 = vadd.f32 0.0, %v7396
      %v7398 = vpop.f32.mrb[0].mxu0
      %v7399 = vpop.f32.mrb[0].mxu0
      %v7400 = vadd.f32 0.0, %v7399
      %v7401 = vpop.f32.mrb[0].mxu0
      %7402 = vmatprep.mubr.bf16.mxu0 0
      %7403 = vmatmul.mubr.bf16.gmra.mrb[0].mxu0 %v5482
      %v7404 = vpop.f32.mrb[0].mxu0
      %v7405 = vpop.f32.mrb[0].mxu0
      %v7406 = vpop.f32.mrb[0].mxu0
      %v7407 = vadd.f32 0.0, %v7406
      %v7408 = vpop.f32.mrb[0].mxu0
      %7409 = vmatprep.mubr.bf16.mxu0 0
      %7410 = vmatmul.mubr.bf16.gmra.mrb[0].mxu0 %v5483
      %v7411 = vpop.f32.mrb[0].mxu0
      %v7412 = vadd.f32 0.0, %v7411
      %v7413 = vpop.f32.mrb[0].mxu0
      %v7414 = vpop.f32.mrb[0].mxu0
      %v7415 = vpop.f32.mrb[0].mxu0
      %7416 = vmatprep.mubr.bf16.mxu0 0
      %7417 = vmatmul.mubr.bf16.gmra.mrb[0].mxu0 %v5484
      %v7418 = vpop.f32.mrb[0].mxu0
      %v7419 = vadd.f32 0.0, %v7418
      %v7420 = vpop.f32.mrb[0].mxu0
      %v7421 = vpop.f32.mrb[0].mxu0
      %v7422 = vadd.f32 0.0, %v7421
      %v7423 = vpop.f32.mrb[0].mxu0
      %7424 = vmatprep.mubr.bf16.mxu0 0
      %7425 = vmatmul.mubr.bf16.gmra.mrb[0].mxu0 %v5485
      %v7426 = vpop.f32.mrb[0].mxu0
      %v7427 = vpop.f32.mrb[0].mxu0
      %v7428 = vpop.f32.mrb[0].mxu0
      %v7429 = vadd.f32 0.0, %v7428
      %v7430 = vpop.f32.mrb[0].mxu0
      %7431 = vmatprep.mubr.bf16.mxu0 0
      %7432 = vmatmul.mubr.bf16.gmra.mrb[0].mxu0 %v5486
      %v7433 = vpop.f32.mrb[0].mxu0
      %v7434 = vadd.f32 0.0, %v7433
      %v7435 = vpop.f32.mrb[0].mxu0
      %v7436 = vpop.f32.mrb[0].mxu0
      %v7437 = vpop.f32.mrb[0].mxu0
      %7438 = vmatprep.mubr.bf16.mxu0 0
      %7439 = vmatmul.mubr.bf16.gmra.mrb[0].mxu0 %v5487
      %v7440 = vpop.f32.mrb[0].mxu0
      %v7441 = vadd.f32 0.0, %v7440
      %v7442 = vpop.f32.mrb[0].mxu0
      %v7443 = vpop.f32.mrb[0].mxu0
      %v7444 = vadd.f32 0.0, %v7443
      %v7445 = vpop.f32.mrb[0].mxu0
      %7446 = vmatprep.mubr.bf16.mxu0 0
      %7447 = vmatmul.mubr.bf16.gmra.mrb[0].mxu0 %v5488
      %v7448 = vpop.f32.mrb[0].mxu0
      %v7449 = vpop.f32.mrb[0].mxu0
      %v7450 = vpop.f32.mrb[0].mxu0
      %v7451 = vadd.f32 0.0, %v7450
      %v7452 = vpop.f32.mrb[0].mxu0
      %7453 = vmatprep.mubr.bf16.mxu0 0
      %7454 = vmatmul.mubr.bf16.gmra.mrb[0].mxu0 %v5489
      %v7455 = vpop.f32.mrb[0].mxu0
      %v7456 = vadd.f32 0.0, %v7455
      %v7457 = vpop.f32.mrb[0].mxu0
      %v7458 = vpop.f32.mrb[0].mxu0
      %v7459 = vpop.f32.mrb[0].mxu0
      %7460 = vmatprep.mubr.bf16.mxu0 0
      %7461 = vmatmul.mubr.bf16.gmra.mrb[0].mxu0 %v5490
      %v7462 = vpop.f32.mrb[0].mxu0
      %v7463 = vadd.f32 0.0, %v7462
      %v7464 = vpop.f32.mrb[0].mxu0
      %v7465 = vpop.f32.mrb[0].mxu0
      %v7466 = vadd.f32 0.0, %v7465
      %v7467 = vpop.f32.mrb[0].mxu0
      %7468 = vmatprep.mubr.bf16.mxu0 0
      %7469 = vmatmul.mubr.bf16.gmra.mrb[0].mxu0 %v5491
      %v7470 = vpop.f32.mrb[0].mxu0
      %v7471 = vpop.f32.mrb[0].mxu0
      %v7472 = vpop.f32.mrb[0].mxu0
      %v7473 = vadd.f32 0.0, %v7472
      %v7474 = vpop.f32.mrb[0].mxu0
      %7475 = vmatprep.mubr.bf16.mxu0 0
      %7476 = vmatmul.mubr.bf16.gmra.mrb[0].mxu0 %v5492
      %v7477 = vpop.f32.mrb[0].mxu0
      %v7478 = vadd.f32 0.0, %v7477
      %v7479 = vpop.f32.mrb[0].mxu0
      %v7480 = vpop.f32.mrb[0].mxu0
      %v7481 = vpop.f32.mrb[0].mxu0
      %7482 = vmatprep.mubr.bf16.mxu0 0
      %7483 = vmatmul.mubr.bf16.gmra.mrb[0].mxu0 %v5493
      %v7484 = vpop.f32.mrb[0].mxu0
      %v7485 = vadd.f32 0.0, %v7484
      %v7486 = vpop.f32.mrb[0].mxu0
      %v7487 = vpop.f32.mrb[0].mxu0
      %v7488 = vadd.f32 0.0, %v7487
      %v7489 = vpop.f32.mrb[0].mxu0
      %7490 = vmatprep.mubr.bf16.mxu0 0
      %7491 = vmatmul.mubr.bf16.gmra.mrb[0].mxu0 %v5494
      %v7492 = vpop.f32.mrb[0].mxu0
      %v7493 = vpop.f32.mrb[0].mxu0
      %v7494 = vpop.f32.mrb[0].mxu0
      %v7495 = vadd.f32 0.0, %v7494
      %v7496 = vpop.f32.mrb[0].mxu0
      %7497 = vmatprep.mubr.bf16.mxu0 0
      %7498 = vmatmul.mubr.bf16.gmra.mrb[0].mxu0 %v5495
      %v7499 = vpop.f32.mrb[0].mxu0
      %v7500 = vadd.f32 0.0, %v7499
      %v7501 = vpop.f32.mrb[0].mxu0
      %v7502 = vpop.f32.mrb[0].mxu0
      %v7503 = vpop.f32.mrb[0].mxu0
      %7504 = vmatprep.mubr.bf16.mxu0 0
      %7505 = vmatmul.mubr.bf16.gmra.mrb[0].mxu0 %v5496
      %v7506 = vpop.f32.mrb[0].mxu0
      %v7507 = vadd.f32 0.0, %v7506
      %v7508 = vpop.f32.mrb[0].mxu0
      %v7509 = vpop.f32.mrb[0].mxu0
      %v7510 = vadd.f32 0.0, %v7509
      %v7511 = vpop.f32.mrb[0].mxu0
      %7512 = vmatprep.mubr.bf16.mxu0 0
      %7513 = vmatmul.mubr.bf16.gmra.mrb[0].mxu0 %v5497
      %v7514 = vpop.f32.mrb[0].mxu0
      %v7515 = vpop.f32.mrb[0].mxu0
      %v7516 = vpop.f32.mrb[0].mxu0
      %v7517 = vadd.f32 0.0, %v7516
      %v7518 = vpop.f32.mrb[0].mxu0
      %7519 = vmatprep.mubr.bf16.mxu0 0
      %7520 = vmatmul.mubr.bf16.gmra.mrb[0].mxu0 %v5498
      %v7521 = vpop.f32.mrb[0].mxu0
      %v7522 = vadd.f32 0.0, %v7521
      %v7523 = vpop.f32.mrb[0].mxu0
      %v7524 = vpop.f32.mrb[0].mxu0
      %v7525 = vpop.f32.mrb[0].mxu0
      %7526 = vmatprep.mubr.bf16.mxu0 0
      %7527 = vmatmul.mubr.bf16.gmra.mrb[0].mxu0 %v5499
      %v7528 = vpop.f32.mrb[0].mxu0
      %v7529 = vadd.f32 0.0, %v7528
      %v7530 = vpop.f32.mrb[0].mxu0
      %v7531 = vpop.f32.mrb[0].mxu0
      %v7532 = vadd.f32 0.0, %v7531
      %v7533 = vpop.f32.mrb[0].mxu0
      %7534 = vmatprep.mubr.bf16.mxu0 0
      %7535 = vmatmul.mubr.bf16.gmra.mrb[0].mxu0 %v5500
      %v7536 = vpop.f32.mrb[0].mxu0
      %v7537 = vpop.f32.mrb[0].mxu0
      %v7538 = vpop.f32.mrb[0].mxu0
      %v7539 = vadd.f32 0.0, %v7538
      %v7540 = vpop.f32.mrb[0].mxu0
      %7541 = vmatprep.mubr.bf16.mxu0 0
      %7542 = vmatmul.mubr.bf16.gmra.mrb[0].mxu0 %v5501
      %v7543 = vpop.f32.mrb[0].mxu0
      %v7544 = vadd.f32 0.0, %v7543
      %v7545 = vpop.f32.mrb[0].mxu0
      %v7546 = vpop.f32.mrb[0].mxu0
      %v7547 = vpop.f32.mrb[0].mxu0
      %7548 = vmatprep.mubr.bf16.mxu0 0
      %7549 = vmatmul.mubr.bf16.gmra.mrb[0].mxu0 %v7312
      %v7550 = vpop.f32.mrb[0].mxu0
      %v7551 = vadd.f32 0.0, %v7550
      %v7552 = vpop.f32.mrb[0].mxu0
      %v7553 = vpop.f32.mrb[0].mxu0
      %v7554 = vadd.f32 0.0, %v7553
      %v7555 = vpop.f32.mrb[0].mxu0
      %7556 = vmatprep.mubr.bf16.mxu0 0
      %7557 = vmatmul.mubr.bf16.gmra.mrb[0].mxu0 %v7313
      %v7558 = vpop.f32.mrb[0].mxu0
      %v7559 = vpop.f32.mrb[0].mxu0
      %v7560 = vpop.f32.mrb[0].mxu0
      %v7561 = vadd.f32 0.0, %v7560
      %v7562 = vpop.f32.mrb[0].mxu0
      %7563 = vmatprep.mubr.bf16.mxu0 0
      %7564 = vmatmul.mubr.bf16.gmra.mrb[0].mxu0 %v5478
      %v7565 = vpop.f32.mrb[0].mxu0
      %v7566 = vadd.f32 0.0, %v7565
      %v7567 = vpop.f32.mrb[0].mxu0
      %v7568 = vpop.f32.mrb[0].mxu0
      %v7569 = vpop.f32.mrb[0].mxu0
      %7570 = vdwg.mxu0
      %v7571 = vadd.f32 %v7280, %v7397
      %v7572 = vadd.f32 %v7281, %v7400
      %v7573 = vadd.f32 %v7282, %v7407
      %v7574 = vadd.f32 %v7283, %v7412
      %v7575 = vadd.f32 %v7284, %v7419
      %v7576 = vadd.f32 %v7285, %v7422
      %v7577 = vadd.f32 %v7286, %v7429
      %v7578 = vadd.f32 %v7287, %v7434
      %v7579 = vadd.f32 %v7288, %v7441
      %v7580 = vadd.f32 %v7289, %v7444
      %v7581 = vadd.f32 %v7290, %v7451
      %v7582 = vadd.f32 %v7291, %v7456
      %v7583 = vadd.f32 %v7292, %v7463
      %v7584 = vadd.f32 %v7293, %v7466
      %v7585 = vadd.f32 %v7294, %v7473
      %v7586 = vadd.f32 %v7295, %v7478
      %v7587 = vadd.f32 %v7296, %v7485
      %v7588 = vadd.f32 %v7297, %v7488
      %v7589 = vadd.f32 %v7298, %v7495
      %v7590 = vadd.f32 %v7299, %v7500
      %v7591 = vadd.f32 %v7300, %v7507
      %v7592 = vadd.f32 %v7301, %v7510
      %v7593 = vadd.f32 %v7302, %v7517
      %v7594 = vadd.f32 %v7303, %v7522
      %v7595 = vadd.f32 %v7304, %v7529
      %v7596 = vadd.f32 %v7305, %v7532
      %v7597 = vadd.f32 %v7306, %v7539
      %v7598 = vadd.f32 %v7307, %v7544
      %v7599 = vadd.f32 %v7308, %v7551
      %v7600 = vadd.f32 %v7309, %v7554
      %v7601 = vadd.f32 %v7310, %v7561
      %v7602 = vadd.f32 %v7311, %v7566
      %v7603 = vld [vmem:[%s6] sm:$0x1]
      %v7605 = vlaneseq
      %v7606 = vshrl.u32 %v7605, 7
      %v7607 = vsub.s32 0, %v7606
      %v7608 = vrot.slane %v7603, %v7607
      %v7610 = vadd.f32 %v7571, %v7608
      %v7611 = vadd.f32 %v7572, %v7608
      %v7612 = vadd.f32 %v7573, %v7608
      %v7613 = vadd.f32 %v7574, %v7608
      %v7614 = vadd.f32 %v7575, %v7608
      %v7615 = vadd.f32 %v7576, %v7608
      %v7616 = vadd.f32 %v7577, %v7608
      %v7617 = vadd.f32 %v7578, %v7608
      %v7618 = vadd.f32 %v7579, %v7608
      %v7619 = vadd.f32 %v7580, %v7608
      %v7620 = vadd.f32 %v7581, %v7608
      %v7621 = vadd.f32 %v7582, %v7608
      %v7622 = vadd.f32 %v7583, %v7608
      %v7623 = vadd.f32 %v7584, %v7608
      %v7624 = vadd.f32 %v7585, %v7608
      %v7625 = vadd.f32 %v7586, %v7608
      %v7626 = vadd.f32 %v7587, %v7608
      %v7627 = vadd.f32 %v7588, %v7608
      %v7628 = vadd.f32 %v7589, %v7608
      %v7629 = vadd.f32 %v7590, %v7608
      %v7630 = vadd.f32 %v7591, %v7608
      %v7631 = vadd.f32 %v7592, %v7608
      %v7632 = vadd.f32 %v7593, %v7608
      %v7633 = vadd.f32 %v7594, %v7608
      %v7634 = vadd.f32 %v7595, %v7608
      %v7635 = vadd.f32 %v7596, %v7608
      %v7636 = vadd.f32 %v7597, %v7608
      %v7637 = vadd.f32 %v7598, %v7608
      %v7638 = vadd.f32 %v7599, %v7608
      %v7639 = vadd.f32 %v7600, %v7608
      %v7640 = vadd.f32 %v7601, %v7608
      %v7641 = vadd.f32 %v7602, %v7608
      %v7642 = vxor.u32 %v7610, 2147483648
      %v7643 = vxor.u32 %v7611, 2147483648
      %v7644 = vxor.u32 %v7612, 2147483648
      %v7645 = vxor.u32 %v7613, 2147483648
      %v7646 = vxor.u32 %v7614, 2147483648
      %v7647 = vxor.u32 %v7615, 2147483648
      %v7648 = vxor.u32 %v7616, 2147483648
      %v7649 = vxor.u32 %v7617, 2147483648
      %v7650 = vxor.u32 %v7618, 2147483648
      %v7651 = vxor.u32 %v7619, 2147483648
      %v7652 = vxor.u32 %v7620, 2147483648
      %v7653 = vxor.u32 %v7621, 2147483648
      %v7654 = vxor.u32 %v7622, 2147483648
      %v7655 = vxor.u32 %v7623, 2147483648
      %v7656 = vxor.u32 %v7624, 2147483648
      %v7657 = vxor.u32 %v7625, 2147483648
      %v7658 = vxor.u32 %v7626, 2147483648
      %v7659 = vxor.u32 %v7627, 2147483648
      %v7660 = vxor.u32 %v7628, 2147483648
      %v7661 = vxor.u32 %v7629, 2147483648
      %v7662 = vxor.u32 %v7630, 2147483648
      %v7663 = vxor.u32 %v7631, 2147483648
      %v7664 = vxor.u32 %v7632, 2147483648
      %v7665 = vxor.u32 %v7633, 2147483648
      %v7666 = vxor.u32 %v7634, 2147483648
      %v7667 = vxor.u32 %v7635, 2147483648
      %v7668 = vxor.u32 %v7636, 2147483648
      %v7669 = vxor.u32 %v7637, 2147483648
      %v7670 = vxor.u32 %v7638, 2147483648
      %v7671 = vxor.u32 %v7639, 2147483648
      %v7672 = vxor.u32 %v7640, 2147483648
      %v7673 = vxor.u32 %v7641, 2147483648
      %v7674 = vmul.f32 %v7642, 1.442695
      %v7675 = vpow.pop %v7674
      %v7676 = vmul.f32 %v7643, 1.442695
      %v7677 = vpow.pop %v7676
      %v7678 = vmul.f32 %v7644, 1.442695
      %v7679 = vpow.pop %v7678
      %v7680 = vmul.f32 %v7645, 1.442695
      %v7681 = vpow.pop %v7680
      %v7682 = vmul.f32 %v7646, 1.442695
      %v7683 = vpow.pop %v7682
      %v7684 = vmul.f32 %v7647, 1.442695
      %v7685 = vpow.pop %v7684
      %v7686 = vmul.f32 %v7648, 1.442695
      %v7687 = vpow.pop %v7686
      %v7688 = vmul.f32 %v7649, 1.442695
      %v7689 = vpow.pop %v7688
      %v7690 = vmul.f32 %v7650, 1.442695
      %v7691 = vpow.pop %v7690
      %v7692 = vmul.f32 %v7651, 1.442695
      %v7693 = vpow.pop %v7692
      %v7694 = vmul.f32 %v7652, 1.442695
      %v7695 = vpow.pop %v7694
      %v7696 = vmul.f32 %v7653, 1.442695
      %v7697 = vpow.pop %v7696
      %v7698 = vmul.f32 %v7654, 1.442695
      %v7699 = vpow.pop %v7698
      %v7700 = vmul.f32 %v7655, 1.442695
      %v7701 = vpow.pop %v7700
      %v7702 = vmul.f32 %v7656, 1.442695
      %v7703 = vpow.pop %v7702
      %v7704 = vmul.f32 %v7657, 1.442695
      %v7705 = vpow.pop %v7704
      %v7706 = vmul.f32 %v7658, 1.442695
      %v7707 = vpow.pop %v7706
      %v7708 = vmul.f32 %v7659, 1.442695
      %v7709 = vpow.pop %v7708
      %v7710 = vmul.f32 %v7660, 1.442695
      %v7711 = vpow.pop %v7710
      %v7712 = vmul.f32 %v7661, 1.442695
      %v7713 = vpow.pop %v7712
      %v7714 = vmul.f32 %v7662, 1.442695
      %v7715 = vpow.pop %v7714
      %v7716 = vmul.f32 %v7663, 1.442695
      %v7717 = vpow.pop %v7716
      %v7718 = vmul.f32 %v7664, 1.442695
      %v7719 = vpow.pop %v7718
      %v7720 = vmul.f32 %v7665, 1.442695
      %v7721 = vpow.pop %v7720
      %v7722 = vmul.f32 %v7666, 1.442695
      %v7723 = vpow.pop %v7722
      %v7724 = vmul.f32 %v7667, 1.442695
      %v7725 = vpow.pop %v7724
      %v7726 = vmul.f32 %v7668, 1.442695
      %v7727 = vpow.pop %v7726
      %v7728 = vmul.f32 %v7669, 1.442695
      %v7729 = vpow.pop %v7728
      %v7730 = vmul.f32 %v7670, 1.442695
      %v7731 = vpow.pop %v7730
      %v7732 = vmul.f32 %v7671, 1.442695
      %v7733 = vpow.pop %v7732
      %v7734 = vmul.f32 %v7672, 1.442695
      %v7735 = vpow.pop %v7734
      %v7736 = vmul.f32 %v7673, 1.442695
      %v7737 = vpow.pop %v7736
      %v7738 = vadd.f32 %v7675, 1.0
      %v7739 = vadd.f32 %v7677, 1.0
      %v7740 = vadd.f32 %v7679, 1.0
      %v7741 = vadd.f32 %v7681, 1.0
      %v7742 = vadd.f32 %v7683, 1.0
      %v7743 = vadd.f32 %v7685, 1.0
      %v7744 = vadd.f32 %v7687, 1.0
      %v7745 = vadd.f32 %v7689, 1.0
      %v7746 = vadd.f32 %v7691, 1.0
      %v7747 = vadd.f32 %v7693, 1.0
      %v7748 = vadd.f32 %v7695, 1.0
      %v7749 = vadd.f32 %v7697, 1.0
      %v7750 = vadd.f32 %v7699, 1.0
      %v7751 = vadd.f32 %v7701, 1.0
      %v7752 = vadd.f32 %v7703, 1.0
      %v7753 = vadd.f32 %v7705, 1.0
      %v7754 = vadd.f32 %v7707, 1.0
      %v7755 = vadd.f32 %v7709, 1.0
      %v7756 = vadd.f32 %v7711, 1.0
      %v7757 = vadd.f32 %v7713, 1.0
      %v7758 = vadd.f32 %v7715, 1.0
      %v7759 = vadd.f32 %v7717, 1.0
      %v7760 = vadd.f32 %v7719, 1.0
      %v7761 = vadd.f32 %v7721, 1.0
      %v7762 = vadd.f32 %v7723, 1.0
      %v7763 = vadd.f32 %v7725, 1.0
      %v7764 = vadd.f32 %v7727, 1.0
      %v7765 = vadd.f32 %v7729, 1.0
      %v7766 = vadd.f32 %v7731, 1.0
      %v7767 = vadd.f32 %v7733, 1.0
      %v7768 = vadd.f32 %v7735, 1.0
      %v7769 = vadd.f32 %v7737, 1.0
      %v7770 = vrcp.pop %v7738
      %v7771 = vmul.f32 1.0, %v7770
      %v7772 = vrcp.pop %v7739
      %v7773 = vmul.f32 1.0, %v7772
      %v7774 = vrcp.pop %v7740
      %v7775 = vmul.f32 1.0, %v7774
      %v7776 = vrcp.pop %v7741
      %v7777 = vmul.f32 1.0, %v7776
      %v7778 = vrcp.pop %v7742
      %v7779 = vmul.f32 1.0, %v7778
      %v7780 = vrcp.pop %v7743
      %v7781 = vmul.f32 1.0, %v7780
      %v7782 = vrcp.pop %v7744
      %v7783 = vmul.f32 1.0, %v7782
      %v7784 = vrcp.pop %v7745
      %v7785 = vmul.f32 1.0, %v7784
      %v7786 = vrcp.pop %v7746
      %v7787 = vmul.f32 1.0, %v7786
      %v7788 = vrcp.pop %v7747
      %v7789 = vmul.f32 1.0, %v7788
      %v7790 = vrcp.pop %v7748
      %v7791 = vmul.f32 1.0, %v7790
      %v7792 = vrcp.pop %v7749
      %v7793 = vmul.f32 1.0, %v7792
      %v7794 = vrcp.pop %v7750
      %v7795 = vmul.f32 1.0, %v7794
      %v7796 = vrcp.pop %v7751
      %v7797 = vmul.f32 1.0, %v7796
      %v7798 = vrcp.pop %v7752
      %v7799 = vmul.f32 1.0, %v7798
      %v7800 = vrcp.pop %v7753
      %v7801 = vmul.f32 1.0, %v7800
      %v7802 = vrcp.pop %v7754
      %v7803 = vmul.f32 1.0, %v7802
      %v7804 = vrcp.pop %v7755
      %v7805 = vmul.f32 1.0, %v7804
      %v7806 = vrcp.pop %v7756
      %v7807 = vmul.f32 1.0, %v7806
      %v7808 = vrcp.pop %v7757
      %v7809 = vmul.f32 1.0, %v7808
      %v7810 = vrcp.pop %v7758
      %v7811 = vmul.f32 1.0, %v7810
      %v7812 = vrcp.pop %v7759
      %v7813 = vmul.f32 1.0, %v7812
      %v7814 = vrcp.pop %v7760
      %v7815 = vmul.f32 1.0, %v7814
      %v7816 = vrcp.pop %v7761
      %v7817 = vmul.f32 1.0, %v7816
      %v7818 = vrcp.pop %v7762
      %v7819 = vmul.f32 1.0, %v7818
      %v7820 = vrcp.pop %v7763
      %v7821 = vmul.f32 1.0, %v7820
      %v7822 = vrcp.pop %v7764
      %v7823 = vmul.f32 1.0, %v7822
      %v7824 = vrcp.pop %v7765
      %v7825 = vmul.f32 1.0, %v7824
      %v7826 = vrcp.pop %v7766
      %v7827 = vmul.f32 1.0, %v7826
      %v7828 = vrcp.pop %v7767
      %v7829 = vmul.f32 1.0, %v7828
      %v7830 = vrcp.pop %v7768
      %v7831 = vmul.f32 1.0, %v7830
      %v7832 = vrcp.pop %v7769
      %v7833 = vmul.f32 1.0, %v7832
      %v7834 = vmul.f32 %v7610, %v7771
      %v7835 = vmul.f32 %v7611, %v7773
      %v7836 = vmul.f32 %v7612, %v7775
      %v7837 = vmul.f32 %v7613, %v7777
      %v7838 = vmul.f32 %v7614, %v7779
      %v7839 = vmul.f32 %v7615, %v7781
      %v7840 = vmul.f32 %v7616, %v7783
      %v7841 = vmul.f32 %v7617, %v7785
      %v7842 = vmul.f32 %v7618, %v7787
      %v7843 = vmul.f32 %v7619, %v7789
      %v7844 = vmul.f32 %v7620, %v7791
      %v7845 = vmul.f32 %v7621, %v7793
      %v7846 = vmul.f32 %v7622, %v7795
      %v7847 = vmul.f32 %v7623, %v7797
      %v7848 = vmul.f32 %v7624, %v7799
      %v7849 = vmul.f32 %v7625, %v7801
      %v7850 = vmul.f32 %v7626, %v7803
      %v7851 = vmul.f32 %v7627, %v7805
      %v7852 = vmul.f32 %v7628, %v7807
      %v7853 = vmul.f32 %v7629, %v7809
      %v7854 = vmul.f32 %v7630, %v7811
      %v7855 = vmul.f32 %v7631, %v7813
      %v7856 = vmul.f32 %v7632, %v7815
      %v7857 = vmul.f32 %v7633, %v7817
      %v7858 = vmul.f32 %v7634, %v7819
      %v7859 = vmul.f32 %v7635, %v7821
      %v7860 = vmul.f32 %v7636, %v7823
      %v7861 = vmul.f32 %v7637, %v7825
      %v7862 = vmul.f32 %v7638, %v7827
      %v7863 = vmul.f32 %v7639, %v7829
      %v7864 = vmul.f32 %v7640, %v7831
      %v7865 = vmul.f32 %v7641, %v7833
      %v7866 = vld [vmem:[%s412] sm:$0xff]
      %v7867 = vld [vmem:[%s412 + $0x8] sm:$0xff]
      %v7868 = vld [vmem:[%s412 + $0x10] sm:$0xff]
      %v7869 = vld [vmem:[%s412 + $0x18] sm:$0xff]
      %v7870 = vld [vmem:[%s412 + $0x20] sm:$0xff]
      %v7871 = vld [vmem:[%s412 + $0x28] sm:$0xff]
      %v7872 = vld [vmem:[%s412 + $0x30] sm:$0xff]
      %v7873 = vld [vmem:[%s412 + $0x38] sm:$0xff]
      %v7874 = vld [vmem:[%s412 + $0x40] sm:$0xff]
      %v7875 = vld [vmem:[%s412 + $0x48] sm:$0xff]
      %v7876 = vld [vmem:[%s412 + $0x50] sm:$0xff]
      %v7877 = vld [vmem:[%s412 + $0x58] sm:$0xff]
      %v7878 = vld [vmem:[%s412 + $0x60] sm:$0xff]
      %v7879 = vld [vmem:[%s412 + $0x68] sm:$0xff]
      %v7880 = vld [vmem:[%s412 + $0x70] sm:$0xff]
      %v7881 = vld [vmem:[%s412 + $0x78] sm:$0xff]
      %v7882 = vld [vmem:[%s412 + $0x80] sm:$0xff]
      %v7883 = vld [vmem:[%s412 + $0x88] sm:$0xff]
      %v7884 = vld [vmem:[%s412 + $0x90] sm:$0xff]
      %v7885 = vld [vmem:[%s412 + $0x98] sm:$0xff]
      %v7886 = vld [vmem:[%s412 + $0xa0] sm:$0xff]
      %v7887 = vld [vmem:[%s412 + $0xa8] sm:$0xff]
      %v7888 = vld [vmem:[%s412 + $0xb0] sm:$0xff]
      %v7889 = vld [vmem:[%s412 + $0xb8] sm:$0xff]
      %v7890 = vld [vmem:[%s412 + $0xc0] sm:$0xff]
      %v7891 = vld [vmem:[%s412 + $0xc8] sm:$0xff]
      %v7892 = vld [vmem:[%s412 + $0xd0] sm:$0xff]
      %v7893 = vld [vmem:[%s412 + $0xd8] sm:$0xff]
      %v7894 = vld [vmem:[%s412 + $0xe0] sm:$0xff]
      %v7895 = vld [vmem:[%s412 + $0xe8] sm:$0xff]
      %v7896 = vld [vmem:[%s412 + $0xf0] sm:$0xff]
      %v7897 = vld [vmem:[%s412 + $0xf8] sm:$0xff]
      %v7898 = vpack.c.bf16 %v7867, %v7866
      %v7899 = vpack.c.bf16 %v7869, %v7868
      %v7900 = vpack.c.bf16 %v7871, %v7870
      %v7901 = vpack.c.bf16 %v7873, %v7872
      %v7902 = vpack.c.bf16 %v7875, %v7874
      %v7903 = vpack.c.bf16 %v7877, %v7876
      %v7904 = vpack.c.bf16 %v7879, %v7878
      %v7905 = vpack.c.bf16 %v7881, %v7880
      %v7906 = vpack.c.bf16 %v7883, %v7882
      %v7907 = vpack.c.bf16 %v7885, %v7884
      %v7908 = vpack.c.bf16 %v7887, %v7886
      %v7909 = vpack.c.bf16 %v7889, %v7888
      %v7910 = vpack.c.bf16 %v7891, %v7890
      %v7911 = vpack.c.bf16 %v7893, %v7892
      %v7912 = vpack.c.bf16 %v7895, %v7894
      %v7913 = vpack.c.bf16 %v7897, %v7896
      %v7914 = vld [vmem:[%s9] sm:$0xf]
      %v7915 = vld [vmem:[%s9 + $0x4] sm:$0xf]
      %v7916 = vld [vmem:[%s9 + $0x8] sm:$0xf]
      %v7917 = vld [vmem:[%s9 + $0xc] sm:$0xf]
      %v7918 = vld [vmem:[%s9 + $0x10] sm:$0xf]
      %v7919 = vld [vmem:[%s9 + $0x14] sm:$0xf]
      %v7920 = vld [vmem:[%s9 + $0x18] sm:$0xf]
      %v7921 = vld [vmem:[%s9 + $0x1c] sm:$0xf]
      %v7922 = vld [vmem:[%s9 + $0x20] sm:$0xf]
      %v7923 = vld [vmem:[%s9 + $0x24] sm:$0xf]
      %v7924 = vld [vmem:[%s9 + $0x28] sm:$0xf]
      %v7925 = vld [vmem:[%s9 + $0x2c] sm:$0xf]
      %v7926 = vld [vmem:[%s9 + $0x30] sm:$0xf]
      %v7927 = vld [vmem:[%s9 + $0x34] sm:$0xf]
      %v7928 = vld [vmem:[%s9 + $0x38] sm:$0xf]
      %v7929 = vld [vmem:[%s9 + $0x3c] sm:$0xf]
      %v7930 = vld [vmem:[%s10] sm:$0x1]
      %v7932 = vlaneseq
      %v7933 = vshrl.u32 %v7932, 7
      %v7934 = vsub.s32 0, %v7933
      %v7935 = vrot.slane %v7930, %v7934
      %v7953 = vunpack.c.l.b16 %v7914
      %v7954 = vunpack.c.l.b16 %v7915
      %v7955 = vunpack.c.l.b16 %v7916
      %v7956 = vunpack.c.l.b16 %v7917
      %v7957 = vunpack.c.l.b16 %v7918
      %v7958 = vunpack.c.l.b16 %v7919
      %v7959 = vunpack.c.l.b16 %v7920
      %v7960 = vunpack.c.l.b16 %v7921
      %v7961 = vunpack.c.l.b16 %v7922
      %v7962 = vunpack.c.l.b16 %v7923
      %v7963 = vunpack.c.l.b16 %v7924
      %v7964 = vunpack.c.l.b16 %v7925
      %v7965 = vunpack.c.l.b16 %v7926
      %v7966 = vunpack.c.l.b16 %v7927
      %v7967 = vunpack.c.l.b16 %v7928
      %v7968 = vunpack.c.l.b16 %v7929
      %v7969 = vpack.c.b16 %v7954, %v7953
      %v7970 = vpack.c.b16 %v7956, %v7955
      %v7971 = vpack.c.b16 %v7958, %v7957
      %v7972 = vpack.c.b16 %v7960, %v7959
      %v7973 = vpack.c.b16 %v7962, %v7961
      %v7974 = vpack.c.b16 %v7964, %v7963
      %v7975 = vpack.c.b16 %v7966, %v7965
      %v7976 = vpack.c.b16 %v7968, %v7967
      %7985 = vmatprep.subr.bf16.mxu0 0
      %7986 = vmatpush1.bf16.msra.mxu0 %v7969
      %7987 = vmatprep.subr.bf16.mxu0 0
      %7988 = vmatpush1.bf16.msra.mxu0 %v7970
      %7989 = vmatprep.subr.bf16.mxu0 0
      %7990 = vmatpush1.bf16.msra.mxu0 %v7971
      %7991 = vmatprep.subr.bf16.mxu0 0
      %7992 = vmatpush1.bf16.msra.mxu0 %v7972
      %7993 = vmatprep.subr.bf16.mxu0 0
      %7994 = vmatpush1.bf16.msra.mxu0 %v7973
      %7995 = vmatprep.subr.bf16.mxu0 0
      %7996 = vmatpush1.bf16.msra.mxu0 %v7974
      %7997 = vmatprep.subr.bf16.mxu0 0
      %7998 = vmatpush1.bf16.msra.mxu0 %v7975
      %7999 = vmatprep.subr.bf16.mxu0 0
      %8000 = vmatpush1.bf16.msra.mxu0 %v7976
      %8001 = vmatprep.subr.bf16.mxu0 0
      %8002 = vmatpush1.bf16.msra.mxu0 0
      %8003 = vmatprep.subr.bf16.mxu0 0
      %8004 = vmatpush1.bf16.msra.mxu0 0
      %8005 = vmatprep.subr.bf16.mxu0 0
      %8006 = vmatpush1.bf16.msra.mxu0 0
      %8007 = vmatprep.subr.bf16.mxu0 0
      %8008 = vmatpush1.bf16.msra.mxu0 0
      %8009 = vmatprep.subr.bf16.mxu0 0
      %8010 = vmatpush1.bf16.msra.mxu0 0
      %8011 = vmatprep.subr.bf16.mxu0 0
      %8012 = vmatpush1.bf16.msra.mxu0 0
      %8013 = vmatprep.subr.bf16.mxu0 0
      %8014 = vmatpush1.bf16.msra.mxu0 0
      %8015 = vmatprep.subr.bf16.mxu0 0
      %8016 = vmatpush1.bf16.msra.mxu0 0
      %8017 = vmatprep.mubr.bf16.mxu0 0
      %8018 = vmatmul.mubr.bf16.gmra.mrb[0].mxu0 %v7898
      %v8019 = vpop.f32.mrb[0].mxu0
      %v8020 = vadd.f32 %v7935, %v8019
      %v8021 = vpop.f32.mrb[0].mxu0
      %v8022 = vpop.f32.mrb[0].mxu0
      %v8023 = vadd.f32 %v7935, %v8022
      %v8024 = vpop.f32.mrb[0].mxu0
      %8025 = vmatprep.mubr.bf16.mxu0 0
      %8026 = vmatmul.mubr.bf16.gmra.mrb[0].mxu0 %v7899
      %v8027 = vpop.f32.mrb[0].mxu0
      %v8028 = vadd.f32 %v7935, %v8027
      %v8029 = vpop.f32.mrb[0].mxu0
      %v8030 = vpop.f32.mrb[0].mxu0
      %v8031 = vadd.f32 %v7935, %v8030
      %v8032 = vpop.f32.mrb[0].mxu0
      %8033 = vmatprep.mubr.bf16.mxu0 0
      %8034 = vmatmul.mubr.bf16.gmra.mrb[0].mxu0 %v7900
      %v8035 = vpop.f32.mrb[0].mxu0
      %v8036 = vadd.f32 %v7935, %v8035
      %v8037 = vpop.f32.mrb[0].mxu0
      %v8038 = vpop.f32.mrb[0].mxu0
      %v8039 = vadd.f32 %v7935, %v8038
      %v8040 = vpop.f32.mrb[0].mxu0
      %8041 = vmatprep.mubr.bf16.mxu0 0
      %8042 = vmatmul.mubr.bf16.gmra.mrb[0].mxu0 %v7901
      %v8043 = vpop.f32.mrb[0].mxu0
      %v8044 = vadd.f32 %v7935, %v8043
      %v8045 = vpop.f32.mrb[0].mxu0
      %v8046 = vpop.f32.mrb[0].mxu0
      %v8047 = vadd.f32 %v7935, %v8046
      %v8048 = vpop.f32.mrb[0].mxu0
      %8049 = vmatprep.mubr.bf16.mxu0 0
      %8050 = vmatmul.mubr.bf16.gmra.mrb[0].mxu0 %v7902
      %v8051 = vpop.f32.mrb[0].mxu0
      %v8052 = vadd.f32 %v7935, %v8051
      %v8053 = vpop.f32.mrb[0].mxu0
      %v8054 = vpop.f32.mrb[0].mxu0
      %v8055 = vadd.f32 %v7935, %v8054
      %v8056 = vpop.f32.mrb[0].mxu0
      %8057 = vmatprep.mubr.bf16.mxu0 0
      %8058 = vmatmul.mubr.bf16.gmra.mrb[0].mxu0 %v7903
      %v8059 = vpop.f32.mrb[0].mxu0
      %v8060 = vadd.f32 %v7935, %v8059
      %v8061 = vpop.f32.mrb[0].mxu0
      %v8062 = vpop.f32.mrb[0].mxu0
      %v8063 = vadd.f32 %v7935, %v8062
      %v8064 = vpop.f32.mrb[0].mxu0
      %8065 = vmatprep.mubr.bf16.mxu0 0
      %8066 = vmatmul.mubr.bf16.gmra.mrb[0].mxu0 %v7904
      %v8067 = vpop.f32.mrb[0].mxu0
      %v8068 = vadd.f32 %v7935, %v8067
      %v8069 = vpop.f32.mrb[0].mxu0
      %v8070 = vpop.f32.mrb[0].mxu0
      %v8071 = vadd.f32 %v7935, %v8070
      %v8072 = vpop.f32.mrb[0].mxu0
      %8073 = vmatprep.mubr.bf16.mxu0 0
      %8074 = vmatmul.mubr.bf16.gmra.mrb[0].mxu0 %v7905
      %v8075 = vpop.f32.mrb[0].mxu0
      %v8076 = vadd.f32 %v7935, %v8075
      %v8077 = vpop.f32.mrb[0].mxu0
      %v8078 = vpop.f32.mrb[0].mxu0
      %v8079 = vadd.f32 %v7935, %v8078
      %v8080 = vpop.f32.mrb[0].mxu0
      %8081 = vmatprep.mubr.bf16.mxu0 0
      %8082 = vmatmul.mubr.bf16.gmra.mrb[0].mxu0 %v7906
      %v8083 = vpop.f32.mrb[0].mxu0
      %v8084 = vadd.f32 %v7935, %v8083
      %v8085 = vpop.f32.mrb[0].mxu0
      %v8086 = vpop.f32.mrb[0].mxu0
      %v8087 = vadd.f32 %v7935, %v8086
      %v8088 = vpop.f32.mrb[0].mxu0
      %8089 = vmatprep.mubr.bf16.mxu0 0
      %8090 = vmatmul.mubr.bf16.gmra.mrb[0].mxu0 %v7907
      %v8091 = vpop.f32.mrb[0].mxu0
      %v8092 = vadd.f32 %v7935, %v8091
      %v8093 = vpop.f32.mrb[0].mxu0
      %v8094 = vpop.f32.mrb[0].mxu0
      %v8095 = vadd.f32 %v7935, %v8094
      %v8096 = vpop.f32.mrb[0].mxu0
      %8097 = vmatprep.mubr.bf16.mxu0 0
      %8098 = vmatmul.mubr.bf16.gmra.mrb[0].mxu0 %v7908
      %v8099 = vpop.f32.mrb[0].mxu0
      %v8100 = vadd.f32 %v7935, %v8099
      %v8101 = vpop.f32.mrb[0].mxu0
      %v8102 = vpop.f32.mrb[0].mxu0
      %v8103 = vadd.f32 %v7935, %v8102
      %v8104 = vpop.f32.mrb[0].mxu0
      %8105 = vmatprep.mubr.bf16.mxu0 0
      %8106 = vmatmul.mubr.bf16.gmra.mrb[0].mxu0 %v7909
      %v8107 = vpop.f32.mrb[0].mxu0
      %v8108 = vadd.f32 %v7935, %v8107
      %v8109 = vpop.f32.mrb[0].mxu0
      %v8110 = vpop.f32.mrb[0].mxu0
      %v8111 = vadd.f32 %v7935, %v8110
      %v8112 = vpop.f32.mrb[0].mxu0
      %8113 = vmatprep.mubr.bf16.mxu0 0
      %8114 = vmatmul.mubr.bf16.gmra.mrb[0].mxu0 %v7910
      %v8115 = vpop.f32.mrb[0].mxu0
      %v8116 = vadd.f32 %v7935, %v8115
      %v8117 = vpop.f32.mrb[0].mxu0
      %v8118 = vpop.f32.mrb[0].mxu0
      %v8119 = vadd.f32 %v7935, %v8118
      %v8120 = vpop.f32.mrb[0].mxu0
      %8121 = vmatprep.mubr.bf16.mxu0 0
      %8122 = vmatmul.mubr.bf16.gmra.mrb[0].mxu0 %v7911
      %v8123 = vpop.f32.mrb[0].mxu0
      %v8124 = vadd.f32 %v7935, %v8123
      %v8125 = vpop.f32.mrb[0].mxu0
      %v8126 = vpop.f32.mrb[0].mxu0
      %v8127 = vadd.f32 %v7935, %v8126
      %v8128 = vpop.f32.mrb[0].mxu0
      %8129 = vmatprep.mubr.bf16.mxu0 0
      %8130 = vmatmul.mubr.bf16.gmra.mrb[0].mxu0 %v7912
      %v8131 = vpop.f32.mrb[0].mxu0
      %v8132 = vadd.f32 %v7935, %v8131
      %v8133 = vpop.f32.mrb[0].mxu0
      %v8134 = vpop.f32.mrb[0].mxu0
      %v8135 = vadd.f32 %v7935, %v8134
      %v8136 = vpop.f32.mrb[0].mxu0
      %8137 = vmatprep.mubr.bf16.mxu0 0
      %8138 = vmatmul.mubr.bf16.gmra.mrb[0].mxu0 %v7913
      %v8139 = vpop.f32.mrb[0].mxu0
      %v8140 = vadd.f32 %v7935, %v8139
      %v8141 = vpop.f32.mrb[0].mxu0
      %v8142 = vpop.f32.mrb[0].mxu0
      %v8143 = vadd.f32 %v7935, %v8142
      %v8144 = vpop.f32.mrb[0].mxu0
      %8145 = vdwg.mxu0
      %v8146 = vadd.f32 %v7834, %v8020
      %v8147 = vadd.f32 %v7835, %v8023
      %v8148 = vadd.f32 %v7836, %v8028
      %v8149 = vadd.f32 %v7837, %v8031
      %v8150 = vadd.f32 %v7838, %v8036
      %v8151 = vadd.f32 %v7839, %v8039
      %v8152 = vadd.f32 %v7840, %v8044
      %v8153 = vadd.f32 %v7841, %v8047
      %v8154 = vadd.f32 %v7842, %v8052
      %v8155 = vadd.f32 %v7843, %v8055
      %v8156 = vadd.f32 %v7844, %v8060
      %v8157 = vadd.f32 %v7845, %v8063
      %v8158 = vadd.f32 %v7846, %v8068
      %v8159 = vadd.f32 %v7847, %v8071
      %v8160 = vadd.f32 %v7848, %v8076
      %v8161 = vadd.f32 %v7849, %v8079
      %v8162 = vadd.f32 %v7850, %v8084
      %v8163 = vadd.f32 %v7851, %v8087
      %v8164 = vadd.f32 %v7852, %v8092
      %v8165 = vadd.f32 %v7853, %v8095
      %v8166 = vadd.f32 %v7854, %v8100
      %v8167 = vadd.f32 %v7855, %v8103
      %v8168 = vadd.f32 %v7856, %v8108
      %v8169 = vadd.f32 %v7857, %v8111
      %v8170 = vadd.f32 %v7858, %v8116
      %v8171 = vadd.f32 %v7859, %v8119
      %v8172 = vadd.f32 %v7860, %v8124
      %v8173 = vadd.f32 %v7861, %v8127
      %v8174 = vadd.f32 %v7862, %v8132
      %v8175 = vadd.f32 %v7863, %v8135
      %v8176 = vadd.f32 %v7864, %v8140
      %v8177 = vadd.f32 %v7865, %v8143
      %8178 = vst [vmem:[%s420] sm:$0xff] %v8146
      %8179 = vst [vmem:[%s420 + $0x8] sm:$0xff] %v8147
      %8180 = vst [vmem:[%s420 + $0x10] sm:$0xff] %v8148
      %8181 = vst [vmem:[%s420 + $0x18] sm:$0xff] %v8149
      %8182 = vst [vmem:[%s420 + $0x20] sm:$0xff] %v8150
      %8183 = vst [vmem:[%s420 + $0x28] sm:$0xff] %v8151
      %8184 = vst [vmem:[%s420 + $0x30] sm:$0xff] %v8152
      %8185 = vst [vmem:[%s420 + $0x38] sm:$0xff] %v8153
      %8186 = vst [vmem:[%s420 + $0x40] sm:$0xff] %v8154
      %8187 = vst [vmem:[%s420 + $0x48] sm:$0xff] %v8155
      %8188 = vst [vmem:[%s420 + $0x50] sm:$0xff] %v8156
      %8189 = vst [vmem:[%s420 + $0x58] sm:$0xff] %v8157
      %8190 = vst [vmem:[%s420 + $0x60] sm:$0xff] %v8158
      %8191 = vst [vmem:[%s420 + $0x68] sm:$0xff] %v8159
      %8192 = vst [vmem:[%s420 + $0x70] sm:$0xff] %v8160
      %8193 = vst [vmem:[%s420 + $0x78] sm:$0xff] %v8161
      %8194 = vst [vmem:[%s420 + $0x80] sm:$0xff] %v8162
      %8195 = vst [vmem:[%s420 + $0x88] sm:$0xff] %v8163
      %8196 = vst [vmem:[%s420 + $0x90] sm:$0xff] %v8164
      %8197 = vst [vmem:[%s420 + $0x98] sm:$0xff] %v8165
      %8198 = vst [vmem:[%s420 + $0xa0] sm:$0xff] %v8166
      %8199 = vst [vmem:[%s420 + $0xa8] sm:$0xff] %v8167
      %8200 = vst [vmem:[%s420 + $0xb0] sm:$0xff] %v8168
      %8201 = vst [vmem:[%s420 + $0xb8] sm:$0xff] %v8169
      %8202 = vst [vmem:[%s420 + $0xc0] sm:$0xff] %v8170
      %8203 = vst [vmem:[%s420 + $0xc8] sm:$0xff] %v8171
      %8204 = vst [vmem:[%s420 + $0xd0] sm:$0xff] %v8172
      %8205 = vst [vmem:[%s420 + $0xd8] sm:$0xff] %v8173
      %8206 = vst [vmem:[%s420 + $0xe0] sm:$0xff] %v8174
      %8207 = vst [vmem:[%s420 + $0xe8] sm:$0xff] %v8175
      %8208 = vst [vmem:[%s420 + $0xf0] sm:$0xff] %v8176
      %8209 = vst [vmem:[%s420 + $0xf8] sm:$0xff] %v8177
      %p8210 = scmp.lt.s32.totalorder %s22, 1
      %s8211 = scalar_select %p8210, %s22, 1
      %s8212 = smul.addr %s8211, 32
      %s8213 = smul.addr %s8212, 8
      %s8214 = scalar_lea.vmem %s11, %s8213
      // Predicated region
      $region65: #{resblock_forward.1} parent=63 // pred_check
        %p8215 = pneg %p286
      $region66: #{resblock_forward.1} parent=63 // pred_check_branch
        %8217 = sbr.rel (%p8215) target = $region68
      $region67: #{resblock_forward.1} parent=63 // pred_region
        _
      $region68: #{resblock_forward.1} parent=63 // pred_fallthru
        _
    $region64: #{resblock_forward.1} parent=5 // pred_fallthru
      _
    %p8218 = scmp.le.s32.totalorder 2, %s17
    // Predicated region
    $region69: #{resblock_forward.1} parent=5 // pred_check
      %p8219 = pneg %p8218
    $region70: #{resblock_forward.1} parent=5 // pred_check_branch
      %8221 = sbr.rel (%p8219) target = $region72
    $region71: #{resblock_forward.1} parent=5 // pred_region
      %s8222 = ssub.s32 %s17, 2
      // Predicated region
      $region73: #{resblock_forward.1} parent=71 // pred_check
        %p8223 = pneg %p292
      $region74: #{resblock_forward.1} parent=71 // pred_check_branch
        %8225 = sbr.rel (%p8223) target = $region76
      $region75: #{resblock_forward.1} parent=71 // pred_region
        %p8226 = scmp.lt.s32.totalorder %s23, 1
        %s8227 = scalar_select %p8226, %s23, 1
        %s8228 = smul.addr %s8227, 32
        %s8229 = smul.addr %s8228, 8
        %s8230 = scalar_lea.vmem %s11, %s8229
      $region76: #{resblock_forward.1} parent=71 // pred_fallthru
        _
    $region72: #{resblock_forward.1} parent=5 // pred_fallthru
      _
  $region6: #{resblock_forward.1} parent=0 // loop_footer
    %s21 = sadd.s32 1, %s17
  $region7: #{resblock_forward.1} parent=0 // loop_footer_branch
    %16 = sbr.rel target = $region3
  $region8: #{resblock_forward.1} parent=0 // loop_exit
    _

</llo_original>
